<compile_context>
chip_gen: v5e
topology: v5e:2x2
jax: 0.10.0
libtpu: 0.0.40
codegen_flags: <defaults>
</compile_context>

<pallas_src>
import math
import numpy as np
import jax
import jax.numpy as jnp
from jax.experimental import pallas as pl
from jax.experimental.pallas import tpu as pltpu

# ---- problem sizes (hidden = d_model // 24 must be >= 8 so hidden // 8 >= 1) ----
N = 2                        # batch
H = W = 8                    # spatial; L = H*W tokens
L = H * W                    # 64
NL = N * L                   # 128 rows (= one f32 sublane-tile column of 16 tiles)
D_MODEL = 192
HIDDEN = D_MODEL // 24       # 8
RANK = HIDDEN // 2           # 4
WF = W // 2 + 1              # rfft width (5)
Q = H * WF                   # half-spectrum bins per image (40)
NQ = N * Q                   # 80
D_PAD = 256                  # tail output padded to full 128-lane tiles
PAD = 16                     # conv halo rows (>= 9, multiple of 8)
BN_EPS = 1e-5
F32 = jnp.float32
BF16 = jnp.bfloat16


# ----------------------------------------------------------------------------
# Host-side constants: real DFT operators (block-diagonal over batch) + conv masks
# ----------------------------------------------------------------------------
def build_dft_matrices(h, w):
    wf = w // 2 + 1
    p = np.arange(h)[:, None, None, None]
    k = np.arange(wf)[None, :, None, None]
    hh = np.arange(h)[None, None, :, None]
    ww = np.arange(w)[None, None, None, :]
    ang = 2.0 * np.pi * (p * hh / h + k * ww / w)          # [p, k, h, w]
    scale = 1.0 / np.sqrt(h * w)
    cos_a, sin_a = np.cos(ang), np.sin(ang)
    # forward rfft2 ('ortho'): spec[p,k] = scale * sum y * exp(-i ang)
    Mre = (cos_a * scale).reshape(h * wf, h * w).astype(np.float32)
    Mim = (-sin_a * scale).reshape(h * wf, h * w).astype(np.float32)
    # inverse irfft2 ('ortho'): Hermitian-extended real inverse
    c = np.full((wf,), 2.0)
    c[0] = 1.0
    if w % 2 == 0:
        c[-1] = 1.0
    Are = np.transpose(cos_a * c[None, :, None, None] * scale, (2, 3, 0, 1))
    Aim = np.transpose(-sin_a * c[None, :, None, None] * scale, (2, 3, 0, 1))
    Are = Are.reshape(h * w, h * wf).astype(np.float32)
    Aim = Aim.reshape(h * w, h * wf).astype(np.float32)
    return Mre, Mim, Are, Aim


def build_block_dft(h, w, n):
    """Stacked + block-diagonal (over batch) real-DFT operators."""
    Mre, Mim, Are, Aim = build_dft_matrices(h, w)
    l, q = h * w, h * (w // 2 + 1)
    Mfwd = np.zeros((2 * n * q, n * l), np.float32)     # [re-block ; im-block]
    Ainv_re = np.zeros((n * l, n * q), np.float32)
    Ainv_im = np.zeros((n * l, n * q), np.float32)
    for b in range(n):
        Mfwd[b * q:(b + 1) * q, b * l:(b + 1) * l] = Mre
        Mfwd[n * q + b * q:n * q + (b + 1) * q, b * l:(b + 1) * l] = Mim
        Ainv_re[b * l:(b + 1) * l, b * q:(b + 1) * q] = Are
        Ainv_im[b * l:(b + 1) * l, b * q:(b + 1) * q] = Aim
    return Mfwd, Ainv_re, Ainv_im


def build_tap_masks(h, w, n):
    """mask[t, n*H*W + hw] = 1 where 3x3 tap t=(di+1)*3+(dj+1) stays inside the image."""
    masks = np.zeros((9, n * h * w), np.float32)
    t = 0
    for di in (-1, 0, 1):
        for dj in (-1, 0, 1):
            m = np.zeros((h, w), np.float32)
            for hh in range(h):
                for ww in range(w):
                    if 0 <= hh + di < h and 0 <= ww + dj < w:
                        m[hh, ww] = 1.0
            masks[t] = np.tile(m.reshape(-1), n)
            t += 1
    return masks


# ----------------------------------------------------------------------------
# In-kernel math helpers built from guaranteed-lowerable primitives
# ----------------------------------------------------------------------------
def _atan2(y, x):
    """atan2 from mul/add/div/sqrt/where only (3x argument halving + odd poly)."""
    ax, ay = jnp.abs(x), jnp.abs(y)
    hi = jnp.maximum(ax, ay)
    lo = jnp.minimum(ax, ay)
    a = lo / jnp.maximum(hi, 1e-30)                      # in [0, 1]
    for _ in range(3):                                   # atan(a) = 2 atan(a/(1+sqrt(1+a^2)))
        a = a / (1.0 + jnp.sqrt(1.0 + a * a))
    a2 = a * a
    r = a * (1.0 + a2 * (-1.0 / 3.0 + a2 * (0.2 + a2 * (-1.0 / 7.0))))
    r = 8.0 * r
    r = jnp.where(ay > ax, (math.pi / 2.0) - r, r)
    r = jnp.where(x < 0.0, math.pi - r, r)
    r = jnp.where(y < 0.0, -r, r)
    return r


def _erf(x):
    """Abramowitz-Stegun 7.1.26 erf (max abs err ~1.5e-7); only exp/where needed."""
    ax = jnp.abs(x)
    t = 1.0 / (1.0 + 0.3275911 * ax)
    poly = t * (0.254829592 + t * (-0.284496736 + t * (1.421413741
               + t * (-1.453152027 + t * 1.061405429))))
    e = 1.0 - poly * jnp.exp(-ax * ax)
    return jnp.where(x >= 0.0, e, -e)


def _gelu(x):
    return 0.5 * x * (1.0 + _erf(x * 0.7071067811865476))


# ----------------------------------------------------------------------------
# The single fused Pallas kernel
# ----------------------------------------------------------------------------
def adaptir_kernel(
    # inputs
    x_ref, head_w_ref, head_b_ref, gamma_ref, beta_ref,
    mfwd_ref, amp_w_ref, amp_b_ref, pha_w_ref, pha_b_ref,
    ainv_re_ref, ainv_im_ref, wmask_ref, conv_bias_ref,
    compress_w_ref, compress_b_ref,
    proj_w1_ref, proj_b1_ref, proj_w2_ref, proj_b2_ref,
    ci1_w_ref, ci1_b_ref, ci2_w_ref, ci2_b_ref,
    spatial_w_ref, spatial_b_ref, tail_w_ref,
    # outputs
    out_ref, gx_ref, lx_ref, pooled_ref,
    # scratch
    pad_ref,
):
    # ---- head 1x1 conv (MXU, bf16 operands / f32 acc) + BatchNorm2d (batch stats) ----
    x = x_ref[...].astype(BF16)                                       # (128, 192)
    y = jnp.dot(x, head_w_ref[...].astype(BF16),
                preferred_element_type=F32) + head_b_ref[...]         # (128, 8)
    mean = jnp.mean(y, axis=0, keepdims=True)
    dev = y - mean
    var = jnp.mean(dev * dev, axis=0, keepdims=True)                  # two-pass, biased
    feat = dev * jax.lax.rsqrt(var + BN_EPS) * gamma_ref[...] + beta_ref[...]

    # ---- rfft2 (ortho): ONE stacked block-diagonal real-DFT matmul ----
    spec = jnp.dot(mfwd_ref[...], feat.astype(BF16),
                   preferred_element_type=F32)                        # (160, 8)
    sre = spec[:NQ]                                                   # (80, 8)
    sim = spec[NQ:]                                                   # (80, 8)

    # ---- spectral remix: per-channel affine on magnitude / phase ----
    # TODO(synk): jnp.cos/jnp.sin are the only library transcendentals relied on here
    # (atan2 / erf are hand-rolled above to avoid depending on Mosaic coverage).
    mag = jnp.sqrt(sre * sre + sim * sim)
    pha = _atan2(sim, sre)
    Mag = mag * amp_w_ref[...] + amp_b_ref[...]
    Pha = pha * pha_w_ref[...] + pha_b_ref[...]
    re2 = Mag * jnp.cos(Pha)
    im2 = Mag * jnp.sin(Pha)

    # ---- irfft2 (ortho) as block-diagonal matmuls, then abs ----
    gxs = (jnp.dot(ainv_re_ref[...], re2.astype(BF16), preferred_element_type=F32)
           + jnp.dot(ainv_im_ref[...], im2.astype(BF16), preferred_element_type=F32))
    gx = jnp.abs(gxs)                                                 # (128, 8)
    gx_ref[...] = gx

    # ---- depthwise 3x3 conv: zero-padded halo + 9 shifted loads, mask*weight on VPU ----
    pad_ref[...] = jnp.zeros((NL + 2 * PAD, HIDDEN), F32)
    pad_ref[PAD:PAD + NL, :] = feat
    acc = wmask_ref[4] * feat                                         # center tap (shift 0)
    t = 0
    for di in (-1, 0, 1):
        for dj in (-1, 0, 1):
            if di == 0 and dj == 0:
                t += 1
                continue
            d = di * W + dj                                           # flattened offset
            shifted = pad_ref[PAD + d:PAD + d + NL, :]                # (128, 8)
            acc = acc + wmask_ref[t] * shifted
            t += 1
    lx = acc + conv_bias_ref[...]                                     # (128, 8)
    lx_ref[...] = lx

    # ---- compress -> softmax over tokens -> attention-pooled channel vector ----
    feat3 = feat.reshape(N, L, HIDDEN)
    logits = jnp.sum(feat3 * compress_w_ref[...], axis=-1) + compress_b_ref[...]  # (2, 64)
    m = jnp.max(logits, axis=-1, keepdims=True)
    e = jnp.exp(logits - m)
    score = e / jnp.sum(e, axis=-1, keepdims=True)
    pooled = jnp.sum(feat3 * score[:, :, None], axis=1)               # (2, 8)
    pooled_ref[...] = pooled

    # ---- proj MLP (hidden -> hidden/2 -> hidden), exact GELU, all VPU ----
    h2 = jnp.sum(pooled[:, None, :] * proj_w1_ref[...][None, :, :], axis=-1) \
        + proj_b1_ref[...]                                            # (2, 4)
    h2 = _gelu(h2)
    channel_score = jnp.sum(h2[:, None, :] * proj_w2_ref[...][None, :, :], axis=-1) \
        + proj_b2_ref[...]                                            # (2, 8)

    # ---- channel interaction MLP on mean(|irfft|) (hidden -> hidden/8 -> hidden) ----
    g3 = gx.reshape(N, L, HIDDEN)
    gmean = jnp.sum(g3, axis=1) * (1.0 / L)                           # (2, 8)
    h1 = jnp.sum(gmean * ci1_w_ref[...], axis=-1, keepdims=True) + ci1_b_ref[...]  # (2, 1)
    h1 = _gelu(h1)
    channel_gate = jax.nn.sigmoid(h1 * ci2_w_ref[...] + ci2_b_ref[...])            # (2, 8)

    # ---- spatial gate + fuse + tail 1x1 conv (output padded to full lane tiles) ----
    lx3 = lx.reshape(N, L, HIDDEN)
    sg = jax.nn.sigmoid(jnp.sum(lx3 * spatial_w_ref[...], axis=-1)
                        + spatial_b_ref[...])                         # (2, 64)
    spatial_x = channel_gate[:, None, :] * lx3 + sg[:, :, None] * g3
    z = (channel_score[:, None, :] * spatial_x).reshape(NL, HIDDEN)   # (128, 8)
    out_ref[...] = jnp.dot(z.astype(BF16), tail_w_ref[...].astype(BF16),
                           preferred_element_type=F32)                # (128, 256)


# ----------------------------------------------------------------------------
# pallas_call plumbing
# ----------------------------------------------------------------------------
def _fs(shape):
    nd = len(shape)
    return pl.BlockSpec(tuple(shape), lambda i, _nd=nd: (0,) * _nd)


def adaptir_forward(x, p):
    """x: (L, N, d_model) -> (L, N, d_model), matching AdaptIR.forward."""
    x2 = jnp.transpose(x, (1, 0, 2)).reshape(NL, D_MODEL)             # (N*L, C)

    # parameter-only precompute (review item: hoist A@B and mask*weight to wrapper)
    w_taps = p['conv_A'] @ p['conv_B']                                # (hidden, 9)
    wmask = p['tap_mask'][:, :, None] * jnp.transpose(w_taps)[:, None, :]  # (9, N*L, hidden)

    ins = [
        x2, p['head_w'], p['head_b'], p['bn_gamma'], p['bn_beta'],
        p['Mfwd'], p['amp_w'], p['amp_b'], p['pha_w'], p['pha_b'],
        p['Ainv_re'], p['Ainv_im'], wmask, p['conv_bias'],
        p['compress_w'], p['compress_b'],
        p['proj_w1'], p['proj_b1'], p['proj_w2'], p['proj_b2'],
        p['ci1_w'], p['ci1_b'], p['ci2_w'].reshape(1, HIDDEN), p['ci2_b'],
        p['spatial_w'], p['spatial_b'], p['tail_w_pad'],
    ]

    out_pad, gx, lx, pooled = pl.pallas_call(
        adaptir_kernel,
        out_shape=(jax.ShapeDtypeStruct((NL, D_PAD), F32),
                   jax.ShapeDtypeStruct((NL, HIDDEN), F32),
                   jax.ShapeDtypeStruct((NL, HIDDEN), F32),
                   jax.ShapeDtypeStruct((N, HIDDEN), F32)),
        grid=(1,),
        in_specs=[_fs(a.shape) for a in ins],
        out_specs=(_fs((NL, D_PAD)), _fs((NL, HIDDEN)),
                   _fs((NL, HIDDEN)), _fs((N, HIDDEN))),
        scratch_shapes=[pltpu.VMEM((NL + 2 * PAD, HIDDEN), F32)],
        compiler_params=pltpu.CompilerParams(
            dimension_semantics=("arbitrary",)),
    )(*ins)

    out = jnp.transpose(out_pad[:, :D_MODEL].reshape(N, L, D_MODEL), (1, 0, 2))
    return out, (gx, lx, pooled)


# ----------------------------------------------------------------------------
# Deterministic parameter init (shapes per AdaptIR.__init__)
# ----------------------------------------------------------------------------
def init_params(key):
    ks = jax.random.split(key, 16)

    def u(k, shape, scale):
        return jax.random.uniform(k, shape, F32, -scale, scale)

    p = {}
    p['head_w'] = u(ks[0], (D_MODEL, HIDDEN), 1.0 / math.sqrt(D_MODEL))
    p['head_b'] = u(ks[1], (1, HIDDEN), 1.0 / math.sqrt(D_MODEL))
    p['bn_gamma'] = jnp.ones((1, HIDDEN), F32)
    p['bn_beta'] = jnp.zeros((1, HIDDEN), F32)
    p['conv_A'] = u(ks[2], (HIDDEN, RANK), math.sqrt(3.0 / RANK))     # kaiming-uniform-ish
    p['conv_B'] = u(ks[3], (RANK, 9), math.sqrt(3.0 / 9.0))
    p['conv_bias'] = jnp.zeros((1, HIDDEN), F32)
    p['amp_w'] = jnp.ones((1, HIDDEN), F32)                           # nn.init.ones_
    p['amp_b'] = jnp.zeros((1, HIDDEN), F32)
    p['pha_w'] = jnp.ones((1, HIDDEN), F32)
    p['pha_b'] = jnp.zeros((1, HIDDEN), F32)
    p['compress_w'] = u(ks[4], (1, HIDDEN), 1.0 / math.sqrt(HIDDEN))
    p['compress_b'] = u(ks[5], (1, 1), 1.0 / math.sqrt(HIDDEN))
    p['proj_w1'] = u(ks[6], (HIDDEN // 2, HIDDEN), 1.0 / math.sqrt(HIDDEN))
    p['proj_b1'] = u(ks[7], (1, HIDDEN // 2), 1.0 / math.sqrt(HIDDEN))
    p['proj_w2'] = u(ks[8], (HIDDEN, HIDDEN // 2), 1.0 / math.sqrt(HIDDEN // 2))
    p['proj_b2'] = u(ks[9], (1, HIDDEN), 1.0 / math.sqrt(HIDDEN // 2))
    p['ci1_w'] = u(ks[10], (HIDDEN // 8, HIDDEN), 1.0 / math.sqrt(HIDDEN))
    p['ci1_b'] = u(ks[11], (1, HIDDEN // 8), 1.0 / math.sqrt(HIDDEN))
    # NOTE: the PyTorch module zero-initializes ci2 / spatial_interaction / tail; we use
    # small non-zero test values so the gating + tail paths are actually exercised.
    p['ci2_w'] = u(ks[12], (HIDDEN, HIDDEN // 8), 0.5)
    p['ci2_b'] = u(ks[13], (1, HIDDEN), 0.5)
    p['spatial_w'] = u(ks[14], (1, HIDDEN), 0.5)
    p['spatial_b'] = jnp.full((1, 1), 0.1, F32)
    p['tail_w'] = u(ks[15], (HIDDEN, D_MODEL), 1.0 / math.sqrt(HIDDEN))
    p['tail_w_pad'] = jnp.pad(p['tail_w'], ((0, 0), (0, D_PAD - D_MODEL)))

    Mfwd, Ainv_re, Ainv_im = build_block_dft(H, W, N)
    p['Mfwd'] = jnp.asarray(Mfwd, dtype=BF16)
    p['Ainv_re'] = jnp.asarray(Ainv_re, dtype=BF16)
    p['Ainv_im'] = jnp.asarray(Ainv_im, dtype=BF16)
    p['tap_mask'] = jnp.asarray(build_tap_masks(H, W, N))
    return p


# ----------------------------------------------------------------------------
# Pure-JAX reference (mirrors the PyTorch forward, NCHW) for validation
# ----------------------------------------------------------------------------
def reference_forward(x, p):
    Lx, Nx, Cx = x.shape
    xi = jnp.transpose(x.reshape(H, W, Nx, Cx), (2, 3, 0, 1))             # (N, C, H, W)
    y = jnp.einsum('nchw,co->nohw', xi, p['head_w']) + p['head_b'].reshape(1, HIDDEN, 1, 1)
    mean = jnp.mean(y, axis=(0, 2, 3), keepdims=True)
    var = jnp.mean((y - mean) ** 2, axis=(0, 2, 3), keepdims=True)
    y = (y - mean) / jnp.sqrt(var + BN_EPS) * p['bn_gamma'].reshape(1, HIDDEN, 1, 1) \
        + p['bn_beta'].reshape(1, HIDDEN, 1, 1)
    gx = jnp.fft.rfft2(y, axes=(2, 3), norm='ortho')
    mag, pha = jnp.abs(gx), jnp.angle(gx)
    Mag = mag * p['amp_w'].reshape(1, HIDDEN, 1, 1) + p['amp_b'].reshape(1, HIDDEN, 1, 1)
    Pha = pha * p['pha_w'].reshape(1, HIDDEN, 1, 1) + p['pha_b'].reshape(1, HIDDEN, 1, 1)
    gx = Mag * jnp.cos(Pha) + 1j * Mag * jnp.sin(Pha)
    gx = jnp.abs(jnp.fft.irfft2(gx, s=(H, W), axes=(2, 3), norm='ortho'))
    convw = (p['conv_A'] @ p['conv_B']).reshape(HIDDEN, 1, 3, 3)
    lx = jax.lax.conv_general_dilated(
        y, convw, window_strides=(1, 1), padding=((1, 1), (1, 1)),
        feature_group_count=HIDDEN,
        dimension_numbers=('NCHW', 'OIHW', 'NCHW')) + p['conv_bias'].reshape(1, HIDDEN, 1, 1)
    score = jnp.einsum('nchw,oc->nohw', y, p['compress_w']) + p['compress_b'].reshape(1, 1, 1, 1)
    score = jnp.transpose(score.reshape(Nx, 1, H * W), (0, 2, 1))
    score = jax.nn.softmax(score, axis=1)
    pooled = (y.reshape(Nx, HIDDEN, H * W) @ score)[..., 0]
    out = jax.nn.gelu(pooled @ p['proj_w1'].T + p['proj_b1'], approximate=False) \
        @ p['proj_w2'].T + p['proj_b2']
    channel_score = out[:, :, None, None]
    cg_in = jnp.mean(gx, axis=(2, 3), keepdims=True)
    h1 = jax.nn.gelu(jnp.einsum('nchw,oc->nohw', cg_in, p['ci1_w'])
                     + p['ci1_b'].reshape(1, -1, 1, 1), approximate=False)
    channel_gate = jax.nn.sigmoid(jnp.einsum('nchw,oc->nohw', h1, p['ci2_w'])
                                  + p['ci2_b'].reshape(1, -1, 1, 1))
    spatial_gate = jax.nn.sigmoid(jnp.einsum('nchw,oc->nohw', lx, p['spatial_w'])
                                  + p['spatial_b'].reshape(1, 1, 1, 1))
    spatial_x = channel_gate * lx + spatial_gate * gx
    fin = jnp.einsum('nchw,oc->nohw', channel_score * spatial_x, p['tail_w'].T)
    fin = jnp.transpose(fin.reshape(Nx, Cx, H * W), (2, 0, 1))
    return fin, (gx, lx, pooled)


# ----------------------------------------------------------------------------
if __name__ == "__main__":
    key = jax.random.PRNGKey(0)
    pkey, xkey = jax.random.split(key)
    params = init_params(pkey)
    x = jax.random.normal(xkey, (L, N, D_MODEL), F32)

    out, (gx, lx, pooled) = jax.jit(adaptir_forward)(x, params)
    jax.block_until_ready(out)

    ref_out, (rgx, rlx, rpooled) = jax.jit(reference_forward)(x, params)
    rgx = jnp.transpose(rgx.reshape(N, HIDDEN, L), (0, 2, 1)).reshape(NL, HIDDEN)
    rlx = jnp.transpose(rlx.reshape(N, HIDDEN, L), (0, 2, 1)).reshape(NL, HIDDEN)

    np.testing.assert_allclose(np.asarray(gx), np.asarray(rgx), rtol=0.1, atol=0.1)
    np.testing.assert_allclose(np.asarray(lx), np.asarray(rlx), rtol=0.1, atol=0.1)
    np.testing.assert_allclose(np.asarray(pooled), np.asarray(rpooled), rtol=0.1, atol=0.1)
    np.testing.assert_allclose(np.asarray(out), np.asarray(ref_out), rtol=0.1, atol=0.1)
    assert out.shape == (L, N, D_MODEL)
    print("KERNEL_OK")
</pallas_src>

<mosaic_0001>
module attributes {stable_mosaic.version = 11 : i64} {
  func.func @adaptir_kernel(%arg0: i32, %arg1: memref<128x192xf32, #tpu.memory_space<vmem>>, %arg2: memref<192x8xf32, #tpu.memory_space<vmem>>, %arg3: memref<1x8xf32, #tpu.memory_space<vmem>>, %arg4: memref<1x8xf32, #tpu.memory_space<vmem>>, %arg5: memref<1x8xf32, #tpu.memory_space<vmem>>, %arg6: memref<160x128xbf16, #tpu.memory_space<vmem>>, %arg7: memref<1x8xf32, #tpu.memory_space<vmem>>, %arg8: memref<1x8xf32, #tpu.memory_space<vmem>>, %arg9: memref<1x8xf32, #tpu.memory_space<vmem>>, %arg10: memref<1x8xf32, #tpu.memory_space<vmem>>, %arg11: memref<128x80xbf16, #tpu.memory_space<vmem>>, %arg12: memref<128x80xbf16, #tpu.memory_space<vmem>>, %arg13: memref<9x128x8xf32, #tpu.memory_space<vmem>>, %arg14: memref<1x8xf32, #tpu.memory_space<vmem>>, %arg15: memref<1x8xf32, #tpu.memory_space<vmem>>, %arg16: memref<1x1xf32, #tpu.memory_space<vmem>>, %arg17: memref<4x8xf32, #tpu.memory_space<vmem>>, %arg18: memref<1x4xf32, #tpu.memory_space<vmem>>, %arg19: memref<8x4xf32, #tpu.memory_space<vmem>>, %arg20: memref<1x8xf32, #tpu.memory_space<vmem>>, %arg21: memref<1x8xf32, #tpu.memory_space<vmem>>, %arg22: memref<1x1xf32, #tpu.memory_space<vmem>>, %arg23: memref<1x8xf32, #tpu.memory_space<vmem>>, %arg24: memref<1x8xf32, #tpu.memory_space<vmem>>, %arg25: memref<1x8xf32, #tpu.memory_space<vmem>>, %arg26: memref<1x1xf32, #tpu.memory_space<vmem>>, %arg27: memref<8x256xf32, #tpu.memory_space<vmem>>, %arg28: memref<128x256xf32, #tpu.memory_space<vmem>>, %arg29: memref<128x8xf32, #tpu.memory_space<vmem>>, %arg30: memref<128x8xf32, #tpu.memory_space<vmem>>, %arg31: memref<2x8xf32, #tpu.memory_space<vmem>>, %arg32: memref<160x8xf32, #tpu.memory_space<vmem>>) attributes {dimension_semantics = [#tpu.dimension_semantics<arbitrary>], iteration_bounds = array<i64: 1>, scalar_prefetch = 0 : i64, scratch_operands = 1 : i64, tpu.core_type = #tpu.core_type<tc>, window_params = [{pipeline_mode = #tpu.pipeline_mode<synchronous>, transform_indices = @transform_0, window_bounds = array<i64: 128, 192>}, {pipeline_mode = #tpu.pipeline_mode<synchronous>, transform_indices = @transform_1, window_bounds = array<i64: 192, 8>}, {pipeline_mode = #tpu.pipeline_mode<synchronous>, transform_indices = @transform_2, window_bounds = array<i64: 1, 8>}, {pipeline_mode = #tpu.pipeline_mode<synchronous>, transform_indices = @transform_3, window_bounds = array<i64: 1, 8>}, {pipeline_mode = #tpu.pipeline_mode<synchronous>, transform_indices = @transform_4, window_bounds = array<i64: 1, 8>}, {pipeline_mode = #tpu.pipeline_mode<synchronous>, transform_indices = @transform_5, window_bounds = array<i64: 160, 128>}, {pipeline_mode = #tpu.pipeline_mode<synchronous>, transform_indices = @transform_6, window_bounds = array<i64: 1, 8>}, {pipeline_mode = #tpu.pipeline_mode<synchronous>, transform_indices = @transform_7, window_bounds = array<i64: 1, 8>}, {pipeline_mode = #tpu.pipeline_mode<synchronous>, transform_indices = @transform_8, window_bounds = array<i64: 1, 8>}, {pipeline_mode = #tpu.pipeline_mode<synchronous>, transform_indices = @transform_9, window_bounds = array<i64: 1, 8>}, {pipeline_mode = #tpu.pipeline_mode<synchronous>, transform_indices = @transform_10, window_bounds = array<i64: 128, 80>}, {pipeline_mode = #tpu.pipeline_mode<synchronous>, transform_indices = @transform_11, window_bounds = array<i64: 128, 80>}, {pipeline_mode = #tpu.pipeline_mode<synchronous>, transform_indices = @transform_12, window_bounds = array<i64: 9, 128, 8>}, {pipeline_mode = #tpu.pipeline_mode<synchronous>, transform_indices = @transform_13, window_bounds = array<i64: 1, 8>}, {pipeline_mode = #tpu.pipeline_mode<synchronous>, transform_indices = @transform_14, window_bounds = array<i64: 1, 8>}, {pipeline_mode = #tpu.pipeline_mode<synchronous>, transform_indices = @transform_15, window_bounds = array<i64: 1, 1>}, {pipeline_mode = #tpu.pipeline_mode<synchronous>, transform_indices = @transform_16, window_bounds = array<i64: 4, 8>}, {pipeline_mode = #tpu.pipeline_mode<synchronous>, transform_indices = @transform_17, window_bounds = array<i64: 1, 4>}, {pipeline_mode = #tpu.pipeline_mode<synchronous>, transform_indices = @transform_18, window_bounds = array<i64: 8, 4>}, {pipeline_mode = #tpu.pipeline_mode<synchronous>, transform_indices = @transform_19, window_bounds = array<i64: 1, 8>}, {pipeline_mode = #tpu.pipeline_mode<synchronous>, transform_indices = @transform_20, window_bounds = array<i64: 1, 8>}, {pipeline_mode = #tpu.pipeline_mode<synchronous>, transform_indices = @transform_21, window_bounds = array<i64: 1, 1>}, {pipeline_mode = #tpu.pipeline_mode<synchronous>, transform_indices = @transform_22, window_bounds = array<i64: 1, 8>}, {pipeline_mode = #tpu.pipeline_mode<synchronous>, transform_indices = @transform_23, window_bounds = array<i64: 1, 8>}, {pipeline_mode = #tpu.pipeline_mode<synchronous>, transform_indices = @transform_24, window_bounds = array<i64: 1, 8>}, {pipeline_mode = #tpu.pipeline_mode<synchronous>, transform_indices = @transform_25, window_bounds = array<i64: 1, 1>}, {pipeline_mode = #tpu.pipeline_mode<synchronous>, transform_indices = @transform_26, window_bounds = array<i64: 8, 256>}, {pipeline_mode = #tpu.pipeline_mode<synchronous>, transform_indices = @transform_27, window_bounds = array<i64: 128, 256>}, {pipeline_mode = #tpu.pipeline_mode<synchronous>, transform_indices = @transform_28, window_bounds = array<i64: 128, 8>}, {pipeline_mode = #tpu.pipeline_mode<synchronous>, transform_indices = @transform_29, window_bounds = array<i64: 128, 8>}, {pipeline_mode = #tpu.pipeline_mode<synchronous>, transform_indices = @transform_30, window_bounds = array<i64: 2, 8>}]} {
    %c0 = arith.constant 0 : index
    %c0_0 = arith.constant 0 : index
    %0 = vector.load %arg1[%c0, %c0_0] : memref<128x192xf32, #tpu.memory_space<vmem>>, vector<128x192xf32>
    %1 = arith.truncf %0 : vector<128x192xf32> to vector<128x192xbf16>
    %c0_1 = arith.constant 0 : index
    %c0_2 = arith.constant 0 : index
    %2 = vector.load %arg2[%c0_1, %c0_2] : memref<192x8xf32, #tpu.memory_space<vmem>>, vector<192x8xf32>
    %3 = arith.truncf %2 : vector<192x8xf32> to vector<192x8xbf16>
    %cst = arith.constant dense<0.000000e+00> : vector<128x8xf32>
    %4 = tpu.matmul %1, %3, %cst {dimension_numbers = #tpu.dot_dimension_numbers<[1], [0], [0], [1], [0, 0, 1, 1], [], []>} : vector<128x192xbf16>, vector<192x8xbf16>, vector<128x8xf32> -> vector<128x8xf32>
    %c0_3 = arith.constant 0 : index
    %c0_4 = arith.constant 0 : index
    %5 = vector.load %arg3[%c0_3, %c0_4] : memref<1x8xf32, #tpu.memory_space<vmem>>, vector<1x8xf32>
    %6 = vector.broadcast %5 : vector<1x8xf32> to vector<128x8xf32>
    %7 = arith.addf %4, %6 : vector<128x8xf32>
    %cst_5 = arith.constant dense<0.000000e+00> : vector<8xf32>
    %8 = vector.multi_reduction <add>, %7, %cst_5 [0] : vector<128x8xf32> to vector<8xf32>
    %9 = vector.shape_cast %8 : vector<8xf32> to vector<1x8xf32>
    %cst_6 = arith.constant 1.280000e+02 : f32
    %10 = vector.broadcast %cst_6 : f32 to vector<1x8xf32>
    %11 = arith.divf %9, %10 : vector<1x8xf32>
    %12 = vector.broadcast %11 : vector<1x8xf32> to vector<128x8xf32>
    %13 = arith.subf %7, %12 : vector<128x8xf32>
    %14 = arith.mulf %13, %13 : vector<128x8xf32>
    %cst_7 = arith.constant dense<0.000000e+00> : vector<8xf32>
    %15 = vector.multi_reduction <add>, %14, %cst_7 [0] : vector<128x8xf32> to vector<8xf32>
    %16 = vector.shape_cast %15 : vector<8xf32> to vector<1x8xf32>
    %cst_8 = arith.constant 1.280000e+02 : f32
    %17 = vector.broadcast %cst_8 : f32 to vector<1x8xf32>
    %18 = arith.divf %16, %17 : vector<1x8xf32>
    %cst_9 = arith.constant 9.99999974E-6 : f32
    %19 = vector.broadcast %cst_9 : f32 to vector<1x8xf32>
    %20 = arith.addf %18, %19 : vector<1x8xf32>
    %21 = math.rsqrt %20 : vector<1x8xf32>
    %22 = vector.broadcast %21 : vector<1x8xf32> to vector<128x8xf32>
    %23 = arith.mulf %13, %22 : vector<128x8xf32>
    %c0_10 = arith.constant 0 : index
    %c0_11 = arith.constant 0 : index
    %24 = vector.load %arg4[%c0_10, %c0_11] : memref<1x8xf32, #tpu.memory_space<vmem>>, vector<1x8xf32>
    %25 = vector.broadcast %24 : vector<1x8xf32> to vector<128x8xf32>
    %26 = arith.mulf %23, %25 : vector<128x8xf32>
    %c0_12 = arith.constant 0 : index
    %c0_13 = arith.constant 0 : index
    %27 = vector.load %arg5[%c0_12, %c0_13] : memref<1x8xf32, #tpu.memory_space<vmem>>, vector<1x8xf32>
    %28 = vector.broadcast %27 : vector<1x8xf32> to vector<128x8xf32>
    %29 = arith.addf %26, %28 : vector<128x8xf32>
    %c0_14 = arith.constant 0 : index
    %c0_15 = arith.constant 0 : index
    %30 = vector.load %arg6[%c0_14, %c0_15] : memref<160x128xbf16, #tpu.memory_space<vmem>>, vector<160x128xbf16>
    %31 = arith.truncf %29 : vector<128x8xf32> to vector<128x8xbf16>
    %cst_16 = arith.constant dense<0.000000e+00> : vector<160x8xf32>
    %32 = tpu.matmul %30, %31, %cst_16 {dimension_numbers = #tpu.dot_dimension_numbers<[1], [0], [0], [1], [0, 0, 1, 1], [], []>} : vector<160x128xbf16>, vector<128x8xbf16>, vector<160x8xf32> -> vector<160x8xf32>
    %33 = vector.extract_strided_slice %32 {offsets = [0, 0], sizes = [80, 8], strides = [1, 1]} : vector<160x8xf32> to vector<80x8xf32>
    %34 = vector.extract_strided_slice %32 {offsets = [80, 0], sizes = [80, 8], strides = [1, 1]} : vector<160x8xf32> to vector<80x8xf32>
    %35 = arith.mulf %33, %33 : vector<80x8xf32>
    %36 = arith.mulf %34, %34 : vector<80x8xf32>
    %37 = arith.addf %35, %36 : vector<80x8xf32>
    %38 = math.sqrt %37 : vector<80x8xf32>
    %39 = math.absf %33 : vector<80x8xf32>
    %40 = math.absf %34 : vector<80x8xf32>
    %41 = arith.maximumf %39, %40 : vector<80x8xf32>
    %42 = arith.minimumf %39, %40 : vector<80x8xf32>
    %cst_17 = arith.constant 1.000000e-30 : f32
    %43 = vector.broadcast %cst_17 : f32 to vector<80x8xf32>
    %44 = arith.maximumf %41, %43 : vector<80x8xf32>
    %45 = arith.divf %42, %44 : vector<80x8xf32>
    %46 = arith.mulf %45, %45 : vector<80x8xf32>
    %cst_18 = arith.constant 1.000000e+00 : f32
    %47 = vector.broadcast %cst_18 : f32 to vector<80x8xf32>
    %48 = arith.addf %47, %46 : vector<80x8xf32>
    %49 = math.sqrt %48 : vector<80x8xf32>
    %cst_19 = arith.constant 1.000000e+00 : f32
    %50 = vector.broadcast %cst_19 : f32 to vector<80x8xf32>
    %51 = arith.addf %50, %49 : vector<80x8xf32>
    %52 = arith.divf %45, %51 : vector<80x8xf32>
    %53 = arith.mulf %52, %52 : vector<80x8xf32>
    %cst_20 = arith.constant 1.000000e+00 : f32
    %54 = vector.broadcast %cst_20 : f32 to vector<80x8xf32>
    %55 = arith.addf %54, %53 : vector<80x8xf32>
    %56 = math.sqrt %55 : vector<80x8xf32>
    %cst_21 = arith.constant 1.000000e+00 : f32
    %57 = vector.broadcast %cst_21 : f32 to vector<80x8xf32>
    %58 = arith.addf %57, %56 : vector<80x8xf32>
    %59 = arith.divf %52, %58 : vector<80x8xf32>
    %60 = arith.mulf %59, %59 : vector<80x8xf32>
    %cst_22 = arith.constant 1.000000e+00 : f32
    %61 = vector.broadcast %cst_22 : f32 to vector<80x8xf32>
    %62 = arith.addf %61, %60 : vector<80x8xf32>
    %63 = math.sqrt %62 : vector<80x8xf32>
    %cst_23 = arith.constant 1.000000e+00 : f32
    %64 = vector.broadcast %cst_23 : f32 to vector<80x8xf32>
    %65 = arith.addf %64, %63 : vector<80x8xf32>
    %66 = arith.divf %59, %65 : vector<80x8xf32>
    %67 = arith.mulf %66, %66 : vector<80x8xf32>
    %cst_24 = arith.constant -0.142857149 : f32
    %68 = vector.broadcast %cst_24 : f32 to vector<80x8xf32>
    %69 = arith.mulf %67, %68 : vector<80x8xf32>
    %cst_25 = arith.constant 2.000000e-01 : f32
    %70 = vector.broadcast %cst_25 : f32 to vector<80x8xf32>
    %71 = arith.addf %70, %69 : vector<80x8xf32>
    %72 = arith.mulf %67, %71 : vector<80x8xf32>
    %cst_26 = arith.constant -0.333333343 : f32
    %73 = vector.broadcast %cst_26 : f32 to vector<80x8xf32>
    %74 = arith.addf %73, %72 : vector<80x8xf32>
    %75 = arith.mulf %67, %74 : vector<80x8xf32>
    %cst_27 = arith.constant 1.000000e+00 : f32
    %76 = vector.broadcast %cst_27 : f32 to vector<80x8xf32>
    %77 = arith.addf %76, %75 : vector<80x8xf32>
    %78 = arith.mulf %66, %77 : vector<80x8xf32>
    %cst_28 = arith.constant 8.000000e+00 : f32
    %79 = vector.broadcast %cst_28 : f32 to vector<80x8xf32>
    %80 = arith.mulf %79, %78 : vector<80x8xf32>
    %81 = arith.cmpf ogt, %40, %39 : vector<80x8xf32>
    %cst_29 = arith.constant 1.57079637 : f32
    %82 = vector.broadcast %cst_29 : f32 to vector<80x8xf32>
    %83 = arith.subf %82, %80 : vector<80x8xf32>
    %84 = arith.select %81, %83, %80 : vector<80x8xi1>, vector<80x8xf32>
    %cst_30 = arith.constant 0.000000e+00 : f32
    %85 = vector.broadcast %cst_30 : f32 to vector<80x8xf32>
    %86 = arith.cmpf olt, %33, %85 : vector<80x8xf32>
    %cst_31 = arith.constant 3.14159274 : f32
    %87 = vector.broadcast %cst_31 : f32 to vector<80x8xf32>
    %88 = arith.subf %87, %84 : vector<80x8xf32>
    %89 = arith.select %86, %88, %84 : vector<80x8xi1>, vector<80x8xf32>
    %cst_32 = arith.constant 0.000000e+00 : f32
    %90 = vector.broadcast %cst_32 : f32 to vector<80x8xf32>
    %91 = arith.cmpf olt, %34, %90 : vector<80x8xf32>
    %cst_33 = arith.constant 0.000000e+00 : f32
    %92 = vector.broadcast %cst_33 : f32 to vector<80x8xf32>
    %93 = arith.subf %92, %89 : vector<80x8xf32>
    %94 = arith.select %91, %93, %89 : vector<80x8xi1>, vector<80x8xf32>
    %c0_34 = arith.constant 0 : index
    %c0_35 = arith.constant 0 : index
    %95 = vector.load %arg7[%c0_34, %c0_35] : memref<1x8xf32, #tpu.memory_space<vmem>>, vector<1x8xf32>
    %96 = vector.broadcast %95 : vector<1x8xf32> to vector<80x8xf32>
    %97 = arith.mulf %38, %96 : vector<80x8xf32>
    %c0_36 = arith.constant 0 : index
    %c0_37 = arith.constant 0 : index
    %98 = vector.load %arg8[%c0_36, %c0_37] : memref<1x8xf32, #tpu.memory_space<vmem>>, vector<1x8xf32>
    %99 = vector.broadcast %98 : vector<1x8xf32> to vector<80x8xf32>
    %100 = arith.addf %97, %99 : vector<80x8xf32>
    %c0_38 = arith.constant 0 : index
    %c0_39 = arith.constant 0 : index
    %101 = vector.load %arg9[%c0_38, %c0_39] : memref<1x8xf32, #tpu.memory_space<vmem>>, vector<1x8xf32>
    %102 = vector.broadcast %101 : vector<1x8xf32> to vector<80x8xf32>
    %103 = arith.mulf %94, %102 : vector<80x8xf32>
    %c0_40 = arith.constant 0 : index
    %c0_41 = arith.constant 0 : index
    %104 = vector.load %arg10[%c0_40, %c0_41] : memref<1x8xf32, #tpu.memory_space<vmem>>, vector<1x8xf32>
    %105 = vector.broadcast %104 : vector<1x8xf32> to vector<80x8xf32>
    %106 = arith.addf %103, %105 : vector<80x8xf32>
    %107 = math.cos %106 : vector<80x8xf32>
    %108 = arith.mulf %100, %107 : vector<80x8xf32>
    %109 = math.sin %106 : vector<80x8xf32>
    %110 = arith.mulf %100, %109 : vector<80x8xf32>
    %c0_42 = arith.constant 0 : index
    %c0_43 = arith.constant 0 : index
    %111 = vector.load %arg11[%c0_42, %c0_43] : memref<128x80xbf16, #tpu.memory_space<vmem>>, vector<128x80xbf16>
    %112 = arith.truncf %108 : vector<80x8xf32> to vector<80x8xbf16>
    %cst_44 = arith.constant dense<0.000000e+00> : vector<128x8xf32>
    %113 = tpu.matmul %111, %112, %cst_44 {dimension_numbers = #tpu.dot_dimension_numbers<[1], [0], [0], [1], [0, 0, 1, 1], [], []>} : vector<128x80xbf16>, vector<80x8xbf16>, vector<128x8xf32> -> vector<128x8xf32>
    %c0_45 = arith.constant 0 : index
    %c0_46 = arith.constant 0 : index
    %114 = vector.load %arg12[%c0_45, %c0_46] : memref<128x80xbf16, #tpu.memory_space<vmem>>, vector<128x80xbf16>
    %115 = arith.truncf %110 : vector<80x8xf32> to vector<80x8xbf16>
    %cst_47 = arith.constant dense<0.000000e+00> : vector<128x8xf32>
    %116 = tpu.matmul %114, %115, %cst_47 {dimension_numbers = #tpu.dot_dimension_numbers<[1], [0], [0], [1], [0, 0, 1, 1], [], []>} : vector<128x80xbf16>, vector<80x8xbf16>, vector<128x8xf32> -> vector<128x8xf32>
    %117 = arith.addf %113, %116 : vector<128x8xf32>
    %118 = math.absf %117 : vector<128x8xf32>
    %c0_48 = arith.constant 0 : index
    %c0_49 = arith.constant 0 : index
    %119 = vector.load %arg29[%c0_48, %c0_49] : memref<128x8xf32, #tpu.memory_space<vmem>>, vector<128x8xf32>
    tpu.vector_store %arg29[%c0_48, %c0_49], %118 {strides = array<i32>} : memref<128x8xf32, #tpu.memory_space<vmem>>, vector<128x8xf32>,
    %cst_50 = arith.constant 0.000000e+00 : f32
    %120 = vector.broadcast %cst_50 : f32 to vector<160x8xf32>
    %c0_51 = arith.constant 0 : index
    %c0_52 = arith.constant 0 : index
    %121 = vector.load %arg32[%c0_51, %c0_52] : memref<160x8xf32, #tpu.memory_space<vmem>>, vector<160x8xf32>
    tpu.vector_store %arg32[%c0_51, %c0_52], %120 {strides = array<i32>} : memref<160x8xf32, #tpu.memory_space<vmem>>, vector<160x8xf32>,
    %c16 = arith.constant 16 : index
    %c0_53 = arith.constant 0 : index
    %122 = vector.load %arg32[%c16, %c0_53] : memref<160x8xf32, #tpu.memory_space<vmem>>, vector<128x8xf32>
    tpu.vector_store %arg32[%c16, %c0_53], %29 {strides = array<i32>} : memref<160x8xf32, #tpu.memory_space<vmem>>, vector<128x8xf32>,
    %c4 = arith.constant 4 : index
    %c0_54 = arith.constant 0 : index
    %c0_55 = arith.constant 0 : index
    %123 = vector.load %arg13[%c4, %c0_54, %c0_55] : memref<9x128x8xf32, #tpu.memory_space<vmem>>, vector<1x128x8xf32>
    %124 = vector.shape_cast %123 : vector<1x128x8xf32> to vector<128x8xf32>
    %125 = arith.mulf %124, %29 : vector<128x8xf32>
    %c7 = arith.constant 7 : index
    %c0_56 = arith.constant 0 : index
    %126 = vector.load %arg32[%c7, %c0_56] : memref<160x8xf32, #tpu.memory_space<vmem>>, vector<128x8xf32>
    %c0_57 = arith.constant 0 : index
    %c0_58 = arith.constant 0 : index
    %c0_59 = arith.constant 0 : index
    %127 = vector.load %arg13[%c0_57, %c0_58, %c0_59] : memref<9x128x8xf32, #tpu.memory_space<vmem>>, vector<1x128x8xf32>
    %128 = vector.shape_cast %127 : vector<1x128x8xf32> to vector<128x8xf32>
    %129 = arith.mulf %128, %126 : vector<128x8xf32>
    %130 = arith.addf %125, %129 : vector<128x8xf32>
    %c8 = arith.constant 8 : index
    %c0_60 = arith.constant 0 : index
    %131 = vector.load %arg32[%c8, %c0_60] : memref<160x8xf32, #tpu.memory_space<vmem>>, vector<128x8xf32>
    %c1 = arith.constant 1 : index
    %c0_61 = arith.constant 0 : index
    %c0_62 = arith.constant 0 : index
    %132 = vector.load %arg13[%c1, %c0_61, %c0_62] : memref<9x128x8xf32, #tpu.memory_space<vmem>>, vector<1x128x8xf32>
    %133 = vector.shape_cast %132 : vector<1x128x8xf32> to vector<128x8xf32>
    %134 = arith.mulf %133, %131 : vector<128x8xf32>
    %135 = arith.addf %130, %134 : vector<128x8xf32>
    %c9 = arith.constant 9 : index
    %c0_63 = arith.constant 0 : index
    %136 = vector.load %arg32[%c9, %c0_63] : memref<160x8xf32, #tpu.memory_space<vmem>>, vector<128x8xf32>
    %c2 = arith.constant 2 : index
    %c0_64 = arith.constant 0 : index
    %c0_65 = arith.constant 0 : index
    %137 = vector.load %arg13[%c2, %c0_64, %c0_65] : memref<9x128x8xf32, #tpu.memory_space<vmem>>, vector<1x128x8xf32>
    %138 = vector.shape_cast %137 : vector<1x128x8xf32> to vector<128x8xf32>
    %139 = arith.mulf %138, %136 : vector<128x8xf32>
    %140 = arith.addf %135, %139 : vector<128x8xf32>
    %c15 = arith.constant 15 : index
    %c0_66 = arith.constant 0 : index
    %141 = vector.load %arg32[%c15, %c0_66] : memref<160x8xf32, #tpu.memory_space<vmem>>, vector<128x8xf32>
    %c3 = arith.constant 3 : index
    %c0_67 = arith.constant 0 : index
    %c0_68 = arith.constant 0 : index
    %142 = vector.load %arg13[%c3, %c0_67, %c0_68] : memref<9x128x8xf32, #tpu.memory_space<vmem>>, vector<1x128x8xf32>
    %143 = vector.shape_cast %142 : vector<1x128x8xf32> to vector<128x8xf32>
    %144 = arith.mulf %143, %141 : vector<128x8xf32>
    %145 = arith.addf %140, %144 : vector<128x8xf32>
    %c17 = arith.constant 17 : index
    %c0_69 = arith.constant 0 : index
    %146 = vector.load %arg32[%c17, %c0_69] : memref<160x8xf32, #tpu.memory_space<vmem>>, vector<128x8xf32>
    %c5 = arith.constant 5 : index
    %c0_70 = arith.constant 0 : index
    %c0_71 = arith.constant 0 : index
    %147 = vector.load %arg13[%c5, %c0_70, %c0_71] : memref<9x128x8xf32, #tpu.memory_space<vmem>>, vector<1x128x8xf32>
    %148 = vector.shape_cast %147 : vector<1x128x8xf32> to vector<128x8xf32>
    %149 = arith.mulf %148, %146 : vector<128x8xf32>
    %150 = arith.addf %145, %149 : vector<128x8xf32>
    %c23 = arith.constant 23 : index
    %c0_72 = arith.constant 0 : index
    %151 = vector.load %arg32[%c23, %c0_72] : memref<160x8xf32, #tpu.memory_space<vmem>>, vector<128x8xf32>
    %c6 = arith.constant 6 : index
    %c0_73 = arith.constant 0 : index
    %c0_74 = arith.constant 0 : index
    %152 = vector.load %arg13[%c6, %c0_73, %c0_74] : memref<9x128x8xf32, #tpu.memory_space<vmem>>, vector<1x128x8xf32>
    %153 = vector.shape_cast %152 : vector<1x128x8xf32> to vector<128x8xf32>
    %154 = arith.mulf %153, %151 : vector<128x8xf32>
    %155 = arith.addf %150, %154 : vector<128x8xf32>
    %c24 = arith.constant 24 : index
    %c0_75 = arith.constant 0 : index
    %156 = vector.load %arg32[%c24, %c0_75] : memref<160x8xf32, #tpu.memory_space<vmem>>, vector<128x8xf32>
    %c7_76 = arith.constant 7 : index
    %c0_77 = arith.constant 0 : index
    %c0_78 = arith.constant 0 : index
    %157 = vector.load %arg13[%c7_76, %c0_77, %c0_78] : memref<9x128x8xf32, #tpu.memory_space<vmem>>, vector<1x128x8xf32>
    %158 = vector.shape_cast %157 : vector<1x128x8xf32> to vector<128x8xf32>
    %159 = arith.mulf %158, %156 : vector<128x8xf32>
    %160 = arith.addf %155, %159 : vector<128x8xf32>
    %c25 = arith.constant 25 : index
    %c0_79 = arith.constant 0 : index
    %161 = vector.load %arg32[%c25, %c0_79] : memref<160x8xf32, #tpu.memory_space<vmem>>, vector<128x8xf32>
    %c8_80 = arith.constant 8 : index
    %c0_81 = arith.constant 0 : index
    %c0_82 = arith.constant 0 : index
    %162 = vector.load %arg13[%c8_80, %c0_81, %c0_82] : memref<9x128x8xf32, #tpu.memory_space<vmem>>, vector<1x128x8xf32>
    %163 = vector.shape_cast %162 : vector<1x128x8xf32> to vector<128x8xf32>
    %164 = arith.mulf %163, %161 : vector<128x8xf32>
    %165 = arith.addf %160, %164 : vector<128x8xf32>
    %c0_83 = arith.constant 0 : index
    %c0_84 = arith.constant 0 : index
    %166 = vector.load %arg14[%c0_83, %c0_84] : memref<1x8xf32, #tpu.memory_space<vmem>>, vector<1x8xf32>
    %167 = vector.broadcast %166 : vector<1x8xf32> to vector<128x8xf32>
    %168 = arith.addf %165, %167 : vector<128x8xf32>
    %c0_85 = arith.constant 0 : index
    %c0_86 = arith.constant 0 : index
    %169 = vector.load %arg30[%c0_85, %c0_86] : memref<128x8xf32, #tpu.memory_space<vmem>>, vector<128x8xf32>
    tpu.vector_store %arg30[%c0_85, %c0_86], %168 {strides = array<i32>} : memref<128x8xf32, #tpu.memory_space<vmem>>, vector<128x8xf32>,
    %170 = vector.shape_cast %29 : vector<128x8xf32> to vector<2x64x8xf32>
    %c0_87 = arith.constant 0 : index
    %c0_88 = arith.constant 0 : index
    %171 = vector.load %arg15[%c0_87, %c0_88] : memref<1x8xf32, #tpu.memory_space<vmem>>, vector<1x8xf32>
    %172 = vector.shape_cast %171 : vector<1x8xf32> to vector<1x1x8xf32>
    %173 = vector.broadcast %172 : vector<1x1x8xf32> to vector<2x64x8xf32>
    %174 = arith.mulf %170, %173 : vector<2x64x8xf32>
    %cst_89 = arith.constant dense<0.000000e+00> : vector<2x64xf32>
    %175 = vector.multi_reduction <add>, %174, %cst_89 [2] : vector<2x64x8xf32> to vector<2x64xf32>
    %c0_90 = arith.constant 0 : index
    %c0_91 = arith.constant 0 : index
    %176 = vector.load %arg16[%c0_90, %c0_91] : memref<1x1xf32, #tpu.memory_space<vmem>>, vector<1x1xf32>
    %177 = vector.broadcast %176 : vector<1x1xf32> to vector<2x64xf32>
    %178 = arith.addf %175, %177 : vector<2x64xf32>
    %cst_92 = arith.constant dense<0xFF800000> : vector<2xf32>
    %179 = vector.multi_reduction <maximumf>, %178, %cst_92 [1] : vector<2x64xf32> to vector<2xf32>
    %180 = vector.shape_cast %179 : vector<2xf32> to vector<2x1xf32>
    %181 = vector.broadcast %180 : vector<2x1xf32> to vector<2x64xf32>
    %182 = arith.subf %178, %181 : vector<2x64xf32>
    %183 = math.exp %182 : vector<2x64xf32>
    %cst_93 = arith.constant dense<0.000000e+00> : vector<2xf32>
    %184 = vector.multi_reduction <add>, %183, %cst_93 [1] : vector<2x64xf32> to vector<2xf32>
    %185 = vector.shape_cast %184 : vector<2xf32> to vector<2x1xf32>
    %186 = vector.broadcast %185 : vector<2x1xf32> to vector<2x64xf32>
    %187 = arith.divf %183, %186 : vector<2x64xf32>
    %188 = vector.shape_cast %187 : vector<2x64xf32> to vector<2x64x1xf32>
    %189 = vector.broadcast %188 : vector<2x64x1xf32> to vector<2x64x8xf32>
    %190 = arith.mulf %170, %189 : vector<2x64x8xf32>
    %cst_94 = arith.constant dense<0.000000e+00> : vector<2x8xf32>
    %191 = vector.multi_reduction <add>, %190, %cst_94 [1] : vector<2x64x8xf32> to vector<2x8xf32>
    %c0_95 = arith.constant 0 : index
    %c0_96 = arith.constant 0 : index
    %192 = vector.load %arg31[%c0_95, %c0_96] : memref<2x8xf32, #tpu.memory_space<vmem>>, vector<2x8xf32>
    tpu.vector_store %arg31[%c0_95, %c0_96], %191 {strides = array<i32>} : memref<2x8xf32, #tpu.memory_space<vmem>>, vector<2x8xf32>,
    %193 = vector.shape_cast %191 : vector<2x8xf32> to vector<2x1x8xf32>
    %c0_97 = arith.constant 0 : index
    %c0_98 = arith.constant 0 : index
    %194 = vector.load %arg17[%c0_97, %c0_98] : memref<4x8xf32, #tpu.memory_space<vmem>>, vector<4x8xf32>
    %195 = vector.shape_cast %194 : vector<4x8xf32> to vector<1x4x8xf32>
    %196 = vector.broadcast %193 : vector<2x1x8xf32> to vector<2x4x8xf32>
    %197 = vector.broadcast %195 : vector<1x4x8xf32> to vector<2x4x8xf32>
    %198 = arith.mulf %196, %197 : vector<2x4x8xf32>
    %cst_99 = arith.constant dense<0.000000e+00> : vector<2x4xf32>
    %199 = vector.multi_reduction <add>, %198, %cst_99 [2] : vector<2x4x8xf32> to vector<2x4xf32>
    %c0_100 = arith.constant 0 : index
    %c0_101 = arith.constant 0 : index
    %200 = vector.load %arg18[%c0_100, %c0_101] : memref<1x4xf32, #tpu.memory_space<vmem>>, vector<1x4xf32>
    %201 = vector.broadcast %200 : vector<1x4xf32> to vector<2x4xf32>
    %202 = arith.addf %199, %201 : vector<2x4xf32>
    %cst_102 = arith.constant 5.000000e-01 : f32
    %203 = vector.broadcast %cst_102 : f32 to vector<2x4xf32>
    %204 = arith.mulf %203, %202 : vector<2x4xf32>
    %cst_103 = arith.constant 0.707106769 : f32
    %205 = vector.broadcast %cst_103 : f32 to vector<2x4xf32>
    %206 = arith.mulf %202, %205 : vector<2x4xf32>
    %207 = math.absf %206 : vector<2x4xf32>
    %cst_104 = arith.constant 0.327591091 : f32
    %208 = vector.broadcast %cst_104 : f32 to vector<2x4xf32>
    %209 = arith.mulf %208, %207 : vector<2x4xf32>
    %cst_105 = arith.constant 1.000000e+00 : f32
    %210 = vector.broadcast %cst_105 : f32 to vector<2x4xf32>
    %211 = arith.addf %210, %209 : vector<2x4xf32>
    %cst_106 = arith.constant 1.000000e+00 : f32
    %212 = vector.broadcast %cst_106 : f32 to vector<2x4xf32>
    %213 = arith.divf %212, %211 : vector<2x4xf32>
    %cst_107 = arith.constant 1.06140542 : f32
    %214 = vector.broadcast %cst_107 : f32 to vector<2x4xf32>
    %215 = arith.mulf %213, %214 : vector<2x4xf32>
    %cst_108 = arith.constant -1.45315206 : f32
    %216 = vector.broadcast %cst_108 : f32 to vector<2x4xf32>
    %217 = arith.addf %216, %215 : vector<2x4xf32>
    %218 = arith.mulf %213, %217 : vector<2x4xf32>
    %cst_109 = arith.constant 1.42141378 : f32
    %219 = vector.broadcast %cst_109 : f32 to vector<2x4xf32>
    %220 = arith.addf %219, %218 : vector<2x4xf32>
    %221 = arith.mulf %213, %220 : vector<2x4xf32>
    %cst_110 = arith.constant -0.284496725 : f32
    %222 = vector.broadcast %cst_110 : f32 to vector<2x4xf32>
    %223 = arith.addf %222, %221 : vector<2x4xf32>
    %224 = arith.mulf %213, %223 : vector<2x4xf32>
    %cst_111 = arith.constant 0.254829586 : f32
    %225 = vector.broadcast %cst_111 : f32 to vector<2x4xf32>
    %226 = arith.addf %225, %224 : vector<2x4xf32>
    %227 = arith.mulf %213, %226 : vector<2x4xf32>
    %cst_112 = arith.constant 0.000000e+00 : f32
    %228 = vector.broadcast %cst_112 : f32 to vector<2x4xf32>
    %229 = arith.subf %228, %207 : vector<2x4xf32>
    %230 = arith.mulf %229, %207 : vector<2x4xf32>
    %231 = math.exp %230 : vector<2x4xf32>
    %232 = arith.mulf %227, %231 : vector<2x4xf32>
    %cst_113 = arith.constant 1.000000e+00 : f32
    %233 = vector.broadcast %cst_113 : f32 to vector<2x4xf32>
    %234 = arith.subf %233, %232 : vector<2x4xf32>
    %cst_114 = arith.constant 0.000000e+00 : f32
    %235 = vector.broadcast %cst_114 : f32 to vector<2x4xf32>
    %236 = arith.cmpf oge, %206, %235 : vector<2x4xf32>
    %cst_115 = arith.constant 0.000000e+00 : f32
    %237 = vector.broadcast %cst_115 : f32 to vector<2x4xf32>
    %238 = arith.subf %237, %234 : vector<2x4xf32>
    %239 = arith.select %236, %234, %238 : vector<2x4xi1>, vector<2x4xf32>
    %cst_116 = arith.constant 1.000000e+00 : f32
    %240 = vector.broadcast %cst_116 : f32 to vector<2x4xf32>
    %241 = arith.addf %240, %239 : vector<2x4xf32>
    %242 = arith.mulf %204, %241 : vector<2x4xf32>
    %243 = vector.shape_cast %242 : vector<2x4xf32> to vector<2x1x4xf32>
    %c0_117 = arith.constant 0 : index
    %c0_118 = arith.constant 0 : index
    %244 = vector.load %arg19[%c0_117, %c0_118] : memref<8x4xf32, #tpu.memory_space<vmem>>, vector<8x4xf32>
    %245 = vector.shape_cast %244 : vector<8x4xf32> to vector<1x8x4xf32>
    %246 = vector.broadcast %243 : vector<2x1x4xf32> to vector<2x8x4xf32>
    %247 = vector.broadcast %245 : vector<1x8x4xf32> to vector<2x8x4xf32>
    %248 = arith.mulf %246, %247 : vector<2x8x4xf32>
    %cst_119 = arith.constant dense<0.000000e+00> : vector<2x8xf32>
    %249 = vector.multi_reduction <add>, %248, %cst_119 [2] : vector<2x8x4xf32> to vector<2x8xf32>
    %c0_120 = arith.constant 0 : index
    %c0_121 = arith.constant 0 : index
    %250 = vector.load %arg20[%c0_120, %c0_121] : memref<1x8xf32, #tpu.memory_space<vmem>>, vector<1x8xf32>
    %251 = vector.broadcast %250 : vector<1x8xf32> to vector<2x8xf32>
    %252 = arith.addf %249, %251 : vector<2x8xf32>
    %253 = vector.shape_cast %118 : vector<128x8xf32> to vector<2x64x8xf32>
    %cst_122 = arith.constant dense<0.000000e+00> : vector<2x8xf32>
    %254 = vector.multi_reduction <add>, %253, %cst_122 [1] : vector<2x64x8xf32> to vector<2x8xf32>
    %cst_123 = arith.constant 1.562500e-02 : f32
    %255 = vector.broadcast %cst_123 : f32 to vector<2x8xf32>
    %256 = arith.mulf %254, %255 : vector<2x8xf32>
    %c0_124 = arith.constant 0 : index
    %c0_125 = arith.constant 0 : index
    %257 = vector.load %arg21[%c0_124, %c0_125] : memref<1x8xf32, #tpu.memory_space<vmem>>, vector<1x8xf32>
    %258 = vector.broadcast %257 : vector<1x8xf32> to vector<2x8xf32>
    %259 = arith.mulf %256, %258 : vector<2x8xf32>
    %cst_126 = arith.constant dense<0.000000e+00> : vector<2xf32>
    %260 = vector.multi_reduction <add>, %259, %cst_126 [1] : vector<2x8xf32> to vector<2xf32>
    %261 = vector.shape_cast %260 : vector<2xf32> to vector<2x1xf32>
    %c0_127 = arith.constant 0 : index
    %c0_128 = arith.constant 0 : index
    %262 = vector.load %arg22[%c0_127, %c0_128] : memref<1x1xf32, #tpu.memory_space<vmem>>, vector<1x1xf32>
    %263 = vector.broadcast %262 : vector<1x1xf32> to vector<2x1xf32>
    %264 = arith.addf %261, %263 : vector<2x1xf32>
    %cst_129 = arith.constant 5.000000e-01 : f32
    %265 = vector.broadcast %cst_129 : f32 to vector<2x1xf32>
    %266 = arith.mulf %265, %264 : vector<2x1xf32>
    %cst_130 = arith.constant 0.707106769 : f32
    %267 = vector.broadcast %cst_130 : f32 to vector<2x1xf32>
    %268 = arith.mulf %264, %267 : vector<2x1xf32>
    %269 = math.absf %268 : vector<2x1xf32>
    %cst_131 = arith.constant 0.327591091 : f32
    %270 = vector.broadcast %cst_131 : f32 to vector<2x1xf32>
    %271 = arith.mulf %270, %269 : vector<2x1xf32>
    %cst_132 = arith.constant 1.000000e+00 : f32
    %272 = vector.broadcast %cst_132 : f32 to vector<2x1xf32>
    %273 = arith.addf %272, %271 : vector<2x1xf32>
    %cst_133 = arith.constant 1.000000e+00 : f32
    %274 = vector.broadcast %cst_133 : f32 to vector<2x1xf32>
    %275 = arith.divf %274, %273 : vector<2x1xf32>
    %cst_134 = arith.constant 1.06140542 : f32
    %276 = vector.broadcast %cst_134 : f32 to vector<2x1xf32>
    %277 = arith.mulf %275, %276 : vector<2x1xf32>
    %cst_135 = arith.constant -1.45315206 : f32
    %278 = vector.broadcast %cst_135 : f32 to vector<2x1xf32>
    %279 = arith.addf %278, %277 : vector<2x1xf32>
    %280 = arith.mulf %275, %279 : vector<2x1xf32>
    %cst_136 = arith.constant 1.42141378 : f32
    %281 = vector.broadcast %cst_136 : f32 to vector<2x1xf32>
    %282 = arith.addf %281, %280 : vector<2x1xf32>
    %283 = arith.mulf %275, %282 : vector<2x1xf32>
    %cst_137 = arith.constant -0.284496725 : f32
    %284 = vector.broadcast %cst_137 : f32 to vector<2x1xf32>
    %285 = arith.addf %284, %283 : vector<2x1xf32>
    %286 = arith.mulf %275, %285 : vector<2x1xf32>
    %cst_138 = arith.constant 0.254829586 : f32
    %287 = vector.broadcast %cst_138 : f32 to vector<2x1xf32>
    %288 = arith.addf %287, %286 : vector<2x1xf32>
    %289 = arith.mulf %275, %288 : vector<2x1xf32>
    %cst_139 = arith.constant 0.000000e+00 : f32
    %290 = vector.broadcast %cst_139 : f32 to vector<2x1xf32>
    %291 = arith.subf %290, %269 : vector<2x1xf32>
    %292 = arith.mulf %291, %269 : vector<2x1xf32>
    %293 = math.exp %292 : vector<2x1xf32>
    %294 = arith.mulf %289, %293 : vector<2x1xf32>
    %cst_140 = arith.constant 1.000000e+00 : f32
    %295 = vector.broadcast %cst_140 : f32 to vector<2x1xf32>
    %296 = arith.subf %295, %294 : vector<2x1xf32>
    %cst_141 = arith.constant 0.000000e+00 : f32
    %297 = vector.broadcast %cst_141 : f32 to vector<2x1xf32>
    %298 = arith.cmpf oge, %268, %297 : vector<2x1xf32>
    %cst_142 = arith.constant 0.000000e+00 : f32
    %299 = vector.broadcast %cst_142 : f32 to vector<2x1xf32>
    %300 = arith.subf %299, %296 : vector<2x1xf32>
    %301 = arith.select %298, %296, %300 : vector<2x1xi1>, vector<2x1xf32>
    %cst_143 = arith.constant 1.000000e+00 : f32
    %302 = vector.broadcast %cst_143 : f32 to vector<2x1xf32>
    %303 = arith.addf %302, %301 : vector<2x1xf32>
    %304 = arith.mulf %266, %303 : vector<2x1xf32>
    %c0_144 = arith.constant 0 : index
    %c0_145 = arith.constant 0 : index
    %305 = vector.load %arg23[%c0_144, %c0_145] : memref<1x8xf32, #tpu.memory_space<vmem>>, vector<1x8xf32>
    %306 = vector.broadcast %304 : vector<2x1xf32> to vector<2x8xf32>
    %307 = vector.broadcast %305 : vector<1x8xf32> to vector<2x8xf32>
    %308 = arith.mulf %306, %307 : vector<2x8xf32>
    %c0_146 = arith.constant 0 : index
    %c0_147 = arith.constant 0 : index
    %309 = vector.load %arg24[%c0_146, %c0_147] : memref<1x8xf32, #tpu.memory_space<vmem>>, vector<1x8xf32>
    %310 = vector.broadcast %309 : vector<1x8xf32> to vector<2x8xf32>
    %311 = arith.addf %308, %310 : vector<2x8xf32>
    %312 = arith.negf %311 : vector<2x8xf32>
    %313 = math.exp %312 : vector<2x8xf32>
    %cst_148 = arith.constant 1.000000e+00 : f32
    %314 = vector.broadcast %cst_148 : f32 to vector<2x8xf32>
    %315 = arith.addf %314, %313 : vector<2x8xf32>
    %316 = arith.divf %314, %315 : vector<2x8xf32>
    %317 = vector.shape_cast %168 : vector<128x8xf32> to vector<2x64x8xf32>
    %c0_149 = arith.constant 0 : index
    %c0_150 = arith.constant 0 : index
    %318 = vector.load %arg25[%c0_149, %c0_150] : memref<1x8xf32, #tpu.memory_space<vmem>>, vector<1x8xf32>
    %319 = vector.shape_cast %318 : vector<1x8xf32> to vector<1x1x8xf32>
    %320 = vector.broadcast %319 : vector<1x1x8xf32> to vector<2x64x8xf32>
    %321 = arith.mulf %317, %320 : vector<2x64x8xf32>
    %cst_151 = arith.constant dense<0.000000e+00> : vector<2x64xf32>
    %322 = vector.multi_reduction <add>, %321, %cst_151 [2] : vector<2x64x8xf32> to vector<2x64xf32>
    %c0_152 = arith.constant 0 : index
    %c0_153 = arith.constant 0 : index
    %323 = vector.load %arg26[%c0_152, %c0_153] : memref<1x1xf32, #tpu.memory_space<vmem>>, vector<1x1xf32>
    %324 = vector.broadcast %323 : vector<1x1xf32> to vector<2x64xf32>
    %325 = arith.addf %322, %324 : vector<2x64xf32>
    %326 = arith.negf %325 : vector<2x64xf32>
    %327 = math.exp %326 : vector<2x64xf32>
    %cst_154 = arith.constant 1.000000e+00 : f32
    %328 = vector.broadcast %cst_154 : f32 to vector<2x64xf32>
    %329 = arith.addf %328, %327 : vector<2x64xf32>
    %330 = arith.divf %328, %329 : vector<2x64xf32>
    %331 = vector.shape_cast %316 : vector<2x8xf32> to vector<2x1x8xf32>
    %332 = vector.broadcast %331 : vector<2x1x8xf32> to vector<2x64x8xf32>
    %333 = arith.mulf %332, %317 : vector<2x64x8xf32>
    %334 = vector.shape_cast %330 : vector<2x64xf32> to vector<2x64x1xf32>
    %335 = vector.broadcast %334 : vector<2x64x1xf32> to vector<2x64x8xf32>
    %336 = arith.mulf %335, %253 : vector<2x64x8xf32>
    %337 = arith.addf %333, %336 : vector<2x64x8xf32>
    %338 = vector.shape_cast %252 : vector<2x8xf32> to vector<2x1x8xf32>
    %339 = vector.broadcast %338 : vector<2x1x8xf32> to vector<2x64x8xf32>
    %340 = arith.mulf %339, %337 : vector<2x64x8xf32>
    %341 = vector.shape_cast %340 : vector<2x64x8xf32> to vector<128x8xf32>
    %342 = arith.truncf %341 : vector<128x8xf32> to vector<128x8xbf16>
    %c0_155 = arith.constant 0 : index
    %c0_156 = arith.constant 0 : index
    %343 = vector.load %arg27[%c0_155, %c0_156] : memref<8x256xf32, #tpu.memory_space<vmem>>, vector<8x256xf32>
    %344 = arith.truncf %343 : vector<8x256xf32> to vector<8x256xbf16>
    %cst_157 = arith.constant dense<0.000000e+00> : vector<128x256xf32>
    %345 = tpu.matmul %342, %344, %cst_157 {dimension_numbers = #tpu.dot_dimension_numbers<[1], [0], [0], [1], [0, 0, 1, 1], [], []>} : vector<128x8xbf16>, vector<8x256xbf16>, vector<128x256xf32> -> vector<128x256xf32>
    %c0_158 = arith.constant 0 : index
    %c0_159 = arith.constant 0 : index
    %346 = vector.load %arg28[%c0_158, %c0_159] : memref<128x256xf32, #tpu.memory_space<vmem>>, vector<128x256xf32>
    tpu.vector_store %arg28[%c0_158, %c0_159], %345 {strides = array<i32>} : memref<128x256xf32, #tpu.memory_space<vmem>>, vector<128x256xf32>,
    return
  }
  func.func @transform_0(%arg0: i32) -> (i32, i32) {
    %c0_i32 = arith.constant 0 : i32
    %c0_i32_0 = arith.constant 0 : i32
    %c0_i32_1 = arith.constant 0 : i32
    return %c0_i32, %c0_i32_0 : i32, i32
  }
  func.func @transform_1(%arg0: i32) -> (i32, i32) {
    %c0_i32 = arith.constant 0 : i32
    %c0_i32_0 = arith.constant 0 : i32
    %c0_i32_1 = arith.constant 0 : i32
    return %c0_i32, %c0_i32_0 : i32, i32
  }
  func.func @transform_2(%arg0: i32) -> (i32, i32) {
    %c0_i32 = arith.constant 0 : i32
    %c0_i32_0 = arith.constant 0 : i32
    %c0_i32_1 = arith.constant 0 : i32
    return %c0_i32, %c0_i32_0 : i32, i32
  }
  func.func @transform_3(%arg0: i32) -> (i32, i32) {
    %c0_i32 = arith.constant 0 : i32
    %c0_i32_0 = arith.constant 0 : i32
    %c0_i32_1 = arith.constant 0 : i32
    return %c0_i32, %c0_i32_0 : i32, i32
  }
  func.func @transform_4(%arg0: i32) -> (i32, i32) {
    %c0_i32 = arith.constant 0 : i32
    %c0_i32_0 = arith.constant 0 : i32
    %c0_i32_1 = arith.constant 0 : i32
    return %c0_i32, %c0_i32_0 : i32, i32
  }
  func.func @transform_5(%arg0: i32) -> (i32, i32) {
    %c0_i32 = arith.constant 0 : i32
    %c0_i32_0 = arith.constant 0 : i32
    %c0_i32_1 = arith.constant 0 : i32
    return %c0_i32, %c0_i32_0 : i32, i32
  }
  func.func @transform_6(%arg0: i32) -> (i32, i32) {
    %c0_i32 = arith.constant 0 : i32
    %c0_i32_0 = arith.constant 0 : i32
    %c0_i32_1 = arith.constant 0 : i32
    return %c0_i32, %c0_i32_0 : i32, i32
  }
  func.func @transform_7(%arg0: i32) -> (i32, i32) {
    %c0_i32 = arith.constant 0 : i32
    %c0_i32_0 = arith.constant 0 : i32
    %c0_i32_1 = arith.constant 0 : i32
    return %c0_i32, %c0_i32_0 : i32, i32
  }
  func.func @transform_8(%arg0: i32) -> (i32, i32) {
    %c0_i32 = arith.constant 0 : i32
    %c0_i32_0 = arith.constant 0 : i32
    %c0_i32_1 = arith.constant 0 : i32
    return %c0_i32, %c0_i32_0 : i32, i32
  }
  func.func @transform_9(%arg0: i32) -> (i32, i32) {
    %c0_i32 = arith.constant 0 : i32
    %c0_i32_0 = arith.constant 0 : i32
    %c0_i32_1 = arith.constant 0 : i32
    return %c0_i32, %c0_i32_0 : i32, i32
  }
  func.func @transform_10(%arg0: i32) -> (i32, i32) {
    %c0_i32 = arith.constant 0 : i32
    %c0_i32_0 = arith.constant 0 : i32
    %c0_i32_1 = arith.constant 0 : i32
    return %c0_i32, %c0_i32_0 : i32, i32
  }
  func.func @transform_11(%arg0: i32) -> (i32, i32) {
    %c0_i32 = arith.constant 0 : i32
    %c0_i32_0 = arith.constant 0 : i32
    %c0_i32_1 = arith.constant 0 : i32
    return %c0_i32, %c0_i32_0 : i32, i32
  }
  func.func @transform_12(%arg0: i32) -> (i32, i32, i32) {
    %c0_i32 = arith.constant 0 : i32
    %c0_i32_0 = arith.constant 0 : i32
    %c0_i32_1 = arith.constant 0 : i32
    %c0_i32_2 = arith.constant 0 : i32
    return %c0_i32, %c0_i32_0, %c0_i32_1 : i32, i32, i32
  }
  func.func @transform_13(%arg0: i32) -> (i32, i32) {
    %c0_i32 = arith.constant 0 : i32
    %c0_i32_0 = arith.constant 0 : i32
    %c0_i32_1 = arith.constant 0 : i32
    return %c0_i32, %c0_i32_0 : i32, i32
  }
  func.func @transform_14(%arg0: i32) -> (i32, i32) {
    %c0_i32 = arith.constant 0 : i32
    %c0_i32_0 = arith.constant 0 : i32
    %c0_i32_1 = arith.constant 0 : i32
    return %c0_i32, %c0_i32_0 : i32, i32
  }
  func.func @transform_15(%arg0: i32) -> (i32, i32) {
    %c0_i32 = arith.constant 0 : i32
    %c0_i32_0 = arith.constant 0 : i32
    %c0_i32_1 = arith.constant 0 : i32
    return %c0_i32, %c0_i32_0 : i32, i32
  }
  func.func @transform_16(%arg0: i32) -> (i32, i32) {
    %c0_i32 = arith.constant 0 : i32
    %c0_i32_0 = arith.constant 0 : i32
    %c0_i32_1 = arith.constant 0 : i32
    return %c0_i32, %c0_i32_0 : i32, i32
  }
  func.func @transform_17(%arg0: i32) -> (i32, i32) {
    %c0_i32 = arith.constant 0 : i32
    %c0_i32_0 = arith.constant 0 : i32
    %c0_i32_1 = arith.constant 0 : i32
    return %c0_i32, %c0_i32_0 : i32, i32
  }
  func.func @transform_18(%arg0: i32) -> (i32, i32) {
    %c0_i32 = arith.constant 0 : i32
    %c0_i32_0 = arith.constant 0 : i32
    %c0_i32_1 = arith.constant 0 : i32
    return %c0_i32, %c0_i32_0 : i32, i32
  }
  func.func @transform_19(%arg0: i32) -> (i32, i32) {
    %c0_i32 = arith.constant 0 : i32
    %c0_i32_0 = arith.constant 0 : i32
    %c0_i32_1 = arith.constant 0 : i32
    return %c0_i32, %c0_i32_0 : i32, i32
  }
  func.func @transform_20(%arg0: i32) -> (i32, i32) {
    %c0_i32 = arith.constant 0 : i32
    %c0_i32_0 = arith.constant 0 : i32
    %c0_i32_1 = arith.constant 0 : i32
    return %c0_i32, %c0_i32_0 : i32, i32
  }
  func.func @transform_21(%arg0: i32) -> (i32, i32) {
    %c0_i32 = arith.constant 0 : i32
    %c0_i32_0 = arith.constant 0 : i32
    %c0_i32_1 = arith.constant 0 : i32
    return %c0_i32, %c0_i32_0 : i32, i32
  }
  func.func @transform_22(%arg0: i32) -> (i32, i32) {
    %c0_i32 = arith.constant 0 : i32
    %c0_i32_0 = arith.constant 0 : i32
    %c0_i32_1 = arith.constant 0 : i32
    return %c0_i32, %c0_i32_0 : i32, i32
  }
  func.func @transform_23(%arg0: i32) -> (i32, i32) {
    %c0_i32 = arith.constant 0 : i32
    %c0_i32_0 = arith.constant 0 : i32
    %c0_i32_1 = arith.constant 0 : i32
    return %c0_i32, %c0_i32_0 : i32, i32
  }
  func.func @transform_24(%arg0: i32) -> (i32, i32) {
    %c0_i32 = arith.constant 0 : i32
    %c0_i32_0 = arith.constant 0 : i32
    %c0_i32_1 = arith.constant 0 : i32
    return %c0_i32, %c0_i32_0 : i32, i32
  }
  func.func @transform_25(%arg0: i32) -> (i32, i32) {
    %c0_i32 = arith.constant 0 : i32
    %c0_i32_0 = arith.constant 0 : i32
    %c0_i32_1 = arith.constant 0 : i32
    return %c0_i32, %c0_i32_0 : i32, i32
  }
  func.func @transform_26(%arg0: i32) -> (i32, i32) {
    %c0_i32 = arith.constant 0 : i32
    %c0_i32_0 = arith.constant 0 : i32
    %c0_i32_1 = arith.constant 0 : i32
    return %c0_i32, %c0_i32_0 : i32, i32
  }
  func.func @transform_27(%arg0: i32) -> (i32, i32) {
    %c0_i32 = arith.constant 0 : i32
    %c0_i32_0 = arith.constant 0 : i32
    %c0_i32_1 = arith.constant 0 : i32
    return %c0_i32, %c0_i32_0 : i32, i32
  }
  func.func @transform_28(%arg0: i32) -> (i32, i32) {
    %c0_i32 = arith.constant 0 : i32
    %c0_i32_0 = arith.constant 0 : i32
    %c0_i32_1 = arith.constant 0 : i32
    return %c0_i32, %c0_i32_0 : i32, i32
  }
  func.func @transform_29(%arg0: i32) -> (i32, i32) {
    %c0_i32 = arith.constant 0 : i32
    %c0_i32_0 = arith.constant 0 : i32
    %c0_i32_1 = arith.constant 0 : i32
    return %c0_i32, %c0_i32_0 : i32, i32
  }
  func.func @transform_30(%arg0: i32) -> (i32, i32) {
    %c0_i32 = arith.constant 0 : i32
    %c0_i32_0 = arith.constant 0 : i32
    %c0_i32_1 = arith.constant 0 : i32
    return %c0_i32, %c0_i32_0 : i32, i32
  }
}

</mosaic_0001>

<llo_original>
// kernel: adaptir_forward.1
$region0: #{adaptir_forward.1}
  #allocation0 [shape = 'u32[]', space=smem, size = 0x4, offset = 0x4, fixed_abs, tag = 'smem constant byte address 0x4 - core index']
  #allocation1 [shape = 'u32[72,128]{1,0:T(1,128)}', space=vmem, size = 0x9000, scoped, tag = 'internal scratch']
  #allocation2 [shape = 'f32[160,8]{1,0:T(8,128)}', space=vmem, size = 0x14000, scoped, tag = 'scratch operand']
  #allocation3 [shape = 'f32[1,1]{1,0:T(1,128)S(1)}', space=vmem, size = 0x200, scoped, tag = 'scoped memory for adaptir_forward.1']
  #allocation4 [shape = 'f32[1,1]{1,0:T(1,128)S(1)}', space=vmem, size = 0x200, scoped, tag = 'scoped memory for adaptir_forward.1']
  #allocation5 [shape = 'f32[1,1]{1,0:T(1,128)S(1)}', space=vmem, size = 0x200, scoped, tag = 'scoped memory for adaptir_forward.1']
  %s0 = inlined_call_operand.smem [shape: u32[31], index: -1, kind: input, shape index: {}]
  %s1 = sld [smem:[%s0]]
  %s2 = scalar_lea.smem %s0, 1
  %s3 = sld [smem:[%s2]]
  %s4 = scalar_lea.smem %s0, 2
  %s5 = sld [smem:[%s4]]
  %s6 = scalar_lea.smem %s0, 3
  %s7 = sld [smem:[%s6]]
  %s8 = scalar_lea.smem %s0, 4
  %s9 = sld [smem:[%s8]]
  %s10 = scalar_lea.smem %s0, 5
  %s11 = sld [smem:[%s10]]
  %s12 = scalar_lea.smem %s0, 6
  %s13 = sld [smem:[%s12]]
  %s14 = scalar_lea.smem %s0, 7
  %s15 = sld [smem:[%s14]]
  %s16 = scalar_lea.smem %s0, 8
  %s17 = sld [smem:[%s16]]
  %s18 = scalar_lea.smem %s0, 9
  %s19 = sld [smem:[%s18]]
  %s20 = scalar_lea.smem %s0, 10
  %s21 = sld [smem:[%s20]]
  %s22 = scalar_lea.smem %s0, 11
  %s23 = sld [smem:[%s22]]
  %s24 = scalar_lea.smem %s0, 12
  %s25 = sld [smem:[%s24]]
  %s26 = scalar_lea.smem %s0, 13
  %s27 = sld [smem:[%s26]]
  %s28 = scalar_lea.smem %s0, 14
  %s29 = sld [smem:[%s28]]
  %s30 = scalar_lea.smem %s0, 15
  %s31 = sld [smem:[%s30]]
  %s32 = scalar_lea.smem %s0, 16
  %s33 = sld [smem:[%s32]]
  %s34 = scalar_lea.smem %s0, 17
  %s35 = sld [smem:[%s34]]
  %s36 = scalar_lea.smem %s0, 18
  %s37 = sld [smem:[%s36]]
  %s38 = scalar_lea.smem %s0, 19
  %s39 = sld [smem:[%s38]]
  %s40 = scalar_lea.smem %s0, 20
  %s41 = sld [smem:[%s40]]
  %s42 = scalar_lea.smem %s0, 21
  %s43 = sld [smem:[%s42]]
  %s44 = scalar_lea.smem %s0, 22
  %s45 = sld [smem:[%s44]]
  %s46 = scalar_lea.smem %s0, 23
  %s47 = sld [smem:[%s46]]
  %s48 = scalar_lea.smem %s0, 24
  %s49 = sld [smem:[%s48]]
  %s50 = scalar_lea.smem %s0, 25
  %s51 = sld [smem:[%s50]]
  %s52 = scalar_lea.smem %s0, 26
  %s53 = sld [smem:[%s52]]
  %s54 = scalar_lea.smem %s0, 27
  %s55 = sld [smem:[%s54]]
  %s56 = scalar_lea.smem %s0, 28
  %s57 = sld [smem:[%s56]]
  %s58 = scalar_lea.smem %s0, 29
  %s59 = sld [smem:[%s58]]
  %s60 = scalar_lea.smem %s0, 30
  %s61 = sld [smem:[%s60]]
  %62 = xla_tuple %s55, %s57, %s59, %s61
  %s63 = sld [smem:[#allocation0]]
  $region142: #{adaptir_forward.1} parent=0
    _
  %s65 = ssub.s32 1, %s63
  %s66 = scalar_select 0, %s65, %s63
  %v67 = vstv %s31
  %68 = vst [vmem:[#allocation3] sm:$0x1] %v67
  %v69 = vstv %s43
  %70 = vst [vmem:[#allocation4] sm:$0x1] %v69
  %v71 = vstv %s51
  %72 = vst [vmem:[#allocation5] sm:$0x1] %v71
  $region1: #{adaptir_forward.1} parent=0
    #allocation6 [shape = 'u8[1024]{0}', space=vmem, size = 0x400, scoped, tag = 'output window, operand 3, single buffered']
    #allocation7 [shape = 's32[1]{0}', space=sflag, size = 0x4, scoped, tag = 'scoped memory for adaptir_forward.1']
    %73 = vsyncpa [#allocation7], 0
    // Predicated region
    $region2: #{adaptir_forward.1} parent=1 // pred_check
      _
    $region3: #{adaptir_forward.1} parent=1 // pred_check_branch
      %75 = sbr.rel (0) target = $region5
    $region4: #{adaptir_forward.1} parent=1 // pred_region
      _
    $region5: #{adaptir_forward.1} parent=1 // pred_fallthru
      _
    // Predicated region
    $region6: #{adaptir_forward.1} parent=1 // pred_check
      _
    $region7: #{adaptir_forward.1} parent=1 // pred_check_branch
      %77 = sbr.rel (0) target = $region9
    $region8: #{adaptir_forward.1} parent=1 // pred_region
      _
    $region9: #{adaptir_forward.1} parent=1 // pred_fallthru
      _
    // Predicated region
    $region10: #{adaptir_forward.1} parent=1 // pred_check
      _
    $region11: #{adaptir_forward.1} parent=1 // pred_check_branch
      %79 = sbr.rel (0) target = $region13
    $region12: #{adaptir_forward.1} parent=1 // pred_region
      _
    $region13: #{adaptir_forward.1} parent=1 // pred_fallthru
      _
    // Predicated region
    $region14: #{adaptir_forward.1} parent=1 // pred_check
      _
    $region15: #{adaptir_forward.1} parent=1 // pred_check_branch
      %81 = sbr.rel (0) target = $region17
    $region16: #{adaptir_forward.1} parent=1 // pred_region
      _
    $region17: #{adaptir_forward.1} parent=1 // pred_fallthru
      _
    // Predicated region
    $region18: #{adaptir_forward.1} parent=1 // pred_check
      _
    $region19: #{adaptir_forward.1} parent=1 // pred_check_branch
      %83 = sbr.rel (0) target = $region21
    $region20: #{adaptir_forward.1} parent=1 // pred_region
      _
    $region21: #{adaptir_forward.1} parent=1 // pred_fallthru
      _
    // Predicated region
    $region22: #{adaptir_forward.1} parent=1 // pred_check
      _
    $region23: #{adaptir_forward.1} parent=1 // pred_check_branch
      %85 = sbr.rel (0) target = $region25
    $region24: #{adaptir_forward.1} parent=1 // pred_region
      _
    $region25: #{adaptir_forward.1} parent=1 // pred_fallthru
      _
    // Predicated region
    $region26: #{adaptir_forward.1} parent=1 // pred_check
      _
    $region27: #{adaptir_forward.1} parent=1 // pred_check_branch
      %87 = sbr.rel (0) target = $region29
    $region28: #{adaptir_forward.1} parent=1 // pred_region
      _
    $region29: #{adaptir_forward.1} parent=1 // pred_fallthru
      _
    // Predicated region
    $region30: #{adaptir_forward.1} parent=1 // pred_check
      _
    $region31: #{adaptir_forward.1} parent=1 // pred_check_branch
      %89 = sbr.rel (0) target = $region33
    $region32: #{adaptir_forward.1} parent=1 // pred_region
      _
    $region33: #{adaptir_forward.1} parent=1 // pred_fallthru
      _
    // Predicated region
    $region34: #{adaptir_forward.1} parent=1 // pred_check
      _
    $region35: #{adaptir_forward.1} parent=1 // pred_check_branch
      %91 = sbr.rel (0) target = $region37
    $region36: #{adaptir_forward.1} parent=1 // pred_region
      _
    $region37: #{adaptir_forward.1} parent=1 // pred_fallthru
      _
    // Predicated region
    $region38: #{adaptir_forward.1} parent=1 // pred_check
      _
    $region39: #{adaptir_forward.1} parent=1 // pred_check_branch
      %93 = sbr.rel (0) target = $region41
    $region40: #{adaptir_forward.1} parent=1 // pred_region
      _
    $region41: #{adaptir_forward.1} parent=1 // pred_fallthru
      _
    // Predicated region
    $region42: #{adaptir_forward.1} parent=1 // pred_check
      _
    $region43: #{adaptir_forward.1} parent=1 // pred_check_branch
      %95 = sbr.rel (0) target = $region45
    $region44: #{adaptir_forward.1} parent=1 // pred_region
      _
    $region45: #{adaptir_forward.1} parent=1 // pred_fallthru
      _
    // Predicated region
    $region46: #{adaptir_forward.1} parent=1 // pred_check
      _
    $region47: #{adaptir_forward.1} parent=1 // pred_check_branch
      %97 = sbr.rel (0) target = $region49
    $region48: #{adaptir_forward.1} parent=1 // pred_region
      _
    $region49: #{adaptir_forward.1} parent=1 // pred_fallthru
      _
    // Predicated region
    $region50: #{adaptir_forward.1} parent=1 // pred_check
      _
    $region51: #{adaptir_forward.1} parent=1 // pred_check_branch
      %99 = sbr.rel (0) target = $region53
    $region52: #{adaptir_forward.1} parent=1 // pred_region
      _
    $region53: #{adaptir_forward.1} parent=1 // pred_fallthru
      _
    // Predicated region
    $region54: #{adaptir_forward.1} parent=1 // pred_check
      _
    $region55: #{adaptir_forward.1} parent=1 // pred_check_branch
      %101 = sbr.rel (0) target = $region57
    $region56: #{adaptir_forward.1} parent=1 // pred_region
      _
    $region57: #{adaptir_forward.1} parent=1 // pred_fallthru
      _
    // Predicated region
    $region58: #{adaptir_forward.1} parent=1 // pred_check
      _
    $region59: #{adaptir_forward.1} parent=1 // pred_check_branch
      %103 = sbr.rel (0) target = $region61
    $region60: #{adaptir_forward.1} parent=1 // pred_region
      _
    $region61: #{adaptir_forward.1} parent=1 // pred_fallthru
      _
    // Predicated region
    $region62: #{adaptir_forward.1} parent=1 // pred_check
      _
    $region63: #{adaptir_forward.1} parent=1 // pred_check_branch
      %105 = sbr.rel (0) target = $region65
    $region64: #{adaptir_forward.1} parent=1 // pred_region
      _
    $region65: #{adaptir_forward.1} parent=1 // pred_fallthru
      _
    // Predicated region
    $region66: #{adaptir_forward.1} parent=1 // pred_check
      _
    $region67: #{adaptir_forward.1} parent=1 // pred_check_branch
      %107 = sbr.rel (0) target = $region69
    $region68: #{adaptir_forward.1} parent=1 // pred_region
      _
    $region69: #{adaptir_forward.1} parent=1 // pred_fallthru
      _
    // Predicated region
    $region70: #{adaptir_forward.1} parent=1 // pred_check
      _
    $region71: #{adaptir_forward.1} parent=1 // pred_check_branch
      %109 = sbr.rel (0) target = $region73
    $region72: #{adaptir_forward.1} parent=1 // pred_region
      _
    $region73: #{adaptir_forward.1} parent=1 // pred_fallthru
      _
    // Predicated region
    $region74: #{adaptir_forward.1} parent=1 // pred_check
      _
    $region75: #{adaptir_forward.1} parent=1 // pred_check_branch
      %111 = sbr.rel (0) target = $region77
    $region76: #{adaptir_forward.1} parent=1 // pred_region
      _
    $region77: #{adaptir_forward.1} parent=1 // pred_fallthru
      _
    // Predicated region
    $region78: #{adaptir_forward.1} parent=1 // pred_check
      _
    $region79: #{adaptir_forward.1} parent=1 // pred_check_branch
      %113 = sbr.rel (0) target = $region81
    $region80: #{adaptir_forward.1} parent=1 // pred_region
      _
    $region81: #{adaptir_forward.1} parent=1 // pred_fallthru
      _
    // Predicated region
    $region82: #{adaptir_forward.1} parent=1 // pred_check
      _
    $region83: #{adaptir_forward.1} parent=1 // pred_check_branch
      %115 = sbr.rel (0) target = $region85
    $region84: #{adaptir_forward.1} parent=1 // pred_region
      _
    $region85: #{adaptir_forward.1} parent=1 // pred_fallthru
      _
    // Predicated region
    $region86: #{adaptir_forward.1} parent=1 // pred_check
      _
    $region87: #{adaptir_forward.1} parent=1 // pred_check_branch
      %117 = sbr.rel (0) target = $region89
    $region88: #{adaptir_forward.1} parent=1 // pred_region
      _
    $region89: #{adaptir_forward.1} parent=1 // pred_fallthru
      _
    // Predicated region
    $region90: #{adaptir_forward.1} parent=1 // pred_check
      _
    $region91: #{adaptir_forward.1} parent=1 // pred_check_branch
      %119 = sbr.rel (0) target = $region93
    $region92: #{adaptir_forward.1} parent=1 // pred_region
      _
    $region93: #{adaptir_forward.1} parent=1 // pred_fallthru
      _
    // Predicated region
    $region94: #{adaptir_forward.1} parent=1 // pred_check
      _
    $region95: #{adaptir_forward.1} parent=1 // pred_check_branch
      %121 = sbr.rel (0) target = $region97
    $region96: #{adaptir_forward.1} parent=1 // pred_region
      _
    $region97: #{adaptir_forward.1} parent=1 // pred_fallthru
      _
    // Predicated region
    $region98: #{adaptir_forward.1} parent=1 // pred_check
      _
    $region99: #{adaptir_forward.1} parent=1 // pred_check_branch
      %123 = sbr.rel (0) target = $region101
    $region100: #{adaptir_forward.1} parent=1 // pred_region
      _
    $region101: #{adaptir_forward.1} parent=1 // pred_fallthru
      _
    // Predicated region
    $region102: #{adaptir_forward.1} parent=1 // pred_check
      _
    $region103: #{adaptir_forward.1} parent=1 // pred_check_branch
      %125 = sbr.rel (0) target = $region105
    $region104: #{adaptir_forward.1} parent=1 // pred_region
      _
    $region105: #{adaptir_forward.1} parent=1 // pred_fallthru
      _
    // Predicated region
    $region106: #{adaptir_forward.1} parent=1 // pred_check
      _
    $region107: #{adaptir_forward.1} parent=1 // pred_check_branch
      %127 = sbr.rel (0) target = $region109
    $region108: #{adaptir_forward.1} parent=1 // pred_region
      _
    $region109: #{adaptir_forward.1} parent=1 // pred_fallthru
      _
    %v129 = vld [vmem:[%s1] sm:$0xff]
    %v130 = vld [vmem:[%s1 + $0x8] sm:$0xff]
    %v131 = vld [vmem:[%s1 + $0x10] sm:$0xff]
    %v132 = vld [vmem:[%s1 + $0x18] sm:$0xff]
    %v133 = vld [vmem:[%s1 + $0x20] sm:$0xff]
    %v134 = vld [vmem:[%s1 + $0x28] sm:$0xff]
    %v135 = vld [vmem:[%s1 + $0x30] sm:$0xff]
    %v136 = vld [vmem:[%s1 + $0x38] sm:$0xff]
    %v137 = vld [vmem:[%s1 + $0x40] sm:$0xff]
    %v138 = vld [vmem:[%s1 + $0x48] sm:$0xff]
    %v139 = vld [vmem:[%s1 + $0x50] sm:$0xff]
    %v140 = vld [vmem:[%s1 + $0x58] sm:$0xff]
    %v141 = vld [vmem:[%s1 + $0x60] sm:$0xff]
    %v142 = vld [vmem:[%s1 + $0x68] sm:$0xff]
    %v143 = vld [vmem:[%s1 + $0x70] sm:$0xff]
    %v144 = vld [vmem:[%s1 + $0x78] sm:$0xff]
    %v145 = vld [vmem:[%s1 + $0x80] sm:$0xff]
    %v146 = vld [vmem:[%s1 + $0x88] sm:$0xff]
    %v147 = vld [vmem:[%s1 + $0x90] sm:$0xff]
    %v148 = vld [vmem:[%s1 + $0x98] sm:$0xff]
    %v149 = vld [vmem:[%s1 + $0xa0] sm:$0xff]
    %v150 = vld [vmem:[%s1 + $0xa8] sm:$0xff]
    %v151 = vld [vmem:[%s1 + $0xb0] sm:$0xff]
    %v152 = vld [vmem:[%s1 + $0xb8] sm:$0xff]
    %v153 = vld [vmem:[%s1 + $0xc0] sm:$0xff]
    %v154 = vld [vmem:[%s1 + $0xc8] sm:$0xff]
    %v155 = vld [vmem:[%s1 + $0xd0] sm:$0xff]
    %v156 = vld [vmem:[%s1 + $0xd8] sm:$0xff]
    %v157 = vld [vmem:[%s1 + $0xe0] sm:$0xff]
    %v158 = vld [vmem:[%s1 + $0xe8] sm:$0xff]
    %v159 = vld [vmem:[%s1 + $0xf0] sm:$0xff]
    %v160 = vld [vmem:[%s1 + $0xf8] sm:$0xff]
    %v161 = vpack.c.bf16 %v131, %v129
    %v162 = vpack.c.bf16 %v132, %v130
    %v163 = vpack.c.bf16 %v135, %v133
    %v164 = vpack.c.bf16 %v136, %v134
    %v165 = vpack.c.bf16 %v139, %v137
    %v166 = vpack.c.bf16 %v140, %v138
    %v167 = vpack.c.bf16 %v143, %v141
    %v168 = vpack.c.bf16 %v144, %v142
    %v169 = vpack.c.bf16 %v147, %v145
    %v170 = vpack.c.bf16 %v148, %v146
    %v171 = vpack.c.bf16 %v151, %v149
    %v172 = vpack.c.bf16 %v152, %v150
    %v173 = vpack.c.bf16 %v155, %v153
    %v174 = vpack.c.bf16 %v156, %v154
    %v175 = vpack.c.bf16 %v159, %v157
    %v176 = vpack.c.bf16 %v160, %v158
    %v177 = vld [vmem:[%s3] sm:$0xff]
    %v178 = vld [vmem:[%s3 + $0x8] sm:$0xff]
    %v179 = vld [vmem:[%s3 + $0x10] sm:$0xff]
    %v180 = vld [vmem:[%s3 + $0x18] sm:$0xff]
    %v181 = vld [vmem:[%s3 + $0x20] sm:$0xff]
    %v182 = vld [vmem:[%s3 + $0x28] sm:$0xff]
    %v183 = vld [vmem:[%s3 + $0x30] sm:$0xff]
    %v184 = vld [vmem:[%s3 + $0x38] sm:$0xff]
    %v185 = vld [vmem:[%s3 + $0x40] sm:$0xff]
    %v186 = vld [vmem:[%s3 + $0x48] sm:$0xff]
    %v187 = vld [vmem:[%s3 + $0x50] sm:$0xff]
    %v188 = vld [vmem:[%s3 + $0x58] sm:$0xff]
    %v189 = vld [vmem:[%s3 + $0x60] sm:$0xff]
    %v190 = vld [vmem:[%s3 + $0x68] sm:$0xff]
    %v191 = vld [vmem:[%s3 + $0x70] sm:$0xff]
    %v192 = vld [vmem:[%s3 + $0x78] sm:$0xff]
    %v193 = vld [vmem:[%s3 + $0x80] sm:$0xff]
    %v194 = vld [vmem:[%s3 + $0x88] sm:$0xff]
    %v195 = vld [vmem:[%s3 + $0x90] sm:$0xff]
    %v196 = vld [vmem:[%s3 + $0x98] sm:$0xff]
    %v197 = vld [vmem:[%s3 + $0xa0] sm:$0xff]
    %v198 = vld [vmem:[%s3 + $0xa8] sm:$0xff]
    %v199 = vld [vmem:[%s3 + $0xb0] sm:$0xff]
    %v200 = vld [vmem:[%s3 + $0xb8] sm:$0xff]
    %v201 = vpack.c.bf16 %v178, %v177
    %v202 = vpack.c.bf16 %v180, %v179
    %v203 = vpack.c.bf16 %v182, %v181
    %v204 = vpack.c.bf16 %v184, %v183
    %v205 = vpack.c.bf16 %v186, %v185
    %v206 = vpack.c.bf16 %v188, %v187
    %v207 = vpack.c.bf16 %v190, %v189
    %v208 = vpack.c.bf16 %v192, %v191
    %v209 = vpack.c.bf16 %v194, %v193
    %v210 = vpack.c.bf16 %v196, %v195
    %v211 = vpack.c.bf16 %v198, %v197
    %v212 = vpack.c.bf16 %v200, %v199
    %v213 = vld [vmem:[%s5] sm:$0x1]
    %v215 = vperm.slane %v213, 0
    %vm217 = vcmask 523264
    %v219 = vsel %vm217, %v162, 0
    %v222 = vsel %vm217, %v164, 0
    %v225 = vsel %vm217, %v166, 0
    %v228 = vsel %vm217, %v168, 0
    %v231 = vsel %vm217, %v170, 0
    %v234 = vsel %vm217, %v172, 0
    %v237 = vsel %vm217, %v174, 0
    %v240 = vsel %vm217, %v176, 0
    %242 = vmatpush.bf16.msra.mxu0 %v208
    %243 = vmatpush.bf16.msra.mxu0 %v207
    %244 = vmatpush.bf16.msra.mxu0 %v206
    %245 = vmatpush.bf16.msra.mxu0 %v205
    %246 = vmatpush.bf16.msra.mxu0 %v204
    %247 = vmatpush.bf16.msra.mxu0 %v203
    %248 = vmatpush.bf16.msra.mxu0 %v202
    %249 = vmatpush.bf16.msra.mxu0 %v201
    %250 = vmatmul.bf16.gmra.mxu0 %v161
    %v251 = vpop.f32.mrf.mxu0
    %v252 = vadd.f32 %v215, %v251
    %v253 = vpop.f32.mrf.mxu0
    %v254 = vadd.f32 %v215, %v253
    %255 = vmatmul.bf16.gmra.mxu0 %v163
    %v256 = vpop.f32.mrf.mxu0
    %v257 = vadd.f32 %v215, %v256
    %v258 = vpop.f32.mrf.mxu0
    %v259 = vadd.f32 %v215, %v258
    %260 = vmatmul.bf16.gmra.mxu0 %v165
    %v261 = vpop.f32.mrf.mxu0
    %v262 = vadd.f32 %v215, %v261
    %v263 = vpop.f32.mrf.mxu0
    %v264 = vadd.f32 %v215, %v263
    %265 = vmatmul.bf16.gmra.mxu0 %v167
    %v266 = vpop.f32.mrf.mxu0
    %v267 = vadd.f32 %v215, %v266
    %v268 = vpop.f32.mrf.mxu0
    %v269 = vadd.f32 %v215, %v268
    %270 = vmatmul.bf16.gmra.mxu0 %v169
    %v271 = vpop.f32.mrf.mxu0
    %v272 = vadd.f32 %v215, %v271
    %v273 = vpop.f32.mrf.mxu0
    %v274 = vadd.f32 %v215, %v273
    %275 = vmatmul.bf16.gmra.mxu0 %v171
    %v276 = vpop.f32.mrf.mxu0
    %v277 = vadd.f32 %v215, %v276
    %v278 = vpop.f32.mrf.mxu0
    %v279 = vadd.f32 %v215, %v278
    %280 = vmatmul.bf16.gmra.mxu0 %v173
    %v281 = vpop.f32.mrf.mxu0
    %v282 = vadd.f32 %v215, %v281
    %v283 = vpop.f32.mrf.mxu0
    %v284 = vadd.f32 %v215, %v283
    %285 = vmatmul.bf16.gmra.mxu0 %v175
    %v286 = vpop.f32.mrf.mxu0
    %v287 = vadd.f32 %v215, %v286
    %v288 = vpop.f32.mrf.mxu0
    %v289 = vadd.f32 %v215, %v288
    %290 = vdwg.mxu0
    %291 = vmatpush.bf16.msra.mxu0 0
    %292 = vmatpush.bf16.msra.mxu0 0
    %293 = vmatpush.bf16.msra.mxu0 0
    %294 = vmatpush.bf16.msra.mxu0 0
    %295 = vmatpush.bf16.msra.mxu0 %v212
    %296 = vmatpush.bf16.msra.mxu0 %v211
    %297 = vmatpush.bf16.msra.mxu0 %v210
    %298 = vmatpush.bf16.msra.mxu0 %v209
    %299 = vmatmul.bf16.gmra.mxu0 %v219
    %v300 = vpop.f32.mrf.mxu0
    %v301 = vadd.f32 %v252, %v300
    %v302 = vpop.f32.mrf.mxu0
    %v303 = vadd.f32 %v254, %v302
    %304 = vmatmul.bf16.gmra.mxu0 %v222
    %v305 = vpop.f32.mrf.mxu0
    %v306 = vadd.f32 %v257, %v305
    %v307 = vpop.f32.mrf.mxu0
    %v308 = vadd.f32 %v259, %v307
    %309 = vmatmul.bf16.gmra.mxu0 %v225
    %v310 = vpop.f32.mrf.mxu0
    %v311 = vadd.f32 %v262, %v310
    %v312 = vpop.f32.mrf.mxu0
    %v313 = vadd.f32 %v264, %v312
    %314 = vmatmul.bf16.gmra.mxu0 %v228
    %v315 = vpop.f32.mrf.mxu0
    %v316 = vadd.f32 %v267, %v315
    %v317 = vpop.f32.mrf.mxu0
    %v318 = vadd.f32 %v269, %v317
    %319 = vmatmul.bf16.gmra.mxu0 %v231
    %v320 = vpop.f32.mrf.mxu0
    %v321 = vadd.f32 %v272, %v320
    %v322 = vpop.f32.mrf.mxu0
    %v323 = vadd.f32 %v274, %v322
    %324 = vmatmul.bf16.gmra.mxu0 %v234
    %v325 = vpop.f32.mrf.mxu0
    %v326 = vadd.f32 %v277, %v325
    %v327 = vpop.f32.mrf.mxu0
    %v328 = vadd.f32 %v279, %v327
    %329 = vmatmul.bf16.gmra.mxu0 %v237
    %v330 = vpop.f32.mrf.mxu0
    %v331 = vadd.f32 %v282, %v330
    %v332 = vpop.f32.mrf.mxu0
    %v333 = vadd.f32 %v284, %v332
    %334 = vmatmul.bf16.gmra.mxu0 %v240
    %v335 = vpop.f32.mrf.mxu0
    %v336 = vadd.f32 %v287, %v335
    %v337 = vpop.f32.mrf.mxu0
    %v338 = vadd.f32 %v289, %v337
    %339 = vdwg.mxu0
    %vm340 = vcmask 64512
    %v341 = vsel %vm340, %v301, 0.0
    %v342 = vsel %vm340, %v303, 0.0
    %v343 = vadd.f32 %v341, %v342
    %v344 = vsel %vm340, %v306, 0.0
    %v345 = vadd.f32 %v343, %v344
    %v346 = vsel %vm340, %v308, 0.0
    %v347 = vadd.f32 %v345, %v346
    %v348 = vsel %vm340, %v311, 0.0
    %v349 = vadd.f32 %v347, %v348
    %v350 = vsel %vm340, %v313, 0.0
    %v351 = vadd.f32 %v349, %v350
    %v352 = vsel %vm340, %v316, 0.0
    %v353 = vadd.f32 %v351, %v352
    %v354 = vsel %vm340, %v318, 0.0
    %v355 = vadd.f32 %v353, %v354
    %v356 = vsel %vm340, %v321, 0.0
    %v357 = vadd.f32 %v355, %v356
    %v358 = vsel %vm340, %v323, 0.0
    %v359 = vadd.f32 %v357, %v358
    %v360 = vsel %vm340, %v326, 0.0
    %v361 = vadd.f32 %v359, %v360
    %v362 = vsel %vm340, %v328, 0.0
    %v363 = vadd.f32 %v361, %v362
    %v364 = vsel %vm340, %v331, 0.0
    %v365 = vadd.f32 %v363, %v364
    %v366 = vsel %vm340, %v333, 0.0
    %v367 = vadd.f32 %v365, %v366
    %v368 = vsel %vm340, %v336, 0.0
    %v369 = vadd.f32 %v367, %v368
    %v370 = vsel %vm340, %v338, 0.0
    %v371 = vadd.f32 %v369, %v370
    %v372 = vrot.slane %v371, 4
    %v373 = vadd.f32 %v371, %v372
    %v374 = vrot.slane %v373, 2
    %v375 = vadd.f32 %v373, %v374
    %v376 = vrot.slane %v375, 1
    %v377 = vadd.f32 %v375, %v376
    %v378 = vrcp.pop 128.0
    %v379 = vmul.f32 128.0, %v378
    %v380 = vsub.f32 1.0, %v379
    %v381 = vmul.f32 %v378, %v380
    %v382 = vadd.f32 %v378, %v381
    %vm383 = vweird.f32 %v378
    %v384 = vsel %vm383, %v378, %v382
    %v385 = vmul.f32 %v377, %v384
    %v386 = vsub.f32 %v301, %v385
    %v387 = vsub.f32 %v303, %v385
    %v388 = vsub.f32 %v306, %v385
    %v389 = vsub.f32 %v308, %v385
    %v390 = vsub.f32 %v311, %v385
    %v391 = vsub.f32 %v313, %v385
    %v392 = vsub.f32 %v316, %v385
    %v393 = vsub.f32 %v318, %v385
    %v394 = vsub.f32 %v321, %v385
    %v395 = vsub.f32 %v323, %v385
    %v396 = vsub.f32 %v326, %v385
    %v397 = vsub.f32 %v328, %v385
    %v398 = vsub.f32 %v331, %v385
    %v399 = vsub.f32 %v333, %v385
    %v400 = vsub.f32 %v336, %v385
    %v401 = vsub.f32 %v338, %v385
    %v402 = vmul.f32 %v386, %v386
    %v403 = vmul.f32 %v387, %v387
    %v404 = vmul.f32 %v388, %v388
    %v405 = vmul.f32 %v389, %v389
    %v406 = vmul.f32 %v390, %v390
    %v407 = vmul.f32 %v391, %v391
    %v408 = vmul.f32 %v392, %v392
    %v409 = vmul.f32 %v393, %v393
    %v410 = vmul.f32 %v394, %v394
    %v411 = vmul.f32 %v395, %v395
    %v412 = vmul.f32 %v396, %v396
    %v413 = vmul.f32 %v397, %v397
    %v414 = vmul.f32 %v398, %v398
    %v415 = vmul.f32 %v399, %v399
    %v416 = vmul.f32 %v400, %v400
    %v417 = vmul.f32 %v401, %v401
    %v418 = vsel %vm340, %v402, 0.0
    %v419 = vsel %vm340, %v403, 0.0
    %v420 = vadd.f32 %v418, %v419
    %v421 = vsel %vm340, %v404, 0.0
    %v422 = vadd.f32 %v420, %v421
    %v423 = vsel %vm340, %v405, 0.0
    %v424 = vadd.f32 %v422, %v423
    %v425 = vsel %vm340, %v406, 0.0
    %v426 = vadd.f32 %v424, %v425
    %v427 = vsel %vm340, %v407, 0.0
    %v428 = vadd.f32 %v426, %v427
    %v429 = vsel %vm340, %v408, 0.0
    %v430 = vadd.f32 %v428, %v429
    %v431 = vsel %vm340, %v409, 0.0
    %v432 = vadd.f32 %v430, %v431
    %v433 = vsel %vm340, %v410, 0.0
    %v434 = vadd.f32 %v432, %v433
    %v435 = vsel %vm340, %v411, 0.0
    %v436 = vadd.f32 %v434, %v435
    %v437 = vsel %vm340, %v412, 0.0
    %v438 = vadd.f32 %v436, %v437
    %v439 = vsel %vm340, %v413, 0.0
    %v440 = vadd.f32 %v438, %v439
    %v441 = vsel %vm340, %v414, 0.0
    %v442 = vadd.f32 %v440, %v441
    %v443 = vsel %vm340, %v415, 0.0
    %v444 = vadd.f32 %v442, %v443
    %v445 = vsel %vm340, %v416, 0.0
    %v446 = vadd.f32 %v444, %v445
    %v447 = vsel %vm340, %v417, 0.0
    %v448 = vadd.f32 %v446, %v447
    %v449 = vrot.slane %v448, 4
    %v450 = vadd.f32 %v448, %v449
    %v451 = vrot.slane %v450, 2
    %v452 = vadd.f32 %v450, %v451
    %v453 = vrot.slane %v452, 1
    %v454 = vadd.f32 %v452, %v453
    %v455 = vmul.f32 %v454, %v384
    %v456 = vadd.f32 %v455, 1e-05
    %v457 = vrsqrt.pop %v456
    %v458 = vmul.f32 %v457, %v456
    %v459 = vmul.f32 %v458, %v457
    %v460 = vmul.f32 0.5, %v459
    %v461 = vsub.f32 1.5, %v460
    %v462 = vmul.f32 %v457, %v461
    %vm463 = vweird.f32 %v456
    %vm464 = vweird.f32 %v457
    %vm465 = vmor %vm463, %vm464
    %v466 = vsel %vm465, %v457, %v462
    %v467 = vmul.f32 %v386, %v466
    %v468 = vmul.f32 %v387, %v466
    %v469 = vmul.f32 %v388, %v466
    %v470 = vmul.f32 %v389, %v466
    %v471 = vmul.f32 %v390, %v466
    %v472 = vmul.f32 %v391, %v466
    %v473 = vmul.f32 %v392, %v466
    %v474 = vmul.f32 %v393, %v466
    %v475 = vmul.f32 %v394, %v466
    %v476 = vmul.f32 %v395, %v466
    %v477 = vmul.f32 %v396, %v466
    %v478 = vmul.f32 %v397, %v466
    %v479 = vmul.f32 %v398, %v466
    %v480 = vmul.f32 %v399, %v466
    %v481 = vmul.f32 %v400, %v466
    %v482 = vmul.f32 %v401, %v466
    %v483 = vld [vmem:[%s7] sm:$0x1]
    %v485 = vperm.slane %v483, 0
    %v487 = vmul.f32 %v467, %v485
    %v488 = vmul.f32 %v468, %v485
    %v489 = vmul.f32 %v469, %v485
    %v490 = vmul.f32 %v470, %v485
    %v491 = vmul.f32 %v471, %v485
    %v492 = vmul.f32 %v472, %v485
    %v493 = vmul.f32 %v473, %v485
    %v494 = vmul.f32 %v474, %v485
    %v495 = vmul.f32 %v475, %v485
    %v496 = vmul.f32 %v476, %v485
    %v497 = vmul.f32 %v477, %v485
    %v498 = vmul.f32 %v478, %v485
    %v499 = vmul.f32 %v479, %v485
    %v500 = vmul.f32 %v480, %v485
    %v501 = vmul.f32 %v481, %v485
    %v502 = vmul.f32 %v482, %v485
    %v503 = vld [vmem:[%s9] sm:$0x1]
    %v505 = vperm.slane %v503, 0
    %v507 = vadd.f32 %v487, %v505
    %v508 = vadd.f32 %v488, %v505
    %v509 = vadd.f32 %v489, %v505
    %v510 = vadd.f32 %v490, %v505
    %v511 = vadd.f32 %v491, %v505
    %v512 = vadd.f32 %v492, %v505
    %v513 = vadd.f32 %v493, %v505
    %v514 = vadd.f32 %v494, %v505
    %v515 = vadd.f32 %v495, %v505
    %v516 = vadd.f32 %v496, %v505
    %v517 = vadd.f32 %v497, %v505
    %v518 = vadd.f32 %v498, %v505
    %v519 = vadd.f32 %v499, %v505
    %v520 = vadd.f32 %v500, %v505
    %v521 = vadd.f32 %v501, %v505
    %v522 = vadd.f32 %v502, %v505
    %v523 = vld [vmem:[%s11] sm:$0xf]
    %v524 = vld [vmem:[%s11 + $0x4] sm:$0xf]
    %v525 = vld [vmem:[%s11 + $0x8] sm:$0xf]
    %v526 = vld [vmem:[%s11 + $0xc] sm:$0xf]
    %v527 = vld [vmem:[%s11 + $0x10] sm:$0xf]
    %v528 = vld [vmem:[%s11 + $0x14] sm:$0xf]
    %v529 = vld [vmem:[%s11 + $0x18] sm:$0xf]
    %v530 = vld [vmem:[%s11 + $0x1c] sm:$0xf]
    %v531 = vld [vmem:[%s11 + $0x20] sm:$0xf]
    %v532 = vld [vmem:[%s11 + $0x24] sm:$0xf]
    %v533 = vld [vmem:[%s11 + $0x28] sm:$0xf]
    %v534 = vld [vmem:[%s11 + $0x2c] sm:$0xf]
    %v535 = vld [vmem:[%s11 + $0x30] sm:$0xf]
    %v536 = vld [vmem:[%s11 + $0x34] sm:$0xf]
    %v537 = vld [vmem:[%s11 + $0x38] sm:$0xf]
    %v538 = vld [vmem:[%s11 + $0x3c] sm:$0xf]
    %v539 = vld [vmem:[%s11 + $0x40] sm:$0xf]
    %v540 = vld [vmem:[%s11 + $0x44] sm:$0xf]
    %v541 = vld [vmem:[%s11 + $0x48] sm:$0xf]
    %v542 = vld [vmem:[%s11 + $0x4c] sm:$0xf]
    %v543 = vpack.c.bf16 %v508, %v507
    %v544 = vpack.c.bf16 %v510, %v509
    %v545 = vpack.c.bf16 %v512, %v511
    %v546 = vpack.c.bf16 %v514, %v513
    %v547 = vpack.c.bf16 %v516, %v515
    %v548 = vpack.c.bf16 %v518, %v517
    %v549 = vpack.c.bf16 %v520, %v519
    %v550 = vpack.c.bf16 %v522, %v521
    %v571 = vunpack.c.l.b16 %v523
    %v572 = vunpack.c.l.b16 %v524
    %v573 = vunpack.c.l.b16 %v525
    %v574 = vunpack.c.l.b16 %v526
    %v575 = vunpack.c.l.b16 %v527
    %v576 = vunpack.c.l.b16 %v528
    %v577 = vunpack.c.l.b16 %v529
    %v578 = vunpack.c.l.b16 %v530
    %v579 = vunpack.c.l.b16 %v531
    %v580 = vunpack.c.l.b16 %v532
    %v581 = vunpack.c.l.b16 %v533
    %v582 = vunpack.c.l.b16 %v534
    %v583 = vunpack.c.l.b16 %v535
    %v584 = vunpack.c.l.b16 %v536
    %v585 = vunpack.c.l.b16 %v537
    %v586 = vunpack.c.l.b16 %v538
    %v587 = vunpack.c.l.b16 %v539
    %v588 = vunpack.c.l.b16 %v540
    %v589 = vunpack.c.l.b16 %v541
    %v590 = vunpack.c.l.b16 %v542
    %v591 = vpack.c.b16 %v572, %v571
    %v592 = vpack.c.b16 %v574, %v573
    %v593 = vpack.c.b16 %v576, %v575
    %v594 = vpack.c.b16 %v578, %v577
    %v595 = vpack.c.b16 %v580, %v579
    %v596 = vpack.c.b16 %v582, %v581
    %v597 = vpack.c.b16 %v584, %v583
    %v598 = vpack.c.b16 %v586, %v585
    %v599 = vpack.c.b16 %v588, %v587
    %v600 = vpack.c.b16 %v590, %v589
    %611 = vmatpush.bf16.msra.mxu0 %v550
    %612 = vmatpush.bf16.msra.mxu0 %v549
    %613 = vmatpush.bf16.msra.mxu0 %v548
    %614 = vmatpush.bf16.msra.mxu0 %v547
    %615 = vmatpush.bf16.msra.mxu0 %v546
    %616 = vmatpush.bf16.msra.mxu0 %v545
    %617 = vmatpush.bf16.msra.mxu0 %v544
    %618 = vmatpush.bf16.msra.mxu0 %v543
    %619 = vmatmul.bf16.gmra.mxu0 %v591
    %v620 = vpop.f32.mrf.mxu0
    %v621 = vadd.f32 0.0, %v620
    %v622 = vpop.f32.mrf.mxu0
    %v623 = vadd.f32 0.0, %v622
    %624 = vmatmul.bf16.gmra.mxu0 %v592
    %v625 = vpop.f32.mrf.mxu0
    %v626 = vadd.f32 0.0, %v625
    %v627 = vpop.f32.mrf.mxu0
    %v628 = vadd.f32 0.0, %v627
    %629 = vmatmul.bf16.gmra.mxu0 %v593
    %v630 = vpop.f32.mrf.mxu0
    %v631 = vadd.f32 0.0, %v630
    %v632 = vpop.f32.mrf.mxu0
    %v633 = vadd.f32 0.0, %v632
    %634 = vmatmul.bf16.gmra.mxu0 %v594
    %v635 = vpop.f32.mrf.mxu0
    %v636 = vadd.f32 0.0, %v635
    %v637 = vpop.f32.mrf.mxu0
    %v638 = vadd.f32 0.0, %v637
    %639 = vmatmul.bf16.gmra.mxu0 %v595
    %v640 = vpop.f32.mrf.mxu0
    %v641 = vadd.f32 0.0, %v640
    %v642 = vpop.f32.mrf.mxu0
    %v643 = vadd.f32 0.0, %v642
    %644 = vmatmul.bf16.gmra.mxu0 %v596
    %v645 = vpop.f32.mrf.mxu0
    %v646 = vadd.f32 0.0, %v645
    %v647 = vpop.f32.mrf.mxu0
    %v648 = vadd.f32 0.0, %v647
    %649 = vmatmul.bf16.gmra.mxu0 %v597
    %v650 = vpop.f32.mrf.mxu0
    %v651 = vadd.f32 0.0, %v650
    %v652 = vpop.f32.mrf.mxu0
    %v653 = vadd.f32 0.0, %v652
    %654 = vmatmul.bf16.gmra.mxu0 %v598
    %v655 = vpop.f32.mrf.mxu0
    %v656 = vadd.f32 0.0, %v655
    %v657 = vpop.f32.mrf.mxu0
    %v658 = vadd.f32 0.0, %v657
    %659 = vmatmul.bf16.gmra.mxu0 %v599
    %v660 = vpop.f32.mrf.mxu0
    %v661 = vadd.f32 0.0, %v660
    %v662 = vpop.f32.mrf.mxu0
    %v663 = vadd.f32 0.0, %v662
    %664 = vmatmul.bf16.gmra.mxu0 %v600
    %v665 = vpop.f32.mrf.mxu0
    %v666 = vadd.f32 0.0, %v665
    %v667 = vpop.f32.mrf.mxu0
    %v668 = vadd.f32 0.0, %v667
    %669 = vdwg.mxu0
    %v670 = vmul.f32 %v621, %v621
    %v671 = vmul.f32 %v623, %v623
    %v672 = vmul.f32 %v626, %v626
    %v673 = vmul.f32 %v628, %v628
    %v674 = vmul.f32 %v631, %v631
    %v675 = vmul.f32 %v633, %v633
    %v676 = vmul.f32 %v636, %v636
    %v677 = vmul.f32 %v638, %v638
    %v678 = vmul.f32 %v641, %v641
    %v679 = vmul.f32 %v643, %v643
    %v680 = vmul.f32 %v646, %v646
    %v681 = vmul.f32 %v648, %v648
    %v682 = vmul.f32 %v651, %v651
    %v683 = vmul.f32 %v653, %v653
    %v684 = vmul.f32 %v656, %v656
    %v685 = vmul.f32 %v658, %v658
    %v686 = vmul.f32 %v661, %v661
    %v687 = vmul.f32 %v663, %v663
    %v688 = vmul.f32 %v666, %v666
    %v689 = vmul.f32 %v668, %v668
    %v690 = vadd.f32 %v670, %v680
    %v691 = vadd.f32 %v671, %v681
    %v692 = vadd.f32 %v672, %v682
    %v693 = vadd.f32 %v673, %v683
    %v694 = vadd.f32 %v674, %v684
    %v695 = vadd.f32 %v675, %v685
    %v696 = vadd.f32 %v676, %v686
    %v697 = vadd.f32 %v677, %v687
    %v698 = vadd.f32 %v678, %v688
    %v699 = vadd.f32 %v679, %v689
    %v700 = vrsqrt.pop %v690
    %v701 = vmul.f32 %v700, %v690
    %v702 = vmul.f32 %v701, %v700
    %v703 = vmul.f32 0.5, %v702
    %v704 = vsub.f32 1.5, %v703
    %v705 = vmul.f32 %v700, %v704
    %v706 = vmul.f32 %v690, %v705
    %vm707 = vcmp.eq.f32.partialorder %v690, inf
    %v708 = vsel %vm707, %v690, %v706
    %vm709 = vcmp.eq.f32.partialorder %v690, 0.0
    %v710 = vand.u32 %v690, 2147483648
    %v711 = vsel %vm709, %v710, %v708
    %v712 = vrsqrt.pop %v691
    %v713 = vmul.f32 %v712, %v691
    %v714 = vmul.f32 %v713, %v712
    %v715 = vmul.f32 0.5, %v714
    %v716 = vsub.f32 1.5, %v715
    %v717 = vmul.f32 %v712, %v716
    %v718 = vmul.f32 %v691, %v717
    %vm719 = vcmp.eq.f32.partialorder %v691, inf
    %v720 = vsel %vm719, %v691, %v718
    %vm721 = vcmp.eq.f32.partialorder %v691, 0.0
    %v722 = vand.u32 %v691, 2147483648
    %v723 = vsel %vm721, %v722, %v720
    %v724 = vrsqrt.pop %v692
    %v725 = vmul.f32 %v724, %v692
    %v726 = vmul.f32 %v725, %v724
    %v727 = vmul.f32 0.5, %v726
    %v728 = vsub.f32 1.5, %v727
    %v729 = vmul.f32 %v724, %v728
    %v730 = vmul.f32 %v692, %v729
    %vm731 = vcmp.eq.f32.partialorder %v692, inf
    %v732 = vsel %vm731, %v692, %v730
    %vm733 = vcmp.eq.f32.partialorder %v692, 0.0
    %v734 = vand.u32 %v692, 2147483648
    %v735 = vsel %vm733, %v734, %v732
    %v736 = vrsqrt.pop %v693
    %v737 = vmul.f32 %v736, %v693
    %v738 = vmul.f32 %v737, %v736
    %v739 = vmul.f32 0.5, %v738
    %v740 = vsub.f32 1.5, %v739
    %v741 = vmul.f32 %v736, %v740
    %v742 = vmul.f32 %v693, %v741
    %vm743 = vcmp.eq.f32.partialorder %v693, inf
    %v744 = vsel %vm743, %v693, %v742
    %vm745 = vcmp.eq.f32.partialorder %v693, 0.0
    %v746 = vand.u32 %v693, 2147483648
    %v747 = vsel %vm745, %v746, %v744
    %v748 = vrsqrt.pop %v694
    %v749 = vmul.f32 %v748, %v694
    %v750 = vmul.f32 %v749, %v748
    %v751 = vmul.f32 0.5, %v750
    %v752 = vsub.f32 1.5, %v751
    %v753 = vmul.f32 %v748, %v752
    %v754 = vmul.f32 %v694, %v753
    %vm755 = vcmp.eq.f32.partialorder %v694, inf
    %v756 = vsel %vm755, %v694, %v754
    %vm757 = vcmp.eq.f32.partialorder %v694, 0.0
    %v758 = vand.u32 %v694, 2147483648
    %v759 = vsel %vm757, %v758, %v756
    %v760 = vrsqrt.pop %v695
    %v761 = vmul.f32 %v760, %v695
    %v762 = vmul.f32 %v761, %v760
    %v763 = vmul.f32 0.5, %v762
    %v764 = vsub.f32 1.5, %v763
    %v765 = vmul.f32 %v760, %v764
    %v766 = vmul.f32 %v695, %v765
    %vm767 = vcmp.eq.f32.partialorder %v695, inf
    %v768 = vsel %vm767, %v695, %v766
    %vm769 = vcmp.eq.f32.partialorder %v695, 0.0
    %v770 = vand.u32 %v695, 2147483648
    %v771 = vsel %vm769, %v770, %v768
    %v772 = vrsqrt.pop %v696
    %v773 = vmul.f32 %v772, %v696
    %v774 = vmul.f32 %v773, %v772
    %v775 = vmul.f32 0.5, %v774
    %v776 = vsub.f32 1.5, %v775
    %v777 = vmul.f32 %v772, %v776
    %v778 = vmul.f32 %v696, %v777
    %vm779 = vcmp.eq.f32.partialorder %v696, inf
    %v780 = vsel %vm779, %v696, %v778
    %vm781 = vcmp.eq.f32.partialorder %v696, 0.0
    %v782 = vand.u32 %v696, 2147483648
    %v783 = vsel %vm781, %v782, %v780
    %v784 = vrsqrt.pop %v697
    %v785 = vmul.f32 %v784, %v697
    %v786 = vmul.f32 %v785, %v784
    %v787 = vmul.f32 0.5, %v786
    %v788 = vsub.f32 1.5, %v787
    %v789 = vmul.f32 %v784, %v788
    %v790 = vmul.f32 %v697, %v789
    %vm791 = vcmp.eq.f32.partialorder %v697, inf
    %v792 = vsel %vm791, %v697, %v790
    %vm793 = vcmp.eq.f32.partialorder %v697, 0.0
    %v794 = vand.u32 %v697, 2147483648
    %v795 = vsel %vm793, %v794, %v792
    %v796 = vrsqrt.pop %v698
    %v797 = vmul.f32 %v796, %v698
    %v798 = vmul.f32 %v797, %v796
    %v799 = vmul.f32 0.5, %v798
    %v800 = vsub.f32 1.5, %v799
    %v801 = vmul.f32 %v796, %v800
    %v802 = vmul.f32 %v698, %v801
    %vm803 = vcmp.eq.f32.partialorder %v698, inf
    %v804 = vsel %vm803, %v698, %v802
    %vm805 = vcmp.eq.f32.partialorder %v698, 0.0
    %v806 = vand.u32 %v698, 2147483648
    %v807 = vsel %vm805, %v806, %v804
    %v808 = vrsqrt.pop %v699
    %v809 = vmul.f32 %v808, %v699
    %v810 = vmul.f32 %v809, %v808
    %v811 = vmul.f32 0.5, %v810
    %v812 = vsub.f32 1.5, %v811
    %v813 = vmul.f32 %v808, %v812
    %v814 = vmul.f32 %v699, %v813
    %vm815 = vcmp.eq.f32.partialorder %v699, inf
    %v816 = vsel %vm815, %v699, %v814
    %vm817 = vcmp.eq.f32.partialorder %v699, 0.0
    %v818 = vand.u32 %v699, 2147483648
    %v819 = vsel %vm817, %v818, %v816
    %v820 = vand.u32 2147483647, %v621
    %v821 = vand.u32 2147483647, %v623
    %v822 = vand.u32 2147483647, %v626
    %v823 = vand.u32 2147483647, %v628
    %v824 = vand.u32 2147483647, %v631
    %v825 = vand.u32 2147483647, %v633
    %v826 = vand.u32 2147483647, %v636
    %v827 = vand.u32 2147483647, %v638
    %v828 = vand.u32 2147483647, %v641
    %v829 = vand.u32 2147483647, %v643
    %v830 = vand.u32 2147483647, %v646
    %v831 = vand.u32 2147483647, %v648
    %v832 = vand.u32 2147483647, %v651
    %v833 = vand.u32 2147483647, %v653
    %v834 = vand.u32 2147483647, %v656
    %v835 = vand.u32 2147483647, %v658
    %v836 = vand.u32 2147483647, %v661
    %v837 = vand.u32 2147483647, %v663
    %v838 = vand.u32 2147483647, %v666
    %v839 = vand.u32 2147483647, %v668
    %v840 = vmax.f32 %v820, %v830
    %v841 = vmax.f32 %v821, %v831
    %v842 = vmax.f32 %v822, %v832
    %v843 = vmax.f32 %v823, %v833
    %v844 = vmax.f32 %v824, %v834
    %v845 = vmax.f32 %v825, %v835
    %v846 = vmax.f32 %v826, %v836
    %v847 = vmax.f32 %v827, %v837
    %v848 = vmax.f32 %v828, %v838
    %v849 = vmax.f32 %v829, %v839
    %v850 = vmin.f32 %v820, %v830
    %v851 = vmin.f32 %v821, %v831
    %v852 = vmin.f32 %v822, %v832
    %v853 = vmin.f32 %v823, %v833
    %v854 = vmin.f32 %v824, %v834
    %v855 = vmin.f32 %v825, %v835
    %v856 = vmin.f32 %v826, %v836
    %v857 = vmin.f32 %v827, %v837
    %v858 = vmin.f32 %v828, %v838
    %v859 = vmin.f32 %v829, %v839
    %v860 = vmax.f32 %v840, 1e-30
    %v861 = vmax.f32 %v841, 1e-30
    %v862 = vmax.f32 %v842, 1e-30
    %v863 = vmax.f32 %v843, 1e-30
    %v864 = vmax.f32 %v844, 1e-30
    %v865 = vmax.f32 %v845, 1e-30
    %v866 = vmax.f32 %v846, 1e-30
    %v867 = vmax.f32 %v847, 1e-30
    %v868 = vmax.f32 %v848, 1e-30
    %v869 = vmax.f32 %v849, 1e-30
    %v870 = vrcp.pop %v860
    %v871 = vmul.f32 %v860, %v870
    %v872 = vsub.f32 1.0, %v871
    %v873 = vmul.f32 %v870, %v872
    %v874 = vadd.f32 %v870, %v873
    %vm875 = vweird.f32 %v860
    %vm876 = vweird.f32 %v870
    %vm877 = vmor %vm875, %vm876
    %v878 = vsel %vm877, %v870, %v874
    %v879 = vand.u32 2147483647, %v860
    %vm880 = vcmp.eq.f32.partialorder %v879, 8.507059e+37
    %v881 = vand.u32 %v860, 2147483648
    %v882 = vor.u32 1.1754944e-38, %v881
    %v883 = vsel %vm880, %v882, %v878
    %v884 = vmul.f32 %v850, %v883
    %v885 = vrcp.pop %v861
    %v886 = vmul.f32 %v861, %v885
    %v887 = vsub.f32 1.0, %v886
    %v888 = vmul.f32 %v885, %v887
    %v889 = vadd.f32 %v885, %v888
    %vm890 = vweird.f32 %v861
    %vm891 = vweird.f32 %v885
    %vm892 = vmor %vm890, %vm891
    %v893 = vsel %vm892, %v885, %v889
    %v894 = vand.u32 2147483647, %v861
    %vm895 = vcmp.eq.f32.partialorder %v894, 8.507059e+37
    %v896 = vand.u32 %v861, 2147483648
    %v897 = vor.u32 1.1754944e-38, %v896
    %v898 = vsel %vm895, %v897, %v893
    %v899 = vmul.f32 %v851, %v898
    %v900 = vrcp.pop %v862
    %v901 = vmul.f32 %v862, %v900
    %v902 = vsub.f32 1.0, %v901
    %v903 = vmul.f32 %v900, %v902
    %v904 = vadd.f32 %v900, %v903
    %vm905 = vweird.f32 %v862
    %vm906 = vweird.f32 %v900
    %vm907 = vmor %vm905, %vm906
    %v908 = vsel %vm907, %v900, %v904
    %v909 = vand.u32 2147483647, %v862
    %vm910 = vcmp.eq.f32.partialorder %v909, 8.507059e+37
    %v911 = vand.u32 %v862, 2147483648
    %v912 = vor.u32 1.1754944e-38, %v911
    %v913 = vsel %vm910, %v912, %v908
    %v914 = vmul.f32 %v852, %v913
    %v915 = vrcp.pop %v863
    %v916 = vmul.f32 %v863, %v915
    %v917 = vsub.f32 1.0, %v916
    %v918 = vmul.f32 %v915, %v917
    %v919 = vadd.f32 %v915, %v918
    %vm920 = vweird.f32 %v863
    %vm921 = vweird.f32 %v915
    %vm922 = vmor %vm920, %vm921
    %v923 = vsel %vm922, %v915, %v919
    %v924 = vand.u32 2147483647, %v863
    %vm925 = vcmp.eq.f32.partialorder %v924, 8.507059e+37
    %v926 = vand.u32 %v863, 2147483648
    %v927 = vor.u32 1.1754944e-38, %v926
    %v928 = vsel %vm925, %v927, %v923
    %v929 = vmul.f32 %v853, %v928
    %v930 = vrcp.pop %v864
    %v931 = vmul.f32 %v864, %v930
    %v932 = vsub.f32 1.0, %v931
    %v933 = vmul.f32 %v930, %v932
    %v934 = vadd.f32 %v930, %v933
    %vm935 = vweird.f32 %v864
    %vm936 = vweird.f32 %v930
    %vm937 = vmor %vm935, %vm936
    %v938 = vsel %vm937, %v930, %v934
    %v939 = vand.u32 2147483647, %v864
    %vm940 = vcmp.eq.f32.partialorder %v939, 8.507059e+37
    %v941 = vand.u32 %v864, 2147483648
    %v942 = vor.u32 1.1754944e-38, %v941
    %v943 = vsel %vm940, %v942, %v938
    %v944 = vmul.f32 %v854, %v943
    %v945 = vrcp.pop %v865
    %v946 = vmul.f32 %v865, %v945
    %v947 = vsub.f32 1.0, %v946
    %v948 = vmul.f32 %v945, %v947
    %v949 = vadd.f32 %v945, %v948
    %vm950 = vweird.f32 %v865
    %vm951 = vweird.f32 %v945
    %vm952 = vmor %vm950, %vm951
    %v953 = vsel %vm952, %v945, %v949
    %v954 = vand.u32 2147483647, %v865
    %vm955 = vcmp.eq.f32.partialorder %v954, 8.507059e+37
    %v956 = vand.u32 %v865, 2147483648
    %v957 = vor.u32 1.1754944e-38, %v956
    %v958 = vsel %vm955, %v957, %v953
    %v959 = vmul.f32 %v855, %v958
    %v960 = vrcp.pop %v866
    %v961 = vmul.f32 %v866, %v960
    %v962 = vsub.f32 1.0, %v961
    %v963 = vmul.f32 %v960, %v962
    %v964 = vadd.f32 %v960, %v963
    %vm965 = vweird.f32 %v866
    %vm966 = vweird.f32 %v960
    %vm967 = vmor %vm965, %vm966
    %v968 = vsel %vm967, %v960, %v964
    %v969 = vand.u32 2147483647, %v866
    %vm970 = vcmp.eq.f32.partialorder %v969, 8.507059e+37
    %v971 = vand.u32 %v866, 2147483648
    %v972 = vor.u32 1.1754944e-38, %v971
    %v973 = vsel %vm970, %v972, %v968
    %v974 = vmul.f32 %v856, %v973
    %v975 = vrcp.pop %v867
    %v976 = vmul.f32 %v867, %v975
    %v977 = vsub.f32 1.0, %v976
    %v978 = vmul.f32 %v975, %v977
    %v979 = vadd.f32 %v975, %v978
    %vm980 = vweird.f32 %v867
    %vm981 = vweird.f32 %v975
    %vm982 = vmor %vm980, %vm981
    %v983 = vsel %vm982, %v975, %v979
    %v984 = vand.u32 2147483647, %v867
    %vm985 = vcmp.eq.f32.partialorder %v984, 8.507059e+37
    %v986 = vand.u32 %v867, 2147483648
    %v987 = vor.u32 1.1754944e-38, %v986
    %v988 = vsel %vm985, %v987, %v983
    %v989 = vmul.f32 %v857, %v988
    %v990 = vrcp.pop %v868
    %v991 = vmul.f32 %v868, %v990
    %v992 = vsub.f32 1.0, %v991
    %v993 = vmul.f32 %v990, %v992
    %v994 = vadd.f32 %v990, %v993
    %vm995 = vweird.f32 %v868
    %vm996 = vweird.f32 %v990
    %vm997 = vmor %vm995, %vm996
    %v998 = vsel %vm997, %v990, %v994
    %v999 = vand.u32 2147483647, %v868
    %vm1000 = vcmp.eq.f32.partialorder %v999, 8.507059e+37
    %v1001 = vand.u32 %v868, 2147483648
    %v1002 = vor.u32 1.1754944e-38, %v1001
    %v1003 = vsel %vm1000, %v1002, %v998
    %v1004 = vmul.f32 %v858, %v1003
    %v1005 = vrcp.pop %v869
    %v1006 = vmul.f32 %v869, %v1005
    %v1007 = vsub.f32 1.0, %v1006
    %v1008 = vmul.f32 %v1005, %v1007
    %v1009 = vadd.f32 %v1005, %v1008
    %vm1010 = vweird.f32 %v869
    %vm1011 = vweird.f32 %v1005
    %vm1012 = vmor %vm1010, %vm1011
    %v1013 = vsel %vm1012, %v1005, %v1009
    %v1014 = vand.u32 2147483647, %v869
    %vm1015 = vcmp.eq.f32.partialorder %v1014, 8.507059e+37
    %v1016 = vand.u32 %v869, 2147483648
    %v1017 = vor.u32 1.1754944e-38, %v1016
    %v1018 = vsel %vm1015, %v1017, %v1013
    %v1019 = vmul.f32 %v859, %v1018
    %v1020 = vmul.f32 %v884, %v884
    %v1021 = vmul.f32 %v899, %v899
    %v1022 = vmul.f32 %v914, %v914
    %v1023 = vmul.f32 %v929, %v929
    %v1024 = vmul.f32 %v944, %v944
    %v1025 = vmul.f32 %v959, %v959
    %v1026 = vmul.f32 %v974, %v974
    %v1027 = vmul.f32 %v989, %v989
    %v1028 = vmul.f32 %v1004, %v1004
    %v1029 = vmul.f32 %v1019, %v1019
    %v1030 = vadd.f32 %v1020, 1.0
    %v1031 = vadd.f32 %v1021, 1.0
    %v1032 = vadd.f32 %v1022, 1.0
    %v1033 = vadd.f32 %v1023, 1.0
    %v1034 = vadd.f32 %v1024, 1.0
    %v1035 = vadd.f32 %v1025, 1.0
    %v1036 = vadd.f32 %v1026, 1.0
    %v1037 = vadd.f32 %v1027, 1.0
    %v1038 = vadd.f32 %v1028, 1.0
    %v1039 = vadd.f32 %v1029, 1.0
    %v1040 = vrsqrt.pop %v1030
    %v1041 = vmul.f32 %v1040, %v1030
    %v1042 = vmul.f32 %v1041, %v1040
    %v1043 = vmul.f32 0.5, %v1042
    %v1044 = vsub.f32 1.5, %v1043
    %v1045 = vmul.f32 %v1040, %v1044
    %v1046 = vmul.f32 %v1030, %v1045
    %vm1047 = vcmp.eq.f32.partialorder %v1030, inf
    %v1048 = vsel %vm1047, %v1030, %v1046
    %vm1049 = vcmp.eq.f32.partialorder %v1030, 0.0
    %v1050 = vand.u32 %v1030, 2147483648
    %v1051 = vsel %vm1049, %v1050, %v1048
    %v1052 = vrsqrt.pop %v1031
    %v1053 = vmul.f32 %v1052, %v1031
    %v1054 = vmul.f32 %v1053, %v1052
    %v1055 = vmul.f32 0.5, %v1054
    %v1056 = vsub.f32 1.5, %v1055
    %v1057 = vmul.f32 %v1052, %v1056
    %v1058 = vmul.f32 %v1031, %v1057
    %vm1059 = vcmp.eq.f32.partialorder %v1031, inf
    %v1060 = vsel %vm1059, %v1031, %v1058
    %vm1061 = vcmp.eq.f32.partialorder %v1031, 0.0
    %v1062 = vand.u32 %v1031, 2147483648
    %v1063 = vsel %vm1061, %v1062, %v1060
    %v1064 = vrsqrt.pop %v1032
    %v1065 = vmul.f32 %v1064, %v1032
    %v1066 = vmul.f32 %v1065, %v1064
    %v1067 = vmul.f32 0.5, %v1066
    %v1068 = vsub.f32 1.5, %v1067
    %v1069 = vmul.f32 %v1064, %v1068
    %v1070 = vmul.f32 %v1032, %v1069
    %vm1071 = vcmp.eq.f32.partialorder %v1032, inf
    %v1072 = vsel %vm1071, %v1032, %v1070
    %vm1073 = vcmp.eq.f32.partialorder %v1032, 0.0
    %v1074 = vand.u32 %v1032, 2147483648
    %v1075 = vsel %vm1073, %v1074, %v1072
    %v1076 = vrsqrt.pop %v1033
    %v1077 = vmul.f32 %v1076, %v1033
    %v1078 = vmul.f32 %v1077, %v1076
    %v1079 = vmul.f32 0.5, %v1078
    %v1080 = vsub.f32 1.5, %v1079
    %v1081 = vmul.f32 %v1076, %v1080
    %v1082 = vmul.f32 %v1033, %v1081
    %vm1083 = vcmp.eq.f32.partialorder %v1033, inf
    %v1084 = vsel %vm1083, %v1033, %v1082
    %vm1085 = vcmp.eq.f32.partialorder %v1033, 0.0
    %v1086 = vand.u32 %v1033, 2147483648
    %v1087 = vsel %vm1085, %v1086, %v1084
    %v1088 = vrsqrt.pop %v1034
    %v1089 = vmul.f32 %v1088, %v1034
    %v1090 = vmul.f32 %v1089, %v1088
    %v1091 = vmul.f32 0.5, %v1090
    %v1092 = vsub.f32 1.5, %v1091
    %v1093 = vmul.f32 %v1088, %v1092
    %v1094 = vmul.f32 %v1034, %v1093
    %vm1095 = vcmp.eq.f32.partialorder %v1034, inf
    %v1096 = vsel %vm1095, %v1034, %v1094
    %vm1097 = vcmp.eq.f32.partialorder %v1034, 0.0
    %v1098 = vand.u32 %v1034, 2147483648
    %v1099 = vsel %vm1097, %v1098, %v1096
    %v1100 = vrsqrt.pop %v1035
    %v1101 = vmul.f32 %v1100, %v1035
    %v1102 = vmul.f32 %v1101, %v1100
    %v1103 = vmul.f32 0.5, %v1102
    %v1104 = vsub.f32 1.5, %v1103
    %v1105 = vmul.f32 %v1100, %v1104
    %v1106 = vmul.f32 %v1035, %v1105
    %vm1107 = vcmp.eq.f32.partialorder %v1035, inf
    %v1108 = vsel %vm1107, %v1035, %v1106
    %vm1109 = vcmp.eq.f32.partialorder %v1035, 0.0
    %v1110 = vand.u32 %v1035, 2147483648
    %v1111 = vsel %vm1109, %v1110, %v1108
    %v1112 = vrsqrt.pop %v1036
    %v1113 = vmul.f32 %v1112, %v1036
    %v1114 = vmul.f32 %v1113, %v1112
    %v1115 = vmul.f32 0.5, %v1114
    %v1116 = vsub.f32 1.5, %v1115
    %v1117 = vmul.f32 %v1112, %v1116
    %v1118 = vmul.f32 %v1036, %v1117
    %vm1119 = vcmp.eq.f32.partialorder %v1036, inf
    %v1120 = vsel %vm1119, %v1036, %v1118
    %vm1121 = vcmp.eq.f32.partialorder %v1036, 0.0
    %v1122 = vand.u32 %v1036, 2147483648
    %v1123 = vsel %vm1121, %v1122, %v1120
    %v1124 = vrsqrt.pop %v1037
    %v1125 = vmul.f32 %v1124, %v1037
    %v1126 = vmul.f32 %v1125, %v1124
    %v1127 = vmul.f32 0.5, %v1126
    %v1128 = vsub.f32 1.5, %v1127
    %v1129 = vmul.f32 %v1124, %v1128
    %v1130 = vmul.f32 %v1037, %v1129
    %vm1131 = vcmp.eq.f32.partialorder %v1037, inf
    %v1132 = vsel %vm1131, %v1037, %v1130
    %vm1133 = vcmp.eq.f32.partialorder %v1037, 0.0
    %v1134 = vand.u32 %v1037, 2147483648
    %v1135 = vsel %vm1133, %v1134, %v1132
    %v1136 = vrsqrt.pop %v1038
    %v1137 = vmul.f32 %v1136, %v1038
    %v1138 = vmul.f32 %v1137, %v1136
    %v1139 = vmul.f32 0.5, %v1138
    %v1140 = vsub.f32 1.5, %v1139
    %v1141 = vmul.f32 %v1136, %v1140
    %v1142 = vmul.f32 %v1038, %v1141
    %vm1143 = vcmp.eq.f32.partialorder %v1038, inf
    %v1144 = vsel %vm1143, %v1038, %v1142
    %vm1145 = vcmp.eq.f32.partialorder %v1038, 0.0
    %v1146 = vand.u32 %v1038, 2147483648
    %v1147 = vsel %vm1145, %v1146, %v1144
    %v1148 = vrsqrt.pop %v1039
    %v1149 = vmul.f32 %v1148, %v1039
    %v1150 = vmul.f32 %v1149, %v1148
    %v1151 = vmul.f32 0.5, %v1150
    %v1152 = vsub.f32 1.5, %v1151
    %v1153 = vmul.f32 %v1148, %v1152
    %v1154 = vmul.f32 %v1039, %v1153
    %vm1155 = vcmp.eq.f32.partialorder %v1039, inf
    %v1156 = vsel %vm1155, %v1039, %v1154
    %vm1157 = vcmp.eq.f32.partialorder %v1039, 0.0
    %v1158 = vand.u32 %v1039, 2147483648
    %v1159 = vsel %vm1157, %v1158, %v1156
    %v1160 = vadd.f32 %v1051, 1.0
    %v1161 = vadd.f32 %v1063, 1.0
    %v1162 = vadd.f32 %v1075, 1.0
    %v1163 = vadd.f32 %v1087, 1.0
    %v1164 = vadd.f32 %v1099, 1.0
    %v1165 = vadd.f32 %v1111, 1.0
    %v1166 = vadd.f32 %v1123, 1.0
    %v1167 = vadd.f32 %v1135, 1.0
    %v1168 = vadd.f32 %v1147, 1.0
    %v1169 = vadd.f32 %v1159, 1.0
    %v1170 = vrcp.pop %v1160
    %v1171 = vmul.f32 %v1160, %v1170
    %v1172 = vsub.f32 1.0, %v1171
    %v1173 = vmul.f32 %v1170, %v1172
    %v1174 = vadd.f32 %v1170, %v1173
    %vm1175 = vweird.f32 %v1160
    %vm1176 = vweird.f32 %v1170
    %vm1177 = vmor %vm1175, %vm1176
    %v1178 = vsel %vm1177, %v1170, %v1174
    %v1179 = vand.u32 2147483647, %v1160
    %vm1180 = vcmp.eq.f32.partialorder %v1179, 8.507059e+37
    %v1181 = vand.u32 %v1160, 2147483648
    %v1182 = vor.u32 1.1754944e-38, %v1181
    %v1183 = vsel %vm1180, %v1182, %v1178
    %v1184 = vmul.f32 %v884, %v1183
    %v1185 = vrcp.pop %v1161
    %v1186 = vmul.f32 %v1161, %v1185
    %v1187 = vsub.f32 1.0, %v1186
    %v1188 = vmul.f32 %v1185, %v1187
    %v1189 = vadd.f32 %v1185, %v1188
    %vm1190 = vweird.f32 %v1161
    %vm1191 = vweird.f32 %v1185
    %vm1192 = vmor %vm1190, %vm1191
    %v1193 = vsel %vm1192, %v1185, %v1189
    %v1194 = vand.u32 2147483647, %v1161
    %vm1195 = vcmp.eq.f32.partialorder %v1194, 8.507059e+37
    %v1196 = vand.u32 %v1161, 2147483648
    %v1197 = vor.u32 1.1754944e-38, %v1196
    %v1198 = vsel %vm1195, %v1197, %v1193
    %v1199 = vmul.f32 %v899, %v1198
    %v1200 = vrcp.pop %v1162
    %v1201 = vmul.f32 %v1162, %v1200
    %v1202 = vsub.f32 1.0, %v1201
    %v1203 = vmul.f32 %v1200, %v1202
    %v1204 = vadd.f32 %v1200, %v1203
    %vm1205 = vweird.f32 %v1162
    %vm1206 = vweird.f32 %v1200
    %vm1207 = vmor %vm1205, %vm1206
    %v1208 = vsel %vm1207, %v1200, %v1204
    %v1209 = vand.u32 2147483647, %v1162
    %vm1210 = vcmp.eq.f32.partialorder %v1209, 8.507059e+37
    %v1211 = vand.u32 %v1162, 2147483648
    %v1212 = vor.u32 1.1754944e-38, %v1211
    %v1213 = vsel %vm1210, %v1212, %v1208
    %v1214 = vmul.f32 %v914, %v1213
    %v1215 = vrcp.pop %v1163
    %v1216 = vmul.f32 %v1163, %v1215
    %v1217 = vsub.f32 1.0, %v1216
    %v1218 = vmul.f32 %v1215, %v1217
    %v1219 = vadd.f32 %v1215, %v1218
    %vm1220 = vweird.f32 %v1163
    %vm1221 = vweird.f32 %v1215
    %vm1222 = vmor %vm1220, %vm1221
    %v1223 = vsel %vm1222, %v1215, %v1219
    %v1224 = vand.u32 2147483647, %v1163
    %vm1225 = vcmp.eq.f32.partialorder %v1224, 8.507059e+37
    %v1226 = vand.u32 %v1163, 2147483648
    %v1227 = vor.u32 1.1754944e-38, %v1226
    %v1228 = vsel %vm1225, %v1227, %v1223
    %v1229 = vmul.f32 %v929, %v1228
    %v1230 = vrcp.pop %v1164
    %v1231 = vmul.f32 %v1164, %v1230
    %v1232 = vsub.f32 1.0, %v1231
    %v1233 = vmul.f32 %v1230, %v1232
    %v1234 = vadd.f32 %v1230, %v1233
    %vm1235 = vweird.f32 %v1164
    %vm1236 = vweird.f32 %v1230
    %vm1237 = vmor %vm1235, %vm1236
    %v1238 = vsel %vm1237, %v1230, %v1234
    %v1239 = vand.u32 2147483647, %v1164
    %vm1240 = vcmp.eq.f32.partialorder %v1239, 8.507059e+37
    %v1241 = vand.u32 %v1164, 2147483648
    %v1242 = vor.u32 1.1754944e-38, %v1241
    %v1243 = vsel %vm1240, %v1242, %v1238
    %v1244 = vmul.f32 %v944, %v1243
    %v1245 = vrcp.pop %v1165
    %v1246 = vmul.f32 %v1165, %v1245
    %v1247 = vsub.f32 1.0, %v1246
    %v1248 = vmul.f32 %v1245, %v1247
    %v1249 = vadd.f32 %v1245, %v1248
    %vm1250 = vweird.f32 %v1165
    %vm1251 = vweird.f32 %v1245
    %vm1252 = vmor %vm1250, %vm1251
    %v1253 = vsel %vm1252, %v1245, %v1249
    %v1254 = vand.u32 2147483647, %v1165
    %vm1255 = vcmp.eq.f32.partialorder %v1254, 8.507059e+37
    %v1256 = vand.u32 %v1165, 2147483648
    %v1257 = vor.u32 1.1754944e-38, %v1256
    %v1258 = vsel %vm1255, %v1257, %v1253
    %v1259 = vmul.f32 %v959, %v1258
    %v1260 = vrcp.pop %v1166
    %v1261 = vmul.f32 %v1166, %v1260
    %v1262 = vsub.f32 1.0, %v1261
    %v1263 = vmul.f32 %v1260, %v1262
    %v1264 = vadd.f32 %v1260, %v1263
    %vm1265 = vweird.f32 %v1166
    %vm1266 = vweird.f32 %v1260
    %vm1267 = vmor %vm1265, %vm1266
    %v1268 = vsel %vm1267, %v1260, %v1264
    %v1269 = vand.u32 2147483647, %v1166
    %vm1270 = vcmp.eq.f32.partialorder %v1269, 8.507059e+37
    %v1271 = vand.u32 %v1166, 2147483648
    %v1272 = vor.u32 1.1754944e-38, %v1271
    %v1273 = vsel %vm1270, %v1272, %v1268
    %v1274 = vmul.f32 %v974, %v1273
    %v1275 = vrcp.pop %v1167
    %v1276 = vmul.f32 %v1167, %v1275
    %v1277 = vsub.f32 1.0, %v1276
    %v1278 = vmul.f32 %v1275, %v1277
    %v1279 = vadd.f32 %v1275, %v1278
    %vm1280 = vweird.f32 %v1167
    %vm1281 = vweird.f32 %v1275
    %vm1282 = vmor %vm1280, %vm1281
    %v1283 = vsel %vm1282, %v1275, %v1279
    %v1284 = vand.u32 2147483647, %v1167
    %vm1285 = vcmp.eq.f32.partialorder %v1284, 8.507059e+37
    %v1286 = vand.u32 %v1167, 2147483648
    %v1287 = vor.u32 1.1754944e-38, %v1286
    %v1288 = vsel %vm1285, %v1287, %v1283
    %v1289 = vmul.f32 %v989, %v1288
    %v1290 = vrcp.pop %v1168
    %v1291 = vmul.f32 %v1168, %v1290
    %v1292 = vsub.f32 1.0, %v1291
    %v1293 = vmul.f32 %v1290, %v1292
    %v1294 = vadd.f32 %v1290, %v1293
    %vm1295 = vweird.f32 %v1168
    %vm1296 = vweird.f32 %v1290
    %vm1297 = vmor %vm1295, %vm1296
    %v1298 = vsel %vm1297, %v1290, %v1294
    %v1299 = vand.u32 2147483647, %v1168
    %vm1300 = vcmp.eq.f32.partialorder %v1299, 8.507059e+37
    %v1301 = vand.u32 %v1168, 2147483648
    %v1302 = vor.u32 1.1754944e-38, %v1301
    %v1303 = vsel %vm1300, %v1302, %v1298
    %v1304 = vmul.f32 %v1004, %v1303
    %v1305 = vrcp.pop %v1169
    %v1306 = vmul.f32 %v1169, %v1305
    %v1307 = vsub.f32 1.0, %v1306
    %v1308 = vmul.f32 %v1305, %v1307
    %v1309 = vadd.f32 %v1305, %v1308
    %vm1310 = vweird.f32 %v1169
    %vm1311 = vweird.f32 %v1305
    %vm1312 = vmor %vm1310, %vm1311
    %v1313 = vsel %vm1312, %v1305, %v1309
    %v1314 = vand.u32 2147483647, %v1169
    %vm1315 = vcmp.eq.f32.partialorder %v1314, 8.507059e+37
    %v1316 = vand.u32 %v1169, 2147483648
    %v1317 = vor.u32 1.1754944e-38, %v1316
    %v1318 = vsel %vm1315, %v1317, %v1313
    %v1319 = vmul.f32 %v1019, %v1318
    %v1320 = vmul.f32 %v1184, %v1184
    %v1321 = vmul.f32 %v1199, %v1199
    %v1322 = vmul.f32 %v1214, %v1214
    %v1323 = vmul.f32 %v1229, %v1229
    %v1324 = vmul.f32 %v1244, %v1244
    %v1325 = vmul.f32 %v1259, %v1259
    %v1326 = vmul.f32 %v1274, %v1274
    %v1327 = vmul.f32 %v1289, %v1289
    %v1328 = vmul.f32 %v1304, %v1304
    %v1329 = vmul.f32 %v1319, %v1319
    %v1330 = vadd.f32 %v1320, 1.0
    %v1331 = vadd.f32 %v1321, 1.0
    %v1332 = vadd.f32 %v1322, 1.0
    %v1333 = vadd.f32 %v1323, 1.0
    %v1334 = vadd.f32 %v1324, 1.0
    %v1335 = vadd.f32 %v1325, 1.0
    %v1336 = vadd.f32 %v1326, 1.0
    %v1337 = vadd.f32 %v1327, 1.0
    %v1338 = vadd.f32 %v1328, 1.0
    %v1339 = vadd.f32 %v1329, 1.0
    %v1340 = vrsqrt.pop %v1330
    %v1341 = vmul.f32 %v1340, %v1330
    %v1342 = vmul.f32 %v1341, %v1340
    %v1343 = vmul.f32 0.5, %v1342
    %v1344 = vsub.f32 1.5, %v1343
    %v1345 = vmul.f32 %v1340, %v1344
    %v1346 = vmul.f32 %v1330, %v1345
    %vm1347 = vcmp.eq.f32.partialorder %v1330, inf
    %v1348 = vsel %vm1347, %v1330, %v1346
    %vm1349 = vcmp.eq.f32.partialorder %v1330, 0.0
    %v1350 = vand.u32 %v1330, 2147483648
    %v1351 = vsel %vm1349, %v1350, %v1348
    %v1352 = vrsqrt.pop %v1331
    %v1353 = vmul.f32 %v1352, %v1331
    %v1354 = vmul.f32 %v1353, %v1352
    %v1355 = vmul.f32 0.5, %v1354
    %v1356 = vsub.f32 1.5, %v1355
    %v1357 = vmul.f32 %v1352, %v1356
    %v1358 = vmul.f32 %v1331, %v1357
    %vm1359 = vcmp.eq.f32.partialorder %v1331, inf
    %v1360 = vsel %vm1359, %v1331, %v1358
    %vm1361 = vcmp.eq.f32.partialorder %v1331, 0.0
    %v1362 = vand.u32 %v1331, 2147483648
    %v1363 = vsel %vm1361, %v1362, %v1360
    %v1364 = vrsqrt.pop %v1332
    %v1365 = vmul.f32 %v1364, %v1332
    %v1366 = vmul.f32 %v1365, %v1364
    %v1367 = vmul.f32 0.5, %v1366
    %v1368 = vsub.f32 1.5, %v1367
    %v1369 = vmul.f32 %v1364, %v1368
    %v1370 = vmul.f32 %v1332, %v1369
    %vm1371 = vcmp.eq.f32.partialorder %v1332, inf
    %v1372 = vsel %vm1371, %v1332, %v1370
    %vm1373 = vcmp.eq.f32.partialorder %v1332, 0.0
    %v1374 = vand.u32 %v1332, 2147483648
    %v1375 = vsel %vm1373, %v1374, %v1372
    %v1376 = vrsqrt.pop %v1333
    %v1377 = vmul.f32 %v1376, %v1333
    %v1378 = vmul.f32 %v1377, %v1376
    %v1379 = vmul.f32 0.5, %v1378
    %v1380 = vsub.f32 1.5, %v1379
    %v1381 = vmul.f32 %v1376, %v1380
    %v1382 = vmul.f32 %v1333, %v1381
    %vm1383 = vcmp.eq.f32.partialorder %v1333, inf
    %v1384 = vsel %vm1383, %v1333, %v1382
    %vm1385 = vcmp.eq.f32.partialorder %v1333, 0.0
    %v1386 = vand.u32 %v1333, 2147483648
    %v1387 = vsel %vm1385, %v1386, %v1384
    %v1388 = vrsqrt.pop %v1334
    %v1389 = vmul.f32 %v1388, %v1334
    %v1390 = vmul.f32 %v1389, %v1388
    %v1391 = vmul.f32 0.5, %v1390
    %v1392 = vsub.f32 1.5, %v1391
    %v1393 = vmul.f32 %v1388, %v1392
    %v1394 = vmul.f32 %v1334, %v1393
    %vm1395 = vcmp.eq.f32.partialorder %v1334, inf
    %v1396 = vsel %vm1395, %v1334, %v1394
    %vm1397 = vcmp.eq.f32.partialorder %v1334, 0.0
    %v1398 = vand.u32 %v1334, 2147483648
    %v1399 = vsel %vm1397, %v1398, %v1396
    %v1400 = vrsqrt.pop %v1335
    %v1401 = vmul.f32 %v1400, %v1335
    %v1402 = vmul.f32 %v1401, %v1400
    %v1403 = vmul.f32 0.5, %v1402
    %v1404 = vsub.f32 1.5, %v1403
    %v1405 = vmul.f32 %v1400, %v1404
    %v1406 = vmul.f32 %v1335, %v1405
    %vm1407 = vcmp.eq.f32.partialorder %v1335, inf
    %v1408 = vsel %vm1407, %v1335, %v1406
    %vm1409 = vcmp.eq.f32.partialorder %v1335, 0.0
    %v1410 = vand.u32 %v1335, 2147483648
    %v1411 = vsel %vm1409, %v1410, %v1408
    %v1412 = vrsqrt.pop %v1336
    %v1413 = vmul.f32 %v1412, %v1336
    %v1414 = vmul.f32 %v1413, %v1412
    %v1415 = vmul.f32 0.5, %v1414
    %v1416 = vsub.f32 1.5, %v1415
    %v1417 = vmul.f32 %v1412, %v1416
    %v1418 = vmul.f32 %v1336, %v1417
    %vm1419 = vcmp.eq.f32.partialorder %v1336, inf
    %v1420 = vsel %vm1419, %v1336, %v1418
    %vm1421 = vcmp.eq.f32.partialorder %v1336, 0.0
    %v1422 = vand.u32 %v1336, 2147483648
    %v1423 = vsel %vm1421, %v1422, %v1420
    %v1424 = vrsqrt.pop %v1337
    %v1425 = vmul.f32 %v1424, %v1337
    %v1426 = vmul.f32 %v1425, %v1424
    %v1427 = vmul.f32 0.5, %v1426
    %v1428 = vsub.f32 1.5, %v1427
    %v1429 = vmul.f32 %v1424, %v1428
    %v1430 = vmul.f32 %v1337, %v1429
    %vm1431 = vcmp.eq.f32.partialorder %v1337, inf
    %v1432 = vsel %vm1431, %v1337, %v1430
    %vm1433 = vcmp.eq.f32.partialorder %v1337, 0.0
    %v1434 = vand.u32 %v1337, 2147483648
    %v1435 = vsel %vm1433, %v1434, %v1432
    %v1436 = vrsqrt.pop %v1338
    %v1437 = vmul.f32 %v1436, %v1338
    %v1438 = vmul.f32 %v1437, %v1436
    %v1439 = vmul.f32 0.5, %v1438
    %v1440 = vsub.f32 1.5, %v1439
    %v1441 = vmul.f32 %v1436, %v1440
    %v1442 = vmul.f32 %v1338, %v1441
    %vm1443 = vcmp.eq.f32.partialorder %v1338, inf
    %v1444 = vsel %vm1443, %v1338, %v1442
    %vm1445 = vcmp.eq.f32.partialorder %v1338, 0.0
    %v1446 = vand.u32 %v1338, 2147483648
    %v1447 = vsel %vm1445, %v1446, %v1444
    %v1448 = vrsqrt.pop %v1339
    %v1449 = vmul.f32 %v1448, %v1339
    %v1450 = vmul.f32 %v1449, %v1448
    %v1451 = vmul.f32 0.5, %v1450
    %v1452 = vsub.f32 1.5, %v1451
    %v1453 = vmul.f32 %v1448, %v1452
    %v1454 = vmul.f32 %v1339, %v1453
    %vm1455 = vcmp.eq.f32.partialorder %v1339, inf
    %v1456 = vsel %vm1455, %v1339, %v1454
    %vm1457 = vcmp.eq.f32.partialorder %v1339, 0.0
    %v1458 = vand.u32 %v1339, 2147483648
    %v1459 = vsel %vm1457, %v1458, %v1456
    %v1460 = vadd.f32 %v1351, 1.0
    %v1461 = vadd.f32 %v1363, 1.0
    %v1462 = vadd.f32 %v1375, 1.0
    %v1463 = vadd.f32 %v1387, 1.0
    %v1464 = vadd.f32 %v1399, 1.0
    %v1465 = vadd.f32 %v1411, 1.0
    %v1466 = vadd.f32 %v1423, 1.0
    %v1467 = vadd.f32 %v1435, 1.0
    %v1468 = vadd.f32 %v1447, 1.0
    %v1469 = vadd.f32 %v1459, 1.0
    %v1470 = vrcp.pop %v1460
    %v1471 = vmul.f32 %v1460, %v1470
    %v1472 = vsub.f32 1.0, %v1471
    %v1473 = vmul.f32 %v1470, %v1472
    %v1474 = vadd.f32 %v1470, %v1473
    %vm1475 = vweird.f32 %v1460
    %vm1476 = vweird.f32 %v1470
    %vm1477 = vmor %vm1475, %vm1476
    %v1478 = vsel %vm1477, %v1470, %v1474
    %v1479 = vand.u32 2147483647, %v1460
    %vm1480 = vcmp.eq.f32.partialorder %v1479, 8.507059e+37
    %v1481 = vand.u32 %v1460, 2147483648
    %v1482 = vor.u32 1.1754944e-38, %v1481
    %v1483 = vsel %vm1480, %v1482, %v1478
    %v1484 = vmul.f32 %v1184, %v1483
    %v1485 = vrcp.pop %v1461
    %v1486 = vmul.f32 %v1461, %v1485
    %v1487 = vsub.f32 1.0, %v1486
    %v1488 = vmul.f32 %v1485, %v1487
    %v1489 = vadd.f32 %v1485, %v1488
    %vm1490 = vweird.f32 %v1461
    %vm1491 = vweird.f32 %v1485
    %vm1492 = vmor %vm1490, %vm1491
    %v1493 = vsel %vm1492, %v1485, %v1489
    %v1494 = vand.u32 2147483647, %v1461
    %vm1495 = vcmp.eq.f32.partialorder %v1494, 8.507059e+37
    %v1496 = vand.u32 %v1461, 2147483648
    %v1497 = vor.u32 1.1754944e-38, %v1496
    %v1498 = vsel %vm1495, %v1497, %v1493
    %v1499 = vmul.f32 %v1199, %v1498
    %v1500 = vrcp.pop %v1462
    %v1501 = vmul.f32 %v1462, %v1500
    %v1502 = vsub.f32 1.0, %v1501
    %v1503 = vmul.f32 %v1500, %v1502
    %v1504 = vadd.f32 %v1500, %v1503
    %vm1505 = vweird.f32 %v1462
    %vm1506 = vweird.f32 %v1500
    %vm1507 = vmor %vm1505, %vm1506
    %v1508 = vsel %vm1507, %v1500, %v1504
    %v1509 = vand.u32 2147483647, %v1462
    %vm1510 = vcmp.eq.f32.partialorder %v1509, 8.507059e+37
    %v1511 = vand.u32 %v1462, 2147483648
    %v1512 = vor.u32 1.1754944e-38, %v1511
    %v1513 = vsel %vm1510, %v1512, %v1508
    %v1514 = vmul.f32 %v1214, %v1513
    %v1515 = vrcp.pop %v1463
    %v1516 = vmul.f32 %v1463, %v1515
    %v1517 = vsub.f32 1.0, %v1516
    %v1518 = vmul.f32 %v1515, %v1517
    %v1519 = vadd.f32 %v1515, %v1518
    %vm1520 = vweird.f32 %v1463
    %vm1521 = vweird.f32 %v1515
    %vm1522 = vmor %vm1520, %vm1521
    %v1523 = vsel %vm1522, %v1515, %v1519
    %v1524 = vand.u32 2147483647, %v1463
    %vm1525 = vcmp.eq.f32.partialorder %v1524, 8.507059e+37
    %v1526 = vand.u32 %v1463, 2147483648
    %v1527 = vor.u32 1.1754944e-38, %v1526
    %v1528 = vsel %vm1525, %v1527, %v1523
    %v1529 = vmul.f32 %v1229, %v1528
    %v1530 = vrcp.pop %v1464
    %v1531 = vmul.f32 %v1464, %v1530
    %v1532 = vsub.f32 1.0, %v1531
    %v1533 = vmul.f32 %v1530, %v1532
    %v1534 = vadd.f32 %v1530, %v1533
    %vm1535 = vweird.f32 %v1464
    %vm1536 = vweird.f32 %v1530
    %vm1537 = vmor %vm1535, %vm1536
    %v1538 = vsel %vm1537, %v1530, %v1534
    %v1539 = vand.u32 2147483647, %v1464
    %vm1540 = vcmp.eq.f32.partialorder %v1539, 8.507059e+37
    %v1541 = vand.u32 %v1464, 2147483648
    %v1542 = vor.u32 1.1754944e-38, %v1541
    %v1543 = vsel %vm1540, %v1542, %v1538
    %v1544 = vmul.f32 %v1244, %v1543
    %v1545 = vrcp.pop %v1465
    %v1546 = vmul.f32 %v1465, %v1545
    %v1547 = vsub.f32 1.0, %v1546
    %v1548 = vmul.f32 %v1545, %v1547
    %v1549 = vadd.f32 %v1545, %v1548
    %vm1550 = vweird.f32 %v1465
    %vm1551 = vweird.f32 %v1545
    %vm1552 = vmor %vm1550, %vm1551
    %v1553 = vsel %vm1552, %v1545, %v1549
    %v1554 = vand.u32 2147483647, %v1465
    %vm1555 = vcmp.eq.f32.partialorder %v1554, 8.507059e+37
    %v1556 = vand.u32 %v1465, 2147483648
    %v1557 = vor.u32 1.1754944e-38, %v1556
    %v1558 = vsel %vm1555, %v1557, %v1553
    %v1559 = vmul.f32 %v1259, %v1558
    %v1560 = vrcp.pop %v1466
    %v1561 = vmul.f32 %v1466, %v1560
    %v1562 = vsub.f32 1.0, %v1561
    %v1563 = vmul.f32 %v1560, %v1562
    %v1564 = vadd.f32 %v1560, %v1563
    %vm1565 = vweird.f32 %v1466
    %vm1566 = vweird.f32 %v1560
    %vm1567 = vmor %vm1565, %vm1566
    %v1568 = vsel %vm1567, %v1560, %v1564
    %v1569 = vand.u32 2147483647, %v1466
    %vm1570 = vcmp.eq.f32.partialorder %v1569, 8.507059e+37
    %v1571 = vand.u32 %v1466, 2147483648
    %v1572 = vor.u32 1.1754944e-38, %v1571
    %v1573 = vsel %vm1570, %v1572, %v1568
    %v1574 = vmul.f32 %v1274, %v1573
    %v1575 = vrcp.pop %v1467
    %v1576 = vmul.f32 %v1467, %v1575
    %v1577 = vsub.f32 1.0, %v1576
    %v1578 = vmul.f32 %v1575, %v1577
    %v1579 = vadd.f32 %v1575, %v1578
    %vm1580 = vweird.f32 %v1467
    %vm1581 = vweird.f32 %v1575
    %vm1582 = vmor %vm1580, %vm1581
    %v1583 = vsel %vm1582, %v1575, %v1579
    %v1584 = vand.u32 2147483647, %v1467
    %vm1585 = vcmp.eq.f32.partialorder %v1584, 8.507059e+37
    %v1586 = vand.u32 %v1467, 2147483648
    %v1587 = vor.u32 1.1754944e-38, %v1586
    %v1588 = vsel %vm1585, %v1587, %v1583
    %v1589 = vmul.f32 %v1289, %v1588
    %v1590 = vrcp.pop %v1468
    %v1591 = vmul.f32 %v1468, %v1590
    %v1592 = vsub.f32 1.0, %v1591
    %v1593 = vmul.f32 %v1590, %v1592
    %v1594 = vadd.f32 %v1590, %v1593
    %vm1595 = vweird.f32 %v1468
    %vm1596 = vweird.f32 %v1590
    %vm1597 = vmor %vm1595, %vm1596
    %v1598 = vsel %vm1597, %v1590, %v1594
    %v1599 = vand.u32 2147483647, %v1468
    %vm1600 = vcmp.eq.f32.partialorder %v1599, 8.507059e+37
    %v1601 = vand.u32 %v1468, 2147483648
    %v1602 = vor.u32 1.1754944e-38, %v1601
    %v1603 = vsel %vm1600, %v1602, %v1598
    %v1604 = vmul.f32 %v1304, %v1603
    %v1605 = vrcp.pop %v1469
    %v1606 = vmul.f32 %v1469, %v1605
    %v1607 = vsub.f32 1.0, %v1606
    %v1608 = vmul.f32 %v1605, %v1607
    %v1609 = vadd.f32 %v1605, %v1608
    %vm1610 = vweird.f32 %v1469
    %vm1611 = vweird.f32 %v1605
    %vm1612 = vmor %vm1610, %vm1611
    %v1613 = vsel %vm1612, %v1605, %v1609
    %v1614 = vand.u32 2147483647, %v1469
    %vm1615 = vcmp.eq.f32.partialorder %v1614, 8.507059e+37
    %v1616 = vand.u32 %v1469, 2147483648
    %v1617 = vor.u32 1.1754944e-38, %v1616
    %v1618 = vsel %vm1615, %v1617, %v1613
    %v1619 = vmul.f32 %v1319, %v1618
    %v1620 = vmul.f32 %v1484, %v1484
    %v1621 = vmul.f32 %v1499, %v1499
    %v1622 = vmul.f32 %v1514, %v1514
    %v1623 = vmul.f32 %v1529, %v1529
    %v1624 = vmul.f32 %v1544, %v1544
    %v1625 = vmul.f32 %v1559, %v1559
    %v1626 = vmul.f32 %v1574, %v1574
    %v1627 = vmul.f32 %v1589, %v1589
    %v1628 = vmul.f32 %v1604, %v1604
    %v1629 = vmul.f32 %v1619, %v1619
    %v1630 = vadd.f32 %v1620, 1.0
    %v1631 = vadd.f32 %v1621, 1.0
    %v1632 = vadd.f32 %v1622, 1.0
    %v1633 = vadd.f32 %v1623, 1.0
    %v1634 = vadd.f32 %v1624, 1.0
    %v1635 = vadd.f32 %v1625, 1.0
    %v1636 = vadd.f32 %v1626, 1.0
    %v1637 = vadd.f32 %v1627, 1.0
    %v1638 = vadd.f32 %v1628, 1.0
    %v1639 = vadd.f32 %v1629, 1.0
    %v1640 = vrsqrt.pop %v1630
    %v1641 = vmul.f32 %v1640, %v1630
    %v1642 = vmul.f32 %v1641, %v1640
    %v1643 = vmul.f32 0.5, %v1642
    %v1644 = vsub.f32 1.5, %v1643
    %v1645 = vmul.f32 %v1640, %v1644
    %v1646 = vmul.f32 %v1630, %v1645
    %vm1647 = vcmp.eq.f32.partialorder %v1630, inf
    %v1648 = vsel %vm1647, %v1630, %v1646
    %vm1649 = vcmp.eq.f32.partialorder %v1630, 0.0
    %v1650 = vand.u32 %v1630, 2147483648
    %v1651 = vsel %vm1649, %v1650, %v1648
    %v1652 = vrsqrt.pop %v1631
    %v1653 = vmul.f32 %v1652, %v1631
    %v1654 = vmul.f32 %v1653, %v1652
    %v1655 = vmul.f32 0.5, %v1654
    %v1656 = vsub.f32 1.5, %v1655
    %v1657 = vmul.f32 %v1652, %v1656
    %v1658 = vmul.f32 %v1631, %v1657
    %vm1659 = vcmp.eq.f32.partialorder %v1631, inf
    %v1660 = vsel %vm1659, %v1631, %v1658
    %vm1661 = vcmp.eq.f32.partialorder %v1631, 0.0
    %v1662 = vand.u32 %v1631, 2147483648
    %v1663 = vsel %vm1661, %v1662, %v1660
    %v1664 = vrsqrt.pop %v1632
    %v1665 = vmul.f32 %v1664, %v1632
    %v1666 = vmul.f32 %v1665, %v1664
    %v1667 = vmul.f32 0.5, %v1666
    %v1668 = vsub.f32 1.5, %v1667
    %v1669 = vmul.f32 %v1664, %v1668
    %v1670 = vmul.f32 %v1632, %v1669
    %vm1671 = vcmp.eq.f32.partialorder %v1632, inf
    %v1672 = vsel %vm1671, %v1632, %v1670
    %vm1673 = vcmp.eq.f32.partialorder %v1632, 0.0
    %v1674 = vand.u32 %v1632, 2147483648
    %v1675 = vsel %vm1673, %v1674, %v1672
    %v1676 = vrsqrt.pop %v1633
    %v1677 = vmul.f32 %v1676, %v1633
    %v1678 = vmul.f32 %v1677, %v1676
    %v1679 = vmul.f32 0.5, %v1678
    %v1680 = vsub.f32 1.5, %v1679
    %v1681 = vmul.f32 %v1676, %v1680
    %v1682 = vmul.f32 %v1633, %v1681
    %vm1683 = vcmp.eq.f32.partialorder %v1633, inf
    %v1684 = vsel %vm1683, %v1633, %v1682
    %vm1685 = vcmp.eq.f32.partialorder %v1633, 0.0
    %v1686 = vand.u32 %v1633, 2147483648
    %v1687 = vsel %vm1685, %v1686, %v1684
    %v1688 = vrsqrt.pop %v1634
    %v1689 = vmul.f32 %v1688, %v1634
    %v1690 = vmul.f32 %v1689, %v1688
    %v1691 = vmul.f32 0.5, %v1690
    %v1692 = vsub.f32 1.5, %v1691
    %v1693 = vmul.f32 %v1688, %v1692
    %v1694 = vmul.f32 %v1634, %v1693
    %vm1695 = vcmp.eq.f32.partialorder %v1634, inf
    %v1696 = vsel %vm1695, %v1634, %v1694
    %vm1697 = vcmp.eq.f32.partialorder %v1634, 0.0
    %v1698 = vand.u32 %v1634, 2147483648
    %v1699 = vsel %vm1697, %v1698, %v1696
    %v1700 = vrsqrt.pop %v1635
    %v1701 = vmul.f32 %v1700, %v1635
    %v1702 = vmul.f32 %v1701, %v1700
    %v1703 = vmul.f32 0.5, %v1702
    %v1704 = vsub.f32 1.5, %v1703
    %v1705 = vmul.f32 %v1700, %v1704
    %v1706 = vmul.f32 %v1635, %v1705
    %vm1707 = vcmp.eq.f32.partialorder %v1635, inf
    %v1708 = vsel %vm1707, %v1635, %v1706
    %vm1709 = vcmp.eq.f32.partialorder %v1635, 0.0
    %v1710 = vand.u32 %v1635, 2147483648
    %v1711 = vsel %vm1709, %v1710, %v1708
    %v1712 = vrsqrt.pop %v1636
    %v1713 = vmul.f32 %v1712, %v1636
    %v1714 = vmul.f32 %v1713, %v1712
    %v1715 = vmul.f32 0.5, %v1714
    %v1716 = vsub.f32 1.5, %v1715
    %v1717 = vmul.f32 %v1712, %v1716
    %v1718 = vmul.f32 %v1636, %v1717
    %vm1719 = vcmp.eq.f32.partialorder %v1636, inf
    %v1720 = vsel %vm1719, %v1636, %v1718
    %vm1721 = vcmp.eq.f32.partialorder %v1636, 0.0
    %v1722 = vand.u32 %v1636, 2147483648
    %v1723 = vsel %vm1721, %v1722, %v1720
    %v1724 = vrsqrt.pop %v1637
    %v1725 = vmul.f32 %v1724, %v1637
    %v1726 = vmul.f32 %v1725, %v1724
    %v1727 = vmul.f32 0.5, %v1726
    %v1728 = vsub.f32 1.5, %v1727
    %v1729 = vmul.f32 %v1724, %v1728
    %v1730 = vmul.f32 %v1637, %v1729
    %vm1731 = vcmp.eq.f32.partialorder %v1637, inf
    %v1732 = vsel %vm1731, %v1637, %v1730
    %vm1733 = vcmp.eq.f32.partialorder %v1637, 0.0
    %v1734 = vand.u32 %v1637, 2147483648
    %v1735 = vsel %vm1733, %v1734, %v1732
    %v1736 = vrsqrt.pop %v1638
    %v1737 = vmul.f32 %v1736, %v1638
    %v1738 = vmul.f32 %v1737, %v1736
    %v1739 = vmul.f32 0.5, %v1738
    %v1740 = vsub.f32 1.5, %v1739
    %v1741 = vmul.f32 %v1736, %v1740
    %v1742 = vmul.f32 %v1638, %v1741
    %vm1743 = vcmp.eq.f32.partialorder %v1638, inf
    %v1744 = vsel %vm1743, %v1638, %v1742
    %vm1745 = vcmp.eq.f32.partialorder %v1638, 0.0
    %v1746 = vand.u32 %v1638, 2147483648
    %v1747 = vsel %vm1745, %v1746, %v1744
    %v1748 = vrsqrt.pop %v1639
    %v1749 = vmul.f32 %v1748, %v1639
    %v1750 = vmul.f32 %v1749, %v1748
    %v1751 = vmul.f32 0.5, %v1750
    %v1752 = vsub.f32 1.5, %v1751
    %v1753 = vmul.f32 %v1748, %v1752
    %v1754 = vmul.f32 %v1639, %v1753
    %vm1755 = vcmp.eq.f32.partialorder %v1639, inf
    %v1756 = vsel %vm1755, %v1639, %v1754
    %vm1757 = vcmp.eq.f32.partialorder %v1639, 0.0
    %v1758 = vand.u32 %v1639, 2147483648
    %v1759 = vsel %vm1757, %v1758, %v1756
    %v1760 = vadd.f32 %v1651, 1.0
    %v1761 = vadd.f32 %v1663, 1.0
    %v1762 = vadd.f32 %v1675, 1.0
    %v1763 = vadd.f32 %v1687, 1.0
    %v1764 = vadd.f32 %v1699, 1.0
    %v1765 = vadd.f32 %v1711, 1.0
    %v1766 = vadd.f32 %v1723, 1.0
    %v1767 = vadd.f32 %v1735, 1.0
    %v1768 = vadd.f32 %v1747, 1.0
    %v1769 = vadd.f32 %v1759, 1.0
    %v1770 = vrcp.pop %v1760
    %v1771 = vmul.f32 %v1760, %v1770
    %v1772 = vsub.f32 1.0, %v1771
    %v1773 = vmul.f32 %v1770, %v1772
    %v1774 = vadd.f32 %v1770, %v1773
    %vm1775 = vweird.f32 %v1760
    %vm1776 = vweird.f32 %v1770
    %vm1777 = vmor %vm1775, %vm1776
    %v1778 = vsel %vm1777, %v1770, %v1774
    %v1779 = vand.u32 2147483647, %v1760
    %vm1780 = vcmp.eq.f32.partialorder %v1779, 8.507059e+37
    %v1781 = vand.u32 %v1760, 2147483648
    %v1782 = vor.u32 1.1754944e-38, %v1781
    %v1783 = vsel %vm1780, %v1782, %v1778
    %v1784 = vmul.f32 %v1484, %v1783
    %v1785 = vrcp.pop %v1761
    %v1786 = vmul.f32 %v1761, %v1785
    %v1787 = vsub.f32 1.0, %v1786
    %v1788 = vmul.f32 %v1785, %v1787
    %v1789 = vadd.f32 %v1785, %v1788
    %vm1790 = vweird.f32 %v1761
    %vm1791 = vweird.f32 %v1785
    %vm1792 = vmor %vm1790, %vm1791
    %v1793 = vsel %vm1792, %v1785, %v1789
    %v1794 = vand.u32 2147483647, %v1761
    %vm1795 = vcmp.eq.f32.partialorder %v1794, 8.507059e+37
    %v1796 = vand.u32 %v1761, 2147483648
    %v1797 = vor.u32 1.1754944e-38, %v1796
    %v1798 = vsel %vm1795, %v1797, %v1793
    %v1799 = vmul.f32 %v1499, %v1798
    %v1800 = vrcp.pop %v1762
    %v1801 = vmul.f32 %v1762, %v1800
    %v1802 = vsub.f32 1.0, %v1801
    %v1803 = vmul.f32 %v1800, %v1802
    %v1804 = vadd.f32 %v1800, %v1803
    %vm1805 = vweird.f32 %v1762
    %vm1806 = vweird.f32 %v1800
    %vm1807 = vmor %vm1805, %vm1806
    %v1808 = vsel %vm1807, %v1800, %v1804
    %v1809 = vand.u32 2147483647, %v1762
    %vm1810 = vcmp.eq.f32.partialorder %v1809, 8.507059e+37
    %v1811 = vand.u32 %v1762, 2147483648
    %v1812 = vor.u32 1.1754944e-38, %v1811
    %v1813 = vsel %vm1810, %v1812, %v1808
    %v1814 = vmul.f32 %v1514, %v1813
    %v1815 = vrcp.pop %v1763
    %v1816 = vmul.f32 %v1763, %v1815
    %v1817 = vsub.f32 1.0, %v1816
    %v1818 = vmul.f32 %v1815, %v1817
    %v1819 = vadd.f32 %v1815, %v1818
    %vm1820 = vweird.f32 %v1763
    %vm1821 = vweird.f32 %v1815
    %vm1822 = vmor %vm1820, %vm1821
    %v1823 = vsel %vm1822, %v1815, %v1819
    %v1824 = vand.u32 2147483647, %v1763
    %vm1825 = vcmp.eq.f32.partialorder %v1824, 8.507059e+37
    %v1826 = vand.u32 %v1763, 2147483648
    %v1827 = vor.u32 1.1754944e-38, %v1826
    %v1828 = vsel %vm1825, %v1827, %v1823
    %v1829 = vmul.f32 %v1529, %v1828
    %v1830 = vrcp.pop %v1764
    %v1831 = vmul.f32 %v1764, %v1830
    %v1832 = vsub.f32 1.0, %v1831
    %v1833 = vmul.f32 %v1830, %v1832
    %v1834 = vadd.f32 %v1830, %v1833
    %vm1835 = vweird.f32 %v1764
    %vm1836 = vweird.f32 %v1830
    %vm1837 = vmor %vm1835, %vm1836
    %v1838 = vsel %vm1837, %v1830, %v1834
    %v1839 = vand.u32 2147483647, %v1764
    %vm1840 = vcmp.eq.f32.partialorder %v1839, 8.507059e+37
    %v1841 = vand.u32 %v1764, 2147483648
    %v1842 = vor.u32 1.1754944e-38, %v1841
    %v1843 = vsel %vm1840, %v1842, %v1838
    %v1844 = vmul.f32 %v1544, %v1843
    %v1845 = vrcp.pop %v1765
    %v1846 = vmul.f32 %v1765, %v1845
    %v1847 = vsub.f32 1.0, %v1846
    %v1848 = vmul.f32 %v1845, %v1847
    %v1849 = vadd.f32 %v1845, %v1848
    %vm1850 = vweird.f32 %v1765
    %vm1851 = vweird.f32 %v1845
    %vm1852 = vmor %vm1850, %vm1851
    %v1853 = vsel %vm1852, %v1845, %v1849
    %v1854 = vand.u32 2147483647, %v1765
    %vm1855 = vcmp.eq.f32.partialorder %v1854, 8.507059e+37
    %v1856 = vand.u32 %v1765, 2147483648
    %v1857 = vor.u32 1.1754944e-38, %v1856
    %v1858 = vsel %vm1855, %v1857, %v1853
    %v1859 = vmul.f32 %v1559, %v1858
    %v1860 = vrcp.pop %v1766
    %v1861 = vmul.f32 %v1766, %v1860
    %v1862 = vsub.f32 1.0, %v1861
    %v1863 = vmul.f32 %v1860, %v1862
    %v1864 = vadd.f32 %v1860, %v1863
    %vm1865 = vweird.f32 %v1766
    %vm1866 = vweird.f32 %v1860
    %vm1867 = vmor %vm1865, %vm1866
    %v1868 = vsel %vm1867, %v1860, %v1864
    %v1869 = vand.u32 2147483647, %v1766
    %vm1870 = vcmp.eq.f32.partialorder %v1869, 8.507059e+37
    %v1871 = vand.u32 %v1766, 2147483648
    %v1872 = vor.u32 1.1754944e-38, %v1871
    %v1873 = vsel %vm1870, %v1872, %v1868
    %v1874 = vmul.f32 %v1574, %v1873
    %v1875 = vrcp.pop %v1767
    %v1876 = vmul.f32 %v1767, %v1875
    %v1877 = vsub.f32 1.0, %v1876
    %v1878 = vmul.f32 %v1875, %v1877
    %v1879 = vadd.f32 %v1875, %v1878
    %vm1880 = vweird.f32 %v1767
    %vm1881 = vweird.f32 %v1875
    %vm1882 = vmor %vm1880, %vm1881
    %v1883 = vsel %vm1882, %v1875, %v1879
    %v1884 = vand.u32 2147483647, %v1767
    %vm1885 = vcmp.eq.f32.partialorder %v1884, 8.507059e+37
    %v1886 = vand.u32 %v1767, 2147483648
    %v1887 = vor.u32 1.1754944e-38, %v1886
    %v1888 = vsel %vm1885, %v1887, %v1883
    %v1889 = vmul.f32 %v1589, %v1888
    %v1890 = vrcp.pop %v1768
    %v1891 = vmul.f32 %v1768, %v1890
    %v1892 = vsub.f32 1.0, %v1891
    %v1893 = vmul.f32 %v1890, %v1892
    %v1894 = vadd.f32 %v1890, %v1893
    %vm1895 = vweird.f32 %v1768
    %vm1896 = vweird.f32 %v1890
    %vm1897 = vmor %vm1895, %vm1896
    %v1898 = vsel %vm1897, %v1890, %v1894
    %v1899 = vand.u32 2147483647, %v1768
    %vm1900 = vcmp.eq.f32.partialorder %v1899, 8.507059e+37
    %v1901 = vand.u32 %v1768, 2147483648
    %v1902 = vor.u32 1.1754944e-38, %v1901
    %v1903 = vsel %vm1900, %v1902, %v1898
    %v1904 = vmul.f32 %v1604, %v1903
    %v1905 = vrcp.pop %v1769
    %v1906 = vmul.f32 %v1769, %v1905
    %v1907 = vsub.f32 1.0, %v1906
    %v1908 = vmul.f32 %v1905, %v1907
    %v1909 = vadd.f32 %v1905, %v1908
    %vm1910 = vweird.f32 %v1769
    %vm1911 = vweird.f32 %v1905
    %vm1912 = vmor %vm1910, %vm1911
    %v1913 = vsel %vm1912, %v1905, %v1909
    %v1914 = vand.u32 2147483647, %v1769
    %vm1915 = vcmp.eq.f32.partialorder %v1914, 8.507059e+37
    %v1916 = vand.u32 %v1769, 2147483648
    %v1917 = vor.u32 1.1754944e-38, %v1916
    %v1918 = vsel %vm1915, %v1917, %v1913
    %v1919 = vmul.f32 %v1619, %v1918
    %v1920 = vmul.f32 %v1784, %v1784
    %v1921 = vmul.f32 %v1799, %v1799
    %v1922 = vmul.f32 %v1814, %v1814
    %v1923 = vmul.f32 %v1829, %v1829
    %v1924 = vmul.f32 %v1844, %v1844
    %v1925 = vmul.f32 %v1859, %v1859
    %v1926 = vmul.f32 %v1874, %v1874
    %v1927 = vmul.f32 %v1889, %v1889
    %v1928 = vmul.f32 %v1904, %v1904
    %v1929 = vmul.f32 %v1919, %v1919
    %v1930 = vmul.f32 %v1920, -0.14285715
    %v1931 = vmul.f32 %v1921, -0.14285715
    %v1932 = vmul.f32 %v1922, -0.14285715
    %v1933 = vmul.f32 %v1923, -0.14285715
    %v1934 = vmul.f32 %v1924, -0.14285715
    %v1935 = vmul.f32 %v1925, -0.14285715
    %v1936 = vmul.f32 %v1926, -0.14285715
    %v1937 = vmul.f32 %v1927, -0.14285715
    %v1938 = vmul.f32 %v1928, -0.14285715
    %v1939 = vmul.f32 %v1929, -0.14285715
    %v1940 = vadd.f32 %v1930, 0.2
    %v1941 = vadd.f32 %v1931, 0.2
    %v1942 = vadd.f32 %v1932, 0.2
    %v1943 = vadd.f32 %v1933, 0.2
    %v1944 = vadd.f32 %v1934, 0.2
    %v1945 = vadd.f32 %v1935, 0.2
    %v1946 = vadd.f32 %v1936, 0.2
    %v1947 = vadd.f32 %v1937, 0.2
    %v1948 = vadd.f32 %v1938, 0.2
    %v1949 = vadd.f32 %v1939, 0.2
    %v1950 = vmul.f32 %v1920, %v1940
    %v1951 = vmul.f32 %v1921, %v1941
    %v1952 = vmul.f32 %v1922, %v1942
    %v1953 = vmul.f32 %v1923, %v1943
    %v1954 = vmul.f32 %v1924, %v1944
    %v1955 = vmul.f32 %v1925, %v1945
    %v1956 = vmul.f32 %v1926, %v1946
    %v1957 = vmul.f32 %v1927, %v1947
    %v1958 = vmul.f32 %v1928, %v1948
    %v1959 = vmul.f32 %v1929, %v1949
    %v1960 = vadd.f32 %v1950, -0.33333334
    %v1961 = vadd.f32 %v1951, -0.33333334
    %v1962 = vadd.f32 %v1952, -0.33333334
    %v1963 = vadd.f32 %v1953, -0.33333334
    %v1964 = vadd.f32 %v1954, -0.33333334
    %v1965 = vadd.f32 %v1955, -0.33333334
    %v1966 = vadd.f32 %v1956, -0.33333334
    %v1967 = vadd.f32 %v1957, -0.33333334
    %v1968 = vadd.f32 %v1958, -0.33333334
    %v1969 = vadd.f32 %v1959, -0.33333334
    %v1970 = vmul.f32 %v1920, %v1960
    %v1971 = vmul.f32 %v1921, %v1961
    %v1972 = vmul.f32 %v1922, %v1962
    %v1973 = vmul.f32 %v1923, %v1963
    %v1974 = vmul.f32 %v1924, %v1964
    %v1975 = vmul.f32 %v1925, %v1965
    %v1976 = vmul.f32 %v1926, %v1966
    %v1977 = vmul.f32 %v1927, %v1967
    %v1978 = vmul.f32 %v1928, %v1968
    %v1979 = vmul.f32 %v1929, %v1969
    %v1980 = vadd.f32 %v1970, 1.0
    %v1981 = vadd.f32 %v1971, 1.0
    %v1982 = vadd.f32 %v1972, 1.0
    %v1983 = vadd.f32 %v1973, 1.0
    %v1984 = vadd.f32 %v1974, 1.0
    %v1985 = vadd.f32 %v1975, 1.0
    %v1986 = vadd.f32 %v1976, 1.0
    %v1987 = vadd.f32 %v1977, 1.0
    %v1988 = vadd.f32 %v1978, 1.0
    %v1989 = vadd.f32 %v1979, 1.0
    %v1990 = vmul.f32 %v1784, %v1980
    %v1991 = vmul.f32 %v1799, %v1981
    %v1992 = vmul.f32 %v1814, %v1982
    %v1993 = vmul.f32 %v1829, %v1983
    %v1994 = vmul.f32 %v1844, %v1984
    %v1995 = vmul.f32 %v1859, %v1985
    %v1996 = vmul.f32 %v1874, %v1986
    %v1997 = vmul.f32 %v1889, %v1987
    %v1998 = vmul.f32 %v1904, %v1988
    %v1999 = vmul.f32 %v1919, %v1989
    %v2000 = vmul.f32 %v1990, 8.0
    %v2001 = vmul.f32 %v1991, 8.0
    %v2002 = vmul.f32 %v1992, 8.0
    %v2003 = vmul.f32 %v1993, 8.0
    %v2004 = vmul.f32 %v1994, 8.0
    %v2005 = vmul.f32 %v1995, 8.0
    %v2006 = vmul.f32 %v1996, 8.0
    %v2007 = vmul.f32 %v1997, 8.0
    %v2008 = vmul.f32 %v1998, 8.0
    %v2009 = vmul.f32 %v1999, 8.0
    %vm2010 = vcmp.gt.f32.partialorder %v830, %v820
    %vm2011 = vcmp.gt.f32.partialorder %v831, %v821
    %vm2012 = vcmp.gt.f32.partialorder %v832, %v822
    %vm2013 = vcmp.gt.f32.partialorder %v833, %v823
    %vm2014 = vcmp.gt.f32.partialorder %v834, %v824
    %vm2015 = vcmp.gt.f32.partialorder %v835, %v825
    %vm2016 = vcmp.gt.f32.partialorder %v836, %v826
    %vm2017 = vcmp.gt.f32.partialorder %v837, %v827
    %vm2018 = vcmp.gt.f32.partialorder %v838, %v828
    %vm2019 = vcmp.gt.f32.partialorder %v839, %v829
    %v2020 = vsub.f32 1.5707964, %v2000
    %v2021 = vsub.f32 1.5707964, %v2001
    %v2022 = vsub.f32 1.5707964, %v2002
    %v2023 = vsub.f32 1.5707964, %v2003
    %v2024 = vsub.f32 1.5707964, %v2004
    %v2025 = vsub.f32 1.5707964, %v2005
    %v2026 = vsub.f32 1.5707964, %v2006
    %v2027 = vsub.f32 1.5707964, %v2007
    %v2028 = vsub.f32 1.5707964, %v2008
    %v2029 = vsub.f32 1.5707964, %v2009
    %v2030 = vsel %vm2010, %v2020, %v2000
    %v2031 = vsel %vm2011, %v2021, %v2001
    %v2032 = vsel %vm2012, %v2022, %v2002
    %v2033 = vsel %vm2013, %v2023, %v2003
    %v2034 = vsel %vm2014, %v2024, %v2004
    %v2035 = vsel %vm2015, %v2025, %v2005
    %v2036 = vsel %vm2016, %v2026, %v2006
    %v2037 = vsel %vm2017, %v2027, %v2007
    %v2038 = vsel %vm2018, %v2028, %v2008
    %v2039 = vsel %vm2019, %v2029, %v2009
    %vm2040 = vcmp.lt.f32.partialorder %v621, 0.0
    %vm2041 = vcmp.lt.f32.partialorder %v623, 0.0
    %vm2042 = vcmp.lt.f32.partialorder %v626, 0.0
    %vm2043 = vcmp.lt.f32.partialorder %v628, 0.0
    %vm2044 = vcmp.lt.f32.partialorder %v631, 0.0
    %vm2045 = vcmp.lt.f32.partialorder %v633, 0.0
    %vm2046 = vcmp.lt.f32.partialorder %v636, 0.0
    %vm2047 = vcmp.lt.f32.partialorder %v638, 0.0
    %vm2048 = vcmp.lt.f32.partialorder %v641, 0.0
    %vm2049 = vcmp.lt.f32.partialorder %v643, 0.0
    %v2050 = vsub.f32 3.1415927, %v2030
    %v2051 = vsub.f32 3.1415927, %v2031
    %v2052 = vsub.f32 3.1415927, %v2032
    %v2053 = vsub.f32 3.1415927, %v2033
    %v2054 = vsub.f32 3.1415927, %v2034
    %v2055 = vsub.f32 3.1415927, %v2035
    %v2056 = vsub.f32 3.1415927, %v2036
    %v2057 = vsub.f32 3.1415927, %v2037
    %v2058 = vsub.f32 3.1415927, %v2038
    %v2059 = vsub.f32 3.1415927, %v2039
    %v2060 = vsel %vm2040, %v2050, %v2030
    %v2061 = vsel %vm2041, %v2051, %v2031
    %v2062 = vsel %vm2042, %v2052, %v2032
    %v2063 = vsel %vm2043, %v2053, %v2033
    %v2064 = vsel %vm2044, %v2054, %v2034
    %v2065 = vsel %vm2045, %v2055, %v2035
    %v2066 = vsel %vm2046, %v2056, %v2036
    %v2067 = vsel %vm2047, %v2057, %v2037
    %v2068 = vsel %vm2048, %v2058, %v2038
    %v2069 = vsel %vm2049, %v2059, %v2039
    %vm2070 = vcmp.lt.f32.partialorder %v646, 0.0
    %vm2071 = vcmp.lt.f32.partialorder %v648, 0.0
    %vm2072 = vcmp.lt.f32.partialorder %v651, 0.0
    %vm2073 = vcmp.lt.f32.partialorder %v653, 0.0
    %vm2074 = vcmp.lt.f32.partialorder %v656, 0.0
    %vm2075 = vcmp.lt.f32.partialorder %v658, 0.0
    %vm2076 = vcmp.lt.f32.partialorder %v661, 0.0
    %vm2077 = vcmp.lt.f32.partialorder %v663, 0.0
    %vm2078 = vcmp.lt.f32.partialorder %v666, 0.0
    %vm2079 = vcmp.lt.f32.partialorder %v668, 0.0
    %v2080 = vsub.f32 0.0, %v2060
    %v2081 = vsub.f32 0.0, %v2061
    %v2082 = vsub.f32 0.0, %v2062
    %v2083 = vsub.f32 0.0, %v2063
    %v2084 = vsub.f32 0.0, %v2064
    %v2085 = vsub.f32 0.0, %v2065
    %v2086 = vsub.f32 0.0, %v2066
    %v2087 = vsub.f32 0.0, %v2067
    %v2088 = vsub.f32 0.0, %v2068
    %v2089 = vsub.f32 0.0, %v2069
    %v2090 = vsel %vm2070, %v2080, %v2060
    %v2091 = vsel %vm2071, %v2081, %v2061
    %v2092 = vsel %vm2072, %v2082, %v2062
    %v2093 = vsel %vm2073, %v2083, %v2063
    %v2094 = vsel %vm2074, %v2084, %v2064
    %v2095 = vsel %vm2075, %v2085, %v2065
    %v2096 = vsel %vm2076, %v2086, %v2066
    %v2097 = vsel %vm2077, %v2087, %v2067
    %v2098 = vsel %vm2078, %v2088, %v2068
    %v2099 = vsel %vm2079, %v2089, %v2069
    %v2100 = vld [vmem:[%s13] sm:$0x1]
    %v2102 = vperm.slane %v2100, 0
    %v2104 = vmul.f32 %v711, %v2102
    %v2105 = vmul.f32 %v723, %v2102
    %v2106 = vmul.f32 %v735, %v2102
    %v2107 = vmul.f32 %v747, %v2102
    %v2108 = vmul.f32 %v759, %v2102
    %v2109 = vmul.f32 %v771, %v2102
    %v2110 = vmul.f32 %v783, %v2102
    %v2111 = vmul.f32 %v795, %v2102
    %v2112 = vmul.f32 %v807, %v2102
    %v2113 = vmul.f32 %v819, %v2102
    %v2114 = vld [vmem:[%s15] sm:$0x1]
    %v2116 = vperm.slane %v2114, 0
    %v2118 = vadd.f32 %v2104, %v2116
    %v2119 = vadd.f32 %v2105, %v2116
    %v2120 = vadd.f32 %v2106, %v2116
    %v2121 = vadd.f32 %v2107, %v2116
    %v2122 = vadd.f32 %v2108, %v2116
    %v2123 = vadd.f32 %v2109, %v2116
    %v2124 = vadd.f32 %v2110, %v2116
    %v2125 = vadd.f32 %v2111, %v2116
    %v2126 = vadd.f32 %v2112, %v2116
    %v2127 = vadd.f32 %v2113, %v2116
    %v2128 = vld [vmem:[%s17] sm:$0x1]
    %v2130 = vperm.slane %v2128, 0
    %v2132 = vmul.f32 %v2090, %v2130
    %v2133 = vmul.f32 %v2091, %v2130
    %v2134 = vmul.f32 %v2092, %v2130
    %v2135 = vmul.f32 %v2093, %v2130
    %v2136 = vmul.f32 %v2094, %v2130
    %v2137 = vmul.f32 %v2095, %v2130
    %v2138 = vmul.f32 %v2096, %v2130
    %v2139 = vmul.f32 %v2097, %v2130
    %v2140 = vmul.f32 %v2098, %v2130
    %v2141 = vmul.f32 %v2099, %v2130
    %v2142 = vld [vmem:[%s19] sm:$0x1]
    %v2144 = vperm.slane %v2142, 0
    %v2146 = vadd.f32 %v2132, %v2144
    %v2147 = vadd.f32 %v2133, %v2144
    %v2148 = vadd.f32 %v2134, %v2144
    %v2149 = vadd.f32 %v2135, %v2144
    %v2150 = vadd.f32 %v2136, %v2144
    %v2151 = vadd.f32 %v2137, %v2144
    %v2152 = vadd.f32 %v2138, %v2144
    %v2153 = vadd.f32 %v2139, %v2144
    %v2154 = vadd.f32 %v2140, %v2144
    %v2155 = vadd.f32 %v2141, %v2144
    %v2156 = vand.u32 2147483647, %v2146
    %vm2157 = vcmp.le.f32.partialorder %v2156, 0.7853982
    %vm2158 = vcmp.lt.s32.totalorder %v2146, 0
    %v2159 = vand.u32 %v2146, 2139095040
    %v2160 = vshrl.u32 %v2159, 23
    %v2161 = vsub.s32 %v2160, 127
    %v2162 = vand.u32 2147483647, %v2146
    %v2163 = vand.u32 %v2162, 8388607
    %v2164 = vor.u32 %v2163, 8388608
    %v2165 = vsub.s32 0, %v2164
    %v2166 = vadd.s32 %v2161, 1
    %vm2167 = vcmp.gt.s32.totalorder %v2166, 0
    %v2168 = vsel %vm2167, %v2166, 0
    %v2169 = vshrl.u32 %v2168, 5
    %v2170 = vand.u32 %v2168, 31
    %v2171 = vsub.s32 32, %v2170
    %v2172 = vshrl.u32 683565275, %v2171
    %v2173 = vshll.u32 683565275, %v2170
    %v2174 = vshrl.u32 2475754826, %v2171
    %v2175 = vor.u32 %v2173, %v2174
    %v2176 = vshll.u32 2475754826, %v2170
    %v2177 = vshrl.u32 2131351028, %v2171
    %v2178 = vor.u32 %v2176, %v2177
    %v2179 = vshll.u32 2131351028, %v2170
    %v2180 = vshrl.u32 2102212464, %v2171
    %v2181 = vor.u32 %v2179, %v2180
    %v2182 = vshll.u32 2102212464, %v2170
    %v2183 = vshrl.u32 920167782, %v2171
    %v2184 = vor.u32 %v2182, %v2183
    %v2185 = vshll.u32 920167782, %v2170
    %v2186 = vshrl.u32 1326507024, %v2171
    %v2187 = vor.u32 %v2185, %v2186
    %vm2188 = vcmp.lt.s32.totalorder %v2169, 1
    %vm2189 = vcmp.lt.s32.totalorder %v2169, 2
    %vm2190 = vcmp.lt.s32.totalorder %v2169, 3
    %vm2191 = vcmp.lt.s32.totalorder %v2169, 4
    %v2192 = vsel %vm2188, %v2172, %v2175
    %v2193 = vsel %vm2191, %v2181, 2102212464
    %v2194 = vsel %vm2190, %v2178, %v2193
    %v2195 = vsel %vm2189, %v2192, %v2194
    %v2196 = vsel %vm2188, %v2175, %v2178
    %v2197 = vsel %vm2191, %v2184, 920167782
    %v2198 = vsel %vm2190, %v2181, %v2197
    %v2199 = vsel %vm2189, %v2196, %v2198
    %v2200 = vsel %vm2188, %v2178, %v2181
    %v2201 = vsel %vm2191, %v2187, 1326507024
    %v2202 = vsel %vm2190, %v2184, %v2201
    %v2203 = vsel %vm2189, %v2200, %v2202
    %v2204 = vshll.u32 %v2164, 8
    %v2205 = vand.u32 %v2204, 65535
    %v2206 = vshrl.u32 %v2204, 16
    %v2207 = vand.u32 %v2203, 65535
    %v2208 = vshrl.u32 %v2203, 16
    %v2209 = vmul.u32 %v2205, %v2207
    %v2210 = vmul.u32 %v2205, %v2208
    %v2211 = vmul.u32 %v2206, %v2207
    %v2212 = vmul.u32 %v2206, %v2208
    %v2213 = vshll.u32 %v2210, 16
    %v2214 = vshrl.u32 %v2210, 16
    %v2215 = vshll.u32 %v2211, 16
    %v2216 = vshrl.u32 %v2211, 16
    %vm2217 = vc.u32 %v2209, %v2213
    %v2218 = vsel %vm2217, 1, 0
    %v2219 = vadd.s32 %v2209, %v2213
    %v2220 = vadd.s32 %v2212, %v2218
    %vm2221 = vc.u32 %v2219, %v2215
    %v2222 = vsel %vm2221, 1, 0
    %v2223 = vadd.s32 %v2219, %v2215
    %v2224 = vadd.s32 %v2220, %v2222
    %v2225 = vadd.s32 %v2224, %v2214
    %v2226 = vadd.s32 %v2225, %v2216
    %v2227 = vand.u32 %v2204, 65535
    %v2228 = vshrl.u32 %v2204, 16
    %v2229 = vand.u32 %v2199, 65535
    %v2230 = vshrl.u32 %v2199, 16
    %v2231 = vmul.u32 %v2227, %v2229
    %v2232 = vmul.u32 %v2227, %v2230
    %v2233 = vmul.u32 %v2228, %v2229
    %v2234 = vmul.u32 %v2228, %v2230
    %v2235 = vshll.u32 %v2232, 16
    %v2236 = vshrl.u32 %v2232, 16
    %v2237 = vshll.u32 %v2233, 16
    %v2238 = vshrl.u32 %v2233, 16
    %vm2239 = vc.u32 %v2231, %v2235
    %v2240 = vsel %vm2239, 1, 0
    %v2241 = vadd.s32 %v2231, %v2235
    %v2242 = vadd.s32 %v2234, %v2240
    %vm2243 = vc.u32 %v2241, %v2237
    %v2244 = vsel %vm2243, 1, 0
    %v2245 = vadd.s32 %v2241, %v2237
    %v2246 = vadd.s32 %v2242, %v2244
    %v2247 = vadd.s32 %v2246, %v2236
    %v2248 = vadd.s32 %v2247, %v2238
    %v2249 = vmul.u32 %v2204, %v2195
    %v2250 = vadd.s32 %v2226, %v2245
    %vm2251 = vc.u32 %v2226, %v2245
    %v2252 = vadd.s32 %v2248, 1
    %v2253 = vsel %vm2251, %v2252, %v2248
    %v2254 = vadd.s32 %v2249, %v2253
    %v2255 = vadd.s32 %v2254, 536870912
    %v2256 = vshrl.u32 %v2255, 30
    %v2257 = vshll.u32 %v2256, 30
    %v2258 = vsub.s32 %v2254, %v2257
    %vm2259 = vcmp.lt.s32.totalorder %v2258, 0
    %v2260 = vsub.s32 0, %v2258
    %v2261 = vsel %vm2259, %v2260, %v2258
    %v2262 = vclz %v2261
    %v2263 = vsub.s32 %v2262, 2
    %vm2264 = vcmp.gt.s32.totalorder 0, %v2263
    %v2265 = vsel %vm2264, 0, %v2263
    %v2266 = vsub.s32 32, %v2265
    %v2267 = vshll.u32 %v2258, %v2265
    %v2268 = vshrl.u32 %v2250, %v2266
    %v2269 = vor.u32 %v2267, %v2268
    %v2270 = vsub.s32 4294967266, %v2265
    %v2271 = vadd.s32 %v2270, 127
    %v2272 = vshll.u32 %v2271, 23
    %v2273 = vor.u32 4788187, %v2272
    %v2274 = vand.u32 2147483647, %v2273
    %v2276 = vcvt.s32.f32 %v2269
    %v2277 = vmul.f32 %v2276, %v2274
    %v2278 = vxor.u32 %v2277, 2147483648
    %v2279 = vsel %vm2158, %v2278, %v2277
    %v2280 = vsub.s32 4, %v2256
    %v2281 = vsel %vm2158, %v2280, %v2256
    %v2282 = vsel %vm2157, %v2146, %v2279
    %v2283 = vsel %vm2157, 0, %v2281
    %v2284 = vmul.f32 %v2282, %v2282
    %v2285 = vmul.f32 %v2284, -0.001358992
    %v2286 = vadd.f32 %v2285, 0.041655596
    %v2287 = vmul.f32 %v2284, %v2286
    %v2288 = vadd.f32 %v2287, -0.4999988
    %v2289 = vmul.f32 %v2284, %v2288
    %v2290 = vadd.f32 1.0, %v2289
    %v2291 = vmul.f32 %v2282, %v2282
    %v2292 = vmul.f32 %v2291, -0.00019511016
    %v2293 = vadd.f32 %v2292, 0.008332121
    %v2294 = vmul.f32 %v2291, %v2293
    %v2295 = vadd.f32 %v2294, -0.16666654
    %v2296 = vmul.f32 %v2291, %v2295
    %v2297 = vadd.f32 %v2296, 1.0
    %v2298 = vmul.f32 %v2297, %v2282
    %vm2299 = vweird.f32 %v2146
    %v2300 = vand.u32 %v2283, 3
    %vm2301 = vcmp.lt.s32.totalorder %v2300, 2
    %vm2302 = vcmp.eq.s32.totalorder %v2300, 0
    %v2303 = vxor.u32 %v2298, 2147483648
    %v2304 = vsel %vm2302, %v2290, %v2303
    %vm2305 = vcmp.eq.s32.totalorder %v2300, 2
    %v2306 = vxor.u32 %v2290, 2147483648
    %v2307 = vsel %vm2305, %v2306, %v2298
    %v2308 = vsel %vm2301, %v2304, %v2307
    %v2309 = vsel %vm2299, nan, %v2308
    %v2310 = vand.u32 2147483647, %v2147
    %vm2311 = vcmp.le.f32.partialorder %v2310, 0.7853982
    %vm2312 = vcmp.lt.s32.totalorder %v2147, 0
    %v2313 = vand.u32 %v2147, 2139095040
    %v2314 = vshrl.u32 %v2313, 23
    %v2315 = vsub.s32 %v2314, 127
    %v2316 = vand.u32 2147483647, %v2147
    %v2317 = vand.u32 %v2316, 8388607
    %v2318 = vor.u32 %v2317, 8388608
    %v2319 = vsub.s32 0, %v2318
    %v2320 = vadd.s32 %v2315, 1
    %vm2321 = vcmp.gt.s32.totalorder %v2320, 0
    %v2322 = vsel %vm2321, %v2320, 0
    %v2323 = vshrl.u32 %v2322, 5
    %v2324 = vand.u32 %v2322, 31
    %v2325 = vsub.s32 32, %v2324
    %v2326 = vshrl.u32 683565275, %v2325
    %v2327 = vshll.u32 683565275, %v2324
    %v2328 = vshrl.u32 2475754826, %v2325
    %v2329 = vor.u32 %v2327, %v2328
    %v2330 = vshll.u32 2475754826, %v2324
    %v2331 = vshrl.u32 2131351028, %v2325
    %v2332 = vor.u32 %v2330, %v2331
    %v2333 = vshll.u32 2131351028, %v2324
    %v2334 = vshrl.u32 2102212464, %v2325
    %v2335 = vor.u32 %v2333, %v2334
    %v2336 = vshll.u32 2102212464, %v2324
    %v2337 = vshrl.u32 920167782, %v2325
    %v2338 = vor.u32 %v2336, %v2337
    %v2339 = vshll.u32 920167782, %v2324
    %v2340 = vshrl.u32 1326507024, %v2325
    %v2341 = vor.u32 %v2339, %v2340
    %vm2342 = vcmp.lt.s32.totalorder %v2323, 1
    %vm2343 = vcmp.lt.s32.totalorder %v2323, 2
    %vm2344 = vcmp.lt.s32.totalorder %v2323, 3
    %vm2345 = vcmp.lt.s32.totalorder %v2323, 4
    %v2346 = vsel %vm2342, %v2326, %v2329
    %v2347 = vsel %vm2345, %v2335, 2102212464
    %v2348 = vsel %vm2344, %v2332, %v2347
    %v2349 = vsel %vm2343, %v2346, %v2348
    %v2350 = vsel %vm2342, %v2329, %v2332
    %v2351 = vsel %vm2345, %v2338, 920167782
    %v2352 = vsel %vm2344, %v2335, %v2351
    %v2353 = vsel %vm2343, %v2350, %v2352
    %v2354 = vsel %vm2342, %v2332, %v2335
    %v2355 = vsel %vm2345, %v2341, 1326507024
    %v2356 = vsel %vm2344, %v2338, %v2355
    %v2357 = vsel %vm2343, %v2354, %v2356
    %v2358 = vshll.u32 %v2318, 8
    %v2359 = vand.u32 %v2358, 65535
    %v2360 = vshrl.u32 %v2358, 16
    %v2361 = vand.u32 %v2357, 65535
    %v2362 = vshrl.u32 %v2357, 16
    %v2363 = vmul.u32 %v2359, %v2361
    %v2364 = vmul.u32 %v2359, %v2362
    %v2365 = vmul.u32 %v2360, %v2361
    %v2366 = vmul.u32 %v2360, %v2362
    %v2367 = vshll.u32 %v2364, 16
    %v2368 = vshrl.u32 %v2364, 16
    %v2369 = vshll.u32 %v2365, 16
    %v2370 = vshrl.u32 %v2365, 16
    %vm2371 = vc.u32 %v2363, %v2367
    %v2372 = vsel %vm2371, 1, 0
    %v2373 = vadd.s32 %v2363, %v2367
    %v2374 = vadd.s32 %v2366, %v2372
    %vm2375 = vc.u32 %v2373, %v2369
    %v2376 = vsel %vm2375, 1, 0
    %v2377 = vadd.s32 %v2373, %v2369
    %v2378 = vadd.s32 %v2374, %v2376
    %v2379 = vadd.s32 %v2378, %v2368
    %v2380 = vadd.s32 %v2379, %v2370
    %v2381 = vand.u32 %v2358, 65535
    %v2382 = vshrl.u32 %v2358, 16
    %v2383 = vand.u32 %v2353, 65535
    %v2384 = vshrl.u32 %v2353, 16
    %v2385 = vmul.u32 %v2381, %v2383
    %v2386 = vmul.u32 %v2381, %v2384
    %v2387 = vmul.u32 %v2382, %v2383
    %v2388 = vmul.u32 %v2382, %v2384
    %v2389 = vshll.u32 %v2386, 16
    %v2390 = vshrl.u32 %v2386, 16
    %v2391 = vshll.u32 %v2387, 16
    %v2392 = vshrl.u32 %v2387, 16
    %vm2393 = vc.u32 %v2385, %v2389
    %v2394 = vsel %vm2393, 1, 0
    %v2395 = vadd.s32 %v2385, %v2389
    %v2396 = vadd.s32 %v2388, %v2394
    %vm2397 = vc.u32 %v2395, %v2391
    %v2398 = vsel %vm2397, 1, 0
    %v2399 = vadd.s32 %v2395, %v2391
    %v2400 = vadd.s32 %v2396, %v2398
    %v2401 = vadd.s32 %v2400, %v2390
    %v2402 = vadd.s32 %v2401, %v2392
    %v2403 = vmul.u32 %v2358, %v2349
    %v2404 = vadd.s32 %v2380, %v2399
    %vm2405 = vc.u32 %v2380, %v2399
    %v2406 = vadd.s32 %v2402, 1
    %v2407 = vsel %vm2405, %v2406, %v2402
    %v2408 = vadd.s32 %v2403, %v2407
    %v2409 = vadd.s32 %v2408, 536870912
    %v2410 = vshrl.u32 %v2409, 30
    %v2411 = vshll.u32 %v2410, 30
    %v2412 = vsub.s32 %v2408, %v2411
    %vm2413 = vcmp.lt.s32.totalorder %v2412, 0
    %v2414 = vsub.s32 0, %v2412
    %v2415 = vsel %vm2413, %v2414, %v2412
    %v2416 = vclz %v2415
    %v2417 = vsub.s32 %v2416, 2
    %vm2418 = vcmp.gt.s32.totalorder 0, %v2417
    %v2419 = vsel %vm2418, 0, %v2417
    %v2420 = vsub.s32 32, %v2419
    %v2421 = vshll.u32 %v2412, %v2419
    %v2422 = vshrl.u32 %v2404, %v2420
    %v2423 = vor.u32 %v2421, %v2422
    %v2424 = vsub.s32 4294967266, %v2419
    %v2425 = vadd.s32 %v2424, 127
    %v2426 = vshll.u32 %v2425, 23
    %v2427 = vor.u32 4788187, %v2426
    %v2428 = vand.u32 2147483647, %v2427
    %v2430 = vcvt.s32.f32 %v2423
    %v2431 = vmul.f32 %v2430, %v2428
    %v2432 = vxor.u32 %v2431, 2147483648
    %v2433 = vsel %vm2312, %v2432, %v2431
    %v2434 = vsub.s32 4, %v2410
    %v2435 = vsel %vm2312, %v2434, %v2410
    %v2436 = vsel %vm2311, %v2147, %v2433
    %v2437 = vsel %vm2311, 0, %v2435
    %v2438 = vmul.f32 %v2436, %v2436
    %v2439 = vmul.f32 %v2438, -0.001358992
    %v2440 = vadd.f32 %v2439, 0.041655596
    %v2441 = vmul.f32 %v2438, %v2440
    %v2442 = vadd.f32 %v2441, -0.4999988
    %v2443 = vmul.f32 %v2438, %v2442
    %v2444 = vadd.f32 1.0, %v2443
    %v2445 = vmul.f32 %v2436, %v2436
    %v2446 = vmul.f32 %v2445, -0.00019511016
    %v2447 = vadd.f32 %v2446, 0.008332121
    %v2448 = vmul.f32 %v2445, %v2447
    %v2449 = vadd.f32 %v2448, -0.16666654
    %v2450 = vmul.f32 %v2445, %v2449
    %v2451 = vadd.f32 %v2450, 1.0
    %v2452 = vmul.f32 %v2451, %v2436
    %vm2453 = vweird.f32 %v2147
    %v2454 = vand.u32 %v2437, 3
    %vm2455 = vcmp.lt.s32.totalorder %v2454, 2
    %vm2456 = vcmp.eq.s32.totalorder %v2454, 0
    %v2457 = vxor.u32 %v2452, 2147483648
    %v2458 = vsel %vm2456, %v2444, %v2457
    %vm2459 = vcmp.eq.s32.totalorder %v2454, 2
    %v2460 = vxor.u32 %v2444, 2147483648
    %v2461 = vsel %vm2459, %v2460, %v2452
    %v2462 = vsel %vm2455, %v2458, %v2461
    %v2463 = vsel %vm2453, nan, %v2462
    %v2464 = vand.u32 2147483647, %v2148
    %vm2465 = vcmp.le.f32.partialorder %v2464, 0.7853982
    %vm2466 = vcmp.lt.s32.totalorder %v2148, 0
    %v2467 = vand.u32 %v2148, 2139095040
    %v2468 = vshrl.u32 %v2467, 23
    %v2469 = vsub.s32 %v2468, 127
    %v2470 = vand.u32 2147483647, %v2148
    %v2471 = vand.u32 %v2470, 8388607
    %v2472 = vor.u32 %v2471, 8388608
    %v2473 = vsub.s32 0, %v2472
    %v2474 = vadd.s32 %v2469, 1
    %vm2475 = vcmp.gt.s32.totalorder %v2474, 0
    %v2476 = vsel %vm2475, %v2474, 0
    %v2477 = vshrl.u32 %v2476, 5
    %v2478 = vand.u32 %v2476, 31
    %v2479 = vsub.s32 32, %v2478
    %v2480 = vshrl.u32 683565275, %v2479
    %v2481 = vshll.u32 683565275, %v2478
    %v2482 = vshrl.u32 2475754826, %v2479
    %v2483 = vor.u32 %v2481, %v2482
    %v2484 = vshll.u32 2475754826, %v2478
    %v2485 = vshrl.u32 2131351028, %v2479
    %v2486 = vor.u32 %v2484, %v2485
    %v2487 = vshll.u32 2131351028, %v2478
    %v2488 = vshrl.u32 2102212464, %v2479
    %v2489 = vor.u32 %v2487, %v2488
    %v2490 = vshll.u32 2102212464, %v2478
    %v2491 = vshrl.u32 920167782, %v2479
    %v2492 = vor.u32 %v2490, %v2491
    %v2493 = vshll.u32 920167782, %v2478
    %v2494 = vshrl.u32 1326507024, %v2479
    %v2495 = vor.u32 %v2493, %v2494
    %vm2496 = vcmp.lt.s32.totalorder %v2477, 1
    %vm2497 = vcmp.lt.s32.totalorder %v2477, 2
    %vm2498 = vcmp.lt.s32.totalorder %v2477, 3
    %vm2499 = vcmp.lt.s32.totalorder %v2477, 4
    %v2500 = vsel %vm2496, %v2480, %v2483
    %v2501 = vsel %vm2499, %v2489, 2102212464
    %v2502 = vsel %vm2498, %v2486, %v2501
    %v2503 = vsel %vm2497, %v2500, %v2502
    %v2504 = vsel %vm2496, %v2483, %v2486
    %v2505 = vsel %vm2499, %v2492, 920167782
    %v2506 = vsel %vm2498, %v2489, %v2505
    %v2507 = vsel %vm2497, %v2504, %v2506
    %v2508 = vsel %vm2496, %v2486, %v2489
    %v2509 = vsel %vm2499, %v2495, 1326507024
    %v2510 = vsel %vm2498, %v2492, %v2509
    %v2511 = vsel %vm2497, %v2508, %v2510
    %v2512 = vshll.u32 %v2472, 8
    %v2513 = vand.u32 %v2512, 65535
    %v2514 = vshrl.u32 %v2512, 16
    %v2515 = vand.u32 %v2511, 65535
    %v2516 = vshrl.u32 %v2511, 16
    %v2517 = vmul.u32 %v2513, %v2515
    %v2518 = vmul.u32 %v2513, %v2516
    %v2519 = vmul.u32 %v2514, %v2515
    %v2520 = vmul.u32 %v2514, %v2516
    %v2521 = vshll.u32 %v2518, 16
    %v2522 = vshrl.u32 %v2518, 16
    %v2523 = vshll.u32 %v2519, 16
    %v2524 = vshrl.u32 %v2519, 16
    %vm2525 = vc.u32 %v2517, %v2521
    %v2526 = vsel %vm2525, 1, 0
    %v2527 = vadd.s32 %v2517, %v2521
    %v2528 = vadd.s32 %v2520, %v2526
    %vm2529 = vc.u32 %v2527, %v2523
    %v2530 = vsel %vm2529, 1, 0
    %v2531 = vadd.s32 %v2527, %v2523
    %v2532 = vadd.s32 %v2528, %v2530
    %v2533 = vadd.s32 %v2532, %v2522
    %v2534 = vadd.s32 %v2533, %v2524
    %v2535 = vand.u32 %v2512, 65535
    %v2536 = vshrl.u32 %v2512, 16
    %v2537 = vand.u32 %v2507, 65535
    %v2538 = vshrl.u32 %v2507, 16
    %v2539 = vmul.u32 %v2535, %v2537
    %v2540 = vmul.u32 %v2535, %v2538
    %v2541 = vmul.u32 %v2536, %v2537
    %v2542 = vmul.u32 %v2536, %v2538
    %v2543 = vshll.u32 %v2540, 16
    %v2544 = vshrl.u32 %v2540, 16
    %v2545 = vshll.u32 %v2541, 16
    %v2546 = vshrl.u32 %v2541, 16
    %vm2547 = vc.u32 %v2539, %v2543
    %v2548 = vsel %vm2547, 1, 0
    %v2549 = vadd.s32 %v2539, %v2543
    %v2550 = vadd.s32 %v2542, %v2548
    %vm2551 = vc.u32 %v2549, %v2545
    %v2552 = vsel %vm2551, 1, 0
    %v2553 = vadd.s32 %v2549, %v2545
    %v2554 = vadd.s32 %v2550, %v2552
    %v2555 = vadd.s32 %v2554, %v2544
    %v2556 = vadd.s32 %v2555, %v2546
    %v2557 = vmul.u32 %v2512, %v2503
    %v2558 = vadd.s32 %v2534, %v2553
    %vm2559 = vc.u32 %v2534, %v2553
    %v2560 = vadd.s32 %v2556, 1
    %v2561 = vsel %vm2559, %v2560, %v2556
    %v2562 = vadd.s32 %v2557, %v2561
    %v2563 = vadd.s32 %v2562, 536870912
    %v2564 = vshrl.u32 %v2563, 30
    %v2565 = vshll.u32 %v2564, 30
    %v2566 = vsub.s32 %v2562, %v2565
    %vm2567 = vcmp.lt.s32.totalorder %v2566, 0
    %v2568 = vsub.s32 0, %v2566
    %v2569 = vsel %vm2567, %v2568, %v2566
    %v2570 = vclz %v2569
    %v2571 = vsub.s32 %v2570, 2
    %vm2572 = vcmp.gt.s32.totalorder 0, %v2571
    %v2573 = vsel %vm2572, 0, %v2571
    %v2574 = vsub.s32 32, %v2573
    %v2575 = vshll.u32 %v2566, %v2573
    %v2576 = vshrl.u32 %v2558, %v2574
    %v2577 = vor.u32 %v2575, %v2576
    %v2578 = vsub.s32 4294967266, %v2573
    %v2579 = vadd.s32 %v2578, 127
    %v2580 = vshll.u32 %v2579, 23
    %v2581 = vor.u32 4788187, %v2580
    %v2582 = vand.u32 2147483647, %v2581
    %v2584 = vcvt.s32.f32 %v2577
    %v2585 = vmul.f32 %v2584, %v2582
    %v2586 = vxor.u32 %v2585, 2147483648
    %v2587 = vsel %vm2466, %v2586, %v2585
    %v2588 = vsub.s32 4, %v2564
    %v2589 = vsel %vm2466, %v2588, %v2564
    %v2590 = vsel %vm2465, %v2148, %v2587
    %v2591 = vsel %vm2465, 0, %v2589
    %v2592 = vmul.f32 %v2590, %v2590
    %v2593 = vmul.f32 %v2592, -0.001358992
    %v2594 = vadd.f32 %v2593, 0.041655596
    %v2595 = vmul.f32 %v2592, %v2594
    %v2596 = vadd.f32 %v2595, -0.4999988
    %v2597 = vmul.f32 %v2592, %v2596
    %v2598 = vadd.f32 1.0, %v2597
    %v2599 = vmul.f32 %v2590, %v2590
    %v2600 = vmul.f32 %v2599, -0.00019511016
    %v2601 = vadd.f32 %v2600, 0.008332121
    %v2602 = vmul.f32 %v2599, %v2601
    %v2603 = vadd.f32 %v2602, -0.16666654
    %v2604 = vmul.f32 %v2599, %v2603
    %v2605 = vadd.f32 %v2604, 1.0
    %v2606 = vmul.f32 %v2605, %v2590
    %vm2607 = vweird.f32 %v2148
    %v2608 = vand.u32 %v2591, 3
    %vm2609 = vcmp.lt.s32.totalorder %v2608, 2
    %vm2610 = vcmp.eq.s32.totalorder %v2608, 0
    %v2611 = vxor.u32 %v2606, 2147483648
    %v2612 = vsel %vm2610, %v2598, %v2611
    %vm2613 = vcmp.eq.s32.totalorder %v2608, 2
    %v2614 = vxor.u32 %v2598, 2147483648
    %v2615 = vsel %vm2613, %v2614, %v2606
    %v2616 = vsel %vm2609, %v2612, %v2615
    %v2617 = vsel %vm2607, nan, %v2616
    %v2618 = vand.u32 2147483647, %v2149
    %vm2619 = vcmp.le.f32.partialorder %v2618, 0.7853982
    %vm2620 = vcmp.lt.s32.totalorder %v2149, 0
    %v2621 = vand.u32 %v2149, 2139095040
    %v2622 = vshrl.u32 %v2621, 23
    %v2623 = vsub.s32 %v2622, 127
    %v2624 = vand.u32 2147483647, %v2149
    %v2625 = vand.u32 %v2624, 8388607
    %v2626 = vor.u32 %v2625, 8388608
    %v2627 = vsub.s32 0, %v2626
    %v2628 = vadd.s32 %v2623, 1
    %vm2629 = vcmp.gt.s32.totalorder %v2628, 0
    %v2630 = vsel %vm2629, %v2628, 0
    %v2631 = vshrl.u32 %v2630, 5
    %v2632 = vand.u32 %v2630, 31
    %v2633 = vsub.s32 32, %v2632
    %v2634 = vshrl.u32 683565275, %v2633
    %v2635 = vshll.u32 683565275, %v2632
    %v2636 = vshrl.u32 2475754826, %v2633
    %v2637 = vor.u32 %v2635, %v2636
    %v2638 = vshll.u32 2475754826, %v2632
    %v2639 = vshrl.u32 2131351028, %v2633
    %v2640 = vor.u32 %v2638, %v2639
    %v2641 = vshll.u32 2131351028, %v2632
    %v2642 = vshrl.u32 2102212464, %v2633
    %v2643 = vor.u32 %v2641, %v2642
    %v2644 = vshll.u32 2102212464, %v2632
    %v2645 = vshrl.u32 920167782, %v2633
    %v2646 = vor.u32 %v2644, %v2645
    %v2647 = vshll.u32 920167782, %v2632
    %v2648 = vshrl.u32 1326507024, %v2633
    %v2649 = vor.u32 %v2647, %v2648
    %vm2650 = vcmp.lt.s32.totalorder %v2631, 1
    %vm2651 = vcmp.lt.s32.totalorder %v2631, 2
    %vm2652 = vcmp.lt.s32.totalorder %v2631, 3
    %vm2653 = vcmp.lt.s32.totalorder %v2631, 4
    %v2654 = vsel %vm2650, %v2634, %v2637
    %v2655 = vsel %vm2653, %v2643, 2102212464
    %v2656 = vsel %vm2652, %v2640, %v2655
    %v2657 = vsel %vm2651, %v2654, %v2656
    %v2658 = vsel %vm2650, %v2637, %v2640
    %v2659 = vsel %vm2653, %v2646, 920167782
    %v2660 = vsel %vm2652, %v2643, %v2659
    %v2661 = vsel %vm2651, %v2658, %v2660
    %v2662 = vsel %vm2650, %v2640, %v2643
    %v2663 = vsel %vm2653, %v2649, 1326507024
    %v2664 = vsel %vm2652, %v2646, %v2663
    %v2665 = vsel %vm2651, %v2662, %v2664
    %v2666 = vshll.u32 %v2626, 8
    %v2667 = vand.u32 %v2666, 65535
    %v2668 = vshrl.u32 %v2666, 16
    %v2669 = vand.u32 %v2665, 65535
    %v2670 = vshrl.u32 %v2665, 16
    %v2671 = vmul.u32 %v2667, %v2669
    %v2672 = vmul.u32 %v2667, %v2670
    %v2673 = vmul.u32 %v2668, %v2669
    %v2674 = vmul.u32 %v2668, %v2670
    %v2675 = vshll.u32 %v2672, 16
    %v2676 = vshrl.u32 %v2672, 16
    %v2677 = vshll.u32 %v2673, 16
    %v2678 = vshrl.u32 %v2673, 16
    %vm2679 = vc.u32 %v2671, %v2675
    %v2680 = vsel %vm2679, 1, 0
    %v2681 = vadd.s32 %v2671, %v2675
    %v2682 = vadd.s32 %v2674, %v2680
    %vm2683 = vc.u32 %v2681, %v2677
    %v2684 = vsel %vm2683, 1, 0
    %v2685 = vadd.s32 %v2681, %v2677
    %v2686 = vadd.s32 %v2682, %v2684
    %v2687 = vadd.s32 %v2686, %v2676
    %v2688 = vadd.s32 %v2687, %v2678
    %v2689 = vand.u32 %v2666, 65535
    %v2690 = vshrl.u32 %v2666, 16
    %v2691 = vand.u32 %v2661, 65535
    %v2692 = vshrl.u32 %v2661, 16
    %v2693 = vmul.u32 %v2689, %v2691
    %v2694 = vmul.u32 %v2689, %v2692
    %v2695 = vmul.u32 %v2690, %v2691
    %v2696 = vmul.u32 %v2690, %v2692
    %v2697 = vshll.u32 %v2694, 16
    %v2698 = vshrl.u32 %v2694, 16
    %v2699 = vshll.u32 %v2695, 16
    %v2700 = vshrl.u32 %v2695, 16
    %vm2701 = vc.u32 %v2693, %v2697
    %v2702 = vsel %vm2701, 1, 0
    %v2703 = vadd.s32 %v2693, %v2697
    %v2704 = vadd.s32 %v2696, %v2702
    %vm2705 = vc.u32 %v2703, %v2699
    %v2706 = vsel %vm2705, 1, 0
    %v2707 = vadd.s32 %v2703, %v2699
    %v2708 = vadd.s32 %v2704, %v2706
    %v2709 = vadd.s32 %v2708, %v2698
    %v2710 = vadd.s32 %v2709, %v2700
    %v2711 = vmul.u32 %v2666, %v2657
    %v2712 = vadd.s32 %v2688, %v2707
    %vm2713 = vc.u32 %v2688, %v2707
    %v2714 = vadd.s32 %v2710, 1
    %v2715 = vsel %vm2713, %v2714, %v2710
    %v2716 = vadd.s32 %v2711, %v2715
    %v2717 = vadd.s32 %v2716, 536870912
    %v2718 = vshrl.u32 %v2717, 30
    %v2719 = vshll.u32 %v2718, 30
    %v2720 = vsub.s32 %v2716, %v2719
    %vm2721 = vcmp.lt.s32.totalorder %v2720, 0
    %v2722 = vsub.s32 0, %v2720
    %v2723 = vsel %vm2721, %v2722, %v2720
    %v2724 = vclz %v2723
    %v2725 = vsub.s32 %v2724, 2
    %vm2726 = vcmp.gt.s32.totalorder 0, %v2725
    %v2727 = vsel %vm2726, 0, %v2725
    %v2728 = vsub.s32 32, %v2727
    %v2729 = vshll.u32 %v2720, %v2727
    %v2730 = vshrl.u32 %v2712, %v2728
    %v2731 = vor.u32 %v2729, %v2730
    %v2732 = vsub.s32 4294967266, %v2727
    %v2733 = vadd.s32 %v2732, 127
    %v2734 = vshll.u32 %v2733, 23
    %v2735 = vor.u32 4788187, %v2734
    %v2736 = vand.u32 2147483647, %v2735
    %v2738 = vcvt.s32.f32 %v2731
    %v2739 = vmul.f32 %v2738, %v2736
    %v2740 = vxor.u32 %v2739, 2147483648
    %v2741 = vsel %vm2620, %v2740, %v2739
    %v2742 = vsub.s32 4, %v2718
    %v2743 = vsel %vm2620, %v2742, %v2718
    %v2744 = vsel %vm2619, %v2149, %v2741
    %v2745 = vsel %vm2619, 0, %v2743
    %v2746 = vmul.f32 %v2744, %v2744
    %v2747 = vmul.f32 %v2746, -0.001358992
    %v2748 = vadd.f32 %v2747, 0.041655596
    %v2749 = vmul.f32 %v2746, %v2748
    %v2750 = vadd.f32 %v2749, -0.4999988
    %v2751 = vmul.f32 %v2746, %v2750
    %v2752 = vadd.f32 1.0, %v2751
    %v2753 = vmul.f32 %v2744, %v2744
    %v2754 = vmul.f32 %v2753, -0.00019511016
    %v2755 = vadd.f32 %v2754, 0.008332121
    %v2756 = vmul.f32 %v2753, %v2755
    %v2757 = vadd.f32 %v2756, -0.16666654
    %v2758 = vmul.f32 %v2753, %v2757
    %v2759 = vadd.f32 %v2758, 1.0
    %v2760 = vmul.f32 %v2759, %v2744
    %vm2761 = vweird.f32 %v2149
    %v2762 = vand.u32 %v2745, 3
    %vm2763 = vcmp.lt.s32.totalorder %v2762, 2
    %vm2764 = vcmp.eq.s32.totalorder %v2762, 0
    %v2765 = vxor.u32 %v2760, 2147483648
    %v2766 = vsel %vm2764, %v2752, %v2765
    %vm2767 = vcmp.eq.s32.totalorder %v2762, 2
    %v2768 = vxor.u32 %v2752, 2147483648
    %v2769 = vsel %vm2767, %v2768, %v2760
    %v2770 = vsel %vm2763, %v2766, %v2769
    %v2771 = vsel %vm2761, nan, %v2770
    %v2772 = vand.u32 2147483647, %v2150
    %vm2773 = vcmp.le.f32.partialorder %v2772, 0.7853982
    %vm2774 = vcmp.lt.s32.totalorder %v2150, 0
    %v2775 = vand.u32 %v2150, 2139095040
    %v2776 = vshrl.u32 %v2775, 23
    %v2777 = vsub.s32 %v2776, 127
    %v2778 = vand.u32 2147483647, %v2150
    %v2779 = vand.u32 %v2778, 8388607
    %v2780 = vor.u32 %v2779, 8388608
    %v2781 = vsub.s32 0, %v2780
    %v2782 = vadd.s32 %v2777, 1
    %vm2783 = vcmp.gt.s32.totalorder %v2782, 0
    %v2784 = vsel %vm2783, %v2782, 0
    %v2785 = vshrl.u32 %v2784, 5
    %v2786 = vand.u32 %v2784, 31
    %v2787 = vsub.s32 32, %v2786
    %v2788 = vshrl.u32 683565275, %v2787
    %v2789 = vshll.u32 683565275, %v2786
    %v2790 = vshrl.u32 2475754826, %v2787
    %v2791 = vor.u32 %v2789, %v2790
    %v2792 = vshll.u32 2475754826, %v2786
    %v2793 = vshrl.u32 2131351028, %v2787
    %v2794 = vor.u32 %v2792, %v2793
    %v2795 = vshll.u32 2131351028, %v2786
    %v2796 = vshrl.u32 2102212464, %v2787
    %v2797 = vor.u32 %v2795, %v2796
    %v2798 = vshll.u32 2102212464, %v2786
    %v2799 = vshrl.u32 920167782, %v2787
    %v2800 = vor.u32 %v2798, %v2799
    %v2801 = vshll.u32 920167782, %v2786
    %v2802 = vshrl.u32 1326507024, %v2787
    %v2803 = vor.u32 %v2801, %v2802
    %vm2804 = vcmp.lt.s32.totalorder %v2785, 1
    %vm2805 = vcmp.lt.s32.totalorder %v2785, 2
    %vm2806 = vcmp.lt.s32.totalorder %v2785, 3
    %vm2807 = vcmp.lt.s32.totalorder %v2785, 4
    %v2808 = vsel %vm2804, %v2788, %v2791
    %v2809 = vsel %vm2807, %v2797, 2102212464
    %v2810 = vsel %vm2806, %v2794, %v2809
    %v2811 = vsel %vm2805, %v2808, %v2810
    %v2812 = vsel %vm2804, %v2791, %v2794
    %v2813 = vsel %vm2807, %v2800, 920167782
    %v2814 = vsel %vm2806, %v2797, %v2813
    %v2815 = vsel %vm2805, %v2812, %v2814
    %v2816 = vsel %vm2804, %v2794, %v2797
    %v2817 = vsel %vm2807, %v2803, 1326507024
    %v2818 = vsel %vm2806, %v2800, %v2817
    %v2819 = vsel %vm2805, %v2816, %v2818
    %v2820 = vshll.u32 %v2780, 8
    %v2821 = vand.u32 %v2820, 65535
    %v2822 = vshrl.u32 %v2820, 16
    %v2823 = vand.u32 %v2819, 65535
    %v2824 = vshrl.u32 %v2819, 16
    %v2825 = vmul.u32 %v2821, %v2823
    %v2826 = vmul.u32 %v2821, %v2824
    %v2827 = vmul.u32 %v2822, %v2823
    %v2828 = vmul.u32 %v2822, %v2824
    %v2829 = vshll.u32 %v2826, 16
    %v2830 = vshrl.u32 %v2826, 16
    %v2831 = vshll.u32 %v2827, 16
    %v2832 = vshrl.u32 %v2827, 16
    %vm2833 = vc.u32 %v2825, %v2829
    %v2834 = vsel %vm2833, 1, 0
    %v2835 = vadd.s32 %v2825, %v2829
    %v2836 = vadd.s32 %v2828, %v2834
    %vm2837 = vc.u32 %v2835, %v2831
    %v2838 = vsel %vm2837, 1, 0
    %v2839 = vadd.s32 %v2835, %v2831
    %v2840 = vadd.s32 %v2836, %v2838
    %v2841 = vadd.s32 %v2840, %v2830
    %v2842 = vadd.s32 %v2841, %v2832
    %v2843 = vand.u32 %v2820, 65535
    %v2844 = vshrl.u32 %v2820, 16
    %v2845 = vand.u32 %v2815, 65535
    %v2846 = vshrl.u32 %v2815, 16
    %v2847 = vmul.u32 %v2843, %v2845
    %v2848 = vmul.u32 %v2843, %v2846
    %v2849 = vmul.u32 %v2844, %v2845
    %v2850 = vmul.u32 %v2844, %v2846
    %v2851 = vshll.u32 %v2848, 16
    %v2852 = vshrl.u32 %v2848, 16
    %v2853 = vshll.u32 %v2849, 16
    %v2854 = vshrl.u32 %v2849, 16
    %vm2855 = vc.u32 %v2847, %v2851
    %v2856 = vsel %vm2855, 1, 0
    %v2857 = vadd.s32 %v2847, %v2851
    %v2858 = vadd.s32 %v2850, %v2856
    %vm2859 = vc.u32 %v2857, %v2853
    %v2860 = vsel %vm2859, 1, 0
    %v2861 = vadd.s32 %v2857, %v2853
    %v2862 = vadd.s32 %v2858, %v2860
    %v2863 = vadd.s32 %v2862, %v2852
    %v2864 = vadd.s32 %v2863, %v2854
    %v2865 = vmul.u32 %v2820, %v2811
    %v2866 = vadd.s32 %v2842, %v2861
    %vm2867 = vc.u32 %v2842, %v2861
    %v2868 = vadd.s32 %v2864, 1
    %v2869 = vsel %vm2867, %v2868, %v2864
    %v2870 = vadd.s32 %v2865, %v2869
    %v2871 = vadd.s32 %v2870, 536870912
    %v2872 = vshrl.u32 %v2871, 30
    %v2873 = vshll.u32 %v2872, 30
    %v2874 = vsub.s32 %v2870, %v2873
    %vm2875 = vcmp.lt.s32.totalorder %v2874, 0
    %v2876 = vsub.s32 0, %v2874
    %v2877 = vsel %vm2875, %v2876, %v2874
    %v2878 = vclz %v2877
    %v2879 = vsub.s32 %v2878, 2
    %vm2880 = vcmp.gt.s32.totalorder 0, %v2879
    %v2881 = vsel %vm2880, 0, %v2879
    %v2882 = vsub.s32 32, %v2881
    %v2883 = vshll.u32 %v2874, %v2881
    %v2884 = vshrl.u32 %v2866, %v2882
    %v2885 = vor.u32 %v2883, %v2884
    %v2886 = vsub.s32 4294967266, %v2881
    %v2887 = vadd.s32 %v2886, 127
    %v2888 = vshll.u32 %v2887, 23
    %v2889 = vor.u32 4788187, %v2888
    %v2890 = vand.u32 2147483647, %v2889
    %v2892 = vcvt.s32.f32 %v2885
    %v2893 = vmul.f32 %v2892, %v2890
    %v2894 = vxor.u32 %v2893, 2147483648
    %v2895 = vsel %vm2774, %v2894, %v2893
    %v2896 = vsub.s32 4, %v2872
    %v2897 = vsel %vm2774, %v2896, %v2872
    %v2898 = vsel %vm2773, %v2150, %v2895
    %v2899 = vsel %vm2773, 0, %v2897
    %v2900 = vmul.f32 %v2898, %v2898
    %v2901 = vmul.f32 %v2900, -0.001358992
    %v2902 = vadd.f32 %v2901, 0.041655596
    %v2903 = vmul.f32 %v2900, %v2902
    %v2904 = vadd.f32 %v2903, -0.4999988
    %v2905 = vmul.f32 %v2900, %v2904
    %v2906 = vadd.f32 1.0, %v2905
    %v2907 = vmul.f32 %v2898, %v2898
    %v2908 = vmul.f32 %v2907, -0.00019511016
    %v2909 = vadd.f32 %v2908, 0.008332121
    %v2910 = vmul.f32 %v2907, %v2909
    %v2911 = vadd.f32 %v2910, -0.16666654
    %v2912 = vmul.f32 %v2907, %v2911
    %v2913 = vadd.f32 %v2912, 1.0
    %v2914 = vmul.f32 %v2913, %v2898
    %vm2915 = vweird.f32 %v2150
    %v2916 = vand.u32 %v2899, 3
    %vm2917 = vcmp.lt.s32.totalorder %v2916, 2
    %vm2918 = vcmp.eq.s32.totalorder %v2916, 0
    %v2919 = vxor.u32 %v2914, 2147483648
    %v2920 = vsel %vm2918, %v2906, %v2919
    %vm2921 = vcmp.eq.s32.totalorder %v2916, 2
    %v2922 = vxor.u32 %v2906, 2147483648
    %v2923 = vsel %vm2921, %v2922, %v2914
    %v2924 = vsel %vm2917, %v2920, %v2923
    %v2925 = vsel %vm2915, nan, %v2924
    %v2926 = vand.u32 2147483647, %v2151
    %vm2927 = vcmp.le.f32.partialorder %v2926, 0.7853982
    %vm2928 = vcmp.lt.s32.totalorder %v2151, 0
    %v2929 = vand.u32 %v2151, 2139095040
    %v2930 = vshrl.u32 %v2929, 23
    %v2931 = vsub.s32 %v2930, 127
    %v2932 = vand.u32 2147483647, %v2151
    %v2933 = vand.u32 %v2932, 8388607
    %v2934 = vor.u32 %v2933, 8388608
    %v2935 = vsub.s32 0, %v2934
    %v2936 = vadd.s32 %v2931, 1
    %vm2937 = vcmp.gt.s32.totalorder %v2936, 0
    %v2938 = vsel %vm2937, %v2936, 0
    %v2939 = vshrl.u32 %v2938, 5
    %v2940 = vand.u32 %v2938, 31
    %v2941 = vsub.s32 32, %v2940
    %v2942 = vshrl.u32 683565275, %v2941
    %v2943 = vshll.u32 683565275, %v2940
    %v2944 = vshrl.u32 2475754826, %v2941
    %v2945 = vor.u32 %v2943, %v2944
    %v2946 = vshll.u32 2475754826, %v2940
    %v2947 = vshrl.u32 2131351028, %v2941
    %v2948 = vor.u32 %v2946, %v2947
    %v2949 = vshll.u32 2131351028, %v2940
    %v2950 = vshrl.u32 2102212464, %v2941
    %v2951 = vor.u32 %v2949, %v2950
    %v2952 = vshll.u32 2102212464, %v2940
    %v2953 = vshrl.u32 920167782, %v2941
    %v2954 = vor.u32 %v2952, %v2953
    %v2955 = vshll.u32 920167782, %v2940
    %v2956 = vshrl.u32 1326507024, %v2941
    %v2957 = vor.u32 %v2955, %v2956
    %vm2958 = vcmp.lt.s32.totalorder %v2939, 1
    %vm2959 = vcmp.lt.s32.totalorder %v2939, 2
    %vm2960 = vcmp.lt.s32.totalorder %v2939, 3
    %vm2961 = vcmp.lt.s32.totalorder %v2939, 4
    %v2962 = vsel %vm2958, %v2942, %v2945
    %v2963 = vsel %vm2961, %v2951, 2102212464
    %v2964 = vsel %vm2960, %v2948, %v2963
    %v2965 = vsel %vm2959, %v2962, %v2964
    %v2966 = vsel %vm2958, %v2945, %v2948
    %v2967 = vsel %vm2961, %v2954, 920167782
    %v2968 = vsel %vm2960, %v2951, %v2967
    %v2969 = vsel %vm2959, %v2966, %v2968
    %v2970 = vsel %vm2958, %v2948, %v2951
    %v2971 = vsel %vm2961, %v2957, 1326507024
    %v2972 = vsel %vm2960, %v2954, %v2971
    %v2973 = vsel %vm2959, %v2970, %v2972
    %v2974 = vshll.u32 %v2934, 8
    %v2975 = vand.u32 %v2974, 65535
    %v2976 = vshrl.u32 %v2974, 16
    %v2977 = vand.u32 %v2973, 65535
    %v2978 = vshrl.u32 %v2973, 16
    %v2979 = vmul.u32 %v2975, %v2977
    %v2980 = vmul.u32 %v2975, %v2978
    %v2981 = vmul.u32 %v2976, %v2977
    %v2982 = vmul.u32 %v2976, %v2978
    %v2983 = vshll.u32 %v2980, 16
    %v2984 = vshrl.u32 %v2980, 16
    %v2985 = vshll.u32 %v2981, 16
    %v2986 = vshrl.u32 %v2981, 16
    %vm2987 = vc.u32 %v2979, %v2983
    %v2988 = vsel %vm2987, 1, 0
    %v2989 = vadd.s32 %v2979, %v2983
    %v2990 = vadd.s32 %v2982, %v2988
    %vm2991 = vc.u32 %v2989, %v2985
    %v2992 = vsel %vm2991, 1, 0
    %v2993 = vadd.s32 %v2989, %v2985
    %v2994 = vadd.s32 %v2990, %v2992
    %v2995 = vadd.s32 %v2994, %v2984
    %v2996 = vadd.s32 %v2995, %v2986
    %v2997 = vand.u32 %v2974, 65535
    %v2998 = vshrl.u32 %v2974, 16
    %v2999 = vand.u32 %v2969, 65535
    %v3000 = vshrl.u32 %v2969, 16
    %v3001 = vmul.u32 %v2997, %v2999
    %v3002 = vmul.u32 %v2997, %v3000
    %v3003 = vmul.u32 %v2998, %v2999
    %v3004 = vmul.u32 %v2998, %v3000
    %v3005 = vshll.u32 %v3002, 16
    %v3006 = vshrl.u32 %v3002, 16
    %v3007 = vshll.u32 %v3003, 16
    %v3008 = vshrl.u32 %v3003, 16
    %vm3009 = vc.u32 %v3001, %v3005
    %v3010 = vsel %vm3009, 1, 0
    %v3011 = vadd.s32 %v3001, %v3005
    %v3012 = vadd.s32 %v3004, %v3010
    %vm3013 = vc.u32 %v3011, %v3007
    %v3014 = vsel %vm3013, 1, 0
    %v3015 = vadd.s32 %v3011, %v3007
    %v3016 = vadd.s32 %v3012, %v3014
    %v3017 = vadd.s32 %v3016, %v3006
    %v3018 = vadd.s32 %v3017, %v3008
    %v3019 = vmul.u32 %v2974, %v2965
    %v3020 = vadd.s32 %v2996, %v3015
    %vm3021 = vc.u32 %v2996, %v3015
    %v3022 = vadd.s32 %v3018, 1
    %v3023 = vsel %vm3021, %v3022, %v3018
    %v3024 = vadd.s32 %v3019, %v3023
    %v3025 = vadd.s32 %v3024, 536870912
    %v3026 = vshrl.u32 %v3025, 30
    %v3027 = vshll.u32 %v3026, 30
    %v3028 = vsub.s32 %v3024, %v3027
    %vm3029 = vcmp.lt.s32.totalorder %v3028, 0
    %v3030 = vsub.s32 0, %v3028
    %v3031 = vsel %vm3029, %v3030, %v3028
    %v3032 = vclz %v3031
    %v3033 = vsub.s32 %v3032, 2
    %vm3034 = vcmp.gt.s32.totalorder 0, %v3033
    %v3035 = vsel %vm3034, 0, %v3033
    %v3036 = vsub.s32 32, %v3035
    %v3037 = vshll.u32 %v3028, %v3035
    %v3038 = vshrl.u32 %v3020, %v3036
    %v3039 = vor.u32 %v3037, %v3038
    %v3040 = vsub.s32 4294967266, %v3035
    %v3041 = vadd.s32 %v3040, 127
    %v3042 = vshll.u32 %v3041, 23
    %v3043 = vor.u32 4788187, %v3042
    %v3044 = vand.u32 2147483647, %v3043
    %v3046 = vcvt.s32.f32 %v3039
    %v3047 = vmul.f32 %v3046, %v3044
    %v3048 = vxor.u32 %v3047, 2147483648
    %v3049 = vsel %vm2928, %v3048, %v3047
    %v3050 = vsub.s32 4, %v3026
    %v3051 = vsel %vm2928, %v3050, %v3026
    %v3052 = vsel %vm2927, %v2151, %v3049
    %v3053 = vsel %vm2927, 0, %v3051
    %v3054 = vmul.f32 %v3052, %v3052
    %v3055 = vmul.f32 %v3054, -0.001358992
    %v3056 = vadd.f32 %v3055, 0.041655596
    %v3057 = vmul.f32 %v3054, %v3056
    %v3058 = vadd.f32 %v3057, -0.4999988
    %v3059 = vmul.f32 %v3054, %v3058
    %v3060 = vadd.f32 1.0, %v3059
    %v3061 = vmul.f32 %v3052, %v3052
    %v3062 = vmul.f32 %v3061, -0.00019511016
    %v3063 = vadd.f32 %v3062, 0.008332121
    %v3064 = vmul.f32 %v3061, %v3063
    %v3065 = vadd.f32 %v3064, -0.16666654
    %v3066 = vmul.f32 %v3061, %v3065
    %v3067 = vadd.f32 %v3066, 1.0
    %v3068 = vmul.f32 %v3067, %v3052
    %vm3069 = vweird.f32 %v2151
    %v3070 = vand.u32 %v3053, 3
    %vm3071 = vcmp.lt.s32.totalorder %v3070, 2
    %vm3072 = vcmp.eq.s32.totalorder %v3070, 0
    %v3073 = vxor.u32 %v3068, 2147483648
    %v3074 = vsel %vm3072, %v3060, %v3073
    %vm3075 = vcmp.eq.s32.totalorder %v3070, 2
    %v3076 = vxor.u32 %v3060, 2147483648
    %v3077 = vsel %vm3075, %v3076, %v3068
    %v3078 = vsel %vm3071, %v3074, %v3077
    %v3079 = vsel %vm3069, nan, %v3078
    %v3080 = vand.u32 2147483647, %v2152
    %vm3081 = vcmp.le.f32.partialorder %v3080, 0.7853982
    %vm3082 = vcmp.lt.s32.totalorder %v2152, 0
    %v3083 = vand.u32 %v2152, 2139095040
    %v3084 = vshrl.u32 %v3083, 23
    %v3085 = vsub.s32 %v3084, 127
    %v3086 = vand.u32 2147483647, %v2152
    %v3087 = vand.u32 %v3086, 8388607
    %v3088 = vor.u32 %v3087, 8388608
    %v3089 = vsub.s32 0, %v3088
    %v3090 = vadd.s32 %v3085, 1
    %vm3091 = vcmp.gt.s32.totalorder %v3090, 0
    %v3092 = vsel %vm3091, %v3090, 0
    %v3093 = vshrl.u32 %v3092, 5
    %v3094 = vand.u32 %v3092, 31
    %v3095 = vsub.s32 32, %v3094
    %v3096 = vshrl.u32 683565275, %v3095
    %v3097 = vshll.u32 683565275, %v3094
    %v3098 = vshrl.u32 2475754826, %v3095
    %v3099 = vor.u32 %v3097, %v3098
    %v3100 = vshll.u32 2475754826, %v3094
    %v3101 = vshrl.u32 2131351028, %v3095
    %v3102 = vor.u32 %v3100, %v3101
    %v3103 = vshll.u32 2131351028, %v3094
    %v3104 = vshrl.u32 2102212464, %v3095
    %v3105 = vor.u32 %v3103, %v3104
    %v3106 = vshll.u32 2102212464, %v3094
    %v3107 = vshrl.u32 920167782, %v3095
    %v3108 = vor.u32 %v3106, %v3107
    %v3109 = vshll.u32 920167782, %v3094
    %v3110 = vshrl.u32 1326507024, %v3095
    %v3111 = vor.u32 %v3109, %v3110
    %vm3112 = vcmp.lt.s32.totalorder %v3093, 1
    %vm3113 = vcmp.lt.s32.totalorder %v3093, 2
    %vm3114 = vcmp.lt.s32.totalorder %v3093, 3
    %vm3115 = vcmp.lt.s32.totalorder %v3093, 4
    %v3116 = vsel %vm3112, %v3096, %v3099
    %v3117 = vsel %vm3115, %v3105, 2102212464
    %v3118 = vsel %vm3114, %v3102, %v3117
    %v3119 = vsel %vm3113, %v3116, %v3118
    %v3120 = vsel %vm3112, %v3099, %v3102
    %v3121 = vsel %vm3115, %v3108, 920167782
    %v3122 = vsel %vm3114, %v3105, %v3121
    %v3123 = vsel %vm3113, %v3120, %v3122
    %v3124 = vsel %vm3112, %v3102, %v3105
    %v3125 = vsel %vm3115, %v3111, 1326507024
    %v3126 = vsel %vm3114, %v3108, %v3125
    %v3127 = vsel %vm3113, %v3124, %v3126
    %v3128 = vshll.u32 %v3088, 8
    %v3129 = vand.u32 %v3128, 65535
    %v3130 = vshrl.u32 %v3128, 16
    %v3131 = vand.u32 %v3127, 65535
    %v3132 = vshrl.u32 %v3127, 16
    %v3133 = vmul.u32 %v3129, %v3131
    %v3134 = vmul.u32 %v3129, %v3132
    %v3135 = vmul.u32 %v3130, %v3131
    %v3136 = vmul.u32 %v3130, %v3132
    %v3137 = vshll.u32 %v3134, 16
    %v3138 = vshrl.u32 %v3134, 16
    %v3139 = vshll.u32 %v3135, 16
    %v3140 = vshrl.u32 %v3135, 16
    %vm3141 = vc.u32 %v3133, %v3137
    %v3142 = vsel %vm3141, 1, 0
    %v3143 = vadd.s32 %v3133, %v3137
    %v3144 = vadd.s32 %v3136, %v3142
    %vm3145 = vc.u32 %v3143, %v3139
    %v3146 = vsel %vm3145, 1, 0
    %v3147 = vadd.s32 %v3143, %v3139
    %v3148 = vadd.s32 %v3144, %v3146
    %v3149 = vadd.s32 %v3148, %v3138
    %v3150 = vadd.s32 %v3149, %v3140
    %v3151 = vand.u32 %v3128, 65535
    %v3152 = vshrl.u32 %v3128, 16
    %v3153 = vand.u32 %v3123, 65535
    %v3154 = vshrl.u32 %v3123, 16
    %v3155 = vmul.u32 %v3151, %v3153
    %v3156 = vmul.u32 %v3151, %v3154
    %v3157 = vmul.u32 %v3152, %v3153
    %v3158 = vmul.u32 %v3152, %v3154
    %v3159 = vshll.u32 %v3156, 16
    %v3160 = vshrl.u32 %v3156, 16
    %v3161 = vshll.u32 %v3157, 16
    %v3162 = vshrl.u32 %v3157, 16
    %vm3163 = vc.u32 %v3155, %v3159
    %v3164 = vsel %vm3163, 1, 0
    %v3165 = vadd.s32 %v3155, %v3159
    %v3166 = vadd.s32 %v3158, %v3164
    %vm3167 = vc.u32 %v3165, %v3161
    %v3168 = vsel %vm3167, 1, 0
    %v3169 = vadd.s32 %v3165, %v3161
    %v3170 = vadd.s32 %v3166, %v3168
    %v3171 = vadd.s32 %v3170, %v3160
    %v3172 = vadd.s32 %v3171, %v3162
    %v3173 = vmul.u32 %v3128, %v3119
    %v3174 = vadd.s32 %v3150, %v3169
    %vm3175 = vc.u32 %v3150, %v3169
    %v3176 = vadd.s32 %v3172, 1
    %v3177 = vsel %vm3175, %v3176, %v3172
    %v3178 = vadd.s32 %v3173, %v3177
    %v3179 = vadd.s32 %v3178, 536870912
    %v3180 = vshrl.u32 %v3179, 30
    %v3181 = vshll.u32 %v3180, 30
    %v3182 = vsub.s32 %v3178, %v3181
    %vm3183 = vcmp.lt.s32.totalorder %v3182, 0
    %v3184 = vsub.s32 0, %v3182
    %v3185 = vsel %vm3183, %v3184, %v3182
    %v3186 = vclz %v3185
    %v3187 = vsub.s32 %v3186, 2
    %vm3188 = vcmp.gt.s32.totalorder 0, %v3187
    %v3189 = vsel %vm3188, 0, %v3187
    %v3190 = vsub.s32 32, %v3189
    %v3191 = vshll.u32 %v3182, %v3189
    %v3192 = vshrl.u32 %v3174, %v3190
    %v3193 = vor.u32 %v3191, %v3192
    %v3194 = vsub.s32 4294967266, %v3189
    %v3195 = vadd.s32 %v3194, 127
    %v3196 = vshll.u32 %v3195, 23
    %v3197 = vor.u32 4788187, %v3196
    %v3198 = vand.u32 2147483647, %v3197
    %v3200 = vcvt.s32.f32 %v3193
    %v3201 = vmul.f32 %v3200, %v3198
    %v3202 = vxor.u32 %v3201, 2147483648
    %v3203 = vsel %vm3082, %v3202, %v3201
    %v3204 = vsub.s32 4, %v3180
    %v3205 = vsel %vm3082, %v3204, %v3180
    %v3206 = vsel %vm3081, %v2152, %v3203
    %v3207 = vsel %vm3081, 0, %v3205
    %v3208 = vmul.f32 %v3206, %v3206
    %v3209 = vmul.f32 %v3208, -0.001358992
    %v3210 = vadd.f32 %v3209, 0.041655596
    %v3211 = vmul.f32 %v3208, %v3210
    %v3212 = vadd.f32 %v3211, -0.4999988
    %v3213 = vmul.f32 %v3208, %v3212
    %v3214 = vadd.f32 1.0, %v3213
    %v3215 = vmul.f32 %v3206, %v3206
    %v3216 = vmul.f32 %v3215, -0.00019511016
    %v3217 = vadd.f32 %v3216, 0.008332121
    %v3218 = vmul.f32 %v3215, %v3217
    %v3219 = vadd.f32 %v3218, -0.16666654
    %v3220 = vmul.f32 %v3215, %v3219
    %v3221 = vadd.f32 %v3220, 1.0
    %v3222 = vmul.f32 %v3221, %v3206
    %vm3223 = vweird.f32 %v2152
    %v3224 = vand.u32 %v3207, 3
    %vm3225 = vcmp.lt.s32.totalorder %v3224, 2
    %vm3226 = vcmp.eq.s32.totalorder %v3224, 0
    %v3227 = vxor.u32 %v3222, 2147483648
    %v3228 = vsel %vm3226, %v3214, %v3227
    %vm3229 = vcmp.eq.s32.totalorder %v3224, 2
    %v3230 = vxor.u32 %v3214, 2147483648
    %v3231 = vsel %vm3229, %v3230, %v3222
    %v3232 = vsel %vm3225, %v3228, %v3231
    %v3233 = vsel %vm3223, nan, %v3232
    %v3234 = vand.u32 2147483647, %v2153
    %vm3235 = vcmp.le.f32.partialorder %v3234, 0.7853982
    %vm3236 = vcmp.lt.s32.totalorder %v2153, 0
    %v3237 = vand.u32 %v2153, 2139095040
    %v3238 = vshrl.u32 %v3237, 23
    %v3239 = vsub.s32 %v3238, 127
    %v3240 = vand.u32 2147483647, %v2153
    %v3241 = vand.u32 %v3240, 8388607
    %v3242 = vor.u32 %v3241, 8388608
    %v3243 = vsub.s32 0, %v3242
    %v3244 = vadd.s32 %v3239, 1
    %vm3245 = vcmp.gt.s32.totalorder %v3244, 0
    %v3246 = vsel %vm3245, %v3244, 0
    %v3247 = vshrl.u32 %v3246, 5
    %v3248 = vand.u32 %v3246, 31
    %v3249 = vsub.s32 32, %v3248
    %v3250 = vshrl.u32 683565275, %v3249
    %v3251 = vshll.u32 683565275, %v3248
    %v3252 = vshrl.u32 2475754826, %v3249
    %v3253 = vor.u32 %v3251, %v3252
    %v3254 = vshll.u32 2475754826, %v3248
    %v3255 = vshrl.u32 2131351028, %v3249
    %v3256 = vor.u32 %v3254, %v3255
    %v3257 = vshll.u32 2131351028, %v3248
    %v3258 = vshrl.u32 2102212464, %v3249
    %v3259 = vor.u32 %v3257, %v3258
    %v3260 = vshll.u32 2102212464, %v3248
    %v3261 = vshrl.u32 920167782, %v3249
    %v3262 = vor.u32 %v3260, %v3261
    %v3263 = vshll.u32 920167782, %v3248
    %v3264 = vshrl.u32 1326507024, %v3249
    %v3265 = vor.u32 %v3263, %v3264
    %vm3266 = vcmp.lt.s32.totalorder %v3247, 1
    %vm3267 = vcmp.lt.s32.totalorder %v3247, 2
    %vm3268 = vcmp.lt.s32.totalorder %v3247, 3
    %vm3269 = vcmp.lt.s32.totalorder %v3247, 4
    %v3270 = vsel %vm3266, %v3250, %v3253
    %v3271 = vsel %vm3269, %v3259, 2102212464
    %v3272 = vsel %vm3268, %v3256, %v3271
    %v3273 = vsel %vm3267, %v3270, %v3272
    %v3274 = vsel %vm3266, %v3253, %v3256
    %v3275 = vsel %vm3269, %v3262, 920167782
    %v3276 = vsel %vm3268, %v3259, %v3275
    %v3277 = vsel %vm3267, %v3274, %v3276
    %v3278 = vsel %vm3266, %v3256, %v3259
    %v3279 = vsel %vm3269, %v3265, 1326507024
    %v3280 = vsel %vm3268, %v3262, %v3279
    %v3281 = vsel %vm3267, %v3278, %v3280
    %v3282 = vshll.u32 %v3242, 8
    %v3283 = vand.u32 %v3282, 65535
    %v3284 = vshrl.u32 %v3282, 16
    %v3285 = vand.u32 %v3281, 65535
    %v3286 = vshrl.u32 %v3281, 16
    %v3287 = vmul.u32 %v3283, %v3285
    %v3288 = vmul.u32 %v3283, %v3286
    %v3289 = vmul.u32 %v3284, %v3285
    %v3290 = vmul.u32 %v3284, %v3286
    %v3291 = vshll.u32 %v3288, 16
    %v3292 = vshrl.u32 %v3288, 16
    %v3293 = vshll.u32 %v3289, 16
    %v3294 = vshrl.u32 %v3289, 16
    %vm3295 = vc.u32 %v3287, %v3291
    %v3296 = vsel %vm3295, 1, 0
    %v3297 = vadd.s32 %v3287, %v3291
    %v3298 = vadd.s32 %v3290, %v3296
    %vm3299 = vc.u32 %v3297, %v3293
    %v3300 = vsel %vm3299, 1, 0
    %v3301 = vadd.s32 %v3297, %v3293
    %v3302 = vadd.s32 %v3298, %v3300
    %v3303 = vadd.s32 %v3302, %v3292
    %v3304 = vadd.s32 %v3303, %v3294
    %v3305 = vand.u32 %v3282, 65535
    %v3306 = vshrl.u32 %v3282, 16
    %v3307 = vand.u32 %v3277, 65535
    %v3308 = vshrl.u32 %v3277, 16
    %v3309 = vmul.u32 %v3305, %v3307
    %v3310 = vmul.u32 %v3305, %v3308
    %v3311 = vmul.u32 %v3306, %v3307
    %v3312 = vmul.u32 %v3306, %v3308
    %v3313 = vshll.u32 %v3310, 16
    %v3314 = vshrl.u32 %v3310, 16
    %v3315 = vshll.u32 %v3311, 16
    %v3316 = vshrl.u32 %v3311, 16
    %vm3317 = vc.u32 %v3309, %v3313
    %v3318 = vsel %vm3317, 1, 0
    %v3319 = vadd.s32 %v3309, %v3313
    %v3320 = vadd.s32 %v3312, %v3318
    %vm3321 = vc.u32 %v3319, %v3315
    %v3322 = vsel %vm3321, 1, 0
    %v3323 = vadd.s32 %v3319, %v3315
    %v3324 = vadd.s32 %v3320, %v3322
    %v3325 = vadd.s32 %v3324, %v3314
    %v3326 = vadd.s32 %v3325, %v3316
    %v3327 = vmul.u32 %v3282, %v3273
    %v3328 = vadd.s32 %v3304, %v3323
    %vm3329 = vc.u32 %v3304, %v3323
    %v3330 = vadd.s32 %v3326, 1
    %v3331 = vsel %vm3329, %v3330, %v3326
    %v3332 = vadd.s32 %v3327, %v3331
    %v3333 = vadd.s32 %v3332, 536870912
    %v3334 = vshrl.u32 %v3333, 30
    %v3335 = vshll.u32 %v3334, 30
    %v3336 = vsub.s32 %v3332, %v3335
    %vm3337 = vcmp.lt.s32.totalorder %v3336, 0
    %v3338 = vsub.s32 0, %v3336
    %v3339 = vsel %vm3337, %v3338, %v3336
    %v3340 = vclz %v3339
    %v3341 = vsub.s32 %v3340, 2
    %vm3342 = vcmp.gt.s32.totalorder 0, %v3341
    %v3343 = vsel %vm3342, 0, %v3341
    %v3344 = vsub.s32 32, %v3343
    %v3345 = vshll.u32 %v3336, %v3343
    %v3346 = vshrl.u32 %v3328, %v3344
    %v3347 = vor.u32 %v3345, %v3346
    %v3348 = vsub.s32 4294967266, %v3343
    %v3349 = vadd.s32 %v3348, 127
    %v3350 = vshll.u32 %v3349, 23
    %v3351 = vor.u32 4788187, %v3350
    %v3352 = vand.u32 2147483647, %v3351
    %v3354 = vcvt.s32.f32 %v3347
    %v3355 = vmul.f32 %v3354, %v3352
    %v3356 = vxor.u32 %v3355, 2147483648
    %v3357 = vsel %vm3236, %v3356, %v3355
    %v3358 = vsub.s32 4, %v3334
    %v3359 = vsel %vm3236, %v3358, %v3334
    %v3360 = vsel %vm3235, %v2153, %v3357
    %v3361 = vsel %vm3235, 0, %v3359
    %v3362 = vmul.f32 %v3360, %v3360
    %v3363 = vmul.f32 %v3362, -0.001358992
    %v3364 = vadd.f32 %v3363, 0.041655596
    %v3365 = vmul.f32 %v3362, %v3364
    %v3366 = vadd.f32 %v3365, -0.4999988
    %v3367 = vmul.f32 %v3362, %v3366
    %v3368 = vadd.f32 1.0, %v3367
    %v3369 = vmul.f32 %v3360, %v3360
    %v3370 = vmul.f32 %v3369, -0.00019511016
    %v3371 = vadd.f32 %v3370, 0.008332121
    %v3372 = vmul.f32 %v3369, %v3371
    %v3373 = vadd.f32 %v3372, -0.16666654
    %v3374 = vmul.f32 %v3369, %v3373
    %v3375 = vadd.f32 %v3374, 1.0
    %v3376 = vmul.f32 %v3375, %v3360
    %vm3377 = vweird.f32 %v2153
    %v3378 = vand.u32 %v3361, 3
    %vm3379 = vcmp.lt.s32.totalorder %v3378, 2
    %vm3380 = vcmp.eq.s32.totalorder %v3378, 0
    %v3381 = vxor.u32 %v3376, 2147483648
    %v3382 = vsel %vm3380, %v3368, %v3381
    %vm3383 = vcmp.eq.s32.totalorder %v3378, 2
    %v3384 = vxor.u32 %v3368, 2147483648
    %v3385 = vsel %vm3383, %v3384, %v3376
    %v3386 = vsel %vm3379, %v3382, %v3385
    %v3387 = vsel %vm3377, nan, %v3386
    %v3388 = vand.u32 2147483647, %v2154
    %vm3389 = vcmp.le.f32.partialorder %v3388, 0.7853982
    %vm3390 = vcmp.lt.s32.totalorder %v2154, 0
    %v3391 = vand.u32 %v2154, 2139095040
    %v3392 = vshrl.u32 %v3391, 23
    %v3393 = vsub.s32 %v3392, 127
    %v3394 = vand.u32 2147483647, %v2154
    %v3395 = vand.u32 %v3394, 8388607
    %v3396 = vor.u32 %v3395, 8388608
    %v3397 = vsub.s32 0, %v3396
    %v3398 = vadd.s32 %v3393, 1
    %vm3399 = vcmp.gt.s32.totalorder %v3398, 0
    %v3400 = vsel %vm3399, %v3398, 0
    %v3401 = vshrl.u32 %v3400, 5
    %v3402 = vand.u32 %v3400, 31
    %v3403 = vsub.s32 32, %v3402
    %v3404 = vshrl.u32 683565275, %v3403
    %v3405 = vshll.u32 683565275, %v3402
    %v3406 = vshrl.u32 2475754826, %v3403
    %v3407 = vor.u32 %v3405, %v3406
    %v3408 = vshll.u32 2475754826, %v3402
    %v3409 = vshrl.u32 2131351028, %v3403
    %v3410 = vor.u32 %v3408, %v3409
    %v3411 = vshll.u32 2131351028, %v3402
    %v3412 = vshrl.u32 2102212464, %v3403
    %v3413 = vor.u32 %v3411, %v3412
    %v3414 = vshll.u32 2102212464, %v3402
    %v3415 = vshrl.u32 920167782, %v3403
    %v3416 = vor.u32 %v3414, %v3415
    %v3417 = vshll.u32 920167782, %v3402
    %v3418 = vshrl.u32 1326507024, %v3403
    %v3419 = vor.u32 %v3417, %v3418
    %vm3420 = vcmp.lt.s32.totalorder %v3401, 1
    %vm3421 = vcmp.lt.s32.totalorder %v3401, 2
    %vm3422 = vcmp.lt.s32.totalorder %v3401, 3
    %vm3423 = vcmp.lt.s32.totalorder %v3401, 4
    %v3424 = vsel %vm3420, %v3404, %v3407
    %v3425 = vsel %vm3423, %v3413, 2102212464
    %v3426 = vsel %vm3422, %v3410, %v3425
    %v3427 = vsel %vm3421, %v3424, %v3426
    %v3428 = vsel %vm3420, %v3407, %v3410
    %v3429 = vsel %vm3423, %v3416, 920167782
    %v3430 = vsel %vm3422, %v3413, %v3429
    %v3431 = vsel %vm3421, %v3428, %v3430
    %v3432 = vsel %vm3420, %v3410, %v3413
    %v3433 = vsel %vm3423, %v3419, 1326507024
    %v3434 = vsel %vm3422, %v3416, %v3433
    %v3435 = vsel %vm3421, %v3432, %v3434
    %v3436 = vshll.u32 %v3396, 8
    %v3437 = vand.u32 %v3436, 65535
    %v3438 = vshrl.u32 %v3436, 16
    %v3439 = vand.u32 %v3435, 65535
    %v3440 = vshrl.u32 %v3435, 16
    %v3441 = vmul.u32 %v3437, %v3439
    %v3442 = vmul.u32 %v3437, %v3440
    %v3443 = vmul.u32 %v3438, %v3439
    %v3444 = vmul.u32 %v3438, %v3440
    %v3445 = vshll.u32 %v3442, 16
    %v3446 = vshrl.u32 %v3442, 16
    %v3447 = vshll.u32 %v3443, 16
    %v3448 = vshrl.u32 %v3443, 16
    %vm3449 = vc.u32 %v3441, %v3445
    %v3450 = vsel %vm3449, 1, 0
    %v3451 = vadd.s32 %v3441, %v3445
    %v3452 = vadd.s32 %v3444, %v3450
    %vm3453 = vc.u32 %v3451, %v3447
    %v3454 = vsel %vm3453, 1, 0
    %v3455 = vadd.s32 %v3451, %v3447
    %v3456 = vadd.s32 %v3452, %v3454
    %v3457 = vadd.s32 %v3456, %v3446
    %v3458 = vadd.s32 %v3457, %v3448
    %v3459 = vand.u32 %v3436, 65535
    %v3460 = vshrl.u32 %v3436, 16
    %v3461 = vand.u32 %v3431, 65535
    %v3462 = vshrl.u32 %v3431, 16
    %v3463 = vmul.u32 %v3459, %v3461
    %v3464 = vmul.u32 %v3459, %v3462
    %v3465 = vmul.u32 %v3460, %v3461
    %v3466 = vmul.u32 %v3460, %v3462
    %v3467 = vshll.u32 %v3464, 16
    %v3468 = vshrl.u32 %v3464, 16
    %v3469 = vshll.u32 %v3465, 16
    %v3470 = vshrl.u32 %v3465, 16
    %vm3471 = vc.u32 %v3463, %v3467
    %v3472 = vsel %vm3471, 1, 0
    %v3473 = vadd.s32 %v3463, %v3467
    %v3474 = vadd.s32 %v3466, %v3472
    %vm3475 = vc.u32 %v3473, %v3469
    %v3476 = vsel %vm3475, 1, 0
    %v3477 = vadd.s32 %v3473, %v3469
    %v3478 = vadd.s32 %v3474, %v3476
    %v3479 = vadd.s32 %v3478, %v3468
    %v3480 = vadd.s32 %v3479, %v3470
    %v3481 = vmul.u32 %v3436, %v3427
    %v3482 = vadd.s32 %v3458, %v3477
    %vm3483 = vc.u32 %v3458, %v3477
    %v3484 = vadd.s32 %v3480, 1
    %v3485 = vsel %vm3483, %v3484, %v3480
    %v3486 = vadd.s32 %v3481, %v3485
    %v3487 = vadd.s32 %v3486, 536870912
    %v3488 = vshrl.u32 %v3487, 30
    %v3489 = vshll.u32 %v3488, 30
    %v3490 = vsub.s32 %v3486, %v3489
    %vm3491 = vcmp.lt.s32.totalorder %v3490, 0
    %v3492 = vsub.s32 0, %v3490
    %v3493 = vsel %vm3491, %v3492, %v3490
    %v3494 = vclz %v3493
    %v3495 = vsub.s32 %v3494, 2
    %vm3496 = vcmp.gt.s32.totalorder 0, %v3495
    %v3497 = vsel %vm3496, 0, %v3495
    %v3498 = vsub.s32 32, %v3497
    %v3499 = vshll.u32 %v3490, %v3497
    %v3500 = vshrl.u32 %v3482, %v3498
    %v3501 = vor.u32 %v3499, %v3500
    %v3502 = vsub.s32 4294967266, %v3497
    %v3503 = vadd.s32 %v3502, 127
    %v3504 = vshll.u32 %v3503, 23
    %v3505 = vor.u32 4788187, %v3504
    %v3506 = vand.u32 2147483647, %v3505
    %v3508 = vcvt.s32.f32 %v3501
    %v3509 = vmul.f32 %v3508, %v3506
    %v3510 = vxor.u32 %v3509, 2147483648
    %v3511 = vsel %vm3390, %v3510, %v3509
    %v3512 = vsub.s32 4, %v3488
    %v3513 = vsel %vm3390, %v3512, %v3488
    %v3514 = vsel %vm3389, %v2154, %v3511
    %v3515 = vsel %vm3389, 0, %v3513
    %v3516 = vmul.f32 %v3514, %v3514
    %v3517 = vmul.f32 %v3516, -0.001358992
    %v3518 = vadd.f32 %v3517, 0.041655596
    %v3519 = vmul.f32 %v3516, %v3518
    %v3520 = vadd.f32 %v3519, -0.4999988
    %v3521 = vmul.f32 %v3516, %v3520
    %v3522 = vadd.f32 1.0, %v3521
    %v3523 = vmul.f32 %v3514, %v3514
    %v3524 = vmul.f32 %v3523, -0.00019511016
    %v3525 = vadd.f32 %v3524, 0.008332121
    %v3526 = vmul.f32 %v3523, %v3525
    %v3527 = vadd.f32 %v3526, -0.16666654
    %v3528 = vmul.f32 %v3523, %v3527
    %v3529 = vadd.f32 %v3528, 1.0
    %v3530 = vmul.f32 %v3529, %v3514
    %vm3531 = vweird.f32 %v2154
    %v3532 = vand.u32 %v3515, 3
    %vm3533 = vcmp.lt.s32.totalorder %v3532, 2
    %vm3534 = vcmp.eq.s32.totalorder %v3532, 0
    %v3535 = vxor.u32 %v3530, 2147483648
    %v3536 = vsel %vm3534, %v3522, %v3535
    %vm3537 = vcmp.eq.s32.totalorder %v3532, 2
    %v3538 = vxor.u32 %v3522, 2147483648
    %v3539 = vsel %vm3537, %v3538, %v3530
    %v3540 = vsel %vm3533, %v3536, %v3539
    %v3541 = vsel %vm3531, nan, %v3540
    %v3542 = vand.u32 2147483647, %v2155
    %vm3543 = vcmp.le.f32.partialorder %v3542, 0.7853982
    %vm3544 = vcmp.lt.s32.totalorder %v2155, 0
    %v3545 = vand.u32 %v2155, 2139095040
    %v3546 = vshrl.u32 %v3545, 23
    %v3547 = vsub.s32 %v3546, 127
    %v3548 = vand.u32 2147483647, %v2155
    %v3549 = vand.u32 %v3548, 8388607
    %v3550 = vor.u32 %v3549, 8388608
    %v3551 = vsub.s32 0, %v3550
    %v3552 = vadd.s32 %v3547, 1
    %vm3553 = vcmp.gt.s32.totalorder %v3552, 0
    %v3554 = vsel %vm3553, %v3552, 0
    %v3555 = vshrl.u32 %v3554, 5
    %v3556 = vand.u32 %v3554, 31
    %v3557 = vsub.s32 32, %v3556
    %v3558 = vshrl.u32 683565275, %v3557
    %v3559 = vshll.u32 683565275, %v3556
    %v3560 = vshrl.u32 2475754826, %v3557
    %v3561 = vor.u32 %v3559, %v3560
    %v3562 = vshll.u32 2475754826, %v3556
    %v3563 = vshrl.u32 2131351028, %v3557
    %v3564 = vor.u32 %v3562, %v3563
    %v3565 = vshll.u32 2131351028, %v3556
    %v3566 = vshrl.u32 2102212464, %v3557
    %v3567 = vor.u32 %v3565, %v3566
    %v3568 = vshll.u32 2102212464, %v3556
    %v3569 = vshrl.u32 920167782, %v3557
    %v3570 = vor.u32 %v3568, %v3569
    %v3571 = vshll.u32 920167782, %v3556
    %v3572 = vshrl.u32 1326507024, %v3557
    %v3573 = vor.u32 %v3571, %v3572
    %vm3574 = vcmp.lt.s32.totalorder %v3555, 1
    %vm3575 = vcmp.lt.s32.totalorder %v3555, 2
    %vm3576 = vcmp.lt.s32.totalorder %v3555, 3
    %vm3577 = vcmp.lt.s32.totalorder %v3555, 4
    %v3578 = vsel %vm3574, %v3558, %v3561
    %v3579 = vsel %vm3577, %v3567, 2102212464
    %v3580 = vsel %vm3576, %v3564, %v3579
    %v3581 = vsel %vm3575, %v3578, %v3580
    %v3582 = vsel %vm3574, %v3561, %v3564
    %v3583 = vsel %vm3577, %v3570, 920167782
    %v3584 = vsel %vm3576, %v3567, %v3583
    %v3585 = vsel %vm3575, %v3582, %v3584
    %v3586 = vsel %vm3574, %v3564, %v3567
    %v3587 = vsel %vm3577, %v3573, 1326507024
    %v3588 = vsel %vm3576, %v3570, %v3587
    %v3589 = vsel %vm3575, %v3586, %v3588
    %v3590 = vshll.u32 %v3550, 8
    %v3591 = vand.u32 %v3590, 65535
    %v3592 = vshrl.u32 %v3590, 16
    %v3593 = vand.u32 %v3589, 65535
    %v3594 = vshrl.u32 %v3589, 16
    %v3595 = vmul.u32 %v3591, %v3593
    %v3596 = vmul.u32 %v3591, %v3594
    %v3597 = vmul.u32 %v3592, %v3593
    %v3598 = vmul.u32 %v3592, %v3594
    %v3599 = vshll.u32 %v3596, 16
    %v3600 = vshrl.u32 %v3596, 16
    %v3601 = vshll.u32 %v3597, 16
    %v3602 = vshrl.u32 %v3597, 16
    %vm3603 = vc.u32 %v3595, %v3599
    %v3604 = vsel %vm3603, 1, 0
    %v3605 = vadd.s32 %v3595, %v3599
    %v3606 = vadd.s32 %v3598, %v3604
    %vm3607 = vc.u32 %v3605, %v3601
    %v3608 = vsel %vm3607, 1, 0
    %v3609 = vadd.s32 %v3605, %v3601
    %v3610 = vadd.s32 %v3606, %v3608
    %v3611 = vadd.s32 %v3610, %v3600
    %v3612 = vadd.s32 %v3611, %v3602
    %v3613 = vand.u32 %v3590, 65535
    %v3614 = vshrl.u32 %v3590, 16
    %v3615 = vand.u32 %v3585, 65535
    %v3616 = vshrl.u32 %v3585, 16
    %v3617 = vmul.u32 %v3613, %v3615
    %v3618 = vmul.u32 %v3613, %v3616
    %v3619 = vmul.u32 %v3614, %v3615
    %v3620 = vmul.u32 %v3614, %v3616
    %v3621 = vshll.u32 %v3618, 16
    %v3622 = vshrl.u32 %v3618, 16
    %v3623 = vshll.u32 %v3619, 16
    %v3624 = vshrl.u32 %v3619, 16
    %vm3625 = vc.u32 %v3617, %v3621
    %v3626 = vsel %vm3625, 1, 0
    %v3627 = vadd.s32 %v3617, %v3621
    %v3628 = vadd.s32 %v3620, %v3626
    %vm3629 = vc.u32 %v3627, %v3623
    %v3630 = vsel %vm3629, 1, 0
    %v3631 = vadd.s32 %v3627, %v3623
    %v3632 = vadd.s32 %v3628, %v3630
    %v3633 = vadd.s32 %v3632, %v3622
    %v3634 = vadd.s32 %v3633, %v3624
    %v3635 = vmul.u32 %v3590, %v3581
    %v3636 = vadd.s32 %v3612, %v3631
    %vm3637 = vc.u32 %v3612, %v3631
    %v3638 = vadd.s32 %v3634, 1
    %v3639 = vsel %vm3637, %v3638, %v3634
    %v3640 = vadd.s32 %v3635, %v3639
    %v3641 = vadd.s32 %v3640, 536870912
    %v3642 = vshrl.u32 %v3641, 30
    %v3643 = vshll.u32 %v3642, 30
    %v3644 = vsub.s32 %v3640, %v3643
    %vm3645 = vcmp.lt.s32.totalorder %v3644, 0
    %v3646 = vsub.s32 0, %v3644
    %v3647 = vsel %vm3645, %v3646, %v3644
    %v3648 = vclz %v3647
    %v3649 = vsub.s32 %v3648, 2
    %vm3650 = vcmp.gt.s32.totalorder 0, %v3649
    %v3651 = vsel %vm3650, 0, %v3649
    %v3652 = vsub.s32 32, %v3651
    %v3653 = vshll.u32 %v3644, %v3651
    %v3654 = vshrl.u32 %v3636, %v3652
    %v3655 = vor.u32 %v3653, %v3654
    %v3656 = vsub.s32 4294967266, %v3651
    %v3657 = vadd.s32 %v3656, 127
    %v3658 = vshll.u32 %v3657, 23
    %v3659 = vor.u32 4788187, %v3658
    %v3660 = vand.u32 2147483647, %v3659
    %v3662 = vcvt.s32.f32 %v3655
    %v3663 = vmul.f32 %v3662, %v3660
    %v3664 = vxor.u32 %v3663, 2147483648
    %v3665 = vsel %vm3544, %v3664, %v3663
    %v3666 = vsub.s32 4, %v3642
    %v3667 = vsel %vm3544, %v3666, %v3642
    %v3668 = vsel %vm3543, %v2155, %v3665
    %v3669 = vsel %vm3543, 0, %v3667
    %v3670 = vmul.f32 %v3668, %v3668
    %v3671 = vmul.f32 %v3670, -0.001358992
    %v3672 = vadd.f32 %v3671, 0.041655596
    %v3673 = vmul.f32 %v3670, %v3672
    %v3674 = vadd.f32 %v3673, -0.4999988
    %v3675 = vmul.f32 %v3670, %v3674
    %v3676 = vadd.f32 1.0, %v3675
    %v3677 = vmul.f32 %v3668, %v3668
    %v3678 = vmul.f32 %v3677, -0.00019511016
    %v3679 = vadd.f32 %v3678, 0.008332121
    %v3680 = vmul.f32 %v3677, %v3679
    %v3681 = vadd.f32 %v3680, -0.16666654
    %v3682 = vmul.f32 %v3677, %v3681
    %v3683 = vadd.f32 %v3682, 1.0
    %v3684 = vmul.f32 %v3683, %v3668
    %vm3685 = vweird.f32 %v2155
    %v3686 = vand.u32 %v3669, 3
    %vm3687 = vcmp.lt.s32.totalorder %v3686, 2
    %vm3688 = vcmp.eq.s32.totalorder %v3686, 0
    %v3689 = vxor.u32 %v3684, 2147483648
    %v3690 = vsel %vm3688, %v3676, %v3689
    %vm3691 = vcmp.eq.s32.totalorder %v3686, 2
    %v3692 = vxor.u32 %v3676, 2147483648
    %v3693 = vsel %vm3691, %v3692, %v3684
    %v3694 = vsel %vm3687, %v3690, %v3693
    %v3695 = vsel %vm3685, nan, %v3694
    %v3696 = vmul.f32 %v2118, %v2309
    %v3697 = vmul.f32 %v2119, %v2463
    %v3698 = vmul.f32 %v2120, %v2617
    %v3699 = vmul.f32 %v2121, %v2771
    %v3700 = vmul.f32 %v2122, %v2925
    %v3701 = vmul.f32 %v2123, %v3079
    %v3702 = vmul.f32 %v2124, %v3233
    %v3703 = vmul.f32 %v2125, %v3387
    %v3704 = vmul.f32 %v2126, %v3541
    %v3705 = vmul.f32 %v2127, %v3695
    %v3706 = vand.u32 2147483647, %v2146
    %vm3707 = vcmp.le.f32.partialorder %v3706, 0.7853982
    %vm3708 = vcmp.lt.s32.totalorder %v2146, 0
    %v3709 = vand.u32 %v2146, 2139095040
    %v3710 = vshrl.u32 %v3709, 23
    %v3711 = vsub.s32 %v3710, 127
    %v3712 = vand.u32 2147483647, %v2146
    %v3713 = vand.u32 %v3712, 8388607
    %v3714 = vor.u32 %v3713, 8388608
    %v3715 = vsub.s32 0, %v3714
    %v3716 = vadd.s32 %v3711, 1
    %vm3717 = vcmp.gt.s32.totalorder %v3716, 0
    %v3718 = vsel %vm3717, %v3716, 0
    %v3719 = vshrl.u32 %v3718, 5
    %v3720 = vand.u32 %v3718, 31
    %v3721 = vsub.s32 32, %v3720
    %v3722 = vshrl.u32 683565275, %v3721
    %v3723 = vshll.u32 683565275, %v3720
    %v3724 = vshrl.u32 2475754826, %v3721
    %v3725 = vor.u32 %v3723, %v3724
    %v3726 = vshll.u32 2475754826, %v3720
    %v3727 = vshrl.u32 2131351028, %v3721
    %v3728 = vor.u32 %v3726, %v3727
    %v3729 = vshll.u32 2131351028, %v3720
    %v3730 = vshrl.u32 2102212464, %v3721
    %v3731 = vor.u32 %v3729, %v3730
    %v3732 = vshll.u32 2102212464, %v3720
    %v3733 = vshrl.u32 920167782, %v3721
    %v3734 = vor.u32 %v3732, %v3733
    %v3735 = vshll.u32 920167782, %v3720
    %v3736 = vshrl.u32 1326507024, %v3721
    %v3737 = vor.u32 %v3735, %v3736
    %vm3738 = vcmp.lt.s32.totalorder %v3719, 1
    %vm3739 = vcmp.lt.s32.totalorder %v3719, 2
    %vm3740 = vcmp.lt.s32.totalorder %v3719, 3
    %vm3741 = vcmp.lt.s32.totalorder %v3719, 4
    %v3742 = vsel %vm3738, %v3722, %v3725
    %v3743 = vsel %vm3741, %v3731, 2102212464
    %v3744 = vsel %vm3740, %v3728, %v3743
    %v3745 = vsel %vm3739, %v3742, %v3744
    %v3746 = vsel %vm3738, %v3725, %v3728
    %v3747 = vsel %vm3741, %v3734, 920167782
    %v3748 = vsel %vm3740, %v3731, %v3747
    %v3749 = vsel %vm3739, %v3746, %v3748
    %v3750 = vsel %vm3738, %v3728, %v3731
    %v3751 = vsel %vm3741, %v3737, 1326507024
    %v3752 = vsel %vm3740, %v3734, %v3751
    %v3753 = vsel %vm3739, %v3750, %v3752
    %v3754 = vshll.u32 %v3714, 8
    %v3755 = vand.u32 %v3754, 65535
    %v3756 = vshrl.u32 %v3754, 16
    %v3757 = vand.u32 %v3753, 65535
    %v3758 = vshrl.u32 %v3753, 16
    %v3759 = vmul.u32 %v3755, %v3757
    %v3760 = vmul.u32 %v3755, %v3758
    %v3761 = vmul.u32 %v3756, %v3757
    %v3762 = vmul.u32 %v3756, %v3758
    %v3763 = vshll.u32 %v3760, 16
    %v3764 = vshrl.u32 %v3760, 16
    %v3765 = vshll.u32 %v3761, 16
    %v3766 = vshrl.u32 %v3761, 16
    %vm3767 = vc.u32 %v3759, %v3763
    %v3768 = vsel %vm3767, 1, 0
    %v3769 = vadd.s32 %v3759, %v3763
    %v3770 = vadd.s32 %v3762, %v3768
    %vm3771 = vc.u32 %v3769, %v3765
    %v3772 = vsel %vm3771, 1, 0
    %v3773 = vadd.s32 %v3769, %v3765
    %v3774 = vadd.s32 %v3770, %v3772
    %v3775 = vadd.s32 %v3774, %v3764
    %v3776 = vadd.s32 %v3775, %v3766
    %v3777 = vand.u32 %v3754, 65535
    %v3778 = vshrl.u32 %v3754, 16
    %v3779 = vand.u32 %v3749, 65535
    %v3780 = vshrl.u32 %v3749, 16
    %v3781 = vmul.u32 %v3777, %v3779
    %v3782 = vmul.u32 %v3777, %v3780
    %v3783 = vmul.u32 %v3778, %v3779
    %v3784 = vmul.u32 %v3778, %v3780
    %v3785 = vshll.u32 %v3782, 16
    %v3786 = vshrl.u32 %v3782, 16
    %v3787 = vshll.u32 %v3783, 16
    %v3788 = vshrl.u32 %v3783, 16
    %vm3789 = vc.u32 %v3781, %v3785
    %v3790 = vsel %vm3789, 1, 0
    %v3791 = vadd.s32 %v3781, %v3785
    %v3792 = vadd.s32 %v3784, %v3790
    %vm3793 = vc.u32 %v3791, %v3787
    %v3794 = vsel %vm3793, 1, 0
    %v3795 = vadd.s32 %v3791, %v3787
    %v3796 = vadd.s32 %v3792, %v3794
    %v3797 = vadd.s32 %v3796, %v3786
    %v3798 = vadd.s32 %v3797, %v3788
    %v3799 = vmul.u32 %v3754, %v3745
    %v3800 = vadd.s32 %v3776, %v3795
    %vm3801 = vc.u32 %v3776, %v3795
    %v3802 = vadd.s32 %v3798, 1
    %v3803 = vsel %vm3801, %v3802, %v3798
    %v3804 = vadd.s32 %v3799, %v3803
    %v3805 = vadd.s32 %v3804, 536870912
    %v3806 = vshrl.u32 %v3805, 30
    %v3807 = vshll.u32 %v3806, 30
    %v3808 = vsub.s32 %v3804, %v3807
    %vm3809 = vcmp.lt.s32.totalorder %v3808, 0
    %v3810 = vsub.s32 0, %v3808
    %v3811 = vsel %vm3809, %v3810, %v3808
    %v3812 = vclz %v3811
    %v3813 = vsub.s32 %v3812, 2
    %vm3814 = vcmp.gt.s32.totalorder 0, %v3813
    %v3815 = vsel %vm3814, 0, %v3813
    %v3816 = vsub.s32 32, %v3815
    %v3817 = vshll.u32 %v3808, %v3815
    %v3818 = vshrl.u32 %v3800, %v3816
    %v3819 = vor.u32 %v3817, %v3818
    %v3820 = vsub.s32 4294967266, %v3815
    %v3821 = vadd.s32 %v3820, 127
    %v3822 = vshll.u32 %v3821, 23
    %v3823 = vor.u32 4788187, %v3822
    %v3824 = vand.u32 2147483647, %v3823
    %v3826 = vcvt.s32.f32 %v3819
    %v3827 = vmul.f32 %v3826, %v3824
    %v3828 = vxor.u32 %v3827, 2147483648
    %v3829 = vsel %vm3708, %v3828, %v3827
    %v3830 = vsub.s32 4, %v3806
    %v3831 = vsel %vm3708, %v3830, %v3806
    %v3832 = vsel %vm3707, %v2146, %v3829
    %v3833 = vsel %vm3707, 0, %v3831
    %v3834 = vmul.f32 %v3832, %v3832
    %v3835 = vmul.f32 %v3834, -0.001358992
    %v3836 = vadd.f32 %v3835, 0.041655596
    %v3837 = vmul.f32 %v3834, %v3836
    %v3838 = vadd.f32 %v3837, -0.4999988
    %v3839 = vmul.f32 %v3834, %v3838
    %v3840 = vadd.f32 1.0, %v3839
    %v3841 = vmul.f32 %v3832, %v3832
    %v3842 = vmul.f32 %v3841, -0.00019511016
    %v3843 = vadd.f32 %v3842, 0.008332121
    %v3844 = vmul.f32 %v3841, %v3843
    %v3845 = vadd.f32 %v3844, -0.16666654
    %v3846 = vmul.f32 %v3841, %v3845
    %v3847 = vadd.f32 %v3846, 1.0
    %v3848 = vmul.f32 %v3847, %v3832
    %vm3849 = vweird.f32 %v2146
    %v3850 = vadd.s32 %v3833, 3
    %v3851 = vand.u32 %v3850, 3
    %vm3852 = vcmp.lt.s32.totalorder %v3851, 2
    %vm3853 = vcmp.eq.s32.totalorder %v3851, 0
    %v3854 = vxor.u32 %v3848, 2147483648
    %v3855 = vsel %vm3853, %v3840, %v3854
    %vm3856 = vcmp.eq.s32.totalorder %v3851, 2
    %v3857 = vxor.u32 %v3840, 2147483648
    %v3858 = vsel %vm3856, %v3857, %v3848
    %v3859 = vsel %vm3852, %v3855, %v3858
    %v3860 = vsel %vm3849, nan, %v3859
    %v3861 = vand.u32 2147483647, %v2147
    %vm3862 = vcmp.le.f32.partialorder %v3861, 0.7853982
    %vm3863 = vcmp.lt.s32.totalorder %v2147, 0
    %v3864 = vand.u32 %v2147, 2139095040
    %v3865 = vshrl.u32 %v3864, 23
    %v3866 = vsub.s32 %v3865, 127
    %v3867 = vand.u32 2147483647, %v2147
    %v3868 = vand.u32 %v3867, 8388607
    %v3869 = vor.u32 %v3868, 8388608
    %v3870 = vsub.s32 0, %v3869
    %v3871 = vadd.s32 %v3866, 1
    %vm3872 = vcmp.gt.s32.totalorder %v3871, 0
    %v3873 = vsel %vm3872, %v3871, 0
    %v3874 = vshrl.u32 %v3873, 5
    %v3875 = vand.u32 %v3873, 31
    %v3876 = vsub.s32 32, %v3875
    %v3877 = vshrl.u32 683565275, %v3876
    %v3878 = vshll.u32 683565275, %v3875
    %v3879 = vshrl.u32 2475754826, %v3876
    %v3880 = vor.u32 %v3878, %v3879
    %v3881 = vshll.u32 2475754826, %v3875
    %v3882 = vshrl.u32 2131351028, %v3876
    %v3883 = vor.u32 %v3881, %v3882
    %v3884 = vshll.u32 2131351028, %v3875
    %v3885 = vshrl.u32 2102212464, %v3876
    %v3886 = vor.u32 %v3884, %v3885
    %v3887 = vshll.u32 2102212464, %v3875
    %v3888 = vshrl.u32 920167782, %v3876
    %v3889 = vor.u32 %v3887, %v3888
    %v3890 = vshll.u32 920167782, %v3875
    %v3891 = vshrl.u32 1326507024, %v3876
    %v3892 = vor.u32 %v3890, %v3891
    %vm3893 = vcmp.lt.s32.totalorder %v3874, 1
    %vm3894 = vcmp.lt.s32.totalorder %v3874, 2
    %vm3895 = vcmp.lt.s32.totalorder %v3874, 3
    %vm3896 = vcmp.lt.s32.totalorder %v3874, 4
    %v3897 = vsel %vm3893, %v3877, %v3880
    %v3898 = vsel %vm3896, %v3886, 2102212464
    %v3899 = vsel %vm3895, %v3883, %v3898
    %v3900 = vsel %vm3894, %v3897, %v3899
    %v3901 = vsel %vm3893, %v3880, %v3883
    %v3902 = vsel %vm3896, %v3889, 920167782
    %v3903 = vsel %vm3895, %v3886, %v3902
    %v3904 = vsel %vm3894, %v3901, %v3903
    %v3905 = vsel %vm3893, %v3883, %v3886
    %v3906 = vsel %vm3896, %v3892, 1326507024
    %v3907 = vsel %vm3895, %v3889, %v3906
    %v3908 = vsel %vm3894, %v3905, %v3907
    %v3909 = vshll.u32 %v3869, 8
    %v3910 = vand.u32 %v3909, 65535
    %v3911 = vshrl.u32 %v3909, 16
    %v3912 = vand.u32 %v3908, 65535
    %v3913 = vshrl.u32 %v3908, 16
    %v3914 = vmul.u32 %v3910, %v3912
    %v3915 = vmul.u32 %v3910, %v3913
    %v3916 = vmul.u32 %v3911, %v3912
    %v3917 = vmul.u32 %v3911, %v3913
    %v3918 = vshll.u32 %v3915, 16
    %v3919 = vshrl.u32 %v3915, 16
    %v3920 = vshll.u32 %v3916, 16
    %v3921 = vshrl.u32 %v3916, 16
    %vm3922 = vc.u32 %v3914, %v3918
    %v3923 = vsel %vm3922, 1, 0
    %v3924 = vadd.s32 %v3914, %v3918
    %v3925 = vadd.s32 %v3917, %v3923
    %vm3926 = vc.u32 %v3924, %v3920
    %v3927 = vsel %vm3926, 1, 0
    %v3928 = vadd.s32 %v3924, %v3920
    %v3929 = vadd.s32 %v3925, %v3927
    %v3930 = vadd.s32 %v3929, %v3919
    %v3931 = vadd.s32 %v3930, %v3921
    %v3932 = vand.u32 %v3909, 65535
    %v3933 = vshrl.u32 %v3909, 16
    %v3934 = vand.u32 %v3904, 65535
    %v3935 = vshrl.u32 %v3904, 16
    %v3936 = vmul.u32 %v3932, %v3934
    %v3937 = vmul.u32 %v3932, %v3935
    %v3938 = vmul.u32 %v3933, %v3934
    %v3939 = vmul.u32 %v3933, %v3935
    %v3940 = vshll.u32 %v3937, 16
    %v3941 = vshrl.u32 %v3937, 16
    %v3942 = vshll.u32 %v3938, 16
    %v3943 = vshrl.u32 %v3938, 16
    %vm3944 = vc.u32 %v3936, %v3940
    %v3945 = vsel %vm3944, 1, 0
    %v3946 = vadd.s32 %v3936, %v3940
    %v3947 = vadd.s32 %v3939, %v3945
    %vm3948 = vc.u32 %v3946, %v3942
    %v3949 = vsel %vm3948, 1, 0
    %v3950 = vadd.s32 %v3946, %v3942
    %v3951 = vadd.s32 %v3947, %v3949
    %v3952 = vadd.s32 %v3951, %v3941
    %v3953 = vadd.s32 %v3952, %v3943
    %v3954 = vmul.u32 %v3909, %v3900
    %v3955 = vadd.s32 %v3931, %v3950
    %vm3956 = vc.u32 %v3931, %v3950
    %v3957 = vadd.s32 %v3953, 1
    %v3958 = vsel %vm3956, %v3957, %v3953
    %v3959 = vadd.s32 %v3954, %v3958
    %v3960 = vadd.s32 %v3959, 536870912
    %v3961 = vshrl.u32 %v3960, 30
    %v3962 = vshll.u32 %v3961, 30
    %v3963 = vsub.s32 %v3959, %v3962
    %vm3964 = vcmp.lt.s32.totalorder %v3963, 0
    %v3965 = vsub.s32 0, %v3963
    %v3966 = vsel %vm3964, %v3965, %v3963
    %v3967 = vclz %v3966
    %v3968 = vsub.s32 %v3967, 2
    %vm3969 = vcmp.gt.s32.totalorder 0, %v3968
    %v3970 = vsel %vm3969, 0, %v3968
    %v3971 = vsub.s32 32, %v3970
    %v3972 = vshll.u32 %v3963, %v3970
    %v3973 = vshrl.u32 %v3955, %v3971
    %v3974 = vor.u32 %v3972, %v3973
    %v3975 = vsub.s32 4294967266, %v3970
    %v3976 = vadd.s32 %v3975, 127
    %v3977 = vshll.u32 %v3976, 23
    %v3978 = vor.u32 4788187, %v3977
    %v3979 = vand.u32 2147483647, %v3978
    %v3981 = vcvt.s32.f32 %v3974
    %v3982 = vmul.f32 %v3981, %v3979
    %v3983 = vxor.u32 %v3982, 2147483648
    %v3984 = vsel %vm3863, %v3983, %v3982
    %v3985 = vsub.s32 4, %v3961
    %v3986 = vsel %vm3863, %v3985, %v3961
    %v3987 = vsel %vm3862, %v2147, %v3984
    %v3988 = vsel %vm3862, 0, %v3986
    %v3989 = vmul.f32 %v3987, %v3987
    %v3990 = vmul.f32 %v3989, -0.001358992
    %v3991 = vadd.f32 %v3990, 0.041655596
    %v3992 = vmul.f32 %v3989, %v3991
    %v3993 = vadd.f32 %v3992, -0.4999988
    %v3994 = vmul.f32 %v3989, %v3993
    %v3995 = vadd.f32 1.0, %v3994
    %v3996 = vmul.f32 %v3987, %v3987
    %v3997 = vmul.f32 %v3996, -0.00019511016
    %v3998 = vadd.f32 %v3997, 0.008332121
    %v3999 = vmul.f32 %v3996, %v3998
    %v4000 = vadd.f32 %v3999, -0.16666654
    %v4001 = vmul.f32 %v3996, %v4000
    %v4002 = vadd.f32 %v4001, 1.0
    %v4003 = vmul.f32 %v4002, %v3987
    %vm4004 = vweird.f32 %v2147
    %v4005 = vadd.s32 %v3988, 3
    %v4006 = vand.u32 %v4005, 3
    %vm4007 = vcmp.lt.s32.totalorder %v4006, 2
    %vm4008 = vcmp.eq.s32.totalorder %v4006, 0
    %v4009 = vxor.u32 %v4003, 2147483648
    %v4010 = vsel %vm4008, %v3995, %v4009
    %vm4011 = vcmp.eq.s32.totalorder %v4006, 2
    %v4012 = vxor.u32 %v3995, 2147483648
    %v4013 = vsel %vm4011, %v4012, %v4003
    %v4014 = vsel %vm4007, %v4010, %v4013
    %v4015 = vsel %vm4004, nan, %v4014
    %v4016 = vand.u32 2147483647, %v2148
    %vm4017 = vcmp.le.f32.partialorder %v4016, 0.7853982
    %vm4018 = vcmp.lt.s32.totalorder %v2148, 0
    %v4019 = vand.u32 %v2148, 2139095040
    %v4020 = vshrl.u32 %v4019, 23
    %v4021 = vsub.s32 %v4020, 127
    %v4022 = vand.u32 2147483647, %v2148
    %v4023 = vand.u32 %v4022, 8388607
    %v4024 = vor.u32 %v4023, 8388608
    %v4025 = vsub.s32 0, %v4024
    %v4026 = vadd.s32 %v4021, 1
    %vm4027 = vcmp.gt.s32.totalorder %v4026, 0
    %v4028 = vsel %vm4027, %v4026, 0
    %v4029 = vshrl.u32 %v4028, 5
    %v4030 = vand.u32 %v4028, 31
    %v4031 = vsub.s32 32, %v4030
    %v4032 = vshrl.u32 683565275, %v4031
    %v4033 = vshll.u32 683565275, %v4030
    %v4034 = vshrl.u32 2475754826, %v4031
    %v4035 = vor.u32 %v4033, %v4034
    %v4036 = vshll.u32 2475754826, %v4030
    %v4037 = vshrl.u32 2131351028, %v4031
    %v4038 = vor.u32 %v4036, %v4037
    %v4039 = vshll.u32 2131351028, %v4030
    %v4040 = vshrl.u32 2102212464, %v4031
    %v4041 = vor.u32 %v4039, %v4040
    %v4042 = vshll.u32 2102212464, %v4030
    %v4043 = vshrl.u32 920167782, %v4031
    %v4044 = vor.u32 %v4042, %v4043
    %v4045 = vshll.u32 920167782, %v4030
    %v4046 = vshrl.u32 1326507024, %v4031
    %v4047 = vor.u32 %v4045, %v4046
    %vm4048 = vcmp.lt.s32.totalorder %v4029, 1
    %vm4049 = vcmp.lt.s32.totalorder %v4029, 2
    %vm4050 = vcmp.lt.s32.totalorder %v4029, 3
    %vm4051 = vcmp.lt.s32.totalorder %v4029, 4
    %v4052 = vsel %vm4048, %v4032, %v4035
    %v4053 = vsel %vm4051, %v4041, 2102212464
    %v4054 = vsel %vm4050, %v4038, %v4053
    %v4055 = vsel %vm4049, %v4052, %v4054
    %v4056 = vsel %vm4048, %v4035, %v4038
    %v4057 = vsel %vm4051, %v4044, 920167782
    %v4058 = vsel %vm4050, %v4041, %v4057
    %v4059 = vsel %vm4049, %v4056, %v4058
    %v4060 = vsel %vm4048, %v4038, %v4041
    %v4061 = vsel %vm4051, %v4047, 1326507024
    %v4062 = vsel %vm4050, %v4044, %v4061
    %v4063 = vsel %vm4049, %v4060, %v4062
    %v4064 = vshll.u32 %v4024, 8
    %v4065 = vand.u32 %v4064, 65535
    %v4066 = vshrl.u32 %v4064, 16
    %v4067 = vand.u32 %v4063, 65535
    %v4068 = vshrl.u32 %v4063, 16
    %v4069 = vmul.u32 %v4065, %v4067
    %v4070 = vmul.u32 %v4065, %v4068
    %v4071 = vmul.u32 %v4066, %v4067
    %v4072 = vmul.u32 %v4066, %v4068
    %v4073 = vshll.u32 %v4070, 16
    %v4074 = vshrl.u32 %v4070, 16
    %v4075 = vshll.u32 %v4071, 16
    %v4076 = vshrl.u32 %v4071, 16
    %vm4077 = vc.u32 %v4069, %v4073
    %v4078 = vsel %vm4077, 1, 0
    %v4079 = vadd.s32 %v4069, %v4073
    %v4080 = vadd.s32 %v4072, %v4078
    %vm4081 = vc.u32 %v4079, %v4075
    %v4082 = vsel %vm4081, 1, 0
    %v4083 = vadd.s32 %v4079, %v4075
    %v4084 = vadd.s32 %v4080, %v4082
    %v4085 = vadd.s32 %v4084, %v4074
    %v4086 = vadd.s32 %v4085, %v4076
    %v4087 = vand.u32 %v4064, 65535
    %v4088 = vshrl.u32 %v4064, 16
    %v4089 = vand.u32 %v4059, 65535
    %v4090 = vshrl.u32 %v4059, 16
    %v4091 = vmul.u32 %v4087, %v4089
    %v4092 = vmul.u32 %v4087, %v4090
    %v4093 = vmul.u32 %v4088, %v4089
    %v4094 = vmul.u32 %v4088, %v4090
    %v4095 = vshll.u32 %v4092, 16
    %v4096 = vshrl.u32 %v4092, 16
    %v4097 = vshll.u32 %v4093, 16
    %v4098 = vshrl.u32 %v4093, 16
    %vm4099 = vc.u32 %v4091, %v4095
    %v4100 = vsel %vm4099, 1, 0
    %v4101 = vadd.s32 %v4091, %v4095
    %v4102 = vadd.s32 %v4094, %v4100
    %vm4103 = vc.u32 %v4101, %v4097
    %v4104 = vsel %vm4103, 1, 0
    %v4105 = vadd.s32 %v4101, %v4097
    %v4106 = vadd.s32 %v4102, %v4104
    %v4107 = vadd.s32 %v4106, %v4096
    %v4108 = vadd.s32 %v4107, %v4098
    %v4109 = vmul.u32 %v4064, %v4055
    %v4110 = vadd.s32 %v4086, %v4105
    %vm4111 = vc.u32 %v4086, %v4105
    %v4112 = vadd.s32 %v4108, 1
    %v4113 = vsel %vm4111, %v4112, %v4108
    %v4114 = vadd.s32 %v4109, %v4113
    %v4115 = vadd.s32 %v4114, 536870912
    %v4116 = vshrl.u32 %v4115, 30
    %v4117 = vshll.u32 %v4116, 30
    %v4118 = vsub.s32 %v4114, %v4117
    %vm4119 = vcmp.lt.s32.totalorder %v4118, 0
    %v4120 = vsub.s32 0, %v4118
    %v4121 = vsel %vm4119, %v4120, %v4118
    %v4122 = vclz %v4121
    %v4123 = vsub.s32 %v4122, 2
    %vm4124 = vcmp.gt.s32.totalorder 0, %v4123
    %v4125 = vsel %vm4124, 0, %v4123
    %v4126 = vsub.s32 32, %v4125
    %v4127 = vshll.u32 %v4118, %v4125
    %v4128 = vshrl.u32 %v4110, %v4126
    %v4129 = vor.u32 %v4127, %v4128
    %v4130 = vsub.s32 4294967266, %v4125
    %v4131 = vadd.s32 %v4130, 127
    %v4132 = vshll.u32 %v4131, 23
    %v4133 = vor.u32 4788187, %v4132
    %v4134 = vand.u32 2147483647, %v4133
    %v4136 = vcvt.s32.f32 %v4129
    %v4137 = vmul.f32 %v4136, %v4134
    %v4138 = vxor.u32 %v4137, 2147483648
    %v4139 = vsel %vm4018, %v4138, %v4137
    %v4140 = vsub.s32 4, %v4116
    %v4141 = vsel %vm4018, %v4140, %v4116
    %v4142 = vsel %vm4017, %v2148, %v4139
    %v4143 = vsel %vm4017, 0, %v4141
    %v4144 = vmul.f32 %v4142, %v4142
    %v4145 = vmul.f32 %v4144, -0.001358992
    %v4146 = vadd.f32 %v4145, 0.041655596
    %v4147 = vmul.f32 %v4144, %v4146
    %v4148 = vadd.f32 %v4147, -0.4999988
    %v4149 = vmul.f32 %v4144, %v4148
    %v4150 = vadd.f32 1.0, %v4149
    %v4151 = vmul.f32 %v4142, %v4142
    %v4152 = vmul.f32 %v4151, -0.00019511016
    %v4153 = vadd.f32 %v4152, 0.008332121
    %v4154 = vmul.f32 %v4151, %v4153
    %v4155 = vadd.f32 %v4154, -0.16666654
    %v4156 = vmul.f32 %v4151, %v4155
    %v4157 = vadd.f32 %v4156, 1.0
    %v4158 = vmul.f32 %v4157, %v4142
    %vm4159 = vweird.f32 %v2148
    %v4160 = vadd.s32 %v4143, 3
    %v4161 = vand.u32 %v4160, 3
    %vm4162 = vcmp.lt.s32.totalorder %v4161, 2
    %vm4163 = vcmp.eq.s32.totalorder %v4161, 0
    %v4164 = vxor.u32 %v4158, 2147483648
    %v4165 = vsel %vm4163, %v4150, %v4164
    %vm4166 = vcmp.eq.s32.totalorder %v4161, 2
    %v4167 = vxor.u32 %v4150, 2147483648
    %v4168 = vsel %vm4166, %v4167, %v4158
    %v4169 = vsel %vm4162, %v4165, %v4168
    %v4170 = vsel %vm4159, nan, %v4169
    %v4171 = vand.u32 2147483647, %v2149
    %vm4172 = vcmp.le.f32.partialorder %v4171, 0.7853982
    %vm4173 = vcmp.lt.s32.totalorder %v2149, 0
    %v4174 = vand.u32 %v2149, 2139095040
    %v4175 = vshrl.u32 %v4174, 23
    %v4176 = vsub.s32 %v4175, 127
    %v4177 = vand.u32 2147483647, %v2149
    %v4178 = vand.u32 %v4177, 8388607
    %v4179 = vor.u32 %v4178, 8388608
    %v4180 = vsub.s32 0, %v4179
    %v4181 = vadd.s32 %v4176, 1
    %vm4182 = vcmp.gt.s32.totalorder %v4181, 0
    %v4183 = vsel %vm4182, %v4181, 0
    %v4184 = vshrl.u32 %v4183, 5
    %v4185 = vand.u32 %v4183, 31
    %v4186 = vsub.s32 32, %v4185
    %v4187 = vshrl.u32 683565275, %v4186
    %v4188 = vshll.u32 683565275, %v4185
    %v4189 = vshrl.u32 2475754826, %v4186
    %v4190 = vor.u32 %v4188, %v4189
    %v4191 = vshll.u32 2475754826, %v4185
    %v4192 = vshrl.u32 2131351028, %v4186
    %v4193 = vor.u32 %v4191, %v4192
    %v4194 = vshll.u32 2131351028, %v4185
    %v4195 = vshrl.u32 2102212464, %v4186
    %v4196 = vor.u32 %v4194, %v4195
    %v4197 = vshll.u32 2102212464, %v4185
    %v4198 = vshrl.u32 920167782, %v4186
    %v4199 = vor.u32 %v4197, %v4198
    %v4200 = vshll.u32 920167782, %v4185
    %v4201 = vshrl.u32 1326507024, %v4186
    %v4202 = vor.u32 %v4200, %v4201
    %vm4203 = vcmp.lt.s32.totalorder %v4184, 1
    %vm4204 = vcmp.lt.s32.totalorder %v4184, 2
    %vm4205 = vcmp.lt.s32.totalorder %v4184, 3
    %vm4206 = vcmp.lt.s32.totalorder %v4184, 4
    %v4207 = vsel %vm4203, %v4187, %v4190
    %v4208 = vsel %vm4206, %v4196, 2102212464
    %v4209 = vsel %vm4205, %v4193, %v4208
    %v4210 = vsel %vm4204, %v4207, %v4209
    %v4211 = vsel %vm4203, %v4190, %v4193
    %v4212 = vsel %vm4206, %v4199, 920167782
    %v4213 = vsel %vm4205, %v4196, %v4212
    %v4214 = vsel %vm4204, %v4211, %v4213
    %v4215 = vsel %vm4203, %v4193, %v4196
    %v4216 = vsel %vm4206, %v4202, 1326507024
    %v4217 = vsel %vm4205, %v4199, %v4216
    %v4218 = vsel %vm4204, %v4215, %v4217
    %v4219 = vshll.u32 %v4179, 8
    %v4220 = vand.u32 %v4219, 65535
    %v4221 = vshrl.u32 %v4219, 16
    %v4222 = vand.u32 %v4218, 65535
    %v4223 = vshrl.u32 %v4218, 16
    %v4224 = vmul.u32 %v4220, %v4222
    %v4225 = vmul.u32 %v4220, %v4223
    %v4226 = vmul.u32 %v4221, %v4222
    %v4227 = vmul.u32 %v4221, %v4223
    %v4228 = vshll.u32 %v4225, 16
    %v4229 = vshrl.u32 %v4225, 16
    %v4230 = vshll.u32 %v4226, 16
    %v4231 = vshrl.u32 %v4226, 16
    %vm4232 = vc.u32 %v4224, %v4228
    %v4233 = vsel %vm4232, 1, 0
    %v4234 = vadd.s32 %v4224, %v4228
    %v4235 = vadd.s32 %v4227, %v4233
    %vm4236 = vc.u32 %v4234, %v4230
    %v4237 = vsel %vm4236, 1, 0
    %v4238 = vadd.s32 %v4234, %v4230
    %v4239 = vadd.s32 %v4235, %v4237
    %v4240 = vadd.s32 %v4239, %v4229
    %v4241 = vadd.s32 %v4240, %v4231
    %v4242 = vand.u32 %v4219, 65535
    %v4243 = vshrl.u32 %v4219, 16
    %v4244 = vand.u32 %v4214, 65535
    %v4245 = vshrl.u32 %v4214, 16
    %v4246 = vmul.u32 %v4242, %v4244
    %v4247 = vmul.u32 %v4242, %v4245
    %v4248 = vmul.u32 %v4243, %v4244
    %v4249 = vmul.u32 %v4243, %v4245
    %v4250 = vshll.u32 %v4247, 16
    %v4251 = vshrl.u32 %v4247, 16
    %v4252 = vshll.u32 %v4248, 16
    %v4253 = vshrl.u32 %v4248, 16
    %vm4254 = vc.u32 %v4246, %v4250
    %v4255 = vsel %vm4254, 1, 0
    %v4256 = vadd.s32 %v4246, %v4250
    %v4257 = vadd.s32 %v4249, %v4255
    %vm4258 = vc.u32 %v4256, %v4252
    %v4259 = vsel %vm4258, 1, 0
    %v4260 = vadd.s32 %v4256, %v4252
    %v4261 = vadd.s32 %v4257, %v4259
    %v4262 = vadd.s32 %v4261, %v4251
    %v4263 = vadd.s32 %v4262, %v4253
    %v4264 = vmul.u32 %v4219, %v4210
    %v4265 = vadd.s32 %v4241, %v4260
    %vm4266 = vc.u32 %v4241, %v4260
    %v4267 = vadd.s32 %v4263, 1
    %v4268 = vsel %vm4266, %v4267, %v4263
    %v4269 = vadd.s32 %v4264, %v4268
    %v4270 = vadd.s32 %v4269, 536870912
    %v4271 = vshrl.u32 %v4270, 30
    %v4272 = vshll.u32 %v4271, 30
    %v4273 = vsub.s32 %v4269, %v4272
    %vm4274 = vcmp.lt.s32.totalorder %v4273, 0
    %v4275 = vsub.s32 0, %v4273
    %v4276 = vsel %vm4274, %v4275, %v4273
    %v4277 = vclz %v4276
    %v4278 = vsub.s32 %v4277, 2
    %vm4279 = vcmp.gt.s32.totalorder 0, %v4278
    %v4280 = vsel %vm4279, 0, %v4278
    %v4281 = vsub.s32 32, %v4280
    %v4282 = vshll.u32 %v4273, %v4280
    %v4283 = vshrl.u32 %v4265, %v4281
    %v4284 = vor.u32 %v4282, %v4283
    %v4285 = vsub.s32 4294967266, %v4280
    %v4286 = vadd.s32 %v4285, 127
    %v4287 = vshll.u32 %v4286, 23
    %v4288 = vor.u32 4788187, %v4287
    %v4289 = vand.u32 2147483647, %v4288
    %v4291 = vcvt.s32.f32 %v4284
    %v4292 = vmul.f32 %v4291, %v4289
    %v4293 = vxor.u32 %v4292, 2147483648
    %v4294 = vsel %vm4173, %v4293, %v4292
    %v4295 = vsub.s32 4, %v4271
    %v4296 = vsel %vm4173, %v4295, %v4271
    %v4297 = vsel %vm4172, %v2149, %v4294
    %v4298 = vsel %vm4172, 0, %v4296
    %v4299 = vmul.f32 %v4297, %v4297
    %v4300 = vmul.f32 %v4299, -0.001358992
    %v4301 = vadd.f32 %v4300, 0.041655596
    %v4302 = vmul.f32 %v4299, %v4301
    %v4303 = vadd.f32 %v4302, -0.4999988
    %v4304 = vmul.f32 %v4299, %v4303
    %v4305 = vadd.f32 1.0, %v4304
    %v4306 = vmul.f32 %v4297, %v4297
    %v4307 = vmul.f32 %v4306, -0.00019511016
    %v4308 = vadd.f32 %v4307, 0.008332121
    %v4309 = vmul.f32 %v4306, %v4308
    %v4310 = vadd.f32 %v4309, -0.16666654
    %v4311 = vmul.f32 %v4306, %v4310
    %v4312 = vadd.f32 %v4311, 1.0
    %v4313 = vmul.f32 %v4312, %v4297
    %vm4314 = vweird.f32 %v2149
    %v4315 = vadd.s32 %v4298, 3
    %v4316 = vand.u32 %v4315, 3
    %vm4317 = vcmp.lt.s32.totalorder %v4316, 2
    %vm4318 = vcmp.eq.s32.totalorder %v4316, 0
    %v4319 = vxor.u32 %v4313, 2147483648
    %v4320 = vsel %vm4318, %v4305, %v4319
    %vm4321 = vcmp.eq.s32.totalorder %v4316, 2
    %v4322 = vxor.u32 %v4305, 2147483648
    %v4323 = vsel %vm4321, %v4322, %v4313
    %v4324 = vsel %vm4317, %v4320, %v4323
    %v4325 = vsel %vm4314, nan, %v4324
    %v4326 = vand.u32 2147483647, %v2150
    %vm4327 = vcmp.le.f32.partialorder %v4326, 0.7853982
    %vm4328 = vcmp.lt.s32.totalorder %v2150, 0
    %v4329 = vand.u32 %v2150, 2139095040
    %v4330 = vshrl.u32 %v4329, 23
    %v4331 = vsub.s32 %v4330, 127
    %v4332 = vand.u32 2147483647, %v2150
    %v4333 = vand.u32 %v4332, 8388607
    %v4334 = vor.u32 %v4333, 8388608
    %v4335 = vsub.s32 0, %v4334
    %v4336 = vadd.s32 %v4331, 1
    %vm4337 = vcmp.gt.s32.totalorder %v4336, 0
    %v4338 = vsel %vm4337, %v4336, 0
    %v4339 = vshrl.u32 %v4338, 5
    %v4340 = vand.u32 %v4338, 31
    %v4341 = vsub.s32 32, %v4340
    %v4342 = vshrl.u32 683565275, %v4341
    %v4343 = vshll.u32 683565275, %v4340
    %v4344 = vshrl.u32 2475754826, %v4341
    %v4345 = vor.u32 %v4343, %v4344
    %v4346 = vshll.u32 2475754826, %v4340
    %v4347 = vshrl.u32 2131351028, %v4341
    %v4348 = vor.u32 %v4346, %v4347
    %v4349 = vshll.u32 2131351028, %v4340
    %v4350 = vshrl.u32 2102212464, %v4341
    %v4351 = vor.u32 %v4349, %v4350
    %v4352 = vshll.u32 2102212464, %v4340
    %v4353 = vshrl.u32 920167782, %v4341
    %v4354 = vor.u32 %v4352, %v4353
    %v4355 = vshll.u32 920167782, %v4340
    %v4356 = vshrl.u32 1326507024, %v4341
    %v4357 = vor.u32 %v4355, %v4356
    %vm4358 = vcmp.lt.s32.totalorder %v4339, 1
    %vm4359 = vcmp.lt.s32.totalorder %v4339, 2
    %vm4360 = vcmp.lt.s32.totalorder %v4339, 3
    %vm4361 = vcmp.lt.s32.totalorder %v4339, 4
    %v4362 = vsel %vm4358, %v4342, %v4345
    %v4363 = vsel %vm4361, %v4351, 2102212464
    %v4364 = vsel %vm4360, %v4348, %v4363
    %v4365 = vsel %vm4359, %v4362, %v4364
    %v4366 = vsel %vm4358, %v4345, %v4348
    %v4367 = vsel %vm4361, %v4354, 920167782
    %v4368 = vsel %vm4360, %v4351, %v4367
    %v4369 = vsel %vm4359, %v4366, %v4368
    %v4370 = vsel %vm4358, %v4348, %v4351
    %v4371 = vsel %vm4361, %v4357, 1326507024
    %v4372 = vsel %vm4360, %v4354, %v4371
    %v4373 = vsel %vm4359, %v4370, %v4372
    %v4374 = vshll.u32 %v4334, 8
    %v4375 = vand.u32 %v4374, 65535
    %v4376 = vshrl.u32 %v4374, 16
    %v4377 = vand.u32 %v4373, 65535
    %v4378 = vshrl.u32 %v4373, 16
    %v4379 = vmul.u32 %v4375, %v4377
    %v4380 = vmul.u32 %v4375, %v4378
    %v4381 = vmul.u32 %v4376, %v4377
    %v4382 = vmul.u32 %v4376, %v4378
    %v4383 = vshll.u32 %v4380, 16
    %v4384 = vshrl.u32 %v4380, 16
    %v4385 = vshll.u32 %v4381, 16
    %v4386 = vshrl.u32 %v4381, 16
    %vm4387 = vc.u32 %v4379, %v4383
    %v4388 = vsel %vm4387, 1, 0
    %v4389 = vadd.s32 %v4379, %v4383
    %v4390 = vadd.s32 %v4382, %v4388
    %vm4391 = vc.u32 %v4389, %v4385
    %v4392 = vsel %vm4391, 1, 0
    %v4393 = vadd.s32 %v4389, %v4385
    %v4394 = vadd.s32 %v4390, %v4392
    %v4395 = vadd.s32 %v4394, %v4384
    %v4396 = vadd.s32 %v4395, %v4386
    %v4397 = vand.u32 %v4374, 65535
    %v4398 = vshrl.u32 %v4374, 16
    %v4399 = vand.u32 %v4369, 65535
    %v4400 = vshrl.u32 %v4369, 16
    %v4401 = vmul.u32 %v4397, %v4399
    %v4402 = vmul.u32 %v4397, %v4400
    %v4403 = vmul.u32 %v4398, %v4399
    %v4404 = vmul.u32 %v4398, %v4400
    %v4405 = vshll.u32 %v4402, 16
    %v4406 = vshrl.u32 %v4402, 16
    %v4407 = vshll.u32 %v4403, 16
    %v4408 = vshrl.u32 %v4403, 16
    %vm4409 = vc.u32 %v4401, %v4405
    %v4410 = vsel %vm4409, 1, 0
    %v4411 = vadd.s32 %v4401, %v4405
    %v4412 = vadd.s32 %v4404, %v4410
    %vm4413 = vc.u32 %v4411, %v4407
    %v4414 = vsel %vm4413, 1, 0
    %v4415 = vadd.s32 %v4411, %v4407
    %v4416 = vadd.s32 %v4412, %v4414
    %v4417 = vadd.s32 %v4416, %v4406
    %v4418 = vadd.s32 %v4417, %v4408
    %v4419 = vmul.u32 %v4374, %v4365
    %v4420 = vadd.s32 %v4396, %v4415
    %vm4421 = vc.u32 %v4396, %v4415
    %v4422 = vadd.s32 %v4418, 1
    %v4423 = vsel %vm4421, %v4422, %v4418
    %v4424 = vadd.s32 %v4419, %v4423
    %v4425 = vadd.s32 %v4424, 536870912
    %v4426 = vshrl.u32 %v4425, 30
    %v4427 = vshll.u32 %v4426, 30
    %v4428 = vsub.s32 %v4424, %v4427
    %vm4429 = vcmp.lt.s32.totalorder %v4428, 0
    %v4430 = vsub.s32 0, %v4428
    %v4431 = vsel %vm4429, %v4430, %v4428
    %v4432 = vclz %v4431
    %v4433 = vsub.s32 %v4432, 2
    %vm4434 = vcmp.gt.s32.totalorder 0, %v4433
    %v4435 = vsel %vm4434, 0, %v4433
    %v4436 = vsub.s32 32, %v4435
    %v4437 = vshll.u32 %v4428, %v4435
    %v4438 = vshrl.u32 %v4420, %v4436
    %v4439 = vor.u32 %v4437, %v4438
    %v4440 = vsub.s32 4294967266, %v4435
    %v4441 = vadd.s32 %v4440, 127
    %v4442 = vshll.u32 %v4441, 23
    %v4443 = vor.u32 4788187, %v4442
    %v4444 = vand.u32 2147483647, %v4443
    %v4446 = vcvt.s32.f32 %v4439
    %v4447 = vmul.f32 %v4446, %v4444
    %v4448 = vxor.u32 %v4447, 2147483648
    %v4449 = vsel %vm4328, %v4448, %v4447
    %v4450 = vsub.s32 4, %v4426
    %v4451 = vsel %vm4328, %v4450, %v4426
    %v4452 = vsel %vm4327, %v2150, %v4449
    %v4453 = vsel %vm4327, 0, %v4451
    %v4454 = vmul.f32 %v4452, %v4452
    %v4455 = vmul.f32 %v4454, -0.001358992
    %v4456 = vadd.f32 %v4455, 0.041655596
    %v4457 = vmul.f32 %v4454, %v4456
    %v4458 = vadd.f32 %v4457, -0.4999988
    %v4459 = vmul.f32 %v4454, %v4458
    %v4460 = vadd.f32 1.0, %v4459
    %v4461 = vmul.f32 %v4452, %v4452
    %v4462 = vmul.f32 %v4461, -0.00019511016
    %v4463 = vadd.f32 %v4462, 0.008332121
    %v4464 = vmul.f32 %v4461, %v4463
    %v4465 = vadd.f32 %v4464, -0.16666654
    %v4466 = vmul.f32 %v4461, %v4465
    %v4467 = vadd.f32 %v4466, 1.0
    %v4468 = vmul.f32 %v4467, %v4452
    %vm4469 = vweird.f32 %v2150
    %v4470 = vadd.s32 %v4453, 3
    %v4471 = vand.u32 %v4470, 3
    %vm4472 = vcmp.lt.s32.totalorder %v4471, 2
    %vm4473 = vcmp.eq.s32.totalorder %v4471, 0
    %v4474 = vxor.u32 %v4468, 2147483648
    %v4475 = vsel %vm4473, %v4460, %v4474
    %vm4476 = vcmp.eq.s32.totalorder %v4471, 2
    %v4477 = vxor.u32 %v4460, 2147483648
    %v4478 = vsel %vm4476, %v4477, %v4468
    %v4479 = vsel %vm4472, %v4475, %v4478
    %v4480 = vsel %vm4469, nan, %v4479
    %v4481 = vand.u32 2147483647, %v2151
    %vm4482 = vcmp.le.f32.partialorder %v4481, 0.7853982
    %vm4483 = vcmp.lt.s32.totalorder %v2151, 0
    %v4484 = vand.u32 %v2151, 2139095040
    %v4485 = vshrl.u32 %v4484, 23
    %v4486 = vsub.s32 %v4485, 127
    %v4487 = vand.u32 2147483647, %v2151
    %v4488 = vand.u32 %v4487, 8388607
    %v4489 = vor.u32 %v4488, 8388608
    %v4490 = vsub.s32 0, %v4489
    %v4491 = vadd.s32 %v4486, 1
    %vm4492 = vcmp.gt.s32.totalorder %v4491, 0
    %v4493 = vsel %vm4492, %v4491, 0
    %v4494 = vshrl.u32 %v4493, 5
    %v4495 = vand.u32 %v4493, 31
    %v4496 = vsub.s32 32, %v4495
    %v4497 = vshrl.u32 683565275, %v4496
    %v4498 = vshll.u32 683565275, %v4495
    %v4499 = vshrl.u32 2475754826, %v4496
    %v4500 = vor.u32 %v4498, %v4499
    %v4501 = vshll.u32 2475754826, %v4495
    %v4502 = vshrl.u32 2131351028, %v4496
    %v4503 = vor.u32 %v4501, %v4502
    %v4504 = vshll.u32 2131351028, %v4495
    %v4505 = vshrl.u32 2102212464, %v4496
    %v4506 = vor.u32 %v4504, %v4505
    %v4507 = vshll.u32 2102212464, %v4495
    %v4508 = vshrl.u32 920167782, %v4496
    %v4509 = vor.u32 %v4507, %v4508
    %v4510 = vshll.u32 920167782, %v4495
    %v4511 = vshrl.u32 1326507024, %v4496
    %v4512 = vor.u32 %v4510, %v4511
    %vm4513 = vcmp.lt.s32.totalorder %v4494, 1
    %vm4514 = vcmp.lt.s32.totalorder %v4494, 2
    %vm4515 = vcmp.lt.s32.totalorder %v4494, 3
    %vm4516 = vcmp.lt.s32.totalorder %v4494, 4
    %v4517 = vsel %vm4513, %v4497, %v4500
    %v4518 = vsel %vm4516, %v4506, 2102212464
    %v4519 = vsel %vm4515, %v4503, %v4518
    %v4520 = vsel %vm4514, %v4517, %v4519
    %v4521 = vsel %vm4513, %v4500, %v4503
    %v4522 = vsel %vm4516, %v4509, 920167782
    %v4523 = vsel %vm4515, %v4506, %v4522
    %v4524 = vsel %vm4514, %v4521, %v4523
    %v4525 = vsel %vm4513, %v4503, %v4506
    %v4526 = vsel %vm4516, %v4512, 1326507024
    %v4527 = vsel %vm4515, %v4509, %v4526
    %v4528 = vsel %vm4514, %v4525, %v4527
    %v4529 = vshll.u32 %v4489, 8
    %v4530 = vand.u32 %v4529, 65535
    %v4531 = vshrl.u32 %v4529, 16
    %v4532 = vand.u32 %v4528, 65535
    %v4533 = vshrl.u32 %v4528, 16
    %v4534 = vmul.u32 %v4530, %v4532
    %v4535 = vmul.u32 %v4530, %v4533
    %v4536 = vmul.u32 %v4531, %v4532
    %v4537 = vmul.u32 %v4531, %v4533
    %v4538 = vshll.u32 %v4535, 16
    %v4539 = vshrl.u32 %v4535, 16
    %v4540 = vshll.u32 %v4536, 16
    %v4541 = vshrl.u32 %v4536, 16
    %vm4542 = vc.u32 %v4534, %v4538
    %v4543 = vsel %vm4542, 1, 0
    %v4544 = vadd.s32 %v4534, %v4538
    %v4545 = vadd.s32 %v4537, %v4543
    %vm4546 = vc.u32 %v4544, %v4540
    %v4547 = vsel %vm4546, 1, 0
    %v4548 = vadd.s32 %v4544, %v4540
    %v4549 = vadd.s32 %v4545, %v4547
    %v4550 = vadd.s32 %v4549, %v4539
    %v4551 = vadd.s32 %v4550, %v4541
    %v4552 = vand.u32 %v4529, 65535
    %v4553 = vshrl.u32 %v4529, 16
    %v4554 = vand.u32 %v4524, 65535
    %v4555 = vshrl.u32 %v4524, 16
    %v4556 = vmul.u32 %v4552, %v4554
    %v4557 = vmul.u32 %v4552, %v4555
    %v4558 = vmul.u32 %v4553, %v4554
    %v4559 = vmul.u32 %v4553, %v4555
    %v4560 = vshll.u32 %v4557, 16
    %v4561 = vshrl.u32 %v4557, 16
    %v4562 = vshll.u32 %v4558, 16
    %v4563 = vshrl.u32 %v4558, 16
    %vm4564 = vc.u32 %v4556, %v4560
    %v4565 = vsel %vm4564, 1, 0
    %v4566 = vadd.s32 %v4556, %v4560
    %v4567 = vadd.s32 %v4559, %v4565
    %vm4568 = vc.u32 %v4566, %v4562
    %v4569 = vsel %vm4568, 1, 0
    %v4570 = vadd.s32 %v4566, %v4562
    %v4571 = vadd.s32 %v4567, %v4569
    %v4572 = vadd.s32 %v4571, %v4561
    %v4573 = vadd.s32 %v4572, %v4563
    %v4574 = vmul.u32 %v4529, %v4520
    %v4575 = vadd.s32 %v4551, %v4570
    %vm4576 = vc.u32 %v4551, %v4570
    %v4577 = vadd.s32 %v4573, 1
    %v4578 = vsel %vm4576, %v4577, %v4573
    %v4579 = vadd.s32 %v4574, %v4578
    %v4580 = vadd.s32 %v4579, 536870912
    %v4581 = vshrl.u32 %v4580, 30
    %v4582 = vshll.u32 %v4581, 30
    %v4583 = vsub.s32 %v4579, %v4582
    %vm4584 = vcmp.lt.s32.totalorder %v4583, 0
    %v4585 = vsub.s32 0, %v4583
    %v4586 = vsel %vm4584, %v4585, %v4583
    %v4587 = vclz %v4586
    %v4588 = vsub.s32 %v4587, 2
    %vm4589 = vcmp.gt.s32.totalorder 0, %v4588
    %v4590 = vsel %vm4589, 0, %v4588
    %v4591 = vsub.s32 32, %v4590
    %v4592 = vshll.u32 %v4583, %v4590
    %v4593 = vshrl.u32 %v4575, %v4591
    %v4594 = vor.u32 %v4592, %v4593
    %v4595 = vsub.s32 4294967266, %v4590
    %v4596 = vadd.s32 %v4595, 127
    %v4597 = vshll.u32 %v4596, 23
    %v4598 = vor.u32 4788187, %v4597
    %v4599 = vand.u32 2147483647, %v4598
    %v4601 = vcvt.s32.f32 %v4594
    %v4602 = vmul.f32 %v4601, %v4599
    %v4603 = vxor.u32 %v4602, 2147483648
    %v4604 = vsel %vm4483, %v4603, %v4602
    %v4605 = vsub.s32 4, %v4581
    %v4606 = vsel %vm4483, %v4605, %v4581
    %v4607 = vsel %vm4482, %v2151, %v4604
    %v4608 = vsel %vm4482, 0, %v4606
    %v4609 = vmul.f32 %v4607, %v4607
    %v4610 = vmul.f32 %v4609, -0.001358992
    %v4611 = vadd.f32 %v4610, 0.041655596
    %v4612 = vmul.f32 %v4609, %v4611
    %v4613 = vadd.f32 %v4612, -0.4999988
    %v4614 = vmul.f32 %v4609, %v4613
    %v4615 = vadd.f32 1.0, %v4614
    %v4616 = vmul.f32 %v4607, %v4607
    %v4617 = vmul.f32 %v4616, -0.00019511016
    %v4618 = vadd.f32 %v4617, 0.008332121
    %v4619 = vmul.f32 %v4616, %v4618
    %v4620 = vadd.f32 %v4619, -0.16666654
    %v4621 = vmul.f32 %v4616, %v4620
    %v4622 = vadd.f32 %v4621, 1.0
    %v4623 = vmul.f32 %v4622, %v4607
    %vm4624 = vweird.f32 %v2151
    %v4625 = vadd.s32 %v4608, 3
    %v4626 = vand.u32 %v4625, 3
    %vm4627 = vcmp.lt.s32.totalorder %v4626, 2
    %vm4628 = vcmp.eq.s32.totalorder %v4626, 0
    %v4629 = vxor.u32 %v4623, 2147483648
    %v4630 = vsel %vm4628, %v4615, %v4629
    %vm4631 = vcmp.eq.s32.totalorder %v4626, 2
    %v4632 = vxor.u32 %v4615, 2147483648
    %v4633 = vsel %vm4631, %v4632, %v4623
    %v4634 = vsel %vm4627, %v4630, %v4633
    %v4635 = vsel %vm4624, nan, %v4634
    %v4636 = vand.u32 2147483647, %v2152
    %vm4637 = vcmp.le.f32.partialorder %v4636, 0.7853982
    %vm4638 = vcmp.lt.s32.totalorder %v2152, 0
    %v4639 = vand.u32 %v2152, 2139095040
    %v4640 = vshrl.u32 %v4639, 23
    %v4641 = vsub.s32 %v4640, 127
    %v4642 = vand.u32 2147483647, %v2152
    %v4643 = vand.u32 %v4642, 8388607
    %v4644 = vor.u32 %v4643, 8388608
    %v4645 = vsub.s32 0, %v4644
    %v4646 = vadd.s32 %v4641, 1
    %vm4647 = vcmp.gt.s32.totalorder %v4646, 0
    %v4648 = vsel %vm4647, %v4646, 0
    %v4649 = vshrl.u32 %v4648, 5
    %v4650 = vand.u32 %v4648, 31
    %v4651 = vsub.s32 32, %v4650
    %v4652 = vshrl.u32 683565275, %v4651
    %v4653 = vshll.u32 683565275, %v4650
    %v4654 = vshrl.u32 2475754826, %v4651
    %v4655 = vor.u32 %v4653, %v4654
    %v4656 = vshll.u32 2475754826, %v4650
    %v4657 = vshrl.u32 2131351028, %v4651
    %v4658 = vor.u32 %v4656, %v4657
    %v4659 = vshll.u32 2131351028, %v4650
    %v4660 = vshrl.u32 2102212464, %v4651
    %v4661 = vor.u32 %v4659, %v4660
    %v4662 = vshll.u32 2102212464, %v4650
    %v4663 = vshrl.u32 920167782, %v4651
    %v4664 = vor.u32 %v4662, %v4663
    %v4665 = vshll.u32 920167782, %v4650
    %v4666 = vshrl.u32 1326507024, %v4651
    %v4667 = vor.u32 %v4665, %v4666
    %vm4668 = vcmp.lt.s32.totalorder %v4649, 1
    %vm4669 = vcmp.lt.s32.totalorder %v4649, 2
    %vm4670 = vcmp.lt.s32.totalorder %v4649, 3
    %vm4671 = vcmp.lt.s32.totalorder %v4649, 4
    %v4672 = vsel %vm4668, %v4652, %v4655
    %v4673 = vsel %vm4671, %v4661, 2102212464
    %v4674 = vsel %vm4670, %v4658, %v4673
    %v4675 = vsel %vm4669, %v4672, %v4674
    %v4676 = vsel %vm4668, %v4655, %v4658
    %v4677 = vsel %vm4671, %v4664, 920167782
    %v4678 = vsel %vm4670, %v4661, %v4677
    %v4679 = vsel %vm4669, %v4676, %v4678
    %v4680 = vsel %vm4668, %v4658, %v4661
    %v4681 = vsel %vm4671, %v4667, 1326507024
    %v4682 = vsel %vm4670, %v4664, %v4681
    %v4683 = vsel %vm4669, %v4680, %v4682
    %v4684 = vshll.u32 %v4644, 8
    %v4685 = vand.u32 %v4684, 65535
    %v4686 = vshrl.u32 %v4684, 16
    %v4687 = vand.u32 %v4683, 65535
    %v4688 = vshrl.u32 %v4683, 16
    %v4689 = vmul.u32 %v4685, %v4687
    %v4690 = vmul.u32 %v4685, %v4688
    %v4691 = vmul.u32 %v4686, %v4687
    %v4692 = vmul.u32 %v4686, %v4688
    %v4693 = vshll.u32 %v4690, 16
    %v4694 = vshrl.u32 %v4690, 16
    %v4695 = vshll.u32 %v4691, 16
    %v4696 = vshrl.u32 %v4691, 16
    %vm4697 = vc.u32 %v4689, %v4693
    %v4698 = vsel %vm4697, 1, 0
    %v4699 = vadd.s32 %v4689, %v4693
    %v4700 = vadd.s32 %v4692, %v4698
    %vm4701 = vc.u32 %v4699, %v4695
    %v4702 = vsel %vm4701, 1, 0
    %v4703 = vadd.s32 %v4699, %v4695
    %v4704 = vadd.s32 %v4700, %v4702
    %v4705 = vadd.s32 %v4704, %v4694
    %v4706 = vadd.s32 %v4705, %v4696
    %v4707 = vand.u32 %v4684, 65535
    %v4708 = vshrl.u32 %v4684, 16
    %v4709 = vand.u32 %v4679, 65535
    %v4710 = vshrl.u32 %v4679, 16
    %v4711 = vmul.u32 %v4707, %v4709
    %v4712 = vmul.u32 %v4707, %v4710
    %v4713 = vmul.u32 %v4708, %v4709
    %v4714 = vmul.u32 %v4708, %v4710
    %v4715 = vshll.u32 %v4712, 16
    %v4716 = vshrl.u32 %v4712, 16
    %v4717 = vshll.u32 %v4713, 16
    %v4718 = vshrl.u32 %v4713, 16
    %vm4719 = vc.u32 %v4711, %v4715
    %v4720 = vsel %vm4719, 1, 0
    %v4721 = vadd.s32 %v4711, %v4715
    %v4722 = vadd.s32 %v4714, %v4720
    %vm4723 = vc.u32 %v4721, %v4717
    %v4724 = vsel %vm4723, 1, 0
    %v4725 = vadd.s32 %v4721, %v4717
    %v4726 = vadd.s32 %v4722, %v4724
    %v4727 = vadd.s32 %v4726, %v4716
    %v4728 = vadd.s32 %v4727, %v4718
    %v4729 = vmul.u32 %v4684, %v4675
    %v4730 = vadd.s32 %v4706, %v4725
    %vm4731 = vc.u32 %v4706, %v4725
    %v4732 = vadd.s32 %v4728, 1
    %v4733 = vsel %vm4731, %v4732, %v4728
    %v4734 = vadd.s32 %v4729, %v4733
    %v4735 = vadd.s32 %v4734, 536870912
    %v4736 = vshrl.u32 %v4735, 30
    %v4737 = vshll.u32 %v4736, 30
    %v4738 = vsub.s32 %v4734, %v4737
    %vm4739 = vcmp.lt.s32.totalorder %v4738, 0
    %v4740 = vsub.s32 0, %v4738
    %v4741 = vsel %vm4739, %v4740, %v4738
    %v4742 = vclz %v4741
    %v4743 = vsub.s32 %v4742, 2
    %vm4744 = vcmp.gt.s32.totalorder 0, %v4743
    %v4745 = vsel %vm4744, 0, %v4743
    %v4746 = vsub.s32 32, %v4745
    %v4747 = vshll.u32 %v4738, %v4745
    %v4748 = vshrl.u32 %v4730, %v4746
    %v4749 = vor.u32 %v4747, %v4748
    %v4750 = vsub.s32 4294967266, %v4745
    %v4751 = vadd.s32 %v4750, 127
    %v4752 = vshll.u32 %v4751, 23
    %v4753 = vor.u32 4788187, %v4752
    %v4754 = vand.u32 2147483647, %v4753
    %v4756 = vcvt.s32.f32 %v4749
    %v4757 = vmul.f32 %v4756, %v4754
    %v4758 = vxor.u32 %v4757, 2147483648
    %v4759 = vsel %vm4638, %v4758, %v4757
    %v4760 = vsub.s32 4, %v4736
    %v4761 = vsel %vm4638, %v4760, %v4736
    %v4762 = vsel %vm4637, %v2152, %v4759
    %v4763 = vsel %vm4637, 0, %v4761
    %v4764 = vmul.f32 %v4762, %v4762
    %v4765 = vmul.f32 %v4764, -0.001358992
    %v4766 = vadd.f32 %v4765, 0.041655596
    %v4767 = vmul.f32 %v4764, %v4766
    %v4768 = vadd.f32 %v4767, -0.4999988
    %v4769 = vmul.f32 %v4764, %v4768
    %v4770 = vadd.f32 1.0, %v4769
    %v4771 = vmul.f32 %v4762, %v4762
    %v4772 = vmul.f32 %v4771, -0.00019511016
    %v4773 = vadd.f32 %v4772, 0.008332121
    %v4774 = vmul.f32 %v4771, %v4773
    %v4775 = vadd.f32 %v4774, -0.16666654
    %v4776 = vmul.f32 %v4771, %v4775
    %v4777 = vadd.f32 %v4776, 1.0
    %v4778 = vmul.f32 %v4777, %v4762
    %vm4779 = vweird.f32 %v2152
    %v4780 = vadd.s32 %v4763, 3
    %v4781 = vand.u32 %v4780, 3
    %vm4782 = vcmp.lt.s32.totalorder %v4781, 2
    %vm4783 = vcmp.eq.s32.totalorder %v4781, 0
    %v4784 = vxor.u32 %v4778, 2147483648
    %v4785 = vsel %vm4783, %v4770, %v4784
    %vm4786 = vcmp.eq.s32.totalorder %v4781, 2
    %v4787 = vxor.u32 %v4770, 2147483648
    %v4788 = vsel %vm4786, %v4787, %v4778
    %v4789 = vsel %vm4782, %v4785, %v4788
    %v4790 = vsel %vm4779, nan, %v4789
    %v4791 = vand.u32 2147483647, %v2153
    %vm4792 = vcmp.le.f32.partialorder %v4791, 0.7853982
    %vm4793 = vcmp.lt.s32.totalorder %v2153, 0
    %v4794 = vand.u32 %v2153, 2139095040
    %v4795 = vshrl.u32 %v4794, 23
    %v4796 = vsub.s32 %v4795, 127
    %v4797 = vand.u32 2147483647, %v2153
    %v4798 = vand.u32 %v4797, 8388607
    %v4799 = vor.u32 %v4798, 8388608
    %v4800 = vsub.s32 0, %v4799
    %v4801 = vadd.s32 %v4796, 1
    %vm4802 = vcmp.gt.s32.totalorder %v4801, 0
    %v4803 = vsel %vm4802, %v4801, 0
    %v4804 = vshrl.u32 %v4803, 5
    %v4805 = vand.u32 %v4803, 31
    %v4806 = vsub.s32 32, %v4805
    %v4807 = vshrl.u32 683565275, %v4806
    %v4808 = vshll.u32 683565275, %v4805
    %v4809 = vshrl.u32 2475754826, %v4806
    %v4810 = vor.u32 %v4808, %v4809
    %v4811 = vshll.u32 2475754826, %v4805
    %v4812 = vshrl.u32 2131351028, %v4806
    %v4813 = vor.u32 %v4811, %v4812
    %v4814 = vshll.u32 2131351028, %v4805
    %v4815 = vshrl.u32 2102212464, %v4806
    %v4816 = vor.u32 %v4814, %v4815
    %v4817 = vshll.u32 2102212464, %v4805
    %v4818 = vshrl.u32 920167782, %v4806
    %v4819 = vor.u32 %v4817, %v4818
    %v4820 = vshll.u32 920167782, %v4805
    %v4821 = vshrl.u32 1326507024, %v4806
    %v4822 = vor.u32 %v4820, %v4821
    %vm4823 = vcmp.lt.s32.totalorder %v4804, 1
    %vm4824 = vcmp.lt.s32.totalorder %v4804, 2
    %vm4825 = vcmp.lt.s32.totalorder %v4804, 3
    %vm4826 = vcmp.lt.s32.totalorder %v4804, 4
    %v4827 = vsel %vm4823, %v4807, %v4810
    %v4828 = vsel %vm4826, %v4816, 2102212464
    %v4829 = vsel %vm4825, %v4813, %v4828
    %v4830 = vsel %vm4824, %v4827, %v4829
    %v4831 = vsel %vm4823, %v4810, %v4813
    %v4832 = vsel %vm4826, %v4819, 920167782
    %v4833 = vsel %vm4825, %v4816, %v4832
    %v4834 = vsel %vm4824, %v4831, %v4833
    %v4835 = vsel %vm4823, %v4813, %v4816
    %v4836 = vsel %vm4826, %v4822, 1326507024
    %v4837 = vsel %vm4825, %v4819, %v4836
    %v4838 = vsel %vm4824, %v4835, %v4837
    %v4839 = vshll.u32 %v4799, 8
    %v4840 = vand.u32 %v4839, 65535
    %v4841 = vshrl.u32 %v4839, 16
    %v4842 = vand.u32 %v4838, 65535
    %v4843 = vshrl.u32 %v4838, 16
    %v4844 = vmul.u32 %v4840, %v4842
    %v4845 = vmul.u32 %v4840, %v4843
    %v4846 = vmul.u32 %v4841, %v4842
    %v4847 = vmul.u32 %v4841, %v4843
    %v4848 = vshll.u32 %v4845, 16
    %v4849 = vshrl.u32 %v4845, 16
    %v4850 = vshll.u32 %v4846, 16
    %v4851 = vshrl.u32 %v4846, 16
    %vm4852 = vc.u32 %v4844, %v4848
    %v4853 = vsel %vm4852, 1, 0
    %v4854 = vadd.s32 %v4844, %v4848
    %v4855 = vadd.s32 %v4847, %v4853
    %vm4856 = vc.u32 %v4854, %v4850
    %v4857 = vsel %vm4856, 1, 0
    %v4858 = vadd.s32 %v4854, %v4850
    %v4859 = vadd.s32 %v4855, %v4857
    %v4860 = vadd.s32 %v4859, %v4849
    %v4861 = vadd.s32 %v4860, %v4851
    %v4862 = vand.u32 %v4839, 65535
    %v4863 = vshrl.u32 %v4839, 16
    %v4864 = vand.u32 %v4834, 65535
    %v4865 = vshrl.u32 %v4834, 16
    %v4866 = vmul.u32 %v4862, %v4864
    %v4867 = vmul.u32 %v4862, %v4865
    %v4868 = vmul.u32 %v4863, %v4864
    %v4869 = vmul.u32 %v4863, %v4865
    %v4870 = vshll.u32 %v4867, 16
    %v4871 = vshrl.u32 %v4867, 16
    %v4872 = vshll.u32 %v4868, 16
    %v4873 = vshrl.u32 %v4868, 16
    %vm4874 = vc.u32 %v4866, %v4870
    %v4875 = vsel %vm4874, 1, 0
    %v4876 = vadd.s32 %v4866, %v4870
    %v4877 = vadd.s32 %v4869, %v4875
    %vm4878 = vc.u32 %v4876, %v4872
    %v4879 = vsel %vm4878, 1, 0
    %v4880 = vadd.s32 %v4876, %v4872
    %v4881 = vadd.s32 %v4877, %v4879
    %v4882 = vadd.s32 %v4881, %v4871
    %v4883 = vadd.s32 %v4882, %v4873
    %v4884 = vmul.u32 %v4839, %v4830
    %v4885 = vadd.s32 %v4861, %v4880
    %vm4886 = vc.u32 %v4861, %v4880
    %v4887 = vadd.s32 %v4883, 1
    %v4888 = vsel %vm4886, %v4887, %v4883
    %v4889 = vadd.s32 %v4884, %v4888
    %v4890 = vadd.s32 %v4889, 536870912
    %v4891 = vshrl.u32 %v4890, 30
    %v4892 = vshll.u32 %v4891, 30
    %v4893 = vsub.s32 %v4889, %v4892
    %vm4894 = vcmp.lt.s32.totalorder %v4893, 0
    %v4895 = vsub.s32 0, %v4893
    %v4896 = vsel %vm4894, %v4895, %v4893
    %v4897 = vclz %v4896
    %v4898 = vsub.s32 %v4897, 2
    %vm4899 = vcmp.gt.s32.totalorder 0, %v4898
    %v4900 = vsel %vm4899, 0, %v4898
    %v4901 = vsub.s32 32, %v4900
    %v4902 = vshll.u32 %v4893, %v4900
    %v4903 = vshrl.u32 %v4885, %v4901
    %v4904 = vor.u32 %v4902, %v4903
    %v4905 = vsub.s32 4294967266, %v4900
    %v4906 = vadd.s32 %v4905, 127
    %v4907 = vshll.u32 %v4906, 23
    %v4908 = vor.u32 4788187, %v4907
    %v4909 = vand.u32 2147483647, %v4908
    %v4911 = vcvt.s32.f32 %v4904
    %v4912 = vmul.f32 %v4911, %v4909
    %v4913 = vxor.u32 %v4912, 2147483648
    %v4914 = vsel %vm4793, %v4913, %v4912
    %v4915 = vsub.s32 4, %v4891
    %v4916 = vsel %vm4793, %v4915, %v4891
    %v4917 = vsel %vm4792, %v2153, %v4914
    %v4918 = vsel %vm4792, 0, %v4916
    %v4919 = vmul.f32 %v4917, %v4917
    %v4920 = vmul.f32 %v4919, -0.001358992
    %v4921 = vadd.f32 %v4920, 0.041655596
    %v4922 = vmul.f32 %v4919, %v4921
    %v4923 = vadd.f32 %v4922, -0.4999988
    %v4924 = vmul.f32 %v4919, %v4923
    %v4925 = vadd.f32 1.0, %v4924
    %v4926 = vmul.f32 %v4917, %v4917
    %v4927 = vmul.f32 %v4926, -0.00019511016
    %v4928 = vadd.f32 %v4927, 0.008332121
    %v4929 = vmul.f32 %v4926, %v4928
    %v4930 = vadd.f32 %v4929, -0.16666654
    %v4931 = vmul.f32 %v4926, %v4930
    %v4932 = vadd.f32 %v4931, 1.0
    %v4933 = vmul.f32 %v4932, %v4917
    %vm4934 = vweird.f32 %v2153
    %v4935 = vadd.s32 %v4918, 3
    %v4936 = vand.u32 %v4935, 3
    %vm4937 = vcmp.lt.s32.totalorder %v4936, 2
    %vm4938 = vcmp.eq.s32.totalorder %v4936, 0
    %v4939 = vxor.u32 %v4933, 2147483648
    %v4940 = vsel %vm4938, %v4925, %v4939
    %vm4941 = vcmp.eq.s32.totalorder %v4936, 2
    %v4942 = vxor.u32 %v4925, 2147483648
    %v4943 = vsel %vm4941, %v4942, %v4933
    %v4944 = vsel %vm4937, %v4940, %v4943
    %v4945 = vsel %vm4934, nan, %v4944
    %v4946 = vand.u32 2147483647, %v2154
    %vm4947 = vcmp.le.f32.partialorder %v4946, 0.7853982
    %vm4948 = vcmp.lt.s32.totalorder %v2154, 0
    %v4949 = vand.u32 %v2154, 2139095040
    %v4950 = vshrl.u32 %v4949, 23
    %v4951 = vsub.s32 %v4950, 127
    %v4952 = vand.u32 2147483647, %v2154
    %v4953 = vand.u32 %v4952, 8388607
    %v4954 = vor.u32 %v4953, 8388608
    %v4955 = vsub.s32 0, %v4954
    %v4956 = vadd.s32 %v4951, 1
    %vm4957 = vcmp.gt.s32.totalorder %v4956, 0
    %v4958 = vsel %vm4957, %v4956, 0
    %v4959 = vshrl.u32 %v4958, 5
    %v4960 = vand.u32 %v4958, 31
    %v4961 = vsub.s32 32, %v4960
    %v4962 = vshrl.u32 683565275, %v4961
    %v4963 = vshll.u32 683565275, %v4960
    %v4964 = vshrl.u32 2475754826, %v4961
    %v4965 = vor.u32 %v4963, %v4964
    %v4966 = vshll.u32 2475754826, %v4960
    %v4967 = vshrl.u32 2131351028, %v4961
    %v4968 = vor.u32 %v4966, %v4967
    %v4969 = vshll.u32 2131351028, %v4960
    %v4970 = vshrl.u32 2102212464, %v4961
    %v4971 = vor.u32 %v4969, %v4970
    %v4972 = vshll.u32 2102212464, %v4960
    %v4973 = vshrl.u32 920167782, %v4961
    %v4974 = vor.u32 %v4972, %v4973
    %v4975 = vshll.u32 920167782, %v4960
    %v4976 = vshrl.u32 1326507024, %v4961
    %v4977 = vor.u32 %v4975, %v4976
    %vm4978 = vcmp.lt.s32.totalorder %v4959, 1
    %vm4979 = vcmp.lt.s32.totalorder %v4959, 2
    %vm4980 = vcmp.lt.s32.totalorder %v4959, 3
    %vm4981 = vcmp.lt.s32.totalorder %v4959, 4
    %v4982 = vsel %vm4978, %v4962, %v4965
    %v4983 = vsel %vm4981, %v4971, 2102212464
    %v4984 = vsel %vm4980, %v4968, %v4983
    %v4985 = vsel %vm4979, %v4982, %v4984
    %v4986 = vsel %vm4978, %v4965, %v4968
    %v4987 = vsel %vm4981, %v4974, 920167782
    %v4988 = vsel %vm4980, %v4971, %v4987
    %v4989 = vsel %vm4979, %v4986, %v4988
    %v4990 = vsel %vm4978, %v4968, %v4971
    %v4991 = vsel %vm4981, %v4977, 1326507024
    %v4992 = vsel %vm4980, %v4974, %v4991
    %v4993 = vsel %vm4979, %v4990, %v4992
    %v4994 = vshll.u32 %v4954, 8
    %v4995 = vand.u32 %v4994, 65535
    %v4996 = vshrl.u32 %v4994, 16
    %v4997 = vand.u32 %v4993, 65535
    %v4998 = vshrl.u32 %v4993, 16
    %v4999 = vmul.u32 %v4995, %v4997
    %v5000 = vmul.u32 %v4995, %v4998
    %v5001 = vmul.u32 %v4996, %v4997
    %v5002 = vmul.u32 %v4996, %v4998
    %v5003 = vshll.u32 %v5000, 16
    %v5004 = vshrl.u32 %v5000, 16
    %v5005 = vshll.u32 %v5001, 16
    %v5006 = vshrl.u32 %v5001, 16
    %vm5007 = vc.u32 %v4999, %v5003
    %v5008 = vsel %vm5007, 1, 0
    %v5009 = vadd.s32 %v4999, %v5003
    %v5010 = vadd.s32 %v5002, %v5008
    %vm5011 = vc.u32 %v5009, %v5005
    %v5012 = vsel %vm5011, 1, 0
    %v5013 = vadd.s32 %v5009, %v5005
    %v5014 = vadd.s32 %v5010, %v5012
    %v5015 = vadd.s32 %v5014, %v5004
    %v5016 = vadd.s32 %v5015, %v5006
    %v5017 = vand.u32 %v4994, 65535
    %v5018 = vshrl.u32 %v4994, 16
    %v5019 = vand.u32 %v4989, 65535
    %v5020 = vshrl.u32 %v4989, 16
    %v5021 = vmul.u32 %v5017, %v5019
    %v5022 = vmul.u32 %v5017, %v5020
    %v5023 = vmul.u32 %v5018, %v5019
    %v5024 = vmul.u32 %v5018, %v5020
    %v5025 = vshll.u32 %v5022, 16
    %v5026 = vshrl.u32 %v5022, 16
    %v5027 = vshll.u32 %v5023, 16
    %v5028 = vshrl.u32 %v5023, 16
    %vm5029 = vc.u32 %v5021, %v5025
    %v5030 = vsel %vm5029, 1, 0
    %v5031 = vadd.s32 %v5021, %v5025
    %v5032 = vadd.s32 %v5024, %v5030
    %vm5033 = vc.u32 %v5031, %v5027
    %v5034 = vsel %vm5033, 1, 0
    %v5035 = vadd.s32 %v5031, %v5027
    %v5036 = vadd.s32 %v5032, %v5034
    %v5037 = vadd.s32 %v5036, %v5026
    %v5038 = vadd.s32 %v5037, %v5028
    %v5039 = vmul.u32 %v4994, %v4985
    %v5040 = vadd.s32 %v5016, %v5035
    %vm5041 = vc.u32 %v5016, %v5035
    %v5042 = vadd.s32 %v5038, 1
    %v5043 = vsel %vm5041, %v5042, %v5038
    %v5044 = vadd.s32 %v5039, %v5043
    %v5045 = vadd.s32 %v5044, 536870912
    %v5046 = vshrl.u32 %v5045, 30
    %v5047 = vshll.u32 %v5046, 30
    %v5048 = vsub.s32 %v5044, %v5047
    %vm5049 = vcmp.lt.s32.totalorder %v5048, 0
    %v5050 = vsub.s32 0, %v5048
    %v5051 = vsel %vm5049, %v5050, %v5048
    %v5052 = vclz %v5051
    %v5053 = vsub.s32 %v5052, 2
    %vm5054 = vcmp.gt.s32.totalorder 0, %v5053
    %v5055 = vsel %vm5054, 0, %v5053
    %v5056 = vsub.s32 32, %v5055
    %v5057 = vshll.u32 %v5048, %v5055
    %v5058 = vshrl.u32 %v5040, %v5056
    %v5059 = vor.u32 %v5057, %v5058
    %v5060 = vsub.s32 4294967266, %v5055
    %v5061 = vadd.s32 %v5060, 127
    %v5062 = vshll.u32 %v5061, 23
    %v5063 = vor.u32 4788187, %v5062
    %v5064 = vand.u32 2147483647, %v5063
    %v5066 = vcvt.s32.f32 %v5059
    %v5067 = vmul.f32 %v5066, %v5064
    %v5068 = vxor.u32 %v5067, 2147483648
    %v5069 = vsel %vm4948, %v5068, %v5067
    %v5070 = vsub.s32 4, %v5046
    %v5071 = vsel %vm4948, %v5070, %v5046
    %v5072 = vsel %vm4947, %v2154, %v5069
    %v5073 = vsel %vm4947, 0, %v5071
    %v5074 = vmul.f32 %v5072, %v5072
    %v5075 = vmul.f32 %v5074, -0.001358992
    %v5076 = vadd.f32 %v5075, 0.041655596
    %v5077 = vmul.f32 %v5074, %v5076
    %v5078 = vadd.f32 %v5077, -0.4999988
    %v5079 = vmul.f32 %v5074, %v5078
    %v5080 = vadd.f32 1.0, %v5079
    %v5081 = vmul.f32 %v5072, %v5072
    %v5082 = vmul.f32 %v5081, -0.00019511016
    %v5083 = vadd.f32 %v5082, 0.008332121
    %v5084 = vmul.f32 %v5081, %v5083
    %v5085 = vadd.f32 %v5084, -0.16666654
    %v5086 = vmul.f32 %v5081, %v5085
    %v5087 = vadd.f32 %v5086, 1.0
    %v5088 = vmul.f32 %v5087, %v5072
    %vm5089 = vweird.f32 %v2154
    %v5090 = vadd.s32 %v5073, 3
    %v5091 = vand.u32 %v5090, 3
    %vm5092 = vcmp.lt.s32.totalorder %v5091, 2
    %vm5093 = vcmp.eq.s32.totalorder %v5091, 0
    %v5094 = vxor.u32 %v5088, 2147483648
    %v5095 = vsel %vm5093, %v5080, %v5094
    %vm5096 = vcmp.eq.s32.totalorder %v5091, 2
    %v5097 = vxor.u32 %v5080, 2147483648
    %v5098 = vsel %vm5096, %v5097, %v5088
    %v5099 = vsel %vm5092, %v5095, %v5098
    %v5100 = vsel %vm5089, nan, %v5099
    %v5101 = vand.u32 2147483647, %v2155
    %vm5102 = vcmp.le.f32.partialorder %v5101, 0.7853982
    %vm5103 = vcmp.lt.s32.totalorder %v2155, 0
    %v5104 = vand.u32 %v2155, 2139095040
    %v5105 = vshrl.u32 %v5104, 23
    %v5106 = vsub.s32 %v5105, 127
    %v5107 = vand.u32 2147483647, %v2155
    %v5108 = vand.u32 %v5107, 8388607
    %v5109 = vor.u32 %v5108, 8388608
    %v5110 = vsub.s32 0, %v5109
    %v5111 = vadd.s32 %v5106, 1
    %vm5112 = vcmp.gt.s32.totalorder %v5111, 0
    %v5113 = vsel %vm5112, %v5111, 0
    %v5114 = vshrl.u32 %v5113, 5
    %v5115 = vand.u32 %v5113, 31
    %v5116 = vsub.s32 32, %v5115
    %v5117 = vshrl.u32 683565275, %v5116
    %v5118 = vshll.u32 683565275, %v5115
    %v5119 = vshrl.u32 2475754826, %v5116
    %v5120 = vor.u32 %v5118, %v5119
    %v5121 = vshll.u32 2475754826, %v5115
    %v5122 = vshrl.u32 2131351028, %v5116
    %v5123 = vor.u32 %v5121, %v5122
    %v5124 = vshll.u32 2131351028, %v5115
    %v5125 = vshrl.u32 2102212464, %v5116
    %v5126 = vor.u32 %v5124, %v5125
    %v5127 = vshll.u32 2102212464, %v5115
    %v5128 = vshrl.u32 920167782, %v5116
    %v5129 = vor.u32 %v5127, %v5128
    %v5130 = vshll.u32 920167782, %v5115
    %v5131 = vshrl.u32 1326507024, %v5116
    %v5132 = vor.u32 %v5130, %v5131
    %vm5133 = vcmp.lt.s32.totalorder %v5114, 1
    %vm5134 = vcmp.lt.s32.totalorder %v5114, 2
    %vm5135 = vcmp.lt.s32.totalorder %v5114, 3
    %vm5136 = vcmp.lt.s32.totalorder %v5114, 4
    %v5137 = vsel %vm5133, %v5117, %v5120
    %v5138 = vsel %vm5136, %v5126, 2102212464
    %v5139 = vsel %vm5135, %v5123, %v5138
    %v5140 = vsel %vm5134, %v5137, %v5139
    %v5141 = vsel %vm5133, %v5120, %v5123
    %v5142 = vsel %vm5136, %v5129, 920167782
    %v5143 = vsel %vm5135, %v5126, %v5142
    %v5144 = vsel %vm5134, %v5141, %v5143
    %v5145 = vsel %vm5133, %v5123, %v5126
    %v5146 = vsel %vm5136, %v5132, 1326507024
    %v5147 = vsel %vm5135, %v5129, %v5146
    %v5148 = vsel %vm5134, %v5145, %v5147
    %v5149 = vshll.u32 %v5109, 8
    %v5150 = vand.u32 %v5149, 65535
    %v5151 = vshrl.u32 %v5149, 16
    %v5152 = vand.u32 %v5148, 65535
    %v5153 = vshrl.u32 %v5148, 16
    %v5154 = vmul.u32 %v5150, %v5152
    %v5155 = vmul.u32 %v5150, %v5153
    %v5156 = vmul.u32 %v5151, %v5152
    %v5157 = vmul.u32 %v5151, %v5153
    %v5158 = vshll.u32 %v5155, 16
    %v5159 = vshrl.u32 %v5155, 16
    %v5160 = vshll.u32 %v5156, 16
    %v5161 = vshrl.u32 %v5156, 16
    %vm5162 = vc.u32 %v5154, %v5158
    %v5163 = vsel %vm5162, 1, 0
    %v5164 = vadd.s32 %v5154, %v5158
    %v5165 = vadd.s32 %v5157, %v5163
    %vm5166 = vc.u32 %v5164, %v5160
    %v5167 = vsel %vm5166, 1, 0
    %v5168 = vadd.s32 %v5164, %v5160
    %v5169 = vadd.s32 %v5165, %v5167
    %v5170 = vadd.s32 %v5169, %v5159
    %v5171 = vadd.s32 %v5170, %v5161
    %v5172 = vand.u32 %v5149, 65535
    %v5173 = vshrl.u32 %v5149, 16
    %v5174 = vand.u32 %v5144, 65535
    %v5175 = vshrl.u32 %v5144, 16
    %v5176 = vmul.u32 %v5172, %v5174
    %v5177 = vmul.u32 %v5172, %v5175
    %v5178 = vmul.u32 %v5173, %v5174
    %v5179 = vmul.u32 %v5173, %v5175
    %v5180 = vshll.u32 %v5177, 16
    %v5181 = vshrl.u32 %v5177, 16
    %v5182 = vshll.u32 %v5178, 16
    %v5183 = vshrl.u32 %v5178, 16
    %vm5184 = vc.u32 %v5176, %v5180
    %v5185 = vsel %vm5184, 1, 0
    %v5186 = vadd.s32 %v5176, %v5180
    %v5187 = vadd.s32 %v5179, %v5185
    %vm5188 = vc.u32 %v5186, %v5182
    %v5189 = vsel %vm5188, 1, 0
    %v5190 = vadd.s32 %v5186, %v5182
    %v5191 = vadd.s32 %v5187, %v5189
    %v5192 = vadd.s32 %v5191, %v5181
    %v5193 = vadd.s32 %v5192, %v5183
    %v5194 = vmul.u32 %v5149, %v5140
    %v5195 = vadd.s32 %v5171, %v5190
    %vm5196 = vc.u32 %v5171, %v5190
    %v5197 = vadd.s32 %v5193, 1
    %v5198 = vsel %vm5196, %v5197, %v5193
    %v5199 = vadd.s32 %v5194, %v5198
    %v5200 = vadd.s32 %v5199, 536870912
    %v5201 = vshrl.u32 %v5200, 30
    %v5202 = vshll.u32 %v5201, 30
    %v5203 = vsub.s32 %v5199, %v5202
    %vm5204 = vcmp.lt.s32.totalorder %v5203, 0
    %v5205 = vsub.s32 0, %v5203
    %v5206 = vsel %vm5204, %v5205, %v5203
    %v5207 = vclz %v5206
    %v5208 = vsub.s32 %v5207, 2
    %vm5209 = vcmp.gt.s32.totalorder 0, %v5208
    %v5210 = vsel %vm5209, 0, %v5208
    %v5211 = vsub.s32 32, %v5210
    %v5212 = vshll.u32 %v5203, %v5210
    %v5213 = vshrl.u32 %v5195, %v5211
    %v5214 = vor.u32 %v5212, %v5213
    %v5215 = vsub.s32 4294967266, %v5210
    %v5216 = vadd.s32 %v5215, 127
    %v5217 = vshll.u32 %v5216, 23
    %v5218 = vor.u32 4788187, %v5217
    %v5219 = vand.u32 2147483647, %v5218
    %v5221 = vcvt.s32.f32 %v5214
    %v5222 = vmul.f32 %v5221, %v5219
    %v5223 = vxor.u32 %v5222, 2147483648
    %v5224 = vsel %vm5103, %v5223, %v5222
    %v5225 = vsub.s32 4, %v5201
    %v5226 = vsel %vm5103, %v5225, %v5201
    %v5227 = vsel %vm5102, %v2155, %v5224
    %v5228 = vsel %vm5102, 0, %v5226
    %v5229 = vmul.f32 %v5227, %v5227
    %v5230 = vmul.f32 %v5229, -0.001358992
    %v5231 = vadd.f32 %v5230, 0.041655596
    %v5232 = vmul.f32 %v5229, %v5231
    %v5233 = vadd.f32 %v5232, -0.4999988
    %v5234 = vmul.f32 %v5229, %v5233
    %v5235 = vadd.f32 1.0, %v5234
    %v5236 = vmul.f32 %v5227, %v5227
    %v5237 = vmul.f32 %v5236, -0.00019511016
    %v5238 = vadd.f32 %v5237, 0.008332121
    %v5239 = vmul.f32 %v5236, %v5238
    %v5240 = vadd.f32 %v5239, -0.16666654
    %v5241 = vmul.f32 %v5236, %v5240
    %v5242 = vadd.f32 %v5241, 1.0
    %v5243 = vmul.f32 %v5242, %v5227
    %vm5244 = vweird.f32 %v2155
    %v5245 = vadd.s32 %v5228, 3
    %v5246 = vand.u32 %v5245, 3
    %vm5247 = vcmp.lt.s32.totalorder %v5246, 2
    %vm5248 = vcmp.eq.s32.totalorder %v5246, 0
    %v5249 = vxor.u32 %v5243, 2147483648
    %v5250 = vsel %vm5248, %v5235, %v5249
    %vm5251 = vcmp.eq.s32.totalorder %v5246, 2
    %v5252 = vxor.u32 %v5235, 2147483648
    %v5253 = vsel %vm5251, %v5252, %v5243
    %v5254 = vsel %vm5247, %v5250, %v5253
    %v5255 = vsel %vm5244, nan, %v5254
    %v5256 = vmul.f32 %v2118, %v3860
    %v5257 = vmul.f32 %v2119, %v4015
    %v5258 = vmul.f32 %v2120, %v4170
    %v5259 = vmul.f32 %v2121, %v4325
    %v5260 = vmul.f32 %v2122, %v4480
    %v5261 = vmul.f32 %v2123, %v4635
    %v5262 = vmul.f32 %v2124, %v4790
    %v5263 = vmul.f32 %v2125, %v4945
    %v5264 = vmul.f32 %v2126, %v5100
    %v5265 = vmul.f32 %v2127, %v5255
    %v5266 = vld [vmem:[%s21] sm:$0xf]
    %v5267 = vld [vmem:[%s21 + $0x4] sm:$0xf]
    %v5268 = vld [vmem:[%s21 + $0x8] sm:$0xf]
    %v5269 = vld [vmem:[%s21 + $0xc] sm:$0xf]
    %v5270 = vld [vmem:[%s21 + $0x10] sm:$0xf]
    %v5271 = vld [vmem:[%s21 + $0x14] sm:$0xf]
    %v5272 = vld [vmem:[%s21 + $0x18] sm:$0xf]
    %v5273 = vld [vmem:[%s21 + $0x1c] sm:$0xf]
    %v5274 = vld [vmem:[%s21 + $0x20] sm:$0xf]
    %v5275 = vld [vmem:[%s21 + $0x24] sm:$0xf]
    %v5276 = vld [vmem:[%s21 + $0x28] sm:$0xf]
    %v5277 = vld [vmem:[%s21 + $0x2c] sm:$0xf]
    %v5278 = vld [vmem:[%s21 + $0x30] sm:$0xf]
    %v5279 = vld [vmem:[%s21 + $0x34] sm:$0xf]
    %v5280 = vld [vmem:[%s21 + $0x38] sm:$0xf]
    %v5281 = vld [vmem:[%s21 + $0x3c] sm:$0xf]
    %v5282 = vpack.c.bf16 %v3697, %v3696
    %v5283 = vpack.c.bf16 %v3699, %v3698
    %v5284 = vpack.c.bf16 %v3701, %v3700
    %v5285 = vpack.c.bf16 %v3703, %v3702
    %v5286 = vpack.c.bf16 %v3705, %v3704
    %v5287 = vld [vmem:[%s23] sm:$0xf]
    %v5288 = vld [vmem:[%s23 + $0x4] sm:$0xf]
    %v5289 = vld [vmem:[%s23 + $0x8] sm:$0xf]
    %v5290 = vld [vmem:[%s23 + $0xc] sm:$0xf]
    %v5291 = vld [vmem:[%s23 + $0x10] sm:$0xf]
    %v5292 = vld [vmem:[%s23 + $0x14] sm:$0xf]
    %v5293 = vld [vmem:[%s23 + $0x18] sm:$0xf]
    %v5294 = vld [vmem:[%s23 + $0x1c] sm:$0xf]
    %v5295 = vld [vmem:[%s23 + $0x20] sm:$0xf]
    %v5296 = vld [vmem:[%s23 + $0x24] sm:$0xf]
    %v5297 = vld [vmem:[%s23 + $0x28] sm:$0xf]
    %v5298 = vld [vmem:[%s23 + $0x2c] sm:$0xf]
    %v5299 = vld [vmem:[%s23 + $0x30] sm:$0xf]
    %v5300 = vld [vmem:[%s23 + $0x34] sm:$0xf]
    %v5301 = vld [vmem:[%s23 + $0x38] sm:$0xf]
    %v5302 = vld [vmem:[%s23 + $0x3c] sm:$0xf]
    %v5303 = vpack.c.bf16 %v5257, %v5256
    %v5304 = vpack.c.bf16 %v5259, %v5258
    %v5305 = vpack.c.bf16 %v5261, %v5260
    %v5306 = vpack.c.bf16 %v5263, %v5262
    %v5307 = vpack.c.bf16 %v5265, %v5264
    %v5324 = vunpack.c.l.b16 %v5287
    %v5325 = vunpack.c.l.b16 %v5288
    %v5326 = vunpack.c.l.b16 %v5289
    %v5327 = vunpack.c.l.b16 %v5290
    %v5328 = vunpack.c.l.b16 %v5291
    %v5329 = vunpack.c.l.b16 %v5292
    %v5330 = vunpack.c.l.b16 %v5293
    %v5331 = vunpack.c.l.b16 %v5294
    %v5332 = vunpack.c.l.b16 %v5295
    %v5333 = vunpack.c.l.b16 %v5296
    %v5334 = vunpack.c.l.b16 %v5297
    %v5335 = vunpack.c.l.b16 %v5298
    %v5336 = vunpack.c.l.b16 %v5299
    %v5337 = vunpack.c.l.b16 %v5300
    %v5338 = vunpack.c.l.b16 %v5301
    %v5339 = vunpack.c.l.b16 %v5302
    %v5340 = vpack.c.b16 %v5325, %v5324
    %v5341 = vpack.c.b16 %v5327, %v5326
    %v5342 = vpack.c.b16 %v5329, %v5328
    %v5343 = vpack.c.b16 %v5331, %v5330
    %v5344 = vpack.c.b16 %v5333, %v5332
    %v5345 = vpack.c.b16 %v5335, %v5334
    %v5346 = vpack.c.b16 %v5337, %v5336
    %v5347 = vpack.c.b16 %v5339, %v5338
    %vm5348 = vcmask 654336
    %v5350 = vsel %vm5348, %v5340, 0
    %v5353 = vsel %vm5348, %v5341, 0
    %v5356 = vsel %vm5348, %v5342, 0
    %v5359 = vsel %vm5348, %v5343, 0
    %v5362 = vsel %vm5348, %v5344, 0
    %v5365 = vsel %vm5348, %v5345, 0
    %v5368 = vsel %vm5348, %v5346, 0
    %v5371 = vsel %vm5348, %v5347, 0
    %5373 = vmatpush.bf16.msra.mxu0 0
    %5374 = vmatpush.bf16.msra.mxu0 0
    %5375 = vmatpush.bf16.msra.mxu0 0
    %5376 = vmatpush.bf16.msra.mxu0 %v5307
    %5377 = vmatpush.bf16.msra.mxu0 %v5306
    %5378 = vmatpush.bf16.msra.mxu0 %v5305
    %5379 = vmatpush.bf16.msra.mxu0 %v5304
    %5380 = vmatpush.bf16.msra.mxu0 %v5303
    %5381 = vmatmul.bf16.gmra.mxu0 %v5350
    %v5382 = vpop.f32.mrf.mxu0
    %v5383 = vadd.f32 0.0, %v5382
    %v5384 = vpop.f32.mrf.mxu0
    %v5385 = vadd.f32 0.0, %v5384
    %5386 = vmatmul.bf16.gmra.mxu0 %v5353
    %v5387 = vpop.f32.mrf.mxu0
    %v5388 = vadd.f32 0.0, %v5387
    %v5389 = vpop.f32.mrf.mxu0
    %v5390 = vadd.f32 0.0, %v5389
    %5391 = vmatmul.bf16.gmra.mxu0 %v5356
    %v5392 = vpop.f32.mrf.mxu0
    %v5393 = vadd.f32 0.0, %v5392
    %v5394 = vpop.f32.mrf.mxu0
    %v5395 = vadd.f32 0.0, %v5394
    %5396 = vmatmul.bf16.gmra.mxu0 %v5359
    %v5397 = vpop.f32.mrf.mxu0
    %v5398 = vadd.f32 0.0, %v5397
    %v5399 = vpop.f32.mrf.mxu0
    %v5400 = vadd.f32 0.0, %v5399
    %5401 = vmatmul.bf16.gmra.mxu0 %v5362
    %v5402 = vpop.f32.mrf.mxu0
    %v5403 = vadd.f32 0.0, %v5402
    %v5404 = vpop.f32.mrf.mxu0
    %v5405 = vadd.f32 0.0, %v5404
    %5406 = vmatmul.bf16.gmra.mxu0 %v5365
    %v5407 = vpop.f32.mrf.mxu0
    %v5408 = vadd.f32 0.0, %v5407
    %v5409 = vpop.f32.mrf.mxu0
    %v5410 = vadd.f32 0.0, %v5409
    %5411 = vmatmul.bf16.gmra.mxu0 %v5368
    %v5412 = vpop.f32.mrf.mxu0
    %v5413 = vadd.f32 0.0, %v5412
    %v5414 = vpop.f32.mrf.mxu0
    %v5415 = vadd.f32 0.0, %v5414
    %5416 = vmatmul.bf16.gmra.mxu0 %v5371
    %v5417 = vpop.f32.mrf.mxu0
    %v5418 = vadd.f32 0.0, %v5417
    %v5419 = vpop.f32.mrf.mxu0
    %v5420 = vadd.f32 0.0, %v5419
    %5421 = vdwg.mxu0
    %v5438 = vunpack.c.l.b16 %v5266
    %v5439 = vunpack.c.l.b16 %v5267
    %v5440 = vunpack.c.l.b16 %v5268
    %v5441 = vunpack.c.l.b16 %v5269
    %v5442 = vunpack.c.l.b16 %v5270
    %v5443 = vunpack.c.l.b16 %v5271
    %v5444 = vunpack.c.l.b16 %v5272
    %v5445 = vunpack.c.l.b16 %v5273
    %v5446 = vunpack.c.l.b16 %v5274
    %v5447 = vunpack.c.l.b16 %v5275
    %v5448 = vunpack.c.l.b16 %v5276
    %v5449 = vunpack.c.l.b16 %v5277
    %v5450 = vunpack.c.l.b16 %v5278
    %v5451 = vunpack.c.l.b16 %v5279
    %v5452 = vunpack.c.l.b16 %v5280
    %v5453 = vunpack.c.l.b16 %v5281
    %v5454 = vpack.c.b16 %v5439, %v5438
    %v5455 = vpack.c.b16 %v5441, %v5440
    %v5456 = vpack.c.b16 %v5443, %v5442
    %v5457 = vpack.c.b16 %v5445, %v5444
    %v5458 = vpack.c.b16 %v5447, %v5446
    %v5459 = vpack.c.b16 %v5449, %v5448
    %v5460 = vpack.c.b16 %v5451, %v5450
    %v5461 = vpack.c.b16 %v5453, %v5452
    %v5463 = vsel %vm5348, %v5454, 0
    %v5466 = vsel %vm5348, %v5455, 0
    %v5469 = vsel %vm5348, %v5456, 0
    %v5472 = vsel %vm5348, %v5457, 0
    %v5475 = vsel %vm5348, %v5458, 0
    %v5478 = vsel %vm5348, %v5459, 0
    %v5481 = vsel %vm5348, %v5460, 0
    %v5484 = vsel %vm5348, %v5461, 0
    %5486 = vmatpush.bf16.msra.mxu0 0
    %5487 = vmatpush.bf16.msra.mxu0 0
    %5488 = vmatpush.bf16.msra.mxu0 0
    %5489 = vmatpush.bf16.msra.mxu0 %v5286
    %5490 = vmatpush.bf16.msra.mxu0 %v5285
    %5491 = vmatpush.bf16.msra.mxu0 %v5284
    %5492 = vmatpush.bf16.msra.mxu0 %v5283
    %5493 = vmatpush.bf16.msra.mxu0 %v5282
    %5494 = vmatmul.bf16.gmra.mxu0 %v5463
    %v5495 = vpop.f32.mrf.mxu0
    %v5496 = vadd.f32 %v5383, %v5495
    %v5497 = vpop.f32.mrf.mxu0
    %v5498 = vadd.f32 %v5385, %v5497
    %5499 = vmatmul.bf16.gmra.mxu0 %v5466
    %v5500 = vpop.f32.mrf.mxu0
    %v5501 = vadd.f32 %v5388, %v5500
    %v5502 = vpop.f32.mrf.mxu0
    %v5503 = vadd.f32 %v5390, %v5502
    %5504 = vmatmul.bf16.gmra.mxu0 %v5469
    %v5505 = vpop.f32.mrf.mxu0
    %v5506 = vadd.f32 %v5393, %v5505
    %v5507 = vpop.f32.mrf.mxu0
    %v5508 = vadd.f32 %v5395, %v5507
    %5509 = vmatmul.bf16.gmra.mxu0 %v5472
    %v5510 = vpop.f32.mrf.mxu0
    %v5511 = vadd.f32 %v5398, %v5510
    %v5512 = vpop.f32.mrf.mxu0
    %v5513 = vadd.f32 %v5400, %v5512
    %5514 = vmatmul.bf16.gmra.mxu0 %v5475
    %v5515 = vpop.f32.mrf.mxu0
    %v5516 = vadd.f32 %v5403, %v5515
    %v5517 = vpop.f32.mrf.mxu0
    %v5518 = vadd.f32 %v5405, %v5517
    %5519 = vmatmul.bf16.gmra.mxu0 %v5478
    %v5520 = vpop.f32.mrf.mxu0
    %v5521 = vadd.f32 %v5408, %v5520
    %v5522 = vpop.f32.mrf.mxu0
    %v5523 = vadd.f32 %v5410, %v5522
    %5524 = vmatmul.bf16.gmra.mxu0 %v5481
    %v5525 = vpop.f32.mrf.mxu0
    %v5526 = vadd.f32 %v5413, %v5525
    %v5527 = vpop.f32.mrf.mxu0
    %v5528 = vadd.f32 %v5415, %v5527
    %5529 = vmatmul.bf16.gmra.mxu0 %v5484
    %v5530 = vpop.f32.mrf.mxu0
    %v5531 = vadd.f32 %v5418, %v5530
    %v5532 = vpop.f32.mrf.mxu0
    %v5533 = vadd.f32 %v5420, %v5532
    %5534 = vdwg.mxu0
    %v5535 = vand.u32 2147483647, %v5496
    %v5536 = vand.u32 2147483647, %v5498
    %v5537 = vand.u32 2147483647, %v5501
    %v5538 = vand.u32 2147483647, %v5503
    %v5539 = vand.u32 2147483647, %v5506
    %v5540 = vand.u32 2147483647, %v5508
    %v5541 = vand.u32 2147483647, %v5511
    %v5542 = vand.u32 2147483647, %v5513
    %v5543 = vand.u32 2147483647, %v5516
    %v5544 = vand.u32 2147483647, %v5518
    %v5545 = vand.u32 2147483647, %v5521
    %v5546 = vand.u32 2147483647, %v5523
    %v5547 = vand.u32 2147483647, %v5526
    %v5548 = vand.u32 2147483647, %v5528
    %v5549 = vand.u32 2147483647, %v5531
    %v5550 = vand.u32 2147483647, %v5533
    %5551 = vst.msk [vmem:[%s57] sm:$0xff] %vm340, %v5535
    %5552 = vst.msk [vmem:[%s57 + $0x8] sm:$0xff] %vm340, %v5536
    %5553 = vst.msk [vmem:[%s57 + $0x10] sm:$0xff] %vm340, %v5537
    %5554 = vst.msk [vmem:[%s57 + $0x18] sm:$0xff] %vm340, %v5538
    %5555 = vst.msk [vmem:[%s57 + $0x20] sm:$0xff] %vm340, %v5539
    %5556 = vst.msk [vmem:[%s57 + $0x28] sm:$0xff] %vm340, %v5540
    %5557 = vst.msk [vmem:[%s57 + $0x30] sm:$0xff] %vm340, %v5541
    %5558 = vst.msk [vmem:[%s57 + $0x38] sm:$0xff] %vm340, %v5542
    %5559 = vst.msk [vmem:[%s57 + $0x40] sm:$0xff] %vm340, %v5543
    %5560 = vst.msk [vmem:[%s57 + $0x48] sm:$0xff] %vm340, %v5544
    %5561 = vst.msk [vmem:[%s57 + $0x50] sm:$0xff] %vm340, %v5545
    %5562 = vst.msk [vmem:[%s57 + $0x58] sm:$0xff] %vm340, %v5546
    %5563 = vst.msk [vmem:[%s57 + $0x60] sm:$0xff] %vm340, %v5547
    %5564 = vst.msk [vmem:[%s57 + $0x68] sm:$0xff] %vm340, %v5548
    %5565 = vst.msk [vmem:[%s57 + $0x70] sm:$0xff] %vm340, %v5549
    %5566 = vst.msk [vmem:[%s57 + $0x78] sm:$0xff] %vm340, %v5550
    %5567 = vst.msk [vmem:[#allocation2] sm:$0xff] %vm340, 0.0
    %5568 = vst.msk [vmem:[#allocation2 + $0x8] sm:$0xff] %vm340, 0.0
    %5569 = vst.msk [vmem:[#allocation2 + $0x10] sm:$0xff] %vm340, 0.0
    %5570 = vst.msk [vmem:[#allocation2 + $0x18] sm:$0xff] %vm340, 0.0
    %5571 = vst.msk [vmem:[#allocation2 + $0x20] sm:$0xff] %vm340, 0.0
    %5572 = vst.msk [vmem:[#allocation2 + $0x28] sm:$0xff] %vm340, 0.0
    %5573 = vst.msk [vmem:[#allocation2 + $0x30] sm:$0xff] %vm340, 0.0
    %5574 = vst.msk [vmem:[#allocation2 + $0x38] sm:$0xff] %vm340, 0.0
    %5575 = vst.msk [vmem:[#allocation2 + $0x40] sm:$0xff] %vm340, 0.0
    %5576 = vst.msk [vmem:[#allocation2 + $0x48] sm:$0xff] %vm340, 0.0
    %5577 = vst.msk [vmem:[#allocation2 + $0x50] sm:$0xff] %vm340, 0.0
    %5578 = vst.msk [vmem:[#allocation2 + $0x58] sm:$0xff] %vm340, 0.0
    %5579 = vst.msk [vmem:[#allocation2 + $0x60] sm:$0xff] %vm340, 0.0
    %5580 = vst.msk [vmem:[#allocation2 + $0x68] sm:$0xff] %vm340, 0.0
    %5581 = vst.msk [vmem:[#allocation2 + $0x70] sm:$0xff] %vm340, 0.0
    %5582 = vst.msk [vmem:[#allocation2 + $0x78] sm:$0xff] %vm340, 0.0
    %5583 = vst.msk [vmem:[#allocation2 + $0x80] sm:$0xff] %vm340, 0.0
    %5584 = vst.msk [vmem:[#allocation2 + $0x88] sm:$0xff] %vm340, 0.0
    %5585 = vst.msk [vmem:[#allocation2 + $0x90] sm:$0xff] %vm340, 0.0
    %5586 = vst.msk [vmem:[#allocation2 + $0x98] sm:$0xff] %vm340, 0.0
    %5587 = vst.msk [vmem:[#allocation2 + $0x10] sm:$0xff] %vm340, %v507
    %5588 = vst.msk [vmem:[#allocation2 + $0x18] sm:$0xff] %vm340, %v508
    %5589 = vst.msk [vmem:[#allocation2 + $0x20] sm:$0xff] %vm340, %v509
    %5590 = vst.msk [vmem:[#allocation2 + $0x28] sm:$0xff] %vm340, %v510
    %5591 = vst.msk [vmem:[#allocation2 + $0x30] sm:$0xff] %vm340, %v511
    %5592 = vst.msk [vmem:[#allocation2 + $0x38] sm:$0xff] %vm340, %v512
    %5593 = vst.msk [vmem:[#allocation2 + $0x40] sm:$0xff] %vm340, %v513
    %5594 = vst.msk [vmem:[#allocation2 + $0x48] sm:$0xff] %vm340, %v514
    %5595 = vst.msk [vmem:[#allocation2 + $0x50] sm:$0xff] %vm340, %v515
    %5596 = vst.msk [vmem:[#allocation2 + $0x58] sm:$0xff] %vm340, %v516
    %5597 = vst.msk [vmem:[#allocation2 + $0x60] sm:$0xff] %vm340, %v517
    %5598 = vst.msk [vmem:[#allocation2 + $0x68] sm:$0xff] %vm340, %v518
    %5599 = vst.msk [vmem:[#allocation2 + $0x70] sm:$0xff] %vm340, %v519
    %5600 = vst.msk [vmem:[#allocation2 + $0x78] sm:$0xff] %vm340, %v520
    %5601 = vst.msk [vmem:[#allocation2 + $0x80] sm:$0xff] %vm340, %v521
    %5602 = vst.msk [vmem:[#allocation2 + $0x88] sm:$0xff] %vm340, %v522
    %s5603 = scalar_lea.vmem %s25, 512
    %v5604 = vld [vmem:[%s5603] sm:$0xff]
    %v5605 = vld [vmem:[%s5603 + $0x8] sm:$0xff]
    %v5606 = vld [vmem:[%s5603 + $0x10] sm:$0xff]
    %v5607 = vld [vmem:[%s5603 + $0x18] sm:$0xff]
    %v5608 = vld [vmem:[%s5603 + $0x20] sm:$0xff]
    %v5609 = vld [vmem:[%s5603 + $0x28] sm:$0xff]
    %v5610 = vld [vmem:[%s5603 + $0x30] sm:$0xff]
    %v5611 = vld [vmem:[%s5603 + $0x38] sm:$0xff]
    %v5612 = vld [vmem:[%s5603 + $0x40] sm:$0xff]
    %v5613 = vld [vmem:[%s5603 + $0x48] sm:$0xff]
    %v5614 = vld [vmem:[%s5603 + $0x50] sm:$0xff]
    %v5615 = vld [vmem:[%s5603 + $0x58] sm:$0xff]
    %v5616 = vld [vmem:[%s5603 + $0x60] sm:$0xff]
    %v5617 = vld [vmem:[%s5603 + $0x68] sm:$0xff]
    %v5618 = vld [vmem:[%s5603 + $0x70] sm:$0xff]
    %v5619 = vld [vmem:[%s5603 + $0x78] sm:$0xff]
    %v5620 = vmul.f32 %v5604, %v507
    %v5621 = vmul.f32 %v5605, %v508
    %v5622 = vmul.f32 %v5606, %v509
    %v5623 = vmul.f32 %v5607, %v510
    %v5624 = vmul.f32 %v5608, %v511
    %v5625 = vmul.f32 %v5609, %v512
    %v5626 = vmul.f32 %v5610, %v513
    %v5627 = vmul.f32 %v5611, %v514
    %v5628 = vmul.f32 %v5612, %v515
    %v5629 = vmul.f32 %v5613, %v516
    %v5630 = vmul.f32 %v5614, %v517
    %v5631 = vmul.f32 %v5615, %v518
    %v5632 = vmul.f32 %v5616, %v519
    %v5633 = vmul.f32 %v5617, %v520
    %v5634 = vmul.f32 %v5618, %v521
    %v5635 = vmul.f32 %v5619, %v522
    %v5636 = vld [vmem:[#allocation2 + $0x7] sm:$0xff]
    %v5637 = vld [vmem:[#allocation2 + $0xf] sm:$0xff]
    %v5638 = vld [vmem:[#allocation2 + $0x17] sm:$0xff]
    %v5639 = vld [vmem:[#allocation2 + $0x1f] sm:$0xff]
    %v5640 = vld [vmem:[#allocation2 + $0x27] sm:$0xff]
    %v5641 = vld [vmem:[#allocation2 + $0x2f] sm:$0xff]
    %v5642 = vld [vmem:[#allocation2 + $0x37] sm:$0xff]
    %v5643 = vld [vmem:[#allocation2 + $0x3f] sm:$0xff]
    %v5644 = vld [vmem:[#allocation2 + $0x47] sm:$0xff]
    %v5645 = vld [vmem:[#allocation2 + $0x4f] sm:$0xff]
    %v5646 = vld [vmem:[#allocation2 + $0x57] sm:$0xff]
    %v5647 = vld [vmem:[#allocation2 + $0x5f] sm:$0xff]
    %v5648 = vld [vmem:[#allocation2 + $0x67] sm:$0xff]
    %v5649 = vld [vmem:[#allocation2 + $0x6f] sm:$0xff]
    %v5650 = vld [vmem:[#allocation2 + $0x77] sm:$0xff]
    %v5651 = vld [vmem:[#allocation2 + $0x7f] sm:$0xff]
    %v5652 = vld [vmem:[%s25] sm:$0xff]
    %v5653 = vld [vmem:[%s25 + $0x8] sm:$0xff]
    %v5654 = vld [vmem:[%s25 + $0x10] sm:$0xff]
    %v5655 = vld [vmem:[%s25 + $0x18] sm:$0xff]
    %v5656 = vld [vmem:[%s25 + $0x20] sm:$0xff]
    %v5657 = vld [vmem:[%s25 + $0x28] sm:$0xff]
    %v5658 = vld [vmem:[%s25 + $0x30] sm:$0xff]
    %v5659 = vld [vmem:[%s25 + $0x38] sm:$0xff]
    %v5660 = vld [vmem:[%s25 + $0x40] sm:$0xff]
    %v5661 = vld [vmem:[%s25 + $0x48] sm:$0xff]
    %v5662 = vld [vmem:[%s25 + $0x50] sm:$0xff]
    %v5663 = vld [vmem:[%s25 + $0x58] sm:$0xff]
    %v5664 = vld [vmem:[%s25 + $0x60] sm:$0xff]
    %v5665 = vld [vmem:[%s25 + $0x68] sm:$0xff]
    %v5666 = vld [vmem:[%s25 + $0x70] sm:$0xff]
    %v5667 = vld [vmem:[%s25 + $0x78] sm:$0xff]
    %v5668 = vmul.f32 %v5652, %v5636
    %v5669 = vmul.f32 %v5653, %v5637
    %v5670 = vmul.f32 %v5654, %v5638
    %v5671 = vmul.f32 %v5655, %v5639
    %v5672 = vmul.f32 %v5656, %v5640
    %v5673 = vmul.f32 %v5657, %v5641
    %v5674 = vmul.f32 %v5658, %v5642
    %v5675 = vmul.f32 %v5659, %v5643
    %v5676 = vmul.f32 %v5660, %v5644
    %v5677 = vmul.f32 %v5661, %v5645
    %v5678 = vmul.f32 %v5662, %v5646
    %v5679 = vmul.f32 %v5663, %v5647
    %v5680 = vmul.f32 %v5664, %v5648
    %v5681 = vmul.f32 %v5665, %v5649
    %v5682 = vmul.f32 %v5666, %v5650
    %v5683 = vmul.f32 %v5667, %v5651
    %v5684 = vadd.f32 %v5620, %v5668
    %v5685 = vadd.f32 %v5621, %v5669
    %v5686 = vadd.f32 %v5622, %v5670
    %v5687 = vadd.f32 %v5623, %v5671
    %v5688 = vadd.f32 %v5624, %v5672
    %v5689 = vadd.f32 %v5625, %v5673
    %v5690 = vadd.f32 %v5626, %v5674
    %v5691 = vadd.f32 %v5627, %v5675
    %v5692 = vadd.f32 %v5628, %v5676
    %v5693 = vadd.f32 %v5629, %v5677
    %v5694 = vadd.f32 %v5630, %v5678
    %v5695 = vadd.f32 %v5631, %v5679
    %v5696 = vadd.f32 %v5632, %v5680
    %v5697 = vadd.f32 %v5633, %v5681
    %v5698 = vadd.f32 %v5634, %v5682
    %v5699 = vadd.f32 %v5635, %v5683
    %v5700 = vld [vmem:[#allocation2 + $0x8] sm:$0xff]
    %v5701 = vld [vmem:[#allocation2 + $0x10] sm:$0xff]
    %v5702 = vld [vmem:[#allocation2 + $0x18] sm:$0xff]
    %v5703 = vld [vmem:[#allocation2 + $0x20] sm:$0xff]
    %v5704 = vld [vmem:[#allocation2 + $0x28] sm:$0xff]
    %v5705 = vld [vmem:[#allocation2 + $0x30] sm:$0xff]
    %v5706 = vld [vmem:[#allocation2 + $0x38] sm:$0xff]
    %v5707 = vld [vmem:[#allocation2 + $0x40] sm:$0xff]
    %v5708 = vld [vmem:[#allocation2 + $0x48] sm:$0xff]
    %v5709 = vld [vmem:[#allocation2 + $0x50] sm:$0xff]
    %v5710 = vld [vmem:[#allocation2 + $0x58] sm:$0xff]
    %v5711 = vld [vmem:[#allocation2 + $0x60] sm:$0xff]
    %v5712 = vld [vmem:[#allocation2 + $0x68] sm:$0xff]
    %v5713 = vld [vmem:[#allocation2 + $0x70] sm:$0xff]
    %v5714 = vld [vmem:[#allocation2 + $0x78] sm:$0xff]
    %v5715 = vld [vmem:[#allocation2 + $0x80] sm:$0xff]
    %s5716 = scalar_lea.vmem %s25, 128
    %v5717 = vld [vmem:[%s5716] sm:$0xff]
    %v5718 = vld [vmem:[%s5716 + $0x8] sm:$0xff]
    %v5719 = vld [vmem:[%s5716 + $0x10] sm:$0xff]
    %v5720 = vld [vmem:[%s5716 + $0x18] sm:$0xff]
    %v5721 = vld [vmem:[%s5716 + $0x20] sm:$0xff]
    %v5722 = vld [vmem:[%s5716 + $0x28] sm:$0xff]
    %v5723 = vld [vmem:[%s5716 + $0x30] sm:$0xff]
    %v5724 = vld [vmem:[%s5716 + $0x38] sm:$0xff]
    %v5725 = vld [vmem:[%s5716 + $0x40] sm:$0xff]
    %v5726 = vld [vmem:[%s5716 + $0x48] sm:$0xff]
    %v5727 = vld [vmem:[%s5716 + $0x50] sm:$0xff]
    %v5728 = vld [vmem:[%s5716 + $0x58] sm:$0xff]
    %v5729 = vld [vmem:[%s5716 + $0x60] sm:$0xff]
    %v5730 = vld [vmem:[%s5716 + $0x68] sm:$0xff]
    %v5731 = vld [vmem:[%s5716 + $0x70] sm:$0xff]
    %v5732 = vld [vmem:[%s5716 + $0x78] sm:$0xff]
    %v5733 = vmul.f32 %v5717, %v5700
    %v5734 = vmul.f32 %v5718, %v5701
    %v5735 = vmul.f32 %v5719, %v5702
    %v5736 = vmul.f32 %v5720, %v5703
    %v5737 = vmul.f32 %v5721, %v5704
    %v5738 = vmul.f32 %v5722, %v5705
    %v5739 = vmul.f32 %v5723, %v5706
    %v5740 = vmul.f32 %v5724, %v5707
    %v5741 = vmul.f32 %v5725, %v5708
    %v5742 = vmul.f32 %v5726, %v5709
    %v5743 = vmul.f32 %v5727, %v5710
    %v5744 = vmul.f32 %v5728, %v5711
    %v5745 = vmul.f32 %v5729, %v5712
    %v5746 = vmul.f32 %v5730, %v5713
    %v5747 = vmul.f32 %v5731, %v5714
    %v5748 = vmul.f32 %v5732, %v5715
    %v5749 = vadd.f32 %v5684, %v5733
    %v5750 = vadd.f32 %v5685, %v5734
    %v5751 = vadd.f32 %v5686, %v5735
    %v5752 = vadd.f32 %v5687, %v5736
    %v5753 = vadd.f32 %v5688, %v5737
    %v5754 = vadd.f32 %v5689, %v5738
    %v5755 = vadd.f32 %v5690, %v5739
    %v5756 = vadd.f32 %v5691, %v5740
    %v5757 = vadd.f32 %v5692, %v5741
    %v5758 = vadd.f32 %v5693, %v5742
    %v5759 = vadd.f32 %v5694, %v5743
    %v5760 = vadd.f32 %v5695, %v5744
    %v5761 = vadd.f32 %v5696, %v5745
    %v5762 = vadd.f32 %v5697, %v5746
    %v5763 = vadd.f32 %v5698, %v5747
    %v5764 = vadd.f32 %v5699, %v5748
    %v5765 = vld [vmem:[#allocation2 + $0x9] sm:$0xff]
    %v5766 = vld [vmem:[#allocation2 + $0x11] sm:$0xff]
    %v5767 = vld [vmem:[#allocation2 + $0x19] sm:$0xff]
    %v5768 = vld [vmem:[#allocation2 + $0x21] sm:$0xff]
    %v5769 = vld [vmem:[#allocation2 + $0x29] sm:$0xff]
    %v5770 = vld [vmem:[#allocation2 + $0x31] sm:$0xff]
    %v5771 = vld [vmem:[#allocation2 + $0x39] sm:$0xff]
    %v5772 = vld [vmem:[#allocation2 + $0x41] sm:$0xff]
    %v5773 = vld [vmem:[#allocation2 + $0x49] sm:$0xff]
    %v5774 = vld [vmem:[#allocation2 + $0x51] sm:$0xff]
    %v5775 = vld [vmem:[#allocation2 + $0x59] sm:$0xff]
    %v5776 = vld [vmem:[#allocation2 + $0x61] sm:$0xff]
    %v5777 = vld [vmem:[#allocation2 + $0x69] sm:$0xff]
    %v5778 = vld [vmem:[#allocation2 + $0x71] sm:$0xff]
    %v5779 = vld [vmem:[#allocation2 + $0x79] sm:$0xff]
    %v5780 = vld [vmem:[#allocation2 + $0x81] sm:$0xff]
    %s5781 = scalar_lea.vmem %s25, 256
    %v5782 = vld [vmem:[%s5781] sm:$0xff]
    %v5783 = vld [vmem:[%s5781 + $0x8] sm:$0xff]
    %v5784 = vld [vmem:[%s5781 + $0x10] sm:$0xff]
    %v5785 = vld [vmem:[%s5781 + $0x18] sm:$0xff]
    %v5786 = vld [vmem:[%s5781 + $0x20] sm:$0xff]
    %v5787 = vld [vmem:[%s5781 + $0x28] sm:$0xff]
    %v5788 = vld [vmem:[%s5781 + $0x30] sm:$0xff]
    %v5789 = vld [vmem:[%s5781 + $0x38] sm:$0xff]
    %v5790 = vld [vmem:[%s5781 + $0x40] sm:$0xff]
    %v5791 = vld [vmem:[%s5781 + $0x48] sm:$0xff]
    %v5792 = vld [vmem:[%s5781 + $0x50] sm:$0xff]
    %v5793 = vld [vmem:[%s5781 + $0x58] sm:$0xff]
    %v5794 = vld [vmem:[%s5781 + $0x60] sm:$0xff]
    %v5795 = vld [vmem:[%s5781 + $0x68] sm:$0xff]
    %v5796 = vld [vmem:[%s5781 + $0x70] sm:$0xff]
    %v5797 = vld [vmem:[%s5781 + $0x78] sm:$0xff]
    %v5798 = vmul.f32 %v5782, %v5765
    %v5799 = vmul.f32 %v5783, %v5766
    %v5800 = vmul.f32 %v5784, %v5767
    %v5801 = vmul.f32 %v5785, %v5768
    %v5802 = vmul.f32 %v5786, %v5769
    %v5803 = vmul.f32 %v5787, %v5770
    %v5804 = vmul.f32 %v5788, %v5771
    %v5805 = vmul.f32 %v5789, %v5772
    %v5806 = vmul.f32 %v5790, %v5773
    %v5807 = vmul.f32 %v5791, %v5774
    %v5808 = vmul.f32 %v5792, %v5775
    %v5809 = vmul.f32 %v5793, %v5776
    %v5810 = vmul.f32 %v5794, %v5777
    %v5811 = vmul.f32 %v5795, %v5778
    %v5812 = vmul.f32 %v5796, %v5779
    %v5813 = vmul.f32 %v5797, %v5780
    %v5814 = vadd.f32 %v5749, %v5798
    %v5815 = vadd.f32 %v5750, %v5799
    %v5816 = vadd.f32 %v5751, %v5800
    %v5817 = vadd.f32 %v5752, %v5801
    %v5818 = vadd.f32 %v5753, %v5802
    %v5819 = vadd.f32 %v5754, %v5803
    %v5820 = vadd.f32 %v5755, %v5804
    %v5821 = vadd.f32 %v5756, %v5805
    %v5822 = vadd.f32 %v5757, %v5806
    %v5823 = vadd.f32 %v5758, %v5807
    %v5824 = vadd.f32 %v5759, %v5808
    %v5825 = vadd.f32 %v5760, %v5809
    %v5826 = vadd.f32 %v5761, %v5810
    %v5827 = vadd.f32 %v5762, %v5811
    %v5828 = vadd.f32 %v5763, %v5812
    %v5829 = vadd.f32 %v5764, %v5813
    %v5830 = vld [vmem:[#allocation2 + $0x87] sm:$0xff]
    %s5831 = scalar_lea.vmem %s25, 384
    %v5832 = vld [vmem:[%s5831] sm:$0xff]
    %v5833 = vld [vmem:[%s5831 + $0x8] sm:$0xff]
    %v5834 = vld [vmem:[%s5831 + $0x10] sm:$0xff]
    %v5835 = vld [vmem:[%s5831 + $0x18] sm:$0xff]
    %v5836 = vld [vmem:[%s5831 + $0x20] sm:$0xff]
    %v5837 = vld [vmem:[%s5831 + $0x28] sm:$0xff]
    %v5838 = vld [vmem:[%s5831 + $0x30] sm:$0xff]
    %v5839 = vld [vmem:[%s5831 + $0x38] sm:$0xff]
    %v5840 = vld [vmem:[%s5831 + $0x40] sm:$0xff]
    %v5841 = vld [vmem:[%s5831 + $0x48] sm:$0xff]
    %v5842 = vld [vmem:[%s5831 + $0x50] sm:$0xff]
    %v5843 = vld [vmem:[%s5831 + $0x58] sm:$0xff]
    %v5844 = vld [vmem:[%s5831 + $0x60] sm:$0xff]
    %v5845 = vld [vmem:[%s5831 + $0x68] sm:$0xff]
    %v5846 = vld [vmem:[%s5831 + $0x70] sm:$0xff]
    %v5847 = vld [vmem:[%s5831 + $0x78] sm:$0xff]
    %v5848 = vmul.f32 %v5832, %v5637
    %v5849 = vmul.f32 %v5833, %v5638
    %v5850 = vmul.f32 %v5834, %v5639
    %v5851 = vmul.f32 %v5835, %v5640
    %v5852 = vmul.f32 %v5836, %v5641
    %v5853 = vmul.f32 %v5837, %v5642
    %v5854 = vmul.f32 %v5838, %v5643
    %v5855 = vmul.f32 %v5839, %v5644
    %v5856 = vmul.f32 %v5840, %v5645
    %v5857 = vmul.f32 %v5841, %v5646
    %v5858 = vmul.f32 %v5842, %v5647
    %v5859 = vmul.f32 %v5843, %v5648
    %v5860 = vmul.f32 %v5844, %v5649
    %v5861 = vmul.f32 %v5845, %v5650
    %v5862 = vmul.f32 %v5846, %v5651
    %v5863 = vmul.f32 %v5847, %v5830
    %v5864 = vadd.f32 %v5814, %v5848
    %v5865 = vadd.f32 %v5815, %v5849
    %v5866 = vadd.f32 %v5816, %v5850
    %v5867 = vadd.f32 %v5817, %v5851
    %v5868 = vadd.f32 %v5818, %v5852
    %v5869 = vadd.f32 %v5819, %v5853
    %v5870 = vadd.f32 %v5820, %v5854
    %v5871 = vadd.f32 %v5821, %v5855
    %v5872 = vadd.f32 %v5822, %v5856
    %v5873 = vadd.f32 %v5823, %v5857
    %v5874 = vadd.f32 %v5824, %v5858
    %v5875 = vadd.f32 %v5825, %v5859
    %v5876 = vadd.f32 %v5826, %v5860
    %v5877 = vadd.f32 %v5827, %v5861
    %v5878 = vadd.f32 %v5828, %v5862
    %v5879 = vadd.f32 %v5829, %v5863
    %v5880 = vld [vmem:[#allocation2 + $0x89] sm:$0xff]
    %s5881 = scalar_lea.vmem %s25, 640
    %v5882 = vld [vmem:[%s5881] sm:$0xff]
    %v5883 = vld [vmem:[%s5881 + $0x8] sm:$0xff]
    %v5884 = vld [vmem:[%s5881 + $0x10] sm:$0xff]
    %v5885 = vld [vmem:[%s5881 + $0x18] sm:$0xff]
    %v5886 = vld [vmem:[%s5881 + $0x20] sm:$0xff]
    %v5887 = vld [vmem:[%s5881 + $0x28] sm:$0xff]
    %v5888 = vld [vmem:[%s5881 + $0x30] sm:$0xff]
    %v5889 = vld [vmem:[%s5881 + $0x38] sm:$0xff]
    %v5890 = vld [vmem:[%s5881 + $0x40] sm:$0xff]
    %v5891 = vld [vmem:[%s5881 + $0x48] sm:$0xff]
    %v5892 = vld [vmem:[%s5881 + $0x50] sm:$0xff]
    %v5893 = vld [vmem:[%s5881 + $0x58] sm:$0xff]
    %v5894 = vld [vmem:[%s5881 + $0x60] sm:$0xff]
    %v5895 = vld [vmem:[%s5881 + $0x68] sm:$0xff]
    %v5896 = vld [vmem:[%s5881 + $0x70] sm:$0xff]
    %v5897 = vld [vmem:[%s5881 + $0x78] sm:$0xff]
    %v5898 = vmul.f32 %v5882, %v5766
    %v5899 = vmul.f32 %v5883, %v5767
    %v5900 = vmul.f32 %v5884, %v5768
    %v5901 = vmul.f32 %v5885, %v5769
    %v5902 = vmul.f32 %v5886, %v5770
    %v5903 = vmul.f32 %v5887, %v5771
    %v5904 = vmul.f32 %v5888, %v5772
    %v5905 = vmul.f32 %v5889, %v5773
    %v5906 = vmul.f32 %v5890, %v5774
    %v5907 = vmul.f32 %v5891, %v5775
    %v5908 = vmul.f32 %v5892, %v5776
    %v5909 = vmul.f32 %v5893, %v5777
    %v5910 = vmul.f32 %v5894, %v5778
    %v5911 = vmul.f32 %v5895, %v5779
    %v5912 = vmul.f32 %v5896, %v5780
    %v5913 = vmul.f32 %v5897, %v5880
    %v5914 = vadd.f32 %v5864, %v5898
    %v5915 = vadd.f32 %v5865, %v5899
    %v5916 = vadd.f32 %v5866, %v5900
    %v5917 = vadd.f32 %v5867, %v5901
    %v5918 = vadd.f32 %v5868, %v5902
    %v5919 = vadd.f32 %v5869, %v5903
    %v5920 = vadd.f32 %v5870, %v5904
    %v5921 = vadd.f32 %v5871, %v5905
    %v5922 = vadd.f32 %v5872, %v5906
    %v5923 = vadd.f32 %v5873, %v5907
    %v5924 = vadd.f32 %v5874, %v5908
    %v5925 = vadd.f32 %v5875, %v5909
    %v5926 = vadd.f32 %v5876, %v5910
    %v5927 = vadd.f32 %v5877, %v5911
    %v5928 = vadd.f32 %v5878, %v5912
    %v5929 = vadd.f32 %v5879, %v5913
    %v5930 = vld [vmem:[#allocation2 + $0x8f] sm:$0xff]
    %s5931 = scalar_lea.vmem %s25, 768
    %v5932 = vld [vmem:[%s5931] sm:$0xff]
    %v5933 = vld [vmem:[%s5931 + $0x8] sm:$0xff]
    %v5934 = vld [vmem:[%s5931 + $0x10] sm:$0xff]
    %v5935 = vld [vmem:[%s5931 + $0x18] sm:$0xff]
    %v5936 = vld [vmem:[%s5931 + $0x20] sm:$0xff]
    %v5937 = vld [vmem:[%s5931 + $0x28] sm:$0xff]
    %v5938 = vld [vmem:[%s5931 + $0x30] sm:$0xff]
    %v5939 = vld [vmem:[%s5931 + $0x38] sm:$0xff]
    %v5940 = vld [vmem:[%s5931 + $0x40] sm:$0xff]
    %v5941 = vld [vmem:[%s5931 + $0x48] sm:$0xff]
    %v5942 = vld [vmem:[%s5931 + $0x50] sm:$0xff]
    %v5943 = vld [vmem:[%s5931 + $0x58] sm:$0xff]
    %v5944 = vld [vmem:[%s5931 + $0x60] sm:$0xff]
    %v5945 = vld [vmem:[%s5931 + $0x68] sm:$0xff]
    %v5946 = vld [vmem:[%s5931 + $0x70] sm:$0xff]
    %v5947 = vld [vmem:[%s5931 + $0x78] sm:$0xff]
    %v5948 = vmul.f32 %v5932, %v5638
    %v5949 = vmul.f32 %v5933, %v5639
    %v5950 = vmul.f32 %v5934, %v5640
    %v5951 = vmul.f32 %v5935, %v5641
    %v5952 = vmul.f32 %v5936, %v5642
    %v5953 = vmul.f32 %v5937, %v5643
    %v5954 = vmul.f32 %v5938, %v5644
    %v5955 = vmul.f32 %v5939, %v5645
    %v5956 = vmul.f32 %v5940, %v5646
    %v5957 = vmul.f32 %v5941, %v5647
    %v5958 = vmul.f32 %v5942, %v5648
    %v5959 = vmul.f32 %v5943, %v5649
    %v5960 = vmul.f32 %v5944, %v5650
    %v5961 = vmul.f32 %v5945, %v5651
    %v5962 = vmul.f32 %v5946, %v5830
    %v5963 = vmul.f32 %v5947, %v5930
    %v5964 = vadd.f32 %v5914, %v5948
    %v5965 = vadd.f32 %v5915, %v5949
    %v5966 = vadd.f32 %v5916, %v5950
    %v5967 = vadd.f32 %v5917, %v5951
    %v5968 = vadd.f32 %v5918, %v5952
    %v5969 = vadd.f32 %v5919, %v5953
    %v5970 = vadd.f32 %v5920, %v5954
    %v5971 = vadd.f32 %v5921, %v5955
    %v5972 = vadd.f32 %v5922, %v5956
    %v5973 = vadd.f32 %v5923, %v5957
    %v5974 = vadd.f32 %v5924, %v5958
    %v5975 = vadd.f32 %v5925, %v5959
    %v5976 = vadd.f32 %v5926, %v5960
    %v5977 = vadd.f32 %v5927, %v5961
    %v5978 = vadd.f32 %v5928, %v5962
    %v5979 = vadd.f32 %v5929, %v5963
    %v5980 = vld [vmem:[#allocation2 + $0x88] sm:$0xff]
    %v5981 = vld [vmem:[#allocation2 + $0x90] sm:$0xff]
    %s5982 = scalar_lea.vmem %s25, 896
    %v5983 = vld [vmem:[%s5982] sm:$0xff]
    %v5984 = vld [vmem:[%s5982 + $0x8] sm:$0xff]
    %v5985 = vld [vmem:[%s5982 + $0x10] sm:$0xff]
    %v5986 = vld [vmem:[%s5982 + $0x18] sm:$0xff]
    %v5987 = vld [vmem:[%s5982 + $0x20] sm:$0xff]
    %v5988 = vld [vmem:[%s5982 + $0x28] sm:$0xff]
    %v5989 = vld [vmem:[%s5982 + $0x30] sm:$0xff]
    %v5990 = vld [vmem:[%s5982 + $0x38] sm:$0xff]
    %v5991 = vld [vmem:[%s5982 + $0x40] sm:$0xff]
    %v5992 = vld [vmem:[%s5982 + $0x48] sm:$0xff]
    %v5993 = vld [vmem:[%s5982 + $0x50] sm:$0xff]
    %v5994 = vld [vmem:[%s5982 + $0x58] sm:$0xff]
    %v5995 = vld [vmem:[%s5982 + $0x60] sm:$0xff]
    %v5996 = vld [vmem:[%s5982 + $0x68] sm:$0xff]
    %v5997 = vld [vmem:[%s5982 + $0x70] sm:$0xff]
    %v5998 = vld [vmem:[%s5982 + $0x78] sm:$0xff]
    %v5999 = vmul.f32 %v5983, %v5702
    %v6000 = vmul.f32 %v5984, %v5703
    %v6001 = vmul.f32 %v5985, %v5704
    %v6002 = vmul.f32 %v5986, %v5705
    %v6003 = vmul.f32 %v5987, %v5706
    %v6004 = vmul.f32 %v5988, %v5707
    %v6005 = vmul.f32 %v5989, %v5708
    %v6006 = vmul.f32 %v5990, %v5709
    %v6007 = vmul.f32 %v5991, %v5710
    %v6008 = vmul.f32 %v5992, %v5711
    %v6009 = vmul.f32 %v5993, %v5712
    %v6010 = vmul.f32 %v5994, %v5713
    %v6011 = vmul.f32 %v5995, %v5714
    %v6012 = vmul.f32 %v5996, %v5715
    %v6013 = vmul.f32 %v5997, %v5980
    %v6014 = vmul.f32 %v5998, %v5981
    %v6015 = vadd.f32 %v5964, %v5999
    %v6016 = vadd.f32 %v5965, %v6000
    %v6017 = vadd.f32 %v5966, %v6001
    %v6018 = vadd.f32 %v5967, %v6002
    %v6019 = vadd.f32 %v5968, %v6003
    %v6020 = vadd.f32 %v5969, %v6004
    %v6021 = vadd.f32 %v5970, %v6005
    %v6022 = vadd.f32 %v5971, %v6006
    %v6023 = vadd.f32 %v5972, %v6007
    %v6024 = vadd.f32 %v5973, %v6008
    %v6025 = vadd.f32 %v5974, %v6009
    %v6026 = vadd.f32 %v5975, %v6010
    %v6027 = vadd.f32 %v5976, %v6011
    %v6028 = vadd.f32 %v5977, %v6012
    %v6029 = vadd.f32 %v5978, %v6013
    %v6030 = vadd.f32 %v5979, %v6014
    %v6031 = vld [vmem:[#allocation2 + $0x91] sm:$0xff]
    %s6032 = scalar_lea.vmem %s25, 1024
    %v6033 = vld [vmem:[%s6032] sm:$0xff]
    %v6034 = vld [vmem:[%s6032 + $0x8] sm:$0xff]
    %v6035 = vld [vmem:[%s6032 + $0x10] sm:$0xff]
    %v6036 = vld [vmem:[%s6032 + $0x18] sm:$0xff]
    %v6037 = vld [vmem:[%s6032 + $0x20] sm:$0xff]
    %v6038 = vld [vmem:[%s6032 + $0x28] sm:$0xff]
    %v6039 = vld [vmem:[%s6032 + $0x30] sm:$0xff]
    %v6040 = vld [vmem:[%s6032 + $0x38] sm:$0xff]
    %v6041 = vld [vmem:[%s6032 + $0x40] sm:$0xff]
    %v6042 = vld [vmem:[%s6032 + $0x48] sm:$0xff]
    %v6043 = vld [vmem:[%s6032 + $0x50] sm:$0xff]
    %v6044 = vld [vmem:[%s6032 + $0x58] sm:$0xff]
    %v6045 = vld [vmem:[%s6032 + $0x60] sm:$0xff]
    %v6046 = vld [vmem:[%s6032 + $0x68] sm:$0xff]
    %v6047 = vld [vmem:[%s6032 + $0x70] sm:$0xff]
    %v6048 = vld [vmem:[%s6032 + $0x78] sm:$0xff]
    %v6049 = vmul.f32 %v6033, %v5767
    %v6050 = vmul.f32 %v6034, %v5768
    %v6051 = vmul.f32 %v6035, %v5769
    %v6052 = vmul.f32 %v6036, %v5770
    %v6053 = vmul.f32 %v6037, %v5771
    %v6054 = vmul.f32 %v6038, %v5772
    %v6055 = vmul.f32 %v6039, %v5773
    %v6056 = vmul.f32 %v6040, %v5774
    %v6057 = vmul.f32 %v6041, %v5775
    %v6058 = vmul.f32 %v6042, %v5776
    %v6059 = vmul.f32 %v6043, %v5777
    %v6060 = vmul.f32 %v6044, %v5778
    %v6061 = vmul.f32 %v6045, %v5779
    %v6062 = vmul.f32 %v6046, %v5780
    %v6063 = vmul.f32 %v6047, %v5880
    %v6064 = vmul.f32 %v6048, %v6031
    %v6065 = vadd.f32 %v6015, %v6049
    %v6066 = vadd.f32 %v6016, %v6050
    %v6067 = vadd.f32 %v6017, %v6051
    %v6068 = vadd.f32 %v6018, %v6052
    %v6069 = vadd.f32 %v6019, %v6053
    %v6070 = vadd.f32 %v6020, %v6054
    %v6071 = vadd.f32 %v6021, %v6055
    %v6072 = vadd.f32 %v6022, %v6056
    %v6073 = vadd.f32 %v6023, %v6057
    %v6074 = vadd.f32 %v6024, %v6058
    %v6075 = vadd.f32 %v6025, %v6059
    %v6076 = vadd.f32 %v6026, %v6060
    %v6077 = vadd.f32 %v6027, %v6061
    %v6078 = vadd.f32 %v6028, %v6062
    %v6079 = vadd.f32 %v6029, %v6063
    %v6080 = vadd.f32 %v6030, %v6064
    %v6081 = vld [vmem:[%s27] sm:$0x1]
    %v6083 = vperm.slane %v6081, 0
    %v6085 = vadd.f32 %v6065, %v6083
    %v6086 = vadd.f32 %v6066, %v6083
    %v6087 = vadd.f32 %v6067, %v6083
    %v6088 = vadd.f32 %v6068, %v6083
    %v6089 = vadd.f32 %v6069, %v6083
    %v6090 = vadd.f32 %v6070, %v6083
    %v6091 = vadd.f32 %v6071, %v6083
    %v6092 = vadd.f32 %v6072, %v6083
    %v6093 = vadd.f32 %v6073, %v6083
    %v6094 = vadd.f32 %v6074, %v6083
    %v6095 = vadd.f32 %v6075, %v6083
    %v6096 = vadd.f32 %v6076, %v6083
    %v6097 = vadd.f32 %v6077, %v6083
    %v6098 = vadd.f32 %v6078, %v6083
    %v6099 = vadd.f32 %v6079, %v6083
    %v6100 = vadd.f32 %v6080, %v6083
    %6101 = vst.msk [vmem:[%s59] sm:$0xff] %vm340, %v6085
    %6102 = vst.msk [vmem:[%s59 + $0x8] sm:$0xff] %vm340, %v6086
    %6103 = vst.msk [vmem:[%s59 + $0x10] sm:$0xff] %vm340, %v6087
    %6104 = vst.msk [vmem:[%s59 + $0x18] sm:$0xff] %vm340, %v6088
    %6105 = vst.msk [vmem:[%s59 + $0x20] sm:$0xff] %vm340, %v6089
    %6106 = vst.msk [vmem:[%s59 + $0x28] sm:$0xff] %vm340, %v6090
    %6107 = vst.msk [vmem:[%s59 + $0x30] sm:$0xff] %vm340, %v6091
    %6108 = vst.msk [vmem:[%s59 + $0x38] sm:$0xff] %vm340, %v6092
    %6109 = vst.msk [vmem:[%s59 + $0x40] sm:$0xff] %vm340, %v6093
    %6110 = vst.msk [vmem:[%s59 + $0x48] sm:$0xff] %vm340, %v6094
    %6111 = vst.msk [vmem:[%s59 + $0x50] sm:$0xff] %vm340, %v6095
    %6112 = vst.msk [vmem:[%s59 + $0x58] sm:$0xff] %vm340, %v6096
    %6113 = vst.msk [vmem:[%s59 + $0x60] sm:$0xff] %vm340, %v6097
    %6114 = vst.msk [vmem:[%s59 + $0x68] sm:$0xff] %vm340, %v6098
    %6115 = vst.msk [vmem:[%s59 + $0x70] sm:$0xff] %vm340, %v6099
    %6116 = vst.msk [vmem:[%s59 + $0x78] sm:$0xff] %vm340, %v6100
    %v6117 = vld [vmem:[%s29] sm:$0x1]
    %v6119 = vperm.slane %v6117, 0
    %v6121 = vmul.f32 %v507, %v6119
    %v6122 = vmul.f32 %v508, %v6119
    %v6123 = vmul.f32 %v509, %v6119
    %v6124 = vmul.f32 %v510, %v6119
    %v6125 = vmul.f32 %v511, %v6119
    %v6126 = vmul.f32 %v512, %v6119
    %v6127 = vmul.f32 %v513, %v6119
    %v6128 = vmul.f32 %v514, %v6119
    %v6129 = vmul.f32 %v515, %v6119
    %v6130 = vmul.f32 %v516, %v6119
    %v6131 = vmul.f32 %v517, %v6119
    %v6132 = vmul.f32 %v518, %v6119
    %v6133 = vmul.f32 %v519, %v6119
    %v6134 = vmul.f32 %v520, %v6119
    %v6135 = vmul.f32 %v521, %v6119
    %v6136 = vmul.f32 %v522, %v6119
    %v6137 = vsel %vm340, %v6121, 0.0
    %6138 = vadd.xlane.f32.xlu0 %v6137
    %v6139 = vpop.xlane.xlu0 %6138
    %v6140 = vsel %vm340, %v6122, 0.0
    %6141 = vadd.xlane.f32.xlu0 %v6140
    %v6142 = vpop.xlane.xlu0 %6141
    %v6143 = vsel %vm340, %v6123, 0.0
    %6144 = vadd.xlane.f32.xlu0 %v6143
    %v6145 = vpop.xlane.xlu0 %6144
    %v6146 = vsel %vm340, %v6124, 0.0
    %6147 = vadd.xlane.f32.xlu0 %v6146
    %v6148 = vpop.xlane.xlu0 %6147
    %v6149 = vsel %vm340, %v6125, 0.0
    %6150 = vadd.xlane.f32.xlu0 %v6149
    %v6151 = vpop.xlane.xlu0 %6150
    %v6152 = vsel %vm340, %v6126, 0.0
    %6153 = vadd.xlane.f32.xlu0 %v6152
    %v6154 = vpop.xlane.xlu0 %6153
    %v6155 = vsel %vm340, %v6127, 0.0
    %6156 = vadd.xlane.f32.xlu0 %v6155
    %v6157 = vpop.xlane.xlu0 %6156
    %v6158 = vsel %vm340, %v6128, 0.0
    %6159 = vadd.xlane.f32.xlu0 %v6158
    %v6160 = vpop.xlane.xlu0 %6159
    %v6161 = vsel %vm340, %v6129, 0.0
    %6162 = vadd.xlane.f32.xlu0 %v6161
    %v6163 = vpop.xlane.xlu0 %6162
    %v6164 = vsel %vm340, %v6130, 0.0
    %6165 = vadd.xlane.f32.xlu0 %v6164
    %v6166 = vpop.xlane.xlu0 %6165
    %v6167 = vsel %vm340, %v6131, 0.0
    %6168 = vadd.xlane.f32.xlu0 %v6167
    %v6169 = vpop.xlane.xlu0 %6168
    %v6170 = vsel %vm340, %v6132, 0.0
    %6171 = vadd.xlane.f32.xlu0 %v6170
    %v6172 = vpop.xlane.xlu0 %6171
    %v6173 = vsel %vm340, %v6133, 0.0
    %6174 = vadd.xlane.f32.xlu0 %v6173
    %v6175 = vpop.xlane.xlu0 %6174
    %v6176 = vsel %vm340, %v6134, 0.0
    %6177 = vadd.xlane.f32.xlu0 %v6176
    %v6178 = vpop.xlane.xlu0 %6177
    %v6179 = vsel %vm340, %v6135, 0.0
    %6180 = vadd.xlane.f32.xlu0 %v6179
    %v6181 = vpop.xlane.xlu0 %6180
    %v6182 = vsel %vm340, %v6136, 0.0
    %6183 = vadd.xlane.f32.xlu0 %v6182
    %v6184 = vpop.xlane.xlu0 %6183
    %v6185 = vld [vmem:[#allocation3] sm:$0x1]
    %v6187 = vperm.slane %v6185, 0
    %6188 = vset.pattern.permute.xlu0 0
    %6189 = vperm.xlu0 %6188, %v6187
    %v6190 = vpop.permute.xlu0 %6189
    %v6192 = vadd.f32 %v6139, %v6190
    %v6193 = vadd.f32 %v6142, %v6190
    %v6194 = vadd.f32 %v6145, %v6190
    %v6195 = vadd.f32 %v6148, %v6190
    %v6196 = vadd.f32 %v6151, %v6190
    %v6197 = vadd.f32 %v6154, %v6190
    %v6198 = vadd.f32 %v6157, %v6190
    %v6199 = vadd.f32 %v6160, %v6190
    %v6200 = vadd.f32 %v6163, %v6190
    %v6201 = vadd.f32 %v6166, %v6190
    %v6202 = vadd.f32 %v6169, %v6190
    %v6203 = vadd.f32 %v6172, %v6190
    %v6204 = vadd.f32 %v6175, %v6190
    %v6205 = vadd.f32 %v6178, %v6190
    %v6206 = vadd.f32 %v6181, %v6190
    %v6207 = vadd.f32 %v6184, %v6190
    %v6224 = vlaneseq
    %v6225 = vand.u32 %v6224, 127
    %v6226 = vperm.slane %v6192, %v6225
    %v6227 = vadd.s32 %v6225, 4294967288
    %v6228 = vperm.slane %v6193, %v6227
    %vm6229 = vcmask 130112
    %v6230 = vsel %vm6229, %v6228, %v6226
    %v6231 = vadd.s32 %v6225, 4294967280
    %v6232 = vperm.slane %v6194, %v6231
    %vm6233 = vcmask 195712
    %v6234 = vsel %vm6233, %v6232, %v6230
    %v6235 = vadd.s32 %v6225, 4294967272
    %v6236 = vperm.slane %v6195, %v6235
    %vm6237 = vcmask 261312
    %v6238 = vsel %vm6237, %v6236, %v6234
    %v6239 = vadd.s32 %v6225, 4294967264
    %v6240 = vperm.slane %v6196, %v6239
    %vm6241 = vcmask 326912
    %v6242 = vsel %vm6241, %v6240, %v6238
    %v6243 = vadd.s32 %v6225, 4294967256
    %v6244 = vperm.slane %v6197, %v6243
    %vm6245 = vcmask 392512
    %v6246 = vsel %vm6245, %v6244, %v6242
    %v6247 = vadd.s32 %v6225, 4294967248
    %v6248 = vperm.slane %v6198, %v6247
    %vm6249 = vcmask 458112
    %v6250 = vsel %vm6249, %v6248, %v6246
    %v6251 = vadd.s32 %v6225, 4294967240
    %v6252 = vperm.slane %v6199, %v6251
    %vm6253 = vcmask 523712
    %v6254 = vsel %vm6253, %v6252, %v6250
    %v6255 = vperm.slane %v6200, %v6225
    %v6256 = vperm.slane %v6201, %v6227
    %v6257 = vsel %vm6229, %v6256, %v6255
    %v6258 = vperm.slane %v6202, %v6231
    %v6259 = vsel %vm6233, %v6258, %v6257
    %v6260 = vperm.slane %v6203, %v6235
    %v6261 = vsel %vm6237, %v6260, %v6259
    %v6262 = vperm.slane %v6204, %v6239
    %v6263 = vsel %vm6241, %v6262, %v6261
    %v6264 = vperm.slane %v6205, %v6243
    %v6265 = vsel %vm6245, %v6264, %v6263
    %v6266 = vperm.slane %v6206, %v6247
    %v6267 = vsel %vm6249, %v6266, %v6265
    %v6268 = vperm.slane %v6207, %v6251
    %v6269 = vsel %vm6253, %v6268, %v6267
    %vm6270 = vcmask 1041409
    %v6271 = vsel %vm6270, %v6269, %v6254
    %vm6273 = vcmask 517120
    %v6274 = vsel %vm6273, %v6271, -inf
    %6275 = vmax.xlane.f32.xlu0 %v6274
    %v6276 = vpop.xlane.xlu0 %6275
    %v6278 = vperm.slane %v6276, 0
    %v6279 = vperm.slane %v6276, 1
    %v6282 = vsub.f32 %v6192, %v6278
    %v6283 = vsub.f32 %v6193, %v6278
    %v6284 = vsub.f32 %v6194, %v6278
    %v6285 = vsub.f32 %v6195, %v6278
    %v6286 = vsub.f32 %v6196, %v6278
    %v6287 = vsub.f32 %v6197, %v6278
    %v6288 = vsub.f32 %v6198, %v6278
    %v6289 = vsub.f32 %v6199, %v6278
    %v6290 = vsub.f32 %v6200, %v6279
    %v6291 = vsub.f32 %v6201, %v6279
    %v6292 = vsub.f32 %v6202, %v6279
    %v6293 = vsub.f32 %v6203, %v6279
    %v6294 = vsub.f32 %v6204, %v6279
    %v6295 = vsub.f32 %v6205, %v6279
    %v6296 = vsub.f32 %v6206, %v6279
    %v6297 = vsub.f32 %v6207, %v6279
    %v6298 = vmul.f32 %v6282, 1.442695
    %v6299 = vpow.pop %v6298
    %v6300 = vmul.f32 %v6283, 1.442695
    %v6301 = vpow.pop %v6300
    %v6302 = vmul.f32 %v6284, 1.442695
    %v6303 = vpow.pop %v6302
    %v6304 = vmul.f32 %v6285, 1.442695
    %v6305 = vpow.pop %v6304
    %v6306 = vmul.f32 %v6286, 1.442695
    %v6307 = vpow.pop %v6306
    %v6308 = vmul.f32 %v6287, 1.442695
    %v6309 = vpow.pop %v6308
    %v6310 = vmul.f32 %v6288, 1.442695
    %v6311 = vpow.pop %v6310
    %v6312 = vmul.f32 %v6289, 1.442695
    %v6313 = vpow.pop %v6312
    %v6314 = vmul.f32 %v6290, 1.442695
    %v6315 = vpow.pop %v6314
    %v6316 = vmul.f32 %v6291, 1.442695
    %v6317 = vpow.pop %v6316
    %v6318 = vmul.f32 %v6292, 1.442695
    %v6319 = vpow.pop %v6318
    %v6320 = vmul.f32 %v6293, 1.442695
    %v6321 = vpow.pop %v6320
    %v6322 = vmul.f32 %v6294, 1.442695
    %v6323 = vpow.pop %v6322
    %v6324 = vmul.f32 %v6295, 1.442695
    %v6325 = vpow.pop %v6324
    %v6326 = vmul.f32 %v6296, 1.442695
    %v6327 = vpow.pop %v6326
    %v6328 = vmul.f32 %v6297, 1.442695
    %v6329 = vpow.pop %v6328
    %6346 = vset.pattern.permute.xlu0 0
    %6347 = vperm.xlu0 %6346, %v6299
    %v6348 = vpop.permute.xlu0 %6347
    %6349 = vset.pattern.permute.xlu0 0
    %6350 = vperm.xlu0 %6349, %v6301
    %v6351 = vpop.permute.xlu0 %6350
    %6352 = vset.pattern.permute.xlu0 0
    %6353 = vperm.xlu0 %6352, %v6303
    %v6354 = vpop.permute.xlu0 %6353
    %6355 = vset.pattern.permute.xlu0 0
    %6356 = vperm.xlu0 %6355, %v6305
    %v6357 = vpop.permute.xlu0 %6356
    %6358 = vset.pattern.permute.xlu0 0
    %6359 = vperm.xlu0 %6358, %v6307
    %v6360 = vpop.permute.xlu0 %6359
    %6361 = vset.pattern.permute.xlu0 0
    %6362 = vperm.xlu0 %6361, %v6309
    %v6363 = vpop.permute.xlu0 %6362
    %6364 = vset.pattern.permute.xlu0 0
    %6365 = vperm.xlu0 %6364, %v6311
    %v6366 = vpop.permute.xlu0 %6365
    %6367 = vset.pattern.permute.xlu0 0
    %6368 = vperm.xlu0 %6367, %v6313
    %v6369 = vpop.permute.xlu0 %6368
    %6370 = vset.pattern.permute.xlu0 0
    %6371 = vperm.xlu0 %6370, %v6315
    %v6372 = vpop.permute.xlu0 %6371
    %6373 = vset.pattern.permute.xlu0 0
    %6374 = vperm.xlu0 %6373, %v6317
    %v6375 = vpop.permute.xlu0 %6374
    %6376 = vset.pattern.permute.xlu0 0
    %6377 = vperm.xlu0 %6376, %v6319
    %v6378 = vpop.permute.xlu0 %6377
    %6379 = vset.pattern.permute.xlu0 0
    %6380 = vperm.xlu0 %6379, %v6321
    %v6381 = vpop.permute.xlu0 %6380
    %6382 = vset.pattern.permute.xlu0 0
    %6383 = vperm.xlu0 %6382, %v6323
    %v6384 = vpop.permute.xlu0 %6383
    %6385 = vset.pattern.permute.xlu0 0
    %6386 = vperm.xlu0 %6385, %v6325
    %v6387 = vpop.permute.xlu0 %6386
    %6388 = vset.pattern.permute.xlu0 0
    %6389 = vperm.xlu0 %6388, %v6327
    %v6390 = vpop.permute.xlu0 %6389
    %6391 = vset.pattern.permute.xlu0 0
    %6392 = vperm.xlu0 %6391, %v6329
    %v6393 = vpop.permute.xlu0 %6392
    %v6394 = vperm.slane %v6348, %v6225
    %v6395 = vperm.slane %v6351, %v6227
    %v6396 = vsel %vm6229, %v6395, %v6394
    %v6397 = vperm.slane %v6354, %v6231
    %v6398 = vsel %vm6233, %v6397, %v6396
    %v6399 = vperm.slane %v6357, %v6235
    %v6400 = vsel %vm6237, %v6399, %v6398
    %v6401 = vperm.slane %v6360, %v6239
    %v6402 = vsel %vm6241, %v6401, %v6400
    %v6403 = vperm.slane %v6363, %v6243
    %v6404 = vsel %vm6245, %v6403, %v6402
    %v6405 = vperm.slane %v6366, %v6247
    %v6406 = vsel %vm6249, %v6405, %v6404
    %v6407 = vperm.slane %v6369, %v6251
    %v6408 = vsel %vm6253, %v6407, %v6406
    %v6409 = vperm.slane %v6372, %v6225
    %v6410 = vperm.slane %v6375, %v6227
    %v6411 = vsel %vm6229, %v6410, %v6409
    %v6412 = vperm.slane %v6378, %v6231
    %v6413 = vsel %vm6233, %v6412, %v6411
    %v6414 = vperm.slane %v6381, %v6235
    %v6415 = vsel %vm6237, %v6414, %v6413
    %v6416 = vperm.slane %v6384, %v6239
    %v6417 = vsel %vm6241, %v6416, %v6415
    %v6418 = vperm.slane %v6387, %v6243
    %v6419 = vsel %vm6245, %v6418, %v6417
    %v6420 = vperm.slane %v6390, %v6247
    %v6421 = vsel %vm6249, %v6420, %v6419
    %v6422 = vperm.slane %v6393, %v6251
    %v6423 = vsel %vm6253, %v6422, %v6421
    %v6424 = vsel %vm6270, %v6423, %v6408
    %v6426 = vsel %vm6273, %v6424, 0.0
    %6427 = vadd.xlane.f32.xlu0 %v6426
    %v6428 = vpop.xlane.xlu0 %6427
    %v6430 = vperm.slane %v6428, 0
    %v6431 = vperm.slane %v6428, 1
    %v6434 = vrcp.pop %v6430
    %v6435 = vmul.f32 %v6430, %v6434
    %v6436 = vsub.f32 1.0, %v6435
    %v6437 = vmul.f32 %v6434, %v6436
    %v6438 = vadd.f32 %v6434, %v6437
    %vm6439 = vweird.f32 %v6430
    %vm6440 = vweird.f32 %v6434
    %vm6441 = vmor %vm6439, %vm6440
    %v6442 = vsel %vm6441, %v6434, %v6438
    %v6443 = vand.u32 2147483647, %v6430
    %vm6444 = vcmp.eq.f32.partialorder %v6443, 8.507059e+37
    %v6445 = vand.u32 %v6430, 2147483648
    %v6446 = vor.u32 1.1754944e-38, %v6445
    %v6447 = vsel %vm6444, %v6446, %v6442
    %v6448 = vmul.f32 %v6299, %v6447
    %v6449 = vmul.f32 %v6301, %v6447
    %v6450 = vmul.f32 %v6303, %v6447
    %v6451 = vmul.f32 %v6305, %v6447
    %v6452 = vmul.f32 %v6307, %v6447
    %v6453 = vmul.f32 %v6309, %v6447
    %v6454 = vmul.f32 %v6311, %v6447
    %v6455 = vmul.f32 %v6313, %v6447
    %v6456 = vrcp.pop %v6431
    %v6457 = vmul.f32 %v6431, %v6456
    %v6458 = vsub.f32 1.0, %v6457
    %v6459 = vmul.f32 %v6456, %v6458
    %v6460 = vadd.f32 %v6456, %v6459
    %vm6461 = vweird.f32 %v6431
    %vm6462 = vweird.f32 %v6456
    %vm6463 = vmor %vm6461, %vm6462
    %v6464 = vsel %vm6463, %v6456, %v6460
    %v6465 = vand.u32 2147483647, %v6431
    %vm6466 = vcmp.eq.f32.partialorder %v6465, 8.507059e+37
    %v6467 = vand.u32 %v6431, 2147483648
    %v6468 = vor.u32 1.1754944e-38, %v6467
    %v6469 = vsel %vm6466, %v6468, %v6464
    %v6470 = vmul.f32 %v6315, %v6469
    %v6471 = vmul.f32 %v6317, %v6469
    %v6472 = vmul.f32 %v6319, %v6469
    %v6473 = vmul.f32 %v6321, %v6469
    %v6474 = vmul.f32 %v6323, %v6469
    %v6475 = vmul.f32 %v6325, %v6469
    %v6476 = vmul.f32 %v6327, %v6469
    %v6477 = vmul.f32 %v6329, %v6469
    %6479 = vset.pattern.permute.xlu0 0
    %6480 = vperm.xlu0 %6479, %v6448
    %v6481 = vpop.permute.xlu0 %6480
    %6484 = vset.pattern.permute.xlu0 0
    %6485 = vperm.xlu0 %6484, %v6449
    %v6486 = vpop.permute.xlu0 %6485
    %6489 = vset.pattern.permute.xlu0 0
    %6490 = vperm.xlu0 %6489, %v6450
    %v6491 = vpop.permute.xlu0 %6490
    %6494 = vset.pattern.permute.xlu0 0
    %6495 = vperm.xlu0 %6494, %v6451
    %v6496 = vpop.permute.xlu0 %6495
    %6499 = vset.pattern.permute.xlu0 0
    %6500 = vperm.xlu0 %6499, %v6452
    %v6501 = vpop.permute.xlu0 %6500
    %6504 = vset.pattern.permute.xlu0 0
    %6505 = vperm.xlu0 %6504, %v6453
    %v6506 = vpop.permute.xlu0 %6505
    %6509 = vset.pattern.permute.xlu0 0
    %6510 = vperm.xlu0 %6509, %v6454
    %v6511 = vpop.permute.xlu0 %6510
    %6514 = vset.pattern.permute.xlu0 0
    %6515 = vperm.xlu0 %6514, %v6455
    %v6516 = vpop.permute.xlu0 %6515
    %6519 = vset.pattern.permute.xlu0 0
    %6520 = vperm.xlu0 %6519, %v6470
    %v6521 = vpop.permute.xlu0 %6520
    %6524 = vset.pattern.permute.xlu0 0
    %6525 = vperm.xlu0 %6524, %v6471
    %v6526 = vpop.permute.xlu0 %6525
    %6529 = vset.pattern.permute.xlu0 0
    %6530 = vperm.xlu0 %6529, %v6472
    %v6531 = vpop.permute.xlu0 %6530
    %6534 = vset.pattern.permute.xlu0 0
    %6535 = vperm.xlu0 %6534, %v6473
    %v6536 = vpop.permute.xlu0 %6535
    %6539 = vset.pattern.permute.xlu0 0
    %6540 = vperm.xlu0 %6539, %v6474
    %v6541 = vpop.permute.xlu0 %6540
    %6544 = vset.pattern.permute.xlu0 0
    %6545 = vperm.xlu0 %6544, %v6475
    %v6546 = vpop.permute.xlu0 %6545
    %6549 = vset.pattern.permute.xlu0 0
    %6550 = vperm.xlu0 %6549, %v6476
    %v6551 = vpop.permute.xlu0 %6550
    %6554 = vset.pattern.permute.xlu0 0
    %6555 = vperm.xlu0 %6554, %v6477
    %v6556 = vpop.permute.xlu0 %6555
    %v6558 = vmul.f32 %v507, %v6481
    %v6559 = vmul.f32 %v508, %v6486
    %v6560 = vmul.f32 %v509, %v6491
    %v6561 = vmul.f32 %v510, %v6496
    %v6562 = vmul.f32 %v511, %v6501
    %v6563 = vmul.f32 %v512, %v6506
    %v6564 = vmul.f32 %v513, %v6511
    %v6565 = vmul.f32 %v514, %v6516
    %v6566 = vmul.f32 %v515, %v6521
    %v6567 = vmul.f32 %v516, %v6526
    %v6568 = vmul.f32 %v517, %v6531
    %v6569 = vmul.f32 %v518, %v6536
    %v6570 = vmul.f32 %v519, %v6541
    %v6571 = vmul.f32 %v520, %v6546
    %v6572 = vmul.f32 %v521, %v6551
    %v6573 = vmul.f32 %v522, %v6556
    %v6574 = vsel %vm340, %v6558, 0.0
    %v6575 = vsel %vm340, %v6559, 0.0
    %v6576 = vadd.f32 %v6574, %v6575
    %v6577 = vsel %vm340, %v6560, 0.0
    %v6578 = vadd.f32 %v6576, %v6577
    %v6579 = vsel %vm340, %v6561, 0.0
    %v6580 = vadd.f32 %v6578, %v6579
    %v6581 = vsel %vm340, %v6562, 0.0
    %v6582 = vadd.f32 %v6580, %v6581
    %v6583 = vsel %vm340, %v6563, 0.0
    %v6584 = vadd.f32 %v6582, %v6583
    %v6585 = vsel %vm340, %v6564, 0.0
    %v6586 = vadd.f32 %v6584, %v6585
    %v6587 = vsel %vm340, %v6565, 0.0
    %v6588 = vadd.f32 %v6586, %v6587
    %v6589 = vrot.slane %v6588, 4
    %v6590 = vadd.f32 %v6588, %v6589
    %v6591 = vrot.slane %v6590, 2
    %v6592 = vadd.f32 %v6590, %v6591
    %v6593 = vrot.slane %v6592, 1
    %v6594 = vadd.f32 %v6592, %v6593
    %v6595 = vsel %vm340, %v6566, 0.0
    %v6596 = vsel %vm340, %v6567, 0.0
    %v6597 = vadd.f32 %v6595, %v6596
    %v6598 = vsel %vm340, %v6568, 0.0
    %v6599 = vadd.f32 %v6597, %v6598
    %v6600 = vsel %vm340, %v6569, 0.0
    %v6601 = vadd.f32 %v6599, %v6600
    %v6602 = vsel %vm340, %v6570, 0.0
    %v6603 = vadd.f32 %v6601, %v6602
    %v6604 = vsel %vm340, %v6571, 0.0
    %v6605 = vadd.f32 %v6603, %v6604
    %v6606 = vsel %vm340, %v6572, 0.0
    %v6607 = vadd.f32 %v6605, %v6606
    %v6608 = vsel %vm340, %v6573, 0.0
    %v6609 = vadd.f32 %v6607, %v6608
    %v6610 = vrot.slane %v6609, 4
    %v6611 = vadd.f32 %v6609, %v6610
    %v6612 = vrot.slane %v6611, 2
    %v6613 = vadd.f32 %v6611, %v6612
    %v6614 = vrot.slane %v6613, 1
    %v6615 = vadd.f32 %v6613, %v6614
    %v6618 = vsel %vm6270, %v6615, %v6594
    %vm6620 = vcmask 58368
    %6621 = vst.msk [vmem:[#allocation6] sm:$0x3] %vm6620, %v6618
    %v6622 = vld [vmem:[%s33] sm:$0xf]
    %v6623 = vmul.f32 %v6594, %v6622
    %v6624 = vmul.f32 %v6615, %v6622
    %vm6625 = vcmask 60416
    %v6626 = vsel %vm6625, %v6623, 0.0
    %6627 = vadd.xlane.f32.xlu0 %v6626
    %v6628 = vpop.xlane.xlu0 %6627
    %v6629 = vsel %vm6625, %v6624, 0.0
    %6630 = vadd.xlane.f32.xlu0 %v6629
    %v6631 = vpop.xlane.xlu0 %6630
    %v6632 = vld [vmem:[%s35] sm:$0x1]
    %v6634 = vperm.slane %v6632, 0
    %v6635 = vlaneseq
    %v6636 = vshrl.u32 %v6635, 7
    %6638 = vset.pattern.permute.xlu0 %v6636
    %6639 = vperm.xlu0 %6638, %v6634
    %v6640 = vpop.permute.xlu0 %6639
    %v6642 = vadd.f32 %v6628, %v6640
    %v6643 = vadd.f32 %v6631, %v6640
    %v6644 = vmul.f32 %v6642, 0.5
    %v6645 = vmul.f32 %v6643, 0.5
    %v6646 = vmul.f32 %v6642, 0.70710677
    %v6647 = vmul.f32 %v6643, 0.70710677
    %v6648 = vand.u32 2147483647, %v6646
    %v6649 = vand.u32 2147483647, %v6647
    %v6650 = vmul.f32 %v6648, 0.3275911
    %v6651 = vmul.f32 %v6649, 0.3275911
    %v6652 = vadd.f32 %v6650, 1.0
    %v6653 = vadd.f32 %v6651, 1.0
    %v6654 = vrcp.pop %v6652
    %v6655 = vmul.f32 %v6652, %v6654
    %v6656 = vsub.f32 1.0, %v6655
    %v6657 = vmul.f32 %v6654, %v6656
    %v6658 = vadd.f32 %v6654, %v6657
    %vm6659 = vweird.f32 %v6652
    %vm6660 = vweird.f32 %v6654
    %vm6661 = vmor %vm6659, %vm6660
    %v6662 = vsel %vm6661, %v6654, %v6658
    %v6663 = vand.u32 2147483647, %v6652
    %vm6664 = vcmp.eq.f32.partialorder %v6663, 8.507059e+37
    %v6665 = vand.u32 %v6652, 2147483648
    %v6666 = vor.u32 1.1754944e-38, %v6665
    %v6667 = vsel %vm6664, %v6666, %v6662
    %v6668 = vmul.f32 1.0, %v6667
    %v6669 = vrcp.pop %v6653
    %v6670 = vmul.f32 %v6653, %v6669
    %v6671 = vsub.f32 1.0, %v6670
    %v6672 = vmul.f32 %v6669, %v6671
    %v6673 = vadd.f32 %v6669, %v6672
    %vm6674 = vweird.f32 %v6653
    %vm6675 = vweird.f32 %v6669
    %vm6676 = vmor %vm6674, %vm6675
    %v6677 = vsel %vm6676, %v6669, %v6673
    %v6678 = vand.u32 2147483647, %v6653
    %vm6679 = vcmp.eq.f32.partialorder %v6678, 8.507059e+37
    %v6680 = vand.u32 %v6653, 2147483648
    %v6681 = vor.u32 1.1754944e-38, %v6680
    %v6682 = vsel %vm6679, %v6681, %v6677
    %v6683 = vmul.f32 1.0, %v6682
    %v6684 = vmul.f32 %v6668, 1.0614054
    %v6685 = vmul.f32 %v6683, 1.0614054
    %v6686 = vadd.f32 %v6684, -1.4531521
    %v6687 = vadd.f32 %v6685, -1.4531521
    %v6688 = vmul.f32 %v6668, %v6686
    %v6689 = vmul.f32 %v6683, %v6687
    %v6690 = vadd.f32 %v6688, 1.4214138
    %v6691 = vadd.f32 %v6689, 1.4214138
    %v6692 = vmul.f32 %v6668, %v6690
    %v6693 = vmul.f32 %v6683, %v6691
    %v6694 = vadd.f32 %v6692, -0.28449672
    %v6695 = vadd.f32 %v6693, -0.28449672
    %v6696 = vmul.f32 %v6668, %v6694
    %v6697 = vmul.f32 %v6683, %v6695
    %v6698 = vadd.f32 %v6696, 0.2548296
    %v6699 = vadd.f32 %v6697, 0.2548296
    %v6700 = vmul.f32 %v6668, %v6698
    %v6701 = vmul.f32 %v6683, %v6699
    %v6702 = vsub.f32 0.0, %v6648
    %v6703 = vsub.f32 0.0, %v6649
    %v6704 = vmul.f32 %v6702, %v6648
    %v6705 = vmul.f32 %v6703, %v6649
    %v6706 = vmul.f32 %v6704, 1.442695
    %v6707 = vpow.pop %v6706
    %v6708 = vmul.f32 %v6705, 1.442695
    %v6709 = vpow.pop %v6708
    %v6710 = vmul.f32 %v6700, %v6707
    %v6711 = vmul.f32 %v6701, %v6709
    %v6712 = vsub.f32 1.0, %v6710
    %v6713 = vsub.f32 1.0, %v6711
    %vm6714 = vcmp.ge.f32.partialorder %v6646, 0.0
    %vm6715 = vcmp.ge.f32.partialorder %v6647, 0.0
    %v6716 = vsub.f32 0.0, %v6712
    %v6717 = vsub.f32 0.0, %v6713
    %v6718 = vsel %vm6714, %v6712, %v6716
    %v6719 = vsel %vm6715, %v6713, %v6717
    %v6720 = vadd.f32 %v6718, 1.0
    %v6721 = vadd.f32 %v6719, 1.0
    %v6722 = vmul.f32 %v6644, %v6720
    %v6723 = vmul.f32 %v6645, %v6721
    %v6724 = vld [vmem:[%s37] sm:$0xff]
    %v6726 = vperm.slane %v6724, 0
    %v6727 = vlaneseq
    %v6728 = vshrl.u32 %v6727, 7
    %6730 = vset.pattern.permute.xlu0 %v6728
    %6731 = vperm.xlu0 %6730, %v6726
    %v6732 = vpop.permute.xlu0 %6731
    %v6733 = vperm.slane %v6724, 1
    %v6734 = vlaneseq
    %v6735 = vshrl.u32 %v6734, 7
    %6737 = vset.pattern.permute.xlu0 %v6735
    %6738 = vperm.xlu0 %6737, %v6733
    %v6739 = vpop.permute.xlu0 %6738
    %v6740 = vperm.slane %v6724, 2
    %v6741 = vlaneseq
    %v6742 = vshrl.u32 %v6741, 7
    %6744 = vset.pattern.permute.xlu0 %v6742
    %6745 = vperm.xlu0 %6744, %v6740
    %v6746 = vpop.permute.xlu0 %6745
    %v6747 = vperm.slane %v6724, 3
    %v6748 = vlaneseq
    %v6749 = vshrl.u32 %v6748, 7
    %6751 = vset.pattern.permute.xlu0 %v6749
    %6752 = vperm.xlu0 %6751, %v6747
    %v6753 = vpop.permute.xlu0 %6752
    %v6754 = vperm.slane %v6724, 4
    %v6755 = vlaneseq
    %v6756 = vshrl.u32 %v6755, 7
    %6758 = vset.pattern.permute.xlu0 %v6756
    %6759 = vperm.xlu0 %6758, %v6754
    %v6760 = vpop.permute.xlu0 %6759
    %v6761 = vperm.slane %v6724, 5
    %v6762 = vlaneseq
    %v6763 = vshrl.u32 %v6762, 7
    %6765 = vset.pattern.permute.xlu0 %v6763
    %6766 = vperm.xlu0 %6765, %v6761
    %v6767 = vpop.permute.xlu0 %6766
    %v6768 = vperm.slane %v6724, 6
    %v6769 = vlaneseq
    %v6770 = vshrl.u32 %v6769, 7
    %6772 = vset.pattern.permute.xlu0 %v6770
    %6773 = vperm.xlu0 %6772, %v6768
    %v6774 = vpop.permute.xlu0 %6773
    %v6775 = vperm.slane %v6724, 7
    %v6776 = vlaneseq
    %v6777 = vshrl.u32 %v6776, 7
    %6779 = vset.pattern.permute.xlu0 %v6777
    %6780 = vperm.xlu0 %6779, %v6775
    %v6781 = vpop.permute.xlu0 %6780
    %v6790 = vmul.f32 %v6722, %v6732
    %v6791 = vmul.f32 %v6722, %v6739
    %v6792 = vmul.f32 %v6722, %v6746
    %v6793 = vmul.f32 %v6722, %v6753
    %v6794 = vmul.f32 %v6722, %v6760
    %v6795 = vmul.f32 %v6722, %v6767
    %v6796 = vmul.f32 %v6722, %v6774
    %v6797 = vmul.f32 %v6722, %v6781
    %v6798 = vmul.f32 %v6723, %v6732
    %v6799 = vmul.f32 %v6723, %v6739
    %v6800 = vmul.f32 %v6723, %v6746
    %v6801 = vmul.f32 %v6723, %v6753
    %v6802 = vmul.f32 %v6723, %v6760
    %v6803 = vmul.f32 %v6723, %v6767
    %v6804 = vmul.f32 %v6723, %v6774
    %v6805 = vmul.f32 %v6723, %v6781
    %6822 = vset.pattern.permute.xlu0 0
    %6823 = vperm.xlu0 %6822, %v6790
    %v6824 = vpop.permute.xlu0 %6823
    %6825 = vset.pattern.permute.xlu0 0
    %6826 = vperm.xlu0 %6825, %v6791
    %v6827 = vpop.permute.xlu0 %6826
    %6828 = vset.pattern.permute.xlu0 0
    %6829 = vperm.xlu0 %6828, %v6792
    %v6830 = vpop.permute.xlu0 %6829
    %6831 = vset.pattern.permute.xlu0 0
    %6832 = vperm.xlu0 %6831, %v6793
    %v6833 = vpop.permute.xlu0 %6832
    %6834 = vset.pattern.permute.xlu0 0
    %6835 = vperm.xlu0 %6834, %v6794
    %v6836 = vpop.permute.xlu0 %6835
    %6837 = vset.pattern.permute.xlu0 0
    %6838 = vperm.xlu0 %6837, %v6795
    %v6839 = vpop.permute.xlu0 %6838
    %6840 = vset.pattern.permute.xlu0 0
    %6841 = vperm.xlu0 %6840, %v6796
    %v6842 = vpop.permute.xlu0 %6841
    %6843 = vset.pattern.permute.xlu0 0
    %6844 = vperm.xlu0 %6843, %v6797
    %v6845 = vpop.permute.xlu0 %6844
    %6846 = vset.pattern.permute.xlu0 0
    %6847 = vperm.xlu0 %6846, %v6798
    %v6848 = vpop.permute.xlu0 %6847
    %6849 = vset.pattern.permute.xlu0 0
    %6850 = vperm.xlu0 %6849, %v6799
    %v6851 = vpop.permute.xlu0 %6850
    %6852 = vset.pattern.permute.xlu0 0
    %6853 = vperm.xlu0 %6852, %v6800
    %v6854 = vpop.permute.xlu0 %6853
    %6855 = vset.pattern.permute.xlu0 0
    %6856 = vperm.xlu0 %6855, %v6801
    %v6857 = vpop.permute.xlu0 %6856
    %6858 = vset.pattern.permute.xlu0 0
    %6859 = vperm.xlu0 %6858, %v6802
    %v6860 = vpop.permute.xlu0 %6859
    %6861 = vset.pattern.permute.xlu0 0
    %6862 = vperm.xlu0 %6861, %v6803
    %v6863 = vpop.permute.xlu0 %6862
    %6864 = vset.pattern.permute.xlu0 0
    %6865 = vperm.xlu0 %6864, %v6804
    %v6866 = vpop.permute.xlu0 %6865
    %6867 = vset.pattern.permute.xlu0 0
    %6868 = vperm.xlu0 %6867, %v6805
    %v6869 = vpop.permute.xlu0 %6868
    %v6870 = vperm.slane %v6824, %v6225
    %v6871 = vperm.slane %v6827, %v6225
    %v6872 = vperm.slane %v6830, %v6225
    %v6873 = vperm.slane %v6833, %v6225
    %v6874 = vperm.slane %v6836, %v6225
    %v6875 = vperm.slane %v6839, %v6225
    %v6876 = vperm.slane %v6842, %v6225
    %v6877 = vperm.slane %v6845, %v6225
    %v6878 = vperm.slane %v6848, %v6225
    %v6879 = vperm.slane %v6851, %v6225
    %v6880 = vperm.slane %v6854, %v6225
    %v6881 = vperm.slane %v6857, %v6225
    %v6882 = vperm.slane %v6860, %v6225
    %v6883 = vperm.slane %v6863, %v6225
    %v6884 = vperm.slane %v6866, %v6225
    %v6885 = vperm.slane %v6869, %v6225
    %v6886 = vsel %vm6270, %v6871, %v6870
    %vm6887 = vcmask 1042434
    %v6888 = vsel %vm6887, %v6872, %v6886
    %vm6889 = vcmask 1043459
    %v6890 = vsel %vm6889, %v6873, %v6888
    %vm6891 = vcmask 1044484
    %v6892 = vsel %vm6891, %v6874, %v6890
    %vm6893 = vcmask 1045509
    %v6894 = vsel %vm6893, %v6875, %v6892
    %vm6895 = vcmask 1046534
    %v6896 = vsel %vm6895, %v6876, %v6894
    %vm6897 = vcmask 1047559
    %v6898 = vsel %vm6897, %v6877, %v6896
    %v6899 = vsel %vm6270, %v6879, %v6878
    %v6900 = vsel %vm6887, %v6880, %v6899
    %v6901 = vsel %vm6889, %v6881, %v6900
    %v6902 = vsel %vm6891, %v6882, %v6901
    %v6903 = vsel %vm6893, %v6883, %v6902
    %v6904 = vsel %vm6895, %v6884, %v6903
    %v6905 = vsel %vm6897, %v6885, %v6904
    %vm6908 = vcmask 31744
    %v6909 = vsel %vm6908, %v6898, 0.0
    %6910 = vadd.xlane.f32.xlu0 %v6909
    %v6911 = vpop.xlane.xlu0 %6910
    %v6912 = vsel %vm6908, %v6905, 0.0
    %6913 = vadd.xlane.f32.xlu0 %v6912
    %v6914 = vpop.xlane.xlu0 %6913
    %v6915 = vld [vmem:[%s39] sm:$0x1]
    %v6917 = vperm.slane %v6915, 0
    %v6918 = vlaneseq
    %v6919 = vshrl.u32 %v6918, 7
    %6921 = vset.pattern.permute.xlu0 %v6919
    %6922 = vperm.xlu0 %6921, %v6917
    %v6923 = vpop.permute.xlu0 %6922
    %v6925 = vadd.f32 %v6911, %v6923
    %v6926 = vadd.f32 %v6914, %v6923
    %v6927 = vsel %vm340, %v5535, 0.0
    %v6928 = vsel %vm340, %v5536, 0.0
    %v6929 = vadd.f32 %v6927, %v6928
    %v6930 = vsel %vm340, %v5537, 0.0
    %v6931 = vadd.f32 %v6929, %v6930
    %v6932 = vsel %vm340, %v5538, 0.0
    %v6933 = vadd.f32 %v6931, %v6932
    %v6934 = vsel %vm340, %v5539, 0.0
    %v6935 = vadd.f32 %v6933, %v6934
    %v6936 = vsel %vm340, %v5540, 0.0
    %v6937 = vadd.f32 %v6935, %v6936
    %v6938 = vsel %vm340, %v5541, 0.0
    %v6939 = vadd.f32 %v6937, %v6938
    %v6940 = vsel %vm340, %v5542, 0.0
    %v6941 = vadd.f32 %v6939, %v6940
    %v6942 = vrot.slane %v6941, 4
    %v6943 = vadd.f32 %v6941, %v6942
    %v6944 = vrot.slane %v6943, 2
    %v6945 = vadd.f32 %v6943, %v6944
    %v6946 = vrot.slane %v6945, 1
    %v6947 = vadd.f32 %v6945, %v6946
    %v6948 = vsel %vm340, %v5543, 0.0
    %v6949 = vsel %vm340, %v5544, 0.0
    %v6950 = vadd.f32 %v6948, %v6949
    %v6951 = vsel %vm340, %v5545, 0.0
    %v6952 = vadd.f32 %v6950, %v6951
    %v6953 = vsel %vm340, %v5546, 0.0
    %v6954 = vadd.f32 %v6952, %v6953
    %v6955 = vsel %vm340, %v5547, 0.0
    %v6956 = vadd.f32 %v6954, %v6955
    %v6957 = vsel %vm340, %v5548, 0.0
    %v6958 = vadd.f32 %v6956, %v6957
    %v6959 = vsel %vm340, %v5549, 0.0
    %v6960 = vadd.f32 %v6958, %v6959
    %v6961 = vsel %vm340, %v5550, 0.0
    %v6962 = vadd.f32 %v6960, %v6961
    %v6963 = vrot.slane %v6962, 4
    %v6964 = vadd.f32 %v6962, %v6963
    %v6965 = vrot.slane %v6964, 2
    %v6966 = vadd.f32 %v6964, %v6965
    %v6967 = vrot.slane %v6966, 1
    %v6968 = vadd.f32 %v6966, %v6967
    %v6969 = vmul.f32 %v6947, 0.015625
    %v6970 = vmul.f32 %v6968, 0.015625
    %v6971 = vld [vmem:[%s41] sm:$0x1]
    %v6973 = vperm.slane %v6971, 0
    %v6975 = vmul.f32 %v6969, %v6973
    %v6976 = vmul.f32 %v6970, %v6973
    %v6979 = vrot.slane %v6976, 7
    %v6980 = vsel %vm6270, %v6979, %v6975
    %v6982 = vsel %vm6620, %v6980, 0.0
    %6983 = vadd.xlane.f32.xlu0 %v6982
    %v6984 = vpop.xlane.xlu0 %6983
    %v6985 = vld [vmem:[#allocation4] sm:$0x1]
    %v6987 = vperm.slane %v6985, 0
    %v6989 = vadd.f32 %v6984, %v6987
    %v6990 = vmul.f32 %v6989, 0.5
    %v6991 = vmul.f32 %v6989, 0.70710677
    %v6992 = vand.u32 2147483647, %v6991
    %v6993 = vmul.f32 %v6992, 0.3275911
    %v6994 = vadd.f32 %v6993, 1.0
    %v6995 = vrcp.pop %v6994
    %v6996 = vmul.f32 %v6994, %v6995
    %v6997 = vsub.f32 1.0, %v6996
    %v6998 = vmul.f32 %v6995, %v6997
    %v6999 = vadd.f32 %v6995, %v6998
    %vm7000 = vweird.f32 %v6994
    %vm7001 = vweird.f32 %v6995
    %vm7002 = vmor %vm7000, %vm7001
    %v7003 = vsel %vm7002, %v6995, %v6999
    %v7004 = vand.u32 2147483647, %v6994
    %vm7005 = vcmp.eq.f32.partialorder %v7004, 8.507059e+37
    %v7006 = vand.u32 %v6994, 2147483648
    %v7007 = vor.u32 1.1754944e-38, %v7006
    %v7008 = vsel %vm7005, %v7007, %v7003
    %v7009 = vmul.f32 1.0, %v7008
    %v7010 = vmul.f32 %v7009, 1.0614054
    %v7011 = vadd.f32 %v7010, -1.4531521
    %v7012 = vmul.f32 %v7009, %v7011
    %v7013 = vadd.f32 %v7012, 1.4214138
    %v7014 = vmul.f32 %v7009, %v7013
    %v7015 = vadd.f32 %v7014, -0.28449672
    %v7016 = vmul.f32 %v7009, %v7015
    %v7017 = vadd.f32 %v7016, 0.2548296
    %v7018 = vmul.f32 %v7009, %v7017
    %v7019 = vsub.f32 0.0, %v6992
    %v7020 = vmul.f32 %v7019, %v6992
    %v7021 = vmul.f32 %v7020, 1.442695
    %v7022 = vpow.pop %v7021
    %v7023 = vmul.f32 %v7018, %v7022
    %v7024 = vsub.f32 1.0, %v7023
    %vm7025 = vcmp.ge.f32.partialorder %v6991, 0.0
    %v7026 = vsub.f32 0.0, %v7024
    %v7027 = vsel %vm7025, %v7024, %v7026
    %v7028 = vadd.f32 %v7027, 1.0
    %v7029 = vmul.f32 %v6990, %v7028
    %v7030 = vld [vmem:[%s45] sm:$0x1]
    %7032 = vset.pattern.permute.xlu0 0
    %7033 = vperm.xlu0 %7032, %v7029
    %v7034 = vpop.permute.xlu0 %7033
    %v7037 = vperm.slane %v7030, 0
    %v7039 = vmul.f32 %v7034, %v7037
    %v7040 = vld [vmem:[%s47] sm:$0x1]
    %v7042 = vperm.slane %v7040, 0
    %v7044 = vadd.f32 %v7039, %v7042
    %v7045 = vxor.u32 %v7044, 2147483648
    %v7046 = vmul.f32 %v7045, 1.442695
    %v7047 = vpow.pop %v7046
    %v7048 = vadd.f32 %v7047, 1.0
    %v7049 = vrcp.pop %v7048
    %v7050 = vmul.f32 %v7048, %v7049
    %v7051 = vsub.f32 1.0, %v7050
    %v7052 = vmul.f32 %v7049, %v7051
    %v7053 = vadd.f32 %v7049, %v7052
    %vm7054 = vweird.f32 %v7048
    %vm7055 = vweird.f32 %v7049
    %vm7056 = vmor %vm7054, %vm7055
    %v7057 = vsel %vm7056, %v7049, %v7053
    %v7058 = vand.u32 2147483647, %v7048
    %vm7059 = vcmp.eq.f32.partialorder %v7058, 8.507059e+37
    %v7060 = vand.u32 %v7048, 2147483648
    %v7061 = vor.u32 1.1754944e-38, %v7060
    %v7062 = vsel %vm7059, %v7061, %v7057
    %v7063 = vmul.f32 1.0, %v7062
    %v7064 = vld [vmem:[%s49] sm:$0x1]
    %v7066 = vperm.slane %v7064, 0
    %v7068 = vmul.f32 %v6085, %v7066
    %v7069 = vmul.f32 %v6086, %v7066
    %v7070 = vmul.f32 %v6087, %v7066
    %v7071 = vmul.f32 %v6088, %v7066
    %v7072 = vmul.f32 %v6089, %v7066
    %v7073 = vmul.f32 %v6090, %v7066
    %v7074 = vmul.f32 %v6091, %v7066
    %v7075 = vmul.f32 %v6092, %v7066
    %v7076 = vmul.f32 %v6093, %v7066
    %v7077 = vmul.f32 %v6094, %v7066
    %v7078 = vmul.f32 %v6095, %v7066
    %v7079 = vmul.f32 %v6096, %v7066
    %v7080 = vmul.f32 %v6097, %v7066
    %v7081 = vmul.f32 %v6098, %v7066
    %v7082 = vmul.f32 %v6099, %v7066
    %v7083 = vmul.f32 %v6100, %v7066
    %v7084 = vsel %vm340, %v7068, 0.0
    %7085 = vadd.xlane.f32.xlu0 %v7084
    %v7086 = vpop.xlane.xlu0 %7085
    %v7087 = vsel %vm340, %v7069, 0.0
    %7088 = vadd.xlane.f32.xlu0 %v7087
    %v7089 = vpop.xlane.xlu0 %7088
    %v7090 = vsel %vm340, %v7070, 0.0
    %7091 = vadd.xlane.f32.xlu0 %v7090
    %v7092 = vpop.xlane.xlu0 %7091
    %v7093 = vsel %vm340, %v7071, 0.0
    %7094 = vadd.xlane.f32.xlu0 %v7093
    %v7095 = vpop.xlane.xlu0 %7094
    %v7096 = vsel %vm340, %v7072, 0.0
    %7097 = vadd.xlane.f32.xlu0 %v7096
    %v7098 = vpop.xlane.xlu0 %7097
    %v7099 = vsel %vm340, %v7073, 0.0
    %7100 = vadd.xlane.f32.xlu0 %v7099
    %v7101 = vpop.xlane.xlu0 %7100
    %v7102 = vsel %vm340, %v7074, 0.0
    %7103 = vadd.xlane.f32.xlu0 %v7102
    %v7104 = vpop.xlane.xlu0 %7103
    %v7105 = vsel %vm340, %v7075, 0.0
    %7106 = vadd.xlane.f32.xlu0 %v7105
    %v7107 = vpop.xlane.xlu0 %7106
    %v7108 = vsel %vm340, %v7076, 0.0
    %7109 = vadd.xlane.f32.xlu0 %v7108
    %v7110 = vpop.xlane.xlu0 %7109
    %v7111 = vsel %vm340, %v7077, 0.0
    %7112 = vadd.xlane.f32.xlu0 %v7111
    %v7113 = vpop.xlane.xlu0 %7112
    %v7114 = vsel %vm340, %v7078, 0.0
    %7115 = vadd.xlane.f32.xlu0 %v7114
    %v7116 = vpop.xlane.xlu0 %7115
    %v7117 = vsel %vm340, %v7079, 0.0
    %7118 = vadd.xlane.f32.xlu0 %v7117
    %v7119 = vpop.xlane.xlu0 %7118
    %v7120 = vsel %vm340, %v7080, 0.0
    %7121 = vadd.xlane.f32.xlu0 %v7120
    %v7122 = vpop.xlane.xlu0 %7121
    %v7123 = vsel %vm340, %v7081, 0.0
    %7124 = vadd.xlane.f32.xlu0 %v7123
    %v7125 = vpop.xlane.xlu0 %7124
    %v7126 = vsel %vm340, %v7082, 0.0
    %7127 = vadd.xlane.f32.xlu0 %v7126
    %v7128 = vpop.xlane.xlu0 %7127
    %v7129 = vsel %vm340, %v7083, 0.0
    %7130 = vadd.xlane.f32.xlu0 %v7129
    %v7131 = vpop.xlane.xlu0 %7130
    %v7132 = vld [vmem:[#allocation5] sm:$0x1]
    %v7134 = vperm.slane %v7132, 0
    %7135 = vset.pattern.permute.xlu0 0
    %7136 = vperm.xlu0 %7135, %v7134
    %v7137 = vpop.permute.xlu0 %7136
    %v7139 = vadd.f32 %v7086, %v7137
    %v7140 = vadd.f32 %v7089, %v7137
    %v7141 = vadd.f32 %v7092, %v7137
    %v7142 = vadd.f32 %v7095, %v7137
    %v7143 = vadd.f32 %v7098, %v7137
    %v7144 = vadd.f32 %v7101, %v7137
    %v7145 = vadd.f32 %v7104, %v7137
    %v7146 = vadd.f32 %v7107, %v7137
    %v7147 = vadd.f32 %v7110, %v7137
    %v7148 = vadd.f32 %v7113, %v7137
    %v7149 = vadd.f32 %v7116, %v7137
    %v7150 = vadd.f32 %v7119, %v7137
    %v7151 = vadd.f32 %v7122, %v7137
    %v7152 = vadd.f32 %v7125, %v7137
    %v7153 = vadd.f32 %v7128, %v7137
    %v7154 = vadd.f32 %v7131, %v7137
    %v7155 = vxor.u32 %v7139, 2147483648
    %v7156 = vxor.u32 %v7140, 2147483648
    %v7157 = vxor.u32 %v7141, 2147483648
    %v7158 = vxor.u32 %v7142, 2147483648
    %v7159 = vxor.u32 %v7143, 2147483648
    %v7160 = vxor.u32 %v7144, 2147483648
    %v7161 = vxor.u32 %v7145, 2147483648
    %v7162 = vxor.u32 %v7146, 2147483648
    %v7163 = vxor.u32 %v7147, 2147483648
    %v7164 = vxor.u32 %v7148, 2147483648
    %v7165 = vxor.u32 %v7149, 2147483648
    %v7166 = vxor.u32 %v7150, 2147483648
    %v7167 = vxor.u32 %v7151, 2147483648
    %v7168 = vxor.u32 %v7152, 2147483648
    %v7169 = vxor.u32 %v7153, 2147483648
    %v7170 = vxor.u32 %v7154, 2147483648
    %v7171 = vmul.f32 %v7155, 1.442695
    %v7172 = vpow.pop %v7171
    %v7173 = vmul.f32 %v7156, 1.442695
    %v7174 = vpow.pop %v7173
    %v7175 = vmul.f32 %v7157, 1.442695
    %v7176 = vpow.pop %v7175
    %v7177 = vmul.f32 %v7158, 1.442695
    %v7178 = vpow.pop %v7177
    %v7179 = vmul.f32 %v7159, 1.442695
    %v7180 = vpow.pop %v7179
    %v7181 = vmul.f32 %v7160, 1.442695
    %v7182 = vpow.pop %v7181
    %v7183 = vmul.f32 %v7161, 1.442695
    %v7184 = vpow.pop %v7183
    %v7185 = vmul.f32 %v7162, 1.442695
    %v7186 = vpow.pop %v7185
    %v7187 = vmul.f32 %v7163, 1.442695
    %v7188 = vpow.pop %v7187
    %v7189 = vmul.f32 %v7164, 1.442695
    %v7190 = vpow.pop %v7189
    %v7191 = vmul.f32 %v7165, 1.442695
    %v7192 = vpow.pop %v7191
    %v7193 = vmul.f32 %v7166, 1.442695
    %v7194 = vpow.pop %v7193
    %v7195 = vmul.f32 %v7167, 1.442695
    %v7196 = vpow.pop %v7195
    %v7197 = vmul.f32 %v7168, 1.442695
    %v7198 = vpow.pop %v7197
    %v7199 = vmul.f32 %v7169, 1.442695
    %v7200 = vpow.pop %v7199
    %v7201 = vmul.f32 %v7170, 1.442695
    %v7202 = vpow.pop %v7201
    %v7203 = vadd.f32 %v7172, 1.0
    %v7204 = vadd.f32 %v7174, 1.0
    %v7205 = vadd.f32 %v7176, 1.0
    %v7206 = vadd.f32 %v7178, 1.0
    %v7207 = vadd.f32 %v7180, 1.0
    %v7208 = vadd.f32 %v7182, 1.0
    %v7209 = vadd.f32 %v7184, 1.0
    %v7210 = vadd.f32 %v7186, 1.0
    %v7211 = vadd.f32 %v7188, 1.0
    %v7212 = vadd.f32 %v7190, 1.0
    %v7213 = vadd.f32 %v7192, 1.0
    %v7214 = vadd.f32 %v7194, 1.0
    %v7215 = vadd.f32 %v7196, 1.0
    %v7216 = vadd.f32 %v7198, 1.0
    %v7217 = vadd.f32 %v7200, 1.0
    %v7218 = vadd.f32 %v7202, 1.0
    %v7219 = vrcp.pop %v7203
    %v7220 = vmul.f32 %v7203, %v7219
    %v7221 = vsub.f32 1.0, %v7220
    %v7222 = vmul.f32 %v7219, %v7221
    %v7223 = vadd.f32 %v7219, %v7222
    %vm7224 = vweird.f32 %v7203
    %vm7225 = vweird.f32 %v7219
    %vm7226 = vmor %vm7224, %vm7225
    %v7227 = vsel %vm7226, %v7219, %v7223
    %v7228 = vand.u32 2147483647, %v7203
    %vm7229 = vcmp.eq.f32.partialorder %v7228, 8.507059e+37
    %v7230 = vand.u32 %v7203, 2147483648
    %v7231 = vor.u32 1.1754944e-38, %v7230
    %v7232 = vsel %vm7229, %v7231, %v7227
    %v7233 = vmul.f32 1.0, %v7232
    %v7234 = vrcp.pop %v7204
    %v7235 = vmul.f32 %v7204, %v7234
    %v7236 = vsub.f32 1.0, %v7235
    %v7237 = vmul.f32 %v7234, %v7236
    %v7238 = vadd.f32 %v7234, %v7237
    %vm7239 = vweird.f32 %v7204
    %vm7240 = vweird.f32 %v7234
    %vm7241 = vmor %vm7239, %vm7240
    %v7242 = vsel %vm7241, %v7234, %v7238
    %v7243 = vand.u32 2147483647, %v7204
    %vm7244 = vcmp.eq.f32.partialorder %v7243, 8.507059e+37
    %v7245 = vand.u32 %v7204, 2147483648
    %v7246 = vor.u32 1.1754944e-38, %v7245
    %v7247 = vsel %vm7244, %v7246, %v7242
    %v7248 = vmul.f32 1.0, %v7247
    %v7249 = vrcp.pop %v7205
    %v7250 = vmul.f32 %v7205, %v7249
    %v7251 = vsub.f32 1.0, %v7250
    %v7252 = vmul.f32 %v7249, %v7251
    %v7253 = vadd.f32 %v7249, %v7252
    %vm7254 = vweird.f32 %v7205
    %vm7255 = vweird.f32 %v7249
    %vm7256 = vmor %vm7254, %vm7255
    %v7257 = vsel %vm7256, %v7249, %v7253
    %v7258 = vand.u32 2147483647, %v7205
    %vm7259 = vcmp.eq.f32.partialorder %v7258, 8.507059e+37
    %v7260 = vand.u32 %v7205, 2147483648
    %v7261 = vor.u32 1.1754944e-38, %v7260
    %v7262 = vsel %vm7259, %v7261, %v7257
    %v7263 = vmul.f32 1.0, %v7262
    %v7264 = vrcp.pop %v7206
    %v7265 = vmul.f32 %v7206, %v7264
    %v7266 = vsub.f32 1.0, %v7265
    %v7267 = vmul.f32 %v7264, %v7266
    %v7268 = vadd.f32 %v7264, %v7267
    %vm7269 = vweird.f32 %v7206
    %vm7270 = vweird.f32 %v7264
    %vm7271 = vmor %vm7269, %vm7270
    %v7272 = vsel %vm7271, %v7264, %v7268
    %v7273 = vand.u32 2147483647, %v7206
    %vm7274 = vcmp.eq.f32.partialorder %v7273, 8.507059e+37
    %v7275 = vand.u32 %v7206, 2147483648
    %v7276 = vor.u32 1.1754944e-38, %v7275
    %v7277 = vsel %vm7274, %v7276, %v7272
    %v7278 = vmul.f32 1.0, %v7277
    %v7279 = vrcp.pop %v7207
    %v7280 = vmul.f32 %v7207, %v7279
    %v7281 = vsub.f32 1.0, %v7280
    %v7282 = vmul.f32 %v7279, %v7281
    %v7283 = vadd.f32 %v7279, %v7282
    %vm7284 = vweird.f32 %v7207
    %vm7285 = vweird.f32 %v7279
    %vm7286 = vmor %vm7284, %vm7285
    %v7287 = vsel %vm7286, %v7279, %v7283
    %v7288 = vand.u32 2147483647, %v7207
    %vm7289 = vcmp.eq.f32.partialorder %v7288, 8.507059e+37
    %v7290 = vand.u32 %v7207, 2147483648
    %v7291 = vor.u32 1.1754944e-38, %v7290
    %v7292 = vsel %vm7289, %v7291, %v7287
    %v7293 = vmul.f32 1.0, %v7292
    %v7294 = vrcp.pop %v7208
    %v7295 = vmul.f32 %v7208, %v7294
    %v7296 = vsub.f32 1.0, %v7295
    %v7297 = vmul.f32 %v7294, %v7296
    %v7298 = vadd.f32 %v7294, %v7297
    %vm7299 = vweird.f32 %v7208
    %vm7300 = vweird.f32 %v7294
    %vm7301 = vmor %vm7299, %vm7300
    %v7302 = vsel %vm7301, %v7294, %v7298
    %v7303 = vand.u32 2147483647, %v7208
    %vm7304 = vcmp.eq.f32.partialorder %v7303, 8.507059e+37
    %v7305 = vand.u32 %v7208, 2147483648
    %v7306 = vor.u32 1.1754944e-38, %v7305
    %v7307 = vsel %vm7304, %v7306, %v7302
    %v7308 = vmul.f32 1.0, %v7307
    %v7309 = vrcp.pop %v7209
    %v7310 = vmul.f32 %v7209, %v7309
    %v7311 = vsub.f32 1.0, %v7310
    %v7312 = vmul.f32 %v7309, %v7311
    %v7313 = vadd.f32 %v7309, %v7312
    %vm7314 = vweird.f32 %v7209
    %vm7315 = vweird.f32 %v7309
    %vm7316 = vmor %vm7314, %vm7315
    %v7317 = vsel %vm7316, %v7309, %v7313
    %v7318 = vand.u32 2147483647, %v7209
    %vm7319 = vcmp.eq.f32.partialorder %v7318, 8.507059e+37
    %v7320 = vand.u32 %v7209, 2147483648
    %v7321 = vor.u32 1.1754944e-38, %v7320
    %v7322 = vsel %vm7319, %v7321, %v7317
    %v7323 = vmul.f32 1.0, %v7322
    %v7324 = vrcp.pop %v7210
    %v7325 = vmul.f32 %v7210, %v7324
    %v7326 = vsub.f32 1.0, %v7325
    %v7327 = vmul.f32 %v7324, %v7326
    %v7328 = vadd.f32 %v7324, %v7327
    %vm7329 = vweird.f32 %v7210
    %vm7330 = vweird.f32 %v7324
    %vm7331 = vmor %vm7329, %vm7330
    %v7332 = vsel %vm7331, %v7324, %v7328
    %v7333 = vand.u32 2147483647, %v7210
    %vm7334 = vcmp.eq.f32.partialorder %v7333, 8.507059e+37
    %v7335 = vand.u32 %v7210, 2147483648
    %v7336 = vor.u32 1.1754944e-38, %v7335
    %v7337 = vsel %vm7334, %v7336, %v7332
    %v7338 = vmul.f32 1.0, %v7337
    %v7339 = vrcp.pop %v7211
    %v7340 = vmul.f32 %v7211, %v7339
    %v7341 = vsub.f32 1.0, %v7340
    %v7342 = vmul.f32 %v7339, %v7341
    %v7343 = vadd.f32 %v7339, %v7342
    %vm7344 = vweird.f32 %v7211
    %vm7345 = vweird.f32 %v7339
    %vm7346 = vmor %vm7344, %vm7345
    %v7347 = vsel %vm7346, %v7339, %v7343
    %v7348 = vand.u32 2147483647, %v7211
    %vm7349 = vcmp.eq.f32.partialorder %v7348, 8.507059e+37
    %v7350 = vand.u32 %v7211, 2147483648
    %v7351 = vor.u32 1.1754944e-38, %v7350
    %v7352 = vsel %vm7349, %v7351, %v7347
    %v7353 = vmul.f32 1.0, %v7352
    %v7354 = vrcp.pop %v7212
    %v7355 = vmul.f32 %v7212, %v7354
    %v7356 = vsub.f32 1.0, %v7355
    %v7357 = vmul.f32 %v7354, %v7356
    %v7358 = vadd.f32 %v7354, %v7357
    %vm7359 = vweird.f32 %v7212
    %vm7360 = vweird.f32 %v7354
    %vm7361 = vmor %vm7359, %vm7360
    %v7362 = vsel %vm7361, %v7354, %v7358
    %v7363 = vand.u32 2147483647, %v7212
    %vm7364 = vcmp.eq.f32.partialorder %v7363, 8.507059e+37
    %v7365 = vand.u32 %v7212, 2147483648
    %v7366 = vor.u32 1.1754944e-38, %v7365
    %v7367 = vsel %vm7364, %v7366, %v7362
    %v7368 = vmul.f32 1.0, %v7367
    %v7369 = vrcp.pop %v7213
    %v7370 = vmul.f32 %v7213, %v7369
    %v7371 = vsub.f32 1.0, %v7370
    %v7372 = vmul.f32 %v7369, %v7371
    %v7373 = vadd.f32 %v7369, %v7372
    %vm7374 = vweird.f32 %v7213
    %vm7375 = vweird.f32 %v7369
    %vm7376 = vmor %vm7374, %vm7375
    %v7377 = vsel %vm7376, %v7369, %v7373
    %v7378 = vand.u32 2147483647, %v7213
    %vm7379 = vcmp.eq.f32.partialorder %v7378, 8.507059e+37
    %v7380 = vand.u32 %v7213, 2147483648
    %v7381 = vor.u32 1.1754944e-38, %v7380
    %v7382 = vsel %vm7379, %v7381, %v7377
    %v7383 = vmul.f32 1.0, %v7382
    %v7384 = vrcp.pop %v7214
    %v7385 = vmul.f32 %v7214, %v7384
    %v7386 = vsub.f32 1.0, %v7385
    %v7387 = vmul.f32 %v7384, %v7386
    %v7388 = vadd.f32 %v7384, %v7387
    %vm7389 = vweird.f32 %v7214
    %vm7390 = vweird.f32 %v7384
    %vm7391 = vmor %vm7389, %vm7390
    %v7392 = vsel %vm7391, %v7384, %v7388
    %v7393 = vand.u32 2147483647, %v7214
    %vm7394 = vcmp.eq.f32.partialorder %v7393, 8.507059e+37
    %v7395 = vand.u32 %v7214, 2147483648
    %v7396 = vor.u32 1.1754944e-38, %v7395
    %v7397 = vsel %vm7394, %v7396, %v7392
    %v7398 = vmul.f32 1.0, %v7397
    %v7399 = vrcp.pop %v7215
    %v7400 = vmul.f32 %v7215, %v7399
    %v7401 = vsub.f32 1.0, %v7400
    %v7402 = vmul.f32 %v7399, %v7401
    %v7403 = vadd.f32 %v7399, %v7402
    %vm7404 = vweird.f32 %v7215
    %vm7405 = vweird.f32 %v7399
    %vm7406 = vmor %vm7404, %vm7405
    %v7407 = vsel %vm7406, %v7399, %v7403
    %v7408 = vand.u32 2147483647, %v7215
    %vm7409 = vcmp.eq.f32.partialorder %v7408, 8.507059e+37
    %v7410 = vand.u32 %v7215, 2147483648
    %v7411 = vor.u32 1.1754944e-38, %v7410
    %v7412 = vsel %vm7409, %v7411, %v7407
    %v7413 = vmul.f32 1.0, %v7412
    %v7414 = vrcp.pop %v7216
    %v7415 = vmul.f32 %v7216, %v7414
    %v7416 = vsub.f32 1.0, %v7415
    %v7417 = vmul.f32 %v7414, %v7416
    %v7418 = vadd.f32 %v7414, %v7417
    %vm7419 = vweird.f32 %v7216
    %vm7420 = vweird.f32 %v7414
    %vm7421 = vmor %vm7419, %vm7420
    %v7422 = vsel %vm7421, %v7414, %v7418
    %v7423 = vand.u32 2147483647, %v7216
    %vm7424 = vcmp.eq.f32.partialorder %v7423, 8.507059e+37
    %v7425 = vand.u32 %v7216, 2147483648
    %v7426 = vor.u32 1.1754944e-38, %v7425
    %v7427 = vsel %vm7424, %v7426, %v7422
    %v7428 = vmul.f32 1.0, %v7427
    %v7429 = vrcp.pop %v7217
    %v7430 = vmul.f32 %v7217, %v7429
    %v7431 = vsub.f32 1.0, %v7430
    %v7432 = vmul.f32 %v7429, %v7431
    %v7433 = vadd.f32 %v7429, %v7432
    %vm7434 = vweird.f32 %v7217
    %vm7435 = vweird.f32 %v7429
    %vm7436 = vmor %vm7434, %vm7435
    %v7437 = vsel %vm7436, %v7429, %v7433
    %v7438 = vand.u32 2147483647, %v7217
    %vm7439 = vcmp.eq.f32.partialorder %v7438, 8.507059e+37
    %v7440 = vand.u32 %v7217, 2147483648
    %v7441 = vor.u32 1.1754944e-38, %v7440
    %v7442 = vsel %vm7439, %v7441, %v7437
    %v7443 = vmul.f32 1.0, %v7442
    %v7444 = vrcp.pop %v7218
    %v7445 = vmul.f32 %v7218, %v7444
    %v7446 = vsub.f32 1.0, %v7445
    %v7447 = vmul.f32 %v7444, %v7446
    %v7448 = vadd.f32 %v7444, %v7447
    %vm7449 = vweird.f32 %v7218
    %vm7450 = vweird.f32 %v7444
    %vm7451 = vmor %vm7449, %vm7450
    %v7452 = vsel %vm7451, %v7444, %v7448
    %v7453 = vand.u32 2147483647, %v7218
    %vm7454 = vcmp.eq.f32.partialorder %v7453, 8.507059e+37
    %v7455 = vand.u32 %v7218, 2147483648
    %v7456 = vor.u32 1.1754944e-38, %v7455
    %v7457 = vsel %vm7454, %v7456, %v7452
    %v7458 = vmul.f32 1.0, %v7457
    %v7460 = vrot.slane %v7063, 1
    %v7461 = vperm.slane %v7063, 0
    %v7462 = vperm.slane %v7460, 0
    %v7465 = vmul.f32 %v7461, %v6085
    %v7466 = vmul.f32 %v7461, %v6086
    %v7467 = vmul.f32 %v7461, %v6087
    %v7468 = vmul.f32 %v7461, %v6088
    %v7469 = vmul.f32 %v7461, %v6089
    %v7470 = vmul.f32 %v7461, %v6090
    %v7471 = vmul.f32 %v7461, %v6091
    %v7472 = vmul.f32 %v7461, %v6092
    %v7473 = vmul.f32 %v7462, %v6093
    %v7474 = vmul.f32 %v7462, %v6094
    %v7475 = vmul.f32 %v7462, %v6095
    %v7476 = vmul.f32 %v7462, %v6096
    %v7477 = vmul.f32 %v7462, %v6097
    %v7478 = vmul.f32 %v7462, %v6098
    %v7479 = vmul.f32 %v7462, %v6099
    %v7480 = vmul.f32 %v7462, %v6100
    %v7481 = vmul.f32 %v7233, %v5535
    %v7482 = vmul.f32 %v7248, %v5536
    %v7483 = vmul.f32 %v7263, %v5537
    %v7484 = vmul.f32 %v7278, %v5538
    %v7485 = vmul.f32 %v7293, %v5539
    %v7486 = vmul.f32 %v7308, %v5540
    %v7487 = vmul.f32 %v7323, %v5541
    %v7488 = vmul.f32 %v7338, %v5542
    %v7489 = vmul.f32 %v7353, %v5543
    %v7490 = vmul.f32 %v7368, %v5544
    %v7491 = vmul.f32 %v7383, %v5545
    %v7492 = vmul.f32 %v7398, %v5546
    %v7493 = vmul.f32 %v7413, %v5547
    %v7494 = vmul.f32 %v7428, %v5548
    %v7495 = vmul.f32 %v7443, %v5549
    %v7496 = vmul.f32 %v7458, %v5550
    %v7497 = vadd.f32 %v7465, %v7481
    %v7498 = vadd.f32 %v7466, %v7482
    %v7499 = vadd.f32 %v7467, %v7483
    %v7500 = vadd.f32 %v7468, %v7484
    %v7501 = vadd.f32 %v7469, %v7485
    %v7502 = vadd.f32 %v7470, %v7486
    %v7503 = vadd.f32 %v7471, %v7487
    %v7504 = vadd.f32 %v7472, %v7488
    %v7505 = vadd.f32 %v7473, %v7489
    %v7506 = vadd.f32 %v7474, %v7490
    %v7507 = vadd.f32 %v7475, %v7491
    %v7508 = vadd.f32 %v7476, %v7492
    %v7509 = vadd.f32 %v7477, %v7493
    %v7510 = vadd.f32 %v7478, %v7494
    %v7511 = vadd.f32 %v7479, %v7495
    %v7512 = vadd.f32 %v7480, %v7496
    %v7529 = vperm.slane %v7497, 0
    %v7530 = vlaneseq
    %v7531 = vshrl.u32 %v7530, 7
    %7533 = vset.pattern.permute.xlu0 %v7531
    %7534 = vperm.xlu0 %7533, %v7529
    %v7535 = vpop.permute.xlu0 %7534
    %v7536 = vperm.slane %v7497, 1
    %v7537 = vlaneseq
    %v7538 = vshrl.u32 %v7537, 7
    %7540 = vset.pattern.permute.xlu0 %v7538
    %7541 = vperm.xlu0 %7540, %v7536
    %v7542 = vpop.permute.xlu0 %7541
    %v7543 = vperm.slane %v7497, 2
    %v7544 = vlaneseq
    %v7545 = vshrl.u32 %v7544, 7
    %7547 = vset.pattern.permute.xlu0 %v7545
    %7548 = vperm.xlu0 %7547, %v7543
    %v7549 = vpop.permute.xlu0 %7548
    %v7550 = vperm.slane %v7497, 3
    %v7551 = vlaneseq
    %v7552 = vshrl.u32 %v7551, 7
    %7554 = vset.pattern.permute.xlu0 %v7552
    %7555 = vperm.xlu0 %7554, %v7550
    %v7556 = vpop.permute.xlu0 %7555
    %v7557 = vperm.slane %v7497, 4
    %v7558 = vlaneseq
    %v7559 = vshrl.u32 %v7558, 7
    %7561 = vset.pattern.permute.xlu0 %v7559
    %7562 = vperm.xlu0 %7561, %v7557
    %v7563 = vpop.permute.xlu0 %7562
    %v7564 = vperm.slane %v7497, 5
    %v7565 = vlaneseq
    %v7566 = vshrl.u32 %v7565, 7
    %7568 = vset.pattern.permute.xlu0 %v7566
    %7569 = vperm.xlu0 %7568, %v7564
    %v7570 = vpop.permute.xlu0 %7569
    %v7571 = vperm.slane %v7497, 6
    %v7572 = vlaneseq
    %v7573 = vshrl.u32 %v7572, 7
    %7575 = vset.pattern.permute.xlu0 %v7573
    %7576 = vperm.xlu0 %7575, %v7571
    %v7577 = vpop.permute.xlu0 %7576
    %v7578 = vperm.slane %v7497, 7
    %v7579 = vlaneseq
    %v7580 = vshrl.u32 %v7579, 7
    %7582 = vset.pattern.permute.xlu0 %v7580
    %7583 = vperm.xlu0 %7582, %v7578
    %v7584 = vpop.permute.xlu0 %7583
    %v7585 = vperm.slane %v7498, 0
    %v7586 = vlaneseq
    %v7587 = vshrl.u32 %v7586, 7
    %7589 = vset.pattern.permute.xlu0 %v7587
    %7590 = vperm.xlu0 %7589, %v7585
    %v7591 = vpop.permute.xlu0 %7590
    %v7592 = vperm.slane %v7498, 1
    %v7593 = vlaneseq
    %v7594 = vshrl.u32 %v7593, 7
    %7596 = vset.pattern.permute.xlu0 %v7594
    %7597 = vperm.xlu0 %7596, %v7592
    %v7598 = vpop.permute.xlu0 %7597
    %v7599 = vperm.slane %v7498, 2
    %v7600 = vlaneseq
    %v7601 = vshrl.u32 %v7600, 7
    %7603 = vset.pattern.permute.xlu0 %v7601
    %7604 = vperm.xlu0 %7603, %v7599
    %v7605 = vpop.permute.xlu0 %7604
    %v7606 = vperm.slane %v7498, 3
    %v7607 = vlaneseq
    %v7608 = vshrl.u32 %v7607, 7
    %7610 = vset.pattern.permute.xlu0 %v7608
    %7611 = vperm.xlu0 %7610, %v7606
    %v7612 = vpop.permute.xlu0 %7611
    %v7613 = vperm.slane %v7498, 4
    %v7614 = vlaneseq
    %v7615 = vshrl.u32 %v7614, 7
    %7617 = vset.pattern.permute.xlu0 %v7615
    %7618 = vperm.xlu0 %7617, %v7613
    %v7619 = vpop.permute.xlu0 %7618
    %v7620 = vperm.slane %v7498, 5
    %v7621 = vlaneseq
    %v7622 = vshrl.u32 %v7621, 7
    %7624 = vset.pattern.permute.xlu0 %v7622
    %7625 = vperm.xlu0 %7624, %v7620
    %v7626 = vpop.permute.xlu0 %7625
    %v7627 = vperm.slane %v7498, 6
    %v7628 = vlaneseq
    %v7629 = vshrl.u32 %v7628, 7
    %7631 = vset.pattern.permute.xlu0 %v7629
    %7632 = vperm.xlu0 %7631, %v7627
    %v7633 = vpop.permute.xlu0 %7632
    %v7634 = vperm.slane %v7498, 7
    %v7635 = vlaneseq
    %v7636 = vshrl.u32 %v7635, 7
    %7638 = vset.pattern.permute.xlu0 %v7636
    %7639 = vperm.xlu0 %7638, %v7634
    %v7640 = vpop.permute.xlu0 %7639
    %v7641 = vperm.slane %v7499, 0
    %v7642 = vlaneseq
    %v7643 = vshrl.u32 %v7642, 7
    %7645 = vset.pattern.permute.xlu0 %v7643
    %7646 = vperm.xlu0 %7645, %v7641
    %v7647 = vpop.permute.xlu0 %7646
    %v7648 = vperm.slane %v7499, 1
    %v7649 = vlaneseq
    %v7650 = vshrl.u32 %v7649, 7
    %7652 = vset.pattern.permute.xlu0 %v7650
    %7653 = vperm.xlu0 %7652, %v7648
    %v7654 = vpop.permute.xlu0 %7653
    %v7655 = vperm.slane %v7499, 2
    %v7656 = vlaneseq
    %v7657 = vshrl.u32 %v7656, 7
    %7659 = vset.pattern.permute.xlu0 %v7657
    %7660 = vperm.xlu0 %7659, %v7655
    %v7661 = vpop.permute.xlu0 %7660
    %v7662 = vperm.slane %v7499, 3
    %v7663 = vlaneseq
    %v7664 = vshrl.u32 %v7663, 7
    %7666 = vset.pattern.permute.xlu0 %v7664
    %7667 = vperm.xlu0 %7666, %v7662
    %v7668 = vpop.permute.xlu0 %7667
    %v7669 = vperm.slane %v7499, 4
    %v7670 = vlaneseq
    %v7671 = vshrl.u32 %v7670, 7
    %7673 = vset.pattern.permute.xlu0 %v7671
    %7674 = vperm.xlu0 %7673, %v7669
    %v7675 = vpop.permute.xlu0 %7674
    %v7676 = vperm.slane %v7499, 5
    %v7677 = vlaneseq
    %v7678 = vshrl.u32 %v7677, 7
    %7680 = vset.pattern.permute.xlu0 %v7678
    %7681 = vperm.xlu0 %7680, %v7676
    %v7682 = vpop.permute.xlu0 %7681
    %v7683 = vperm.slane %v7499, 6
    %v7684 = vlaneseq
    %v7685 = vshrl.u32 %v7684, 7
    %7687 = vset.pattern.permute.xlu0 %v7685
    %7688 = vperm.xlu0 %7687, %v7683
    %v7689 = vpop.permute.xlu0 %7688
    %v7690 = vperm.slane %v7499, 7
    %v7691 = vlaneseq
    %v7692 = vshrl.u32 %v7691, 7
    %7694 = vset.pattern.permute.xlu0 %v7692
    %7695 = vperm.xlu0 %7694, %v7690
    %v7696 = vpop.permute.xlu0 %7695
    %v7697 = vperm.slane %v7500, 0
    %v7698 = vlaneseq
    %v7699 = vshrl.u32 %v7698, 7
    %7701 = vset.pattern.permute.xlu0 %v7699
    %7702 = vperm.xlu0 %7701, %v7697
    %v7703 = vpop.permute.xlu0 %7702
    %v7704 = vperm.slane %v7500, 1
    %v7705 = vlaneseq
    %v7706 = vshrl.u32 %v7705, 7
    %7708 = vset.pattern.permute.xlu0 %v7706
    %7709 = vperm.xlu0 %7708, %v7704
    %v7710 = vpop.permute.xlu0 %7709
    %v7711 = vperm.slane %v7500, 2
    %v7712 = vlaneseq
    %v7713 = vshrl.u32 %v7712, 7
    %7715 = vset.pattern.permute.xlu0 %v7713
    %7716 = vperm.xlu0 %7715, %v7711
    %v7717 = vpop.permute.xlu0 %7716
    %v7718 = vperm.slane %v7500, 3
    %v7719 = vlaneseq
    %v7720 = vshrl.u32 %v7719, 7
    %7722 = vset.pattern.permute.xlu0 %v7720
    %7723 = vperm.xlu0 %7722, %v7718
    %v7724 = vpop.permute.xlu0 %7723
    %v7725 = vperm.slane %v7500, 4
    %v7726 = vlaneseq
    %v7727 = vshrl.u32 %v7726, 7
    %7729 = vset.pattern.permute.xlu0 %v7727
    %7730 = vperm.xlu0 %7729, %v7725
    %v7731 = vpop.permute.xlu0 %7730
    %v7732 = vperm.slane %v7500, 5
    %v7733 = vlaneseq
    %v7734 = vshrl.u32 %v7733, 7
    %7736 = vset.pattern.permute.xlu0 %v7734
    %7737 = vperm.xlu0 %7736, %v7732
    %v7738 = vpop.permute.xlu0 %7737
    %v7739 = vperm.slane %v7500, 6
    %v7740 = vlaneseq
    %v7741 = vshrl.u32 %v7740, 7
    %7743 = vset.pattern.permute.xlu0 %v7741
    %7744 = vperm.xlu0 %7743, %v7739
    %v7745 = vpop.permute.xlu0 %7744
    %v7746 = vperm.slane %v7500, 7
    %v7747 = vlaneseq
    %v7748 = vshrl.u32 %v7747, 7
    %7750 = vset.pattern.permute.xlu0 %v7748
    %7751 = vperm.xlu0 %7750, %v7746
    %v7752 = vpop.permute.xlu0 %7751
    %v7753 = vperm.slane %v7501, 0
    %v7754 = vlaneseq
    %v7755 = vshrl.u32 %v7754, 7
    %7757 = vset.pattern.permute.xlu0 %v7755
    %7758 = vperm.xlu0 %7757, %v7753
    %v7759 = vpop.permute.xlu0 %7758
    %v7760 = vperm.slane %v7501, 1
    %v7761 = vlaneseq
    %v7762 = vshrl.u32 %v7761, 7
    %7764 = vset.pattern.permute.xlu0 %v7762
    %7765 = vperm.xlu0 %7764, %v7760
    %v7766 = vpop.permute.xlu0 %7765
    %v7767 = vperm.slane %v7501, 2
    %v7768 = vlaneseq
    %v7769 = vshrl.u32 %v7768, 7
    %7771 = vset.pattern.permute.xlu0 %v7769
    %7772 = vperm.xlu0 %7771, %v7767
    %v7773 = vpop.permute.xlu0 %7772
    %v7774 = vperm.slane %v7501, 3
    %v7775 = vlaneseq
    %v7776 = vshrl.u32 %v7775, 7
    %7778 = vset.pattern.permute.xlu0 %v7776
    %7779 = vperm.xlu0 %7778, %v7774
    %v7780 = vpop.permute.xlu0 %7779
    %v7781 = vperm.slane %v7501, 4
    %v7782 = vlaneseq
    %v7783 = vshrl.u32 %v7782, 7
    %7785 = vset.pattern.permute.xlu0 %v7783
    %7786 = vperm.xlu0 %7785, %v7781
    %v7787 = vpop.permute.xlu0 %7786
    %v7788 = vperm.slane %v7501, 5
    %v7789 = vlaneseq
    %v7790 = vshrl.u32 %v7789, 7
    %7792 = vset.pattern.permute.xlu0 %v7790
    %7793 = vperm.xlu0 %7792, %v7788
    %v7794 = vpop.permute.xlu0 %7793
    %v7795 = vperm.slane %v7501, 6
    %v7796 = vlaneseq
    %v7797 = vshrl.u32 %v7796, 7
    %7799 = vset.pattern.permute.xlu0 %v7797
    %7800 = vperm.xlu0 %7799, %v7795
    %v7801 = vpop.permute.xlu0 %7800
    %v7802 = vperm.slane %v7501, 7
    %v7803 = vlaneseq
    %v7804 = vshrl.u32 %v7803, 7
    %7806 = vset.pattern.permute.xlu0 %v7804
    %7807 = vperm.xlu0 %7806, %v7802
    %v7808 = vpop.permute.xlu0 %7807
    %v7809 = vperm.slane %v7502, 0
    %v7810 = vlaneseq
    %v7811 = vshrl.u32 %v7810, 7
    %7813 = vset.pattern.permute.xlu0 %v7811
    %7814 = vperm.xlu0 %7813, %v7809
    %v7815 = vpop.permute.xlu0 %7814
    %v7816 = vperm.slane %v7502, 1
    %v7817 = vlaneseq
    %v7818 = vshrl.u32 %v7817, 7
    %7820 = vset.pattern.permute.xlu0 %v7818
    %7821 = vperm.xlu0 %7820, %v7816
    %v7822 = vpop.permute.xlu0 %7821
    %v7823 = vperm.slane %v7502, 2
    %v7824 = vlaneseq
    %v7825 = vshrl.u32 %v7824, 7
    %7827 = vset.pattern.permute.xlu0 %v7825
    %7828 = vperm.xlu0 %7827, %v7823
    %v7829 = vpop.permute.xlu0 %7828
    %v7830 = vperm.slane %v7502, 3
    %v7831 = vlaneseq
    %v7832 = vshrl.u32 %v7831, 7
    %7834 = vset.pattern.permute.xlu0 %v7832
    %7835 = vperm.xlu0 %7834, %v7830
    %v7836 = vpop.permute.xlu0 %7835
    %v7837 = vperm.slane %v7502, 4
    %v7838 = vlaneseq
    %v7839 = vshrl.u32 %v7838, 7
    %7841 = vset.pattern.permute.xlu0 %v7839
    %7842 = vperm.xlu0 %7841, %v7837
    %v7843 = vpop.permute.xlu0 %7842
    %v7844 = vperm.slane %v7502, 5
    %v7845 = vlaneseq
    %v7846 = vshrl.u32 %v7845, 7
    %7848 = vset.pattern.permute.xlu0 %v7846
    %7849 = vperm.xlu0 %7848, %v7844
    %v7850 = vpop.permute.xlu0 %7849
    %v7851 = vperm.slane %v7502, 6
    %v7852 = vlaneseq
    %v7853 = vshrl.u32 %v7852, 7
    %7855 = vset.pattern.permute.xlu0 %v7853
    %7856 = vperm.xlu0 %7855, %v7851
    %v7857 = vpop.permute.xlu0 %7856
    %v7858 = vperm.slane %v7502, 7
    %v7859 = vlaneseq
    %v7860 = vshrl.u32 %v7859, 7
    %7862 = vset.pattern.permute.xlu0 %v7860
    %7863 = vperm.xlu0 %7862, %v7858
    %v7864 = vpop.permute.xlu0 %7863
    %v7865 = vperm.slane %v7503, 0
    %v7866 = vlaneseq
    %v7867 = vshrl.u32 %v7866, 7
    %7869 = vset.pattern.permute.xlu0 %v7867
    %7870 = vperm.xlu0 %7869, %v7865
    %v7871 = vpop.permute.xlu0 %7870
    %v7872 = vperm.slane %v7503, 1
    %v7873 = vlaneseq
    %v7874 = vshrl.u32 %v7873, 7
    %7876 = vset.pattern.permute.xlu0 %v7874
    %7877 = vperm.xlu0 %7876, %v7872
    %v7878 = vpop.permute.xlu0 %7877
    %v7879 = vperm.slane %v7503, 2
    %v7880 = vlaneseq
    %v7881 = vshrl.u32 %v7880, 7
    %7883 = vset.pattern.permute.xlu0 %v7881
    %7884 = vperm.xlu0 %7883, %v7879
    %v7885 = vpop.permute.xlu0 %7884
    %v7886 = vperm.slane %v7503, 3
    %v7887 = vlaneseq
    %v7888 = vshrl.u32 %v7887, 7
    %7890 = vset.pattern.permute.xlu0 %v7888
    %7891 = vperm.xlu0 %7890, %v7886
    %v7892 = vpop.permute.xlu0 %7891
    %v7893 = vperm.slane %v7503, 4
    %v7894 = vlaneseq
    %v7895 = vshrl.u32 %v7894, 7
    %7897 = vset.pattern.permute.xlu0 %v7895
    %7898 = vperm.xlu0 %7897, %v7893
    %v7899 = vpop.permute.xlu0 %7898
    %v7900 = vperm.slane %v7503, 5
    %v7901 = vlaneseq
    %v7902 = vshrl.u32 %v7901, 7
    %7904 = vset.pattern.permute.xlu0 %v7902
    %7905 = vperm.xlu0 %7904, %v7900
    %v7906 = vpop.permute.xlu0 %7905
    %v7907 = vperm.slane %v7503, 6
    %v7908 = vlaneseq
    %v7909 = vshrl.u32 %v7908, 7
    %7911 = vset.pattern.permute.xlu0 %v7909
    %7912 = vperm.xlu0 %7911, %v7907
    %v7913 = vpop.permute.xlu0 %7912
    %v7914 = vperm.slane %v7503, 7
    %v7915 = vlaneseq
    %v7916 = vshrl.u32 %v7915, 7
    %7918 = vset.pattern.permute.xlu0 %v7916
    %7919 = vperm.xlu0 %7918, %v7914
    %v7920 = vpop.permute.xlu0 %7919
    %v7921 = vperm.slane %v7504, 0
    %v7922 = vlaneseq
    %v7923 = vshrl.u32 %v7922, 7
    %7925 = vset.pattern.permute.xlu0 %v7923
    %7926 = vperm.xlu0 %7925, %v7921
    %v7927 = vpop.permute.xlu0 %7926
    %v7928 = vperm.slane %v7504, 1
    %v7929 = vlaneseq
    %v7930 = vshrl.u32 %v7929, 7
    %7932 = vset.pattern.permute.xlu0 %v7930
    %7933 = vperm.xlu0 %7932, %v7928
    %v7934 = vpop.permute.xlu0 %7933
    %v7935 = vperm.slane %v7504, 2
    %v7936 = vlaneseq
    %v7937 = vshrl.u32 %v7936, 7
    %7939 = vset.pattern.permute.xlu0 %v7937
    %7940 = vperm.xlu0 %7939, %v7935
    %v7941 = vpop.permute.xlu0 %7940
    %v7942 = vperm.slane %v7504, 3
    %v7943 = vlaneseq
    %v7944 = vshrl.u32 %v7943, 7
    %7946 = vset.pattern.permute.xlu0 %v7944
    %7947 = vperm.xlu0 %7946, %v7942
    %v7948 = vpop.permute.xlu0 %7947
    %v7949 = vperm.slane %v7504, 4
    %v7950 = vlaneseq
    %v7951 = vshrl.u32 %v7950, 7
    %7953 = vset.pattern.permute.xlu0 %v7951
    %7954 = vperm.xlu0 %7953, %v7949
    %v7955 = vpop.permute.xlu0 %7954
    %v7956 = vperm.slane %v7504, 5
    %v7957 = vlaneseq
    %v7958 = vshrl.u32 %v7957, 7
    %7960 = vset.pattern.permute.xlu0 %v7958
    %7961 = vperm.xlu0 %7960, %v7956
    %v7962 = vpop.permute.xlu0 %7961
    %v7963 = vperm.slane %v7504, 6
    %v7964 = vlaneseq
    %v7965 = vshrl.u32 %v7964, 7
    %7967 = vset.pattern.permute.xlu0 %v7965
    %7968 = vperm.xlu0 %7967, %v7963
    %v7969 = vpop.permute.xlu0 %7968
    %v7970 = vperm.slane %v7504, 7
    %v7971 = vlaneseq
    %v7972 = vshrl.u32 %v7971, 7
    %7974 = vset.pattern.permute.xlu0 %v7972
    %7975 = vperm.xlu0 %7974, %v7970
    %v7976 = vpop.permute.xlu0 %7975
    %v7977 = vperm.slane %v7505, 0
    %v7978 = vlaneseq
    %v7979 = vshrl.u32 %v7978, 7
    %7981 = vset.pattern.permute.xlu0 %v7979
    %7982 = vperm.xlu0 %7981, %v7977
    %v7983 = vpop.permute.xlu0 %7982
    %v7984 = vperm.slane %v7505, 1
    %v7985 = vlaneseq
    %v7986 = vshrl.u32 %v7985, 7
    %7988 = vset.pattern.permute.xlu0 %v7986
    %7989 = vperm.xlu0 %7988, %v7984
    %v7990 = vpop.permute.xlu0 %7989
    %v7991 = vperm.slane %v7505, 2
    %v7992 = vlaneseq
    %v7993 = vshrl.u32 %v7992, 7
    %7995 = vset.pattern.permute.xlu0 %v7993
    %7996 = vperm.xlu0 %7995, %v7991
    %v7997 = vpop.permute.xlu0 %7996
    %v7998 = vperm.slane %v7505, 3
    %v7999 = vlaneseq
    %v8000 = vshrl.u32 %v7999, 7
    %8002 = vset.pattern.permute.xlu0 %v8000
    %8003 = vperm.xlu0 %8002, %v7998
    %v8004 = vpop.permute.xlu0 %8003
    %v8005 = vperm.slane %v7505, 4
    %v8006 = vlaneseq
    %v8007 = vshrl.u32 %v8006, 7
    %8009 = vset.pattern.permute.xlu0 %v8007
    %8010 = vperm.xlu0 %8009, %v8005
    %v8011 = vpop.permute.xlu0 %8010
    %v8012 = vperm.slane %v7505, 5
    %v8013 = vlaneseq
    %v8014 = vshrl.u32 %v8013, 7
    %8016 = vset.pattern.permute.xlu0 %v8014
    %8017 = vperm.xlu0 %8016, %v8012
    %v8018 = vpop.permute.xlu0 %8017
    %v8019 = vperm.slane %v7505, 6
    %v8020 = vlaneseq
    %v8021 = vshrl.u32 %v8020, 7
    %8023 = vset.pattern.permute.xlu0 %v8021
    %8024 = vperm.xlu0 %8023, %v8019
    %v8025 = vpop.permute.xlu0 %8024
    %v8026 = vperm.slane %v7505, 7
    %v8027 = vlaneseq
    %v8028 = vshrl.u32 %v8027, 7
    %8030 = vset.pattern.permute.xlu0 %v8028
    %8031 = vperm.xlu0 %8030, %v8026
    %v8032 = vpop.permute.xlu0 %8031
    %v8033 = vperm.slane %v7506, 0
    %v8034 = vlaneseq
    %v8035 = vshrl.u32 %v8034, 7
    %8037 = vset.pattern.permute.xlu0 %v8035
    %8038 = vperm.xlu0 %8037, %v8033
    %v8039 = vpop.permute.xlu0 %8038
    %v8040 = vperm.slane %v7506, 1
    %v8041 = vlaneseq
    %v8042 = vshrl.u32 %v8041, 7
    %8044 = vset.pattern.permute.xlu0 %v8042
    %8045 = vperm.xlu0 %8044, %v8040
    %v8046 = vpop.permute.xlu0 %8045
    %v8047 = vperm.slane %v7506, 2
    %v8048 = vlaneseq
    %v8049 = vshrl.u32 %v8048, 7
    %8051 = vset.pattern.permute.xlu0 %v8049
    %8052 = vperm.xlu0 %8051, %v8047
    %v8053 = vpop.permute.xlu0 %8052
    %v8054 = vperm.slane %v7506, 3
    %v8055 = vlaneseq
    %v8056 = vshrl.u32 %v8055, 7
    %8058 = vset.pattern.permute.xlu0 %v8056
    %8059 = vperm.xlu0 %8058, %v8054
    %v8060 = vpop.permute.xlu0 %8059
    %v8061 = vperm.slane %v7506, 4
    %v8062 = vlaneseq
    %v8063 = vshrl.u32 %v8062, 7
    %8065 = vset.pattern.permute.xlu0 %v8063
    %8066 = vperm.xlu0 %8065, %v8061
    %v8067 = vpop.permute.xlu0 %8066
    %v8068 = vperm.slane %v7506, 5
    %v8069 = vlaneseq
    %v8070 = vshrl.u32 %v8069, 7
    %8072 = vset.pattern.permute.xlu0 %v8070
    %8073 = vperm.xlu0 %8072, %v8068
    %v8074 = vpop.permute.xlu0 %8073
    %v8075 = vperm.slane %v7506, 6
    %v8076 = vlaneseq
    %v8077 = vshrl.u32 %v8076, 7
    %8079 = vset.pattern.permute.xlu0 %v8077
    %8080 = vperm.xlu0 %8079, %v8075
    %v8081 = vpop.permute.xlu0 %8080
    %v8082 = vperm.slane %v7506, 7
    %v8083 = vlaneseq
    %v8084 = vshrl.u32 %v8083, 7
    %8086 = vset.pattern.permute.xlu0 %v8084
    %8087 = vperm.xlu0 %8086, %v8082
    %v8088 = vpop.permute.xlu0 %8087
    %v8089 = vperm.slane %v7507, 0
    %v8090 = vlaneseq
    %v8091 = vshrl.u32 %v8090, 7
    %8093 = vset.pattern.permute.xlu0 %v8091
    %8094 = vperm.xlu0 %8093, %v8089
    %v8095 = vpop.permute.xlu0 %8094
    %v8096 = vperm.slane %v7507, 1
    %v8097 = vlaneseq
    %v8098 = vshrl.u32 %v8097, 7
    %8100 = vset.pattern.permute.xlu0 %v8098
    %8101 = vperm.xlu0 %8100, %v8096
    %v8102 = vpop.permute.xlu0 %8101
    %v8103 = vperm.slane %v7507, 2
    %v8104 = vlaneseq
    %v8105 = vshrl.u32 %v8104, 7
    %8107 = vset.pattern.permute.xlu0 %v8105
    %8108 = vperm.xlu0 %8107, %v8103
    %v8109 = vpop.permute.xlu0 %8108
    %v8110 = vperm.slane %v7507, 3
    %v8111 = vlaneseq
    %v8112 = vshrl.u32 %v8111, 7
    %8114 = vset.pattern.permute.xlu0 %v8112
    %8115 = vperm.xlu0 %8114, %v8110
    %v8116 = vpop.permute.xlu0 %8115
    %v8117 = vperm.slane %v7507, 4
    %v8118 = vlaneseq
    %v8119 = vshrl.u32 %v8118, 7
    %8121 = vset.pattern.permute.xlu0 %v8119
    %8122 = vperm.xlu0 %8121, %v8117
    %v8123 = vpop.permute.xlu0 %8122
    %v8124 = vperm.slane %v7507, 5
    %v8125 = vlaneseq
    %v8126 = vshrl.u32 %v8125, 7
    %8128 = vset.pattern.permute.xlu0 %v8126
    %8129 = vperm.xlu0 %8128, %v8124
    %v8130 = vpop.permute.xlu0 %8129
    %v8131 = vperm.slane %v7507, 6
    %v8132 = vlaneseq
    %v8133 = vshrl.u32 %v8132, 7
    %8135 = vset.pattern.permute.xlu0 %v8133
    %8136 = vperm.xlu0 %8135, %v8131
    %v8137 = vpop.permute.xlu0 %8136
    %v8138 = vperm.slane %v7507, 7
    %v8139 = vlaneseq
    %v8140 = vshrl.u32 %v8139, 7
    %8142 = vset.pattern.permute.xlu0 %v8140
    %8143 = vperm.xlu0 %8142, %v8138
    %v8144 = vpop.permute.xlu0 %8143
    %v8145 = vperm.slane %v7508, 0
    %v8146 = vlaneseq
    %v8147 = vshrl.u32 %v8146, 7
    %8149 = vset.pattern.permute.xlu0 %v8147
    %8150 = vperm.xlu0 %8149, %v8145
    %v8151 = vpop.permute.xlu0 %8150
    %v8152 = vperm.slane %v7508, 1
    %v8153 = vlaneseq
    %v8154 = vshrl.u32 %v8153, 7
    %8156 = vset.pattern.permute.xlu0 %v8154
    %8157 = vperm.xlu0 %8156, %v8152
    %v8158 = vpop.permute.xlu0 %8157
    %v8159 = vperm.slane %v7508, 2
    %v8160 = vlaneseq
    %v8161 = vshrl.u32 %v8160, 7
    %8163 = vset.pattern.permute.xlu0 %v8161
    %8164 = vperm.xlu0 %8163, %v8159
    %v8165 = vpop.permute.xlu0 %8164
    %v8166 = vperm.slane %v7508, 3
    %v8167 = vlaneseq
    %v8168 = vshrl.u32 %v8167, 7
    %8170 = vset.pattern.permute.xlu0 %v8168
    %8171 = vperm.xlu0 %8170, %v8166
    %v8172 = vpop.permute.xlu0 %8171
    %v8173 = vperm.slane %v7508, 4
    %v8174 = vlaneseq
    %v8175 = vshrl.u32 %v8174, 7
    %8177 = vset.pattern.permute.xlu0 %v8175
    %8178 = vperm.xlu0 %8177, %v8173
    %v8179 = vpop.permute.xlu0 %8178
    %v8180 = vperm.slane %v7508, 5
    %v8181 = vlaneseq
    %v8182 = vshrl.u32 %v8181, 7
    %8184 = vset.pattern.permute.xlu0 %v8182
    %8185 = vperm.xlu0 %8184, %v8180
    %v8186 = vpop.permute.xlu0 %8185
    %v8187 = vperm.slane %v7508, 6
    %v8188 = vlaneseq
    %v8189 = vshrl.u32 %v8188, 7
    %8191 = vset.pattern.permute.xlu0 %v8189
    %8192 = vperm.xlu0 %8191, %v8187
    %v8193 = vpop.permute.xlu0 %8192
    %v8194 = vperm.slane %v7508, 7
    %v8195 = vlaneseq
    %v8196 = vshrl.u32 %v8195, 7
    %8198 = vset.pattern.permute.xlu0 %v8196
    %8199 = vperm.xlu0 %8198, %v8194
    %v8200 = vpop.permute.xlu0 %8199
    %v8201 = vperm.slane %v7509, 0
    %v8202 = vlaneseq
    %v8203 = vshrl.u32 %v8202, 7
    %8205 = vset.pattern.permute.xlu0 %v8203
    %8206 = vperm.xlu0 %8205, %v8201
    %v8207 = vpop.permute.xlu0 %8206
    %v8208 = vperm.slane %v7509, 1
    %v8209 = vlaneseq
    %v8210 = vshrl.u32 %v8209, 7
    %8212 = vset.pattern.permute.xlu0 %v8210
    %8213 = vperm.xlu0 %8212, %v8208
    %v8214 = vpop.permute.xlu0 %8213
    %v8215 = vperm.slane %v7509, 2
    %v8216 = vlaneseq
    %v8217 = vshrl.u32 %v8216, 7
    %8219 = vset.pattern.permute.xlu0 %v8217
    %8220 = vperm.xlu0 %8219, %v8215
    %v8221 = vpop.permute.xlu0 %8220
    %v8222 = vperm.slane %v7509, 3
    %v8223 = vlaneseq
    %v8224 = vshrl.u32 %v8223, 7
    %8226 = vset.pattern.permute.xlu0 %v8224
    %8227 = vperm.xlu0 %8226, %v8222
    %v8228 = vpop.permute.xlu0 %8227
    %v8229 = vperm.slane %v7509, 4
    %v8230 = vlaneseq
    %v8231 = vshrl.u32 %v8230, 7
    %8233 = vset.pattern.permute.xlu0 %v8231
    %8234 = vperm.xlu0 %8233, %v8229
    %v8235 = vpop.permute.xlu0 %8234
    %v8236 = vperm.slane %v7509, 5
    %v8237 = vlaneseq
    %v8238 = vshrl.u32 %v8237, 7
    %8240 = vset.pattern.permute.xlu0 %v8238
    %8241 = vperm.xlu0 %8240, %v8236
    %v8242 = vpop.permute.xlu0 %8241
    %v8243 = vperm.slane %v7509, 6
    %v8244 = vlaneseq
    %v8245 = vshrl.u32 %v8244, 7
    %8247 = vset.pattern.permute.xlu0 %v8245
    %8248 = vperm.xlu0 %8247, %v8243
    %v8249 = vpop.permute.xlu0 %8248
    %v8250 = vperm.slane %v7509, 7
    %v8251 = vlaneseq
    %v8252 = vshrl.u32 %v8251, 7
    %8254 = vset.pattern.permute.xlu0 %v8252
    %8255 = vperm.xlu0 %8254, %v8250
    %v8256 = vpop.permute.xlu0 %8255
    %v8257 = vperm.slane %v7510, 0
    %v8258 = vlaneseq
    %v8259 = vshrl.u32 %v8258, 7
    %8261 = vset.pattern.permute.xlu0 %v8259
    %8262 = vperm.xlu0 %8261, %v8257
    %v8263 = vpop.permute.xlu0 %8262
    %v8264 = vperm.slane %v7510, 1
    %v8265 = vlaneseq
    %v8266 = vshrl.u32 %v8265, 7
    %8268 = vset.pattern.permute.xlu0 %v8266
    %8269 = vperm.xlu0 %8268, %v8264
    %v8270 = vpop.permute.xlu0 %8269
    %v8271 = vperm.slane %v7510, 2
    %v8272 = vlaneseq
    %v8273 = vshrl.u32 %v8272, 7
    %8275 = vset.pattern.permute.xlu0 %v8273
    %8276 = vperm.xlu0 %8275, %v8271
    %v8277 = vpop.permute.xlu0 %8276
    %v8278 = vperm.slane %v7510, 3
    %v8279 = vlaneseq
    %v8280 = vshrl.u32 %v8279, 7
    %8282 = vset.pattern.permute.xlu0 %v8280
    %8283 = vperm.xlu0 %8282, %v8278
    %v8284 = vpop.permute.xlu0 %8283
    %v8285 = vperm.slane %v7510, 4
    %v8286 = vlaneseq
    %v8287 = vshrl.u32 %v8286, 7
    %8289 = vset.pattern.permute.xlu0 %v8287
    %8290 = vperm.xlu0 %8289, %v8285
    %v8291 = vpop.permute.xlu0 %8290
    %v8292 = vperm.slane %v7510, 5
    %v8293 = vlaneseq
    %v8294 = vshrl.u32 %v8293, 7
    %8296 = vset.pattern.permute.xlu0 %v8294
    %8297 = vperm.xlu0 %8296, %v8292
    %v8298 = vpop.permute.xlu0 %8297
    %v8299 = vperm.slane %v7510, 6
    %v8300 = vlaneseq
    %v8301 = vshrl.u32 %v8300, 7
    %8303 = vset.pattern.permute.xlu0 %v8301
    %8304 = vperm.xlu0 %8303, %v8299
    %v8305 = vpop.permute.xlu0 %8304
    %v8306 = vperm.slane %v7510, 7
    %v8307 = vlaneseq
    %v8308 = vshrl.u32 %v8307, 7
    %8310 = vset.pattern.permute.xlu0 %v8308
    %8311 = vperm.xlu0 %8310, %v8306
    %v8312 = vpop.permute.xlu0 %8311
    %v8313 = vperm.slane %v7511, 0
    %v8314 = vlaneseq
    %v8315 = vshrl.u32 %v8314, 7
    %8317 = vset.pattern.permute.xlu0 %v8315
    %8318 = vperm.xlu0 %8317, %v8313
    %v8319 = vpop.permute.xlu0 %8318
    %v8320 = vperm.slane %v7511, 1
    %v8321 = vlaneseq
    %v8322 = vshrl.u32 %v8321, 7
    %8324 = vset.pattern.permute.xlu0 %v8322
    %8325 = vperm.xlu0 %8324, %v8320
    %v8326 = vpop.permute.xlu0 %8325
    %v8327 = vperm.slane %v7511, 2
    %v8328 = vlaneseq
    %v8329 = vshrl.u32 %v8328, 7
    %8331 = vset.pattern.permute.xlu0 %v8329
    %8332 = vperm.xlu0 %8331, %v8327
    %v8333 = vpop.permute.xlu0 %8332
    %v8334 = vperm.slane %v7511, 3
    %v8335 = vlaneseq
    %v8336 = vshrl.u32 %v8335, 7
    %8338 = vset.pattern.permute.xlu0 %v8336
    %8339 = vperm.xlu0 %8338, %v8334
    %v8340 = vpop.permute.xlu0 %8339
    %v8341 = vperm.slane %v7511, 4
    %v8342 = vlaneseq
    %v8343 = vshrl.u32 %v8342, 7
    %8345 = vset.pattern.permute.xlu0 %v8343
    %8346 = vperm.xlu0 %8345, %v8341
    %v8347 = vpop.permute.xlu0 %8346
    %v8348 = vperm.slane %v7511, 5
    %v8349 = vlaneseq
    %v8350 = vshrl.u32 %v8349, 7
    %8352 = vset.pattern.permute.xlu0 %v8350
    %8353 = vperm.xlu0 %8352, %v8348
    %v8354 = vpop.permute.xlu0 %8353
    %v8355 = vperm.slane %v7511, 6
    %v8356 = vlaneseq
    %v8357 = vshrl.u32 %v8356, 7
    %8359 = vset.pattern.permute.xlu0 %v8357
    %8360 = vperm.xlu0 %8359, %v8355
    %v8361 = vpop.permute.xlu0 %8360
    %v8362 = vperm.slane %v7511, 7
    %v8363 = vlaneseq
    %v8364 = vshrl.u32 %v8363, 7
    %8366 = vset.pattern.permute.xlu0 %v8364
    %8367 = vperm.xlu0 %8366, %v8362
    %v8368 = vpop.permute.xlu0 %8367
    %v8369 = vperm.slane %v7512, 0
    %v8370 = vlaneseq
    %v8371 = vshrl.u32 %v8370, 7
    %8373 = vset.pattern.permute.xlu0 %v8371
    %8374 = vperm.xlu0 %8373, %v8369
    %v8375 = vpop.permute.xlu0 %8374
    %v8376 = vperm.slane %v7512, 1
    %v8377 = vlaneseq
    %v8378 = vshrl.u32 %v8377, 7
    %8380 = vset.pattern.permute.xlu0 %v8378
    %8381 = vperm.xlu0 %8380, %v8376
    %v8382 = vpop.permute.xlu0 %8381
    %v8383 = vperm.slane %v7512, 2
    %v8384 = vlaneseq
    %v8385 = vshrl.u32 %v8384, 7
    %8387 = vset.pattern.permute.xlu0 %v8385
    %8388 = vperm.xlu0 %8387, %v8383
    %v8389 = vpop.permute.xlu0 %8388
    %v8390 = vperm.slane %v7512, 3
    %v8391 = vlaneseq
    %v8392 = vshrl.u32 %v8391, 7
    %8394 = vset.pattern.permute.xlu0 %v8392
    %8395 = vperm.xlu0 %8394, %v8390
    %v8396 = vpop.permute.xlu0 %8395
    %v8397 = vperm.slane %v7512, 4
    %v8398 = vlaneseq
    %v8399 = vshrl.u32 %v8398, 7
    %8401 = vset.pattern.permute.xlu0 %v8399
    %8402 = vperm.xlu0 %8401, %v8397
    %v8403 = vpop.permute.xlu0 %8402
    %v8404 = vperm.slane %v7512, 5
    %v8405 = vlaneseq
    %v8406 = vshrl.u32 %v8405, 7
    %8408 = vset.pattern.permute.xlu0 %v8406
    %8409 = vperm.xlu0 %8408, %v8404
    %v8410 = vpop.permute.xlu0 %8409
    %v8411 = vperm.slane %v7512, 6
    %v8412 = vlaneseq
    %v8413 = vshrl.u32 %v8412, 7
    %8415 = vset.pattern.permute.xlu0 %v8413
    %8416 = vperm.xlu0 %8415, %v8411
    %v8417 = vpop.permute.xlu0 %8416
    %v8418 = vperm.slane %v7512, 7
    %v8419 = vlaneseq
    %v8420 = vshrl.u32 %v8419, 7
    %8422 = vset.pattern.permute.xlu0 %v8420
    %8423 = vperm.xlu0 %8422, %v8418
    %v8424 = vpop.permute.xlu0 %8423
    %v8553 = vmul.f32 %v6925, %v7535
    %v8554 = vmul.f32 %v6925, %v7542
    %v8555 = vmul.f32 %v6925, %v7549
    %v8556 = vmul.f32 %v6925, %v7556
    %v8557 = vmul.f32 %v6925, %v7563
    %v8558 = vmul.f32 %v6925, %v7570
    %v8559 = vmul.f32 %v6925, %v7577
    %v8560 = vmul.f32 %v6925, %v7584
    %v8561 = vmul.f32 %v6925, %v7591
    %v8562 = vmul.f32 %v6925, %v7598
    %v8563 = vmul.f32 %v6925, %v7605
    %v8564 = vmul.f32 %v6925, %v7612
    %v8565 = vmul.f32 %v6925, %v7619
    %v8566 = vmul.f32 %v6925, %v7626
    %v8567 = vmul.f32 %v6925, %v7633
    %v8568 = vmul.f32 %v6925, %v7640
    %v8569 = vmul.f32 %v6925, %v7647
    %v8570 = vmul.f32 %v6925, %v7654
    %v8571 = vmul.f32 %v6925, %v7661
    %v8572 = vmul.f32 %v6925, %v7668
    %v8573 = vmul.f32 %v6925, %v7675
    %v8574 = vmul.f32 %v6925, %v7682
    %v8575 = vmul.f32 %v6925, %v7689
    %v8576 = vmul.f32 %v6925, %v7696
    %v8577 = vmul.f32 %v6925, %v7703
    %v8578 = vmul.f32 %v6925, %v7710
    %v8579 = vmul.f32 %v6925, %v7717
    %v8580 = vmul.f32 %v6925, %v7724
    %v8581 = vmul.f32 %v6925, %v7731
    %v8582 = vmul.f32 %v6925, %v7738
    %v8583 = vmul.f32 %v6925, %v7745
    %v8584 = vmul.f32 %v6925, %v7752
    %v8585 = vmul.f32 %v6925, %v7759
    %v8586 = vmul.f32 %v6925, %v7766
    %v8587 = vmul.f32 %v6925, %v7773
    %v8588 = vmul.f32 %v6925, %v7780
    %v8589 = vmul.f32 %v6925, %v7787
    %v8590 = vmul.f32 %v6925, %v7794
    %v8591 = vmul.f32 %v6925, %v7801
    %v8592 = vmul.f32 %v6925, %v7808
    %v8593 = vmul.f32 %v6925, %v7815
    %v8594 = vmul.f32 %v6925, %v7822
    %v8595 = vmul.f32 %v6925, %v7829
    %v8596 = vmul.f32 %v6925, %v7836
    %v8597 = vmul.f32 %v6925, %v7843
    %v8598 = vmul.f32 %v6925, %v7850
    %v8599 = vmul.f32 %v6925, %v7857
    %v8600 = vmul.f32 %v6925, %v7864
    %v8601 = vmul.f32 %v6925, %v7871
    %v8602 = vmul.f32 %v6925, %v7878
    %v8603 = vmul.f32 %v6925, %v7885
    %v8604 = vmul.f32 %v6925, %v7892
    %v8605 = vmul.f32 %v6925, %v7899
    %v8606 = vmul.f32 %v6925, %v7906
    %v8607 = vmul.f32 %v6925, %v7913
    %v8608 = vmul.f32 %v6925, %v7920
    %v8609 = vmul.f32 %v6925, %v7927
    %v8610 = vmul.f32 %v6925, %v7934
    %v8611 = vmul.f32 %v6925, %v7941
    %v8612 = vmul.f32 %v6925, %v7948
    %v8613 = vmul.f32 %v6925, %v7955
    %v8614 = vmul.f32 %v6925, %v7962
    %v8615 = vmul.f32 %v6925, %v7969
    %v8616 = vmul.f32 %v6925, %v7976
    %v8617 = vmul.f32 %v6926, %v7983
    %v8618 = vmul.f32 %v6926, %v7990
    %v8619 = vmul.f32 %v6926, %v7997
    %v8620 = vmul.f32 %v6926, %v8004
    %v8621 = vmul.f32 %v6926, %v8011
    %v8622 = vmul.f32 %v6926, %v8018
    %v8623 = vmul.f32 %v6926, %v8025
    %v8624 = vmul.f32 %v6926, %v8032
    %v8625 = vmul.f32 %v6926, %v8039
    %v8626 = vmul.f32 %v6926, %v8046
    %v8627 = vmul.f32 %v6926, %v8053
    %v8628 = vmul.f32 %v6926, %v8060
    %v8629 = vmul.f32 %v6926, %v8067
    %v8630 = vmul.f32 %v6926, %v8074
    %v8631 = vmul.f32 %v6926, %v8081
    %v8632 = vmul.f32 %v6926, %v8088
    %v8633 = vmul.f32 %v6926, %v8095
    %v8634 = vmul.f32 %v6926, %v8102
    %v8635 = vmul.f32 %v6926, %v8109
    %v8636 = vmul.f32 %v6926, %v8116
    %v8637 = vmul.f32 %v6926, %v8123
    %v8638 = vmul.f32 %v6926, %v8130
    %v8639 = vmul.f32 %v6926, %v8137
    %v8640 = vmul.f32 %v6926, %v8144
    %v8641 = vmul.f32 %v6926, %v8151
    %v8642 = vmul.f32 %v6926, %v8158
    %v8643 = vmul.f32 %v6926, %v8165
    %v8644 = vmul.f32 %v6926, %v8172
    %v8645 = vmul.f32 %v6926, %v8179
    %v8646 = vmul.f32 %v6926, %v8186
    %v8647 = vmul.f32 %v6926, %v8193
    %v8648 = vmul.f32 %v6926, %v8200
    %v8649 = vmul.f32 %v6926, %v8207
    %v8650 = vmul.f32 %v6926, %v8214
    %v8651 = vmul.f32 %v6926, %v8221
    %v8652 = vmul.f32 %v6926, %v8228
    %v8653 = vmul.f32 %v6926, %v8235
    %v8654 = vmul.f32 %v6926, %v8242
    %v8655 = vmul.f32 %v6926, %v8249
    %v8656 = vmul.f32 %v6926, %v8256
    %v8657 = vmul.f32 %v6926, %v8263
    %v8658 = vmul.f32 %v6926, %v8270
    %v8659 = vmul.f32 %v6926, %v8277
    %v8660 = vmul.f32 %v6926, %v8284
    %v8661 = vmul.f32 %v6926, %v8291
    %v8662 = vmul.f32 %v6926, %v8298
    %v8663 = vmul.f32 %v6926, %v8305
    %v8664 = vmul.f32 %v6926, %v8312
    %v8665 = vmul.f32 %v6926, %v8319
    %v8666 = vmul.f32 %v6926, %v8326
    %v8667 = vmul.f32 %v6926, %v8333
    %v8668 = vmul.f32 %v6926, %v8340
    %v8669 = vmul.f32 %v6926, %v8347
    %v8670 = vmul.f32 %v6926, %v8354
    %v8671 = vmul.f32 %v6926, %v8361
    %v8672 = vmul.f32 %v6926, %v8368
    %v8673 = vmul.f32 %v6926, %v8375
    %v8674 = vmul.f32 %v6926, %v8382
    %v8675 = vmul.f32 %v6926, %v8389
    %v8676 = vmul.f32 %v6926, %v8396
    %v8677 = vmul.f32 %v6926, %v8403
    %v8678 = vmul.f32 %v6926, %v8410
    %v8679 = vmul.f32 %v6926, %v8417
    %v8680 = vmul.f32 %v6926, %v8424
    %v8681 = vpack.c.bf16 %v8553, %v8553
    %v8682 = vpack.c.bf16 %v8554, %v8554
    %v8683 = vpack.c.bf16 %v8555, %v8555
    %v8684 = vpack.c.bf16 %v8556, %v8556
    %v8685 = vpack.c.bf16 %v8557, %v8557
    %v8686 = vpack.c.bf16 %v8558, %v8558
    %v8687 = vpack.c.bf16 %v8559, %v8559
    %v8688 = vpack.c.bf16 %v8560, %v8560
    %v8689 = vpack.c.bf16 %v8561, %v8561
    %v8690 = vpack.c.bf16 %v8562, %v8562
    %v8691 = vpack.c.bf16 %v8563, %v8563
    %v8692 = vpack.c.bf16 %v8564, %v8564
    %v8693 = vpack.c.bf16 %v8565, %v8565
    %v8694 = vpack.c.bf16 %v8566, %v8566
    %v8695 = vpack.c.bf16 %v8567, %v8567
    %v8696 = vpack.c.bf16 %v8568, %v8568
    %v8697 = vpack.c.bf16 %v8569, %v8569
    %v8698 = vpack.c.bf16 %v8570, %v8570
    %v8699 = vpack.c.bf16 %v8571, %v8571
    %v8700 = vpack.c.bf16 %v8572, %v8572
    %v8701 = vpack.c.bf16 %v8573, %v8573
    %v8702 = vpack.c.bf16 %v8574, %v8574
    %v8703 = vpack.c.bf16 %v8575, %v8575
    %v8704 = vpack.c.bf16 %v8576, %v8576
    %v8705 = vpack.c.bf16 %v8577, %v8577
    %v8706 = vpack.c.bf16 %v8578, %v8578
    %v8707 = vpack.c.bf16 %v8579, %v8579
    %v8708 = vpack.c.bf16 %v8580, %v8580
    %v8709 = vpack.c.bf16 %v8581, %v8581
    %v8710 = vpack.c.bf16 %v8582, %v8582
    %v8711 = vpack.c.bf16 %v8583, %v8583
    %v8712 = vpack.c.bf16 %v8584, %v8584
    %v8713 = vpack.c.bf16 %v8585, %v8585
    %v8714 = vpack.c.bf16 %v8586, %v8586
    %v8715 = vpack.c.bf16 %v8587, %v8587
    %v8716 = vpack.c.bf16 %v8588, %v8588
    %v8717 = vpack.c.bf16 %v8589, %v8589
    %v8718 = vpack.c.bf16 %v8590, %v8590
    %v8719 = vpack.c.bf16 %v8591, %v8591
    %v8720 = vpack.c.bf16 %v8592, %v8592
    %v8721 = vpack.c.bf16 %v8593, %v8593
    %v8722 = vpack.c.bf16 %v8594, %v8594
    %v8723 = vpack.c.bf16 %v8595, %v8595
    %v8724 = vpack.c.bf16 %v8596, %v8596
    %v8725 = vpack.c.bf16 %v8597, %v8597
    %v8726 = vpack.c.bf16 %v8598, %v8598
    %v8727 = vpack.c.bf16 %v8599, %v8599
    %v8728 = vpack.c.bf16 %v8600, %v8600
    %v8729 = vpack.c.bf16 %v8601, %v8601
    %v8730 = vpack.c.bf16 %v8602, %v8602
    %v8731 = vpack.c.bf16 %v8603, %v8603
    %v8732 = vpack.c.bf16 %v8604, %v8604
    %v8733 = vpack.c.bf16 %v8605, %v8605
    %v8734 = vpack.c.bf16 %v8606, %v8606
    %v8735 = vpack.c.bf16 %v8607, %v8607
    %v8736 = vpack.c.bf16 %v8608, %v8608
    %v8737 = vpack.c.bf16 %v8609, %v8609
    %v8738 = vpack.c.bf16 %v8610, %v8610
    %v8739 = vpack.c.bf16 %v8611, %v8611
    %v8740 = vpack.c.bf16 %v8612, %v8612
    %v8741 = vpack.c.bf16 %v8613, %v8613
    %v8742 = vpack.c.bf16 %v8614, %v8614
    %v8743 = vpack.c.bf16 %v8615, %v8615
    %v8744 = vpack.c.bf16 %v8616, %v8616
    %v8745 = vpack.c.bf16 %v8617, %v8617
    %v8746 = vpack.c.bf16 %v8618, %v8618
    %v8747 = vpack.c.bf16 %v8619, %v8619
    %v8748 = vpack.c.bf16 %v8620, %v8620
    %v8749 = vpack.c.bf16 %v8621, %v8621
    %v8750 = vpack.c.bf16 %v8622, %v8622
    %v8751 = vpack.c.bf16 %v8623, %v8623
    %v8752 = vpack.c.bf16 %v8624, %v8624
    %v8753 = vpack.c.bf16 %v8625, %v8625
    %v8754 = vpack.c.bf16 %v8626, %v8626
    %v8755 = vpack.c.bf16 %v8627, %v8627
    %v8756 = vpack.c.bf16 %v8628, %v8628
    %v8757 = vpack.c.bf16 %v8629, %v8629
    %v8758 = vpack.c.bf16 %v8630, %v8630
    %v8759 = vpack.c.bf16 %v8631, %v8631
    %v8760 = vpack.c.bf16 %v8632, %v8632
    %v8761 = vpack.c.bf16 %v8633, %v8633
    %v8762 = vpack.c.bf16 %v8634, %v8634
    %v8763 = vpack.c.bf16 %v8635, %v8635
    %v8764 = vpack.c.bf16 %v8636, %v8636
    %v8765 = vpack.c.bf16 %v8637, %v8637
    %v8766 = vpack.c.bf16 %v8638, %v8638
    %v8767 = vpack.c.bf16 %v8639, %v8639
    %v8768 = vpack.c.bf16 %v8640, %v8640
    %v8769 = vpack.c.bf16 %v8641, %v8641
    %v8770 = vpack.c.bf16 %v8642, %v8642
    %v8771 = vpack.c.bf16 %v8643, %v8643
    %v8772 = vpack.c.bf16 %v8644, %v8644
    %v8773 = vpack.c.bf16 %v8645, %v8645
    %v8774 = vpack.c.bf16 %v8646, %v8646
    %v8775 = vpack.c.bf16 %v8647, %v8647
    %v8776 = vpack.c.bf16 %v8648, %v8648
    %v8777 = vpack.c.bf16 %v8649, %v8649
    %v8778 = vpack.c.bf16 %v8650, %v8650
    %v8779 = vpack.c.bf16 %v8651, %v8651
    %v8780 = vpack.c.bf16 %v8652, %v8652
    %v8781 = vpack.c.bf16 %v8653, %v8653
    %v8782 = vpack.c.bf16 %v8654, %v8654
    %v8783 = vpack.c.bf16 %v8655, %v8655
    %v8784 = vpack.c.bf16 %v8656, %v8656
    %v8785 = vpack.c.bf16 %v8657, %v8657
    %v8786 = vpack.c.bf16 %v8658, %v8658
    %v8787 = vpack.c.bf16 %v8659, %v8659
    %v8788 = vpack.c.bf16 %v8660, %v8660
    %v8789 = vpack.c.bf16 %v8661, %v8661
    %v8790 = vpack.c.bf16 %v8662, %v8662
    %v8791 = vpack.c.bf16 %v8663, %v8663
    %v8792 = vpack.c.bf16 %v8664, %v8664
    %v8793 = vpack.c.bf16 %v8665, %v8665
    %v8794 = vpack.c.bf16 %v8666, %v8666
    %v8795 = vpack.c.bf16 %v8667, %v8667
    %v8796 = vpack.c.bf16 %v8668, %v8668
    %v8797 = vpack.c.bf16 %v8669, %v8669
    %v8798 = vpack.c.bf16 %v8670, %v8670
    %v8799 = vpack.c.bf16 %v8671, %v8671
    %v8800 = vpack.c.bf16 %v8672, %v8672
    %v8801 = vpack.c.bf16 %v8673, %v8673
    %v8802 = vpack.c.bf16 %v8674, %v8674
    %v8803 = vpack.c.bf16 %v8675, %v8675
    %v8804 = vpack.c.bf16 %v8676, %v8676
    %v8805 = vpack.c.bf16 %v8677, %v8677
    %v8806 = vpack.c.bf16 %v8678, %v8678
    %v8807 = vpack.c.bf16 %v8679, %v8679
    %v8808 = vpack.c.bf16 %v8680, %v8680
    %v8809 = vld [vmem:[%s53] sm:$0xff]
    %v8810 = vld [vmem:[%s53 + $0x8] sm:$0xff]
    %v8811 = vpack.c.bf16 %v8809, %v8809
    %v8812 = vpack.c.bf16 %v8810, %v8810
    %v8941 = vunpack.c.l.b16 %v8681
    %v8942 = vunpack.c.l.b16 %v8682
    %v8943 = vunpack.c.l.b16 %v8683
    %v8944 = vunpack.c.l.b16 %v8684
    %v8945 = vunpack.c.l.b16 %v8685
    %v8946 = vunpack.c.l.b16 %v8686
    %v8947 = vunpack.c.l.b16 %v8687
    %v8948 = vunpack.c.l.b16 %v8688
    %v8949 = vunpack.c.l.b16 %v8689
    %v8950 = vunpack.c.l.b16 %v8690
    %v8951 = vunpack.c.l.b16 %v8691
    %v8952 = vunpack.c.l.b16 %v8692
    %v8953 = vunpack.c.l.b16 %v8693
    %v8954 = vunpack.c.l.b16 %v8694
    %v8955 = vunpack.c.l.b16 %v8695
    %v8956 = vunpack.c.l.b16 %v8696
    %v8957 = vunpack.c.l.b16 %v8697
    %v8958 = vunpack.c.l.b16 %v8698
    %v8959 = vunpack.c.l.b16 %v8699
    %v8960 = vunpack.c.l.b16 %v8700
    %v8961 = vunpack.c.l.b16 %v8701
    %v8962 = vunpack.c.l.b16 %v8702
    %v8963 = vunpack.c.l.b16 %v8703
    %v8964 = vunpack.c.l.b16 %v8704
    %v8965 = vunpack.c.l.b16 %v8705
    %v8966 = vunpack.c.l.b16 %v8706
    %v8967 = vunpack.c.l.b16 %v8707
    %v8968 = vunpack.c.l.b16 %v8708
    %v8969 = vunpack.c.l.b16 %v8709
    %v8970 = vunpack.c.l.b16 %v8710
    %v8971 = vunpack.c.l.b16 %v8711
    %v8972 = vunpack.c.l.b16 %v8712
    %v8973 = vunpack.c.l.b16 %v8713
    %v8974 = vunpack.c.l.b16 %v8714
    %v8975 = vunpack.c.l.b16 %v8715
    %v8976 = vunpack.c.l.b16 %v8716
    %v8977 = vunpack.c.l.b16 %v8717
    %v8978 = vunpack.c.l.b16 %v8718
    %v8979 = vunpack.c.l.b16 %v8719
    %v8980 = vunpack.c.l.b16 %v8720
    %v8981 = vunpack.c.l.b16 %v8721
    %v8982 = vunpack.c.l.b16 %v8722
    %v8983 = vunpack.c.l.b16 %v8723
    %v8984 = vunpack.c.l.b16 %v8724
    %v8985 = vunpack.c.l.b16 %v8725
    %v8986 = vunpack.c.l.b16 %v8726
    %v8987 = vunpack.c.l.b16 %v8727
    %v8988 = vunpack.c.l.b16 %v8728
    %v8989 = vunpack.c.l.b16 %v8729
    %v8990 = vunpack.c.l.b16 %v8730
    %v8991 = vunpack.c.l.b16 %v8731
    %v8992 = vunpack.c.l.b16 %v8732
    %v8993 = vunpack.c.l.b16 %v8733
    %v8994 = vunpack.c.l.b16 %v8734
    %v8995 = vunpack.c.l.b16 %v8735
    %v8996 = vunpack.c.l.b16 %v8736
    %v8997 = vunpack.c.l.b16 %v8737
    %v8998 = vunpack.c.l.b16 %v8738
    %v8999 = vunpack.c.l.b16 %v8739
    %v9000 = vunpack.c.l.b16 %v8740
    %v9001 = vunpack.c.l.b16 %v8741
    %v9002 = vunpack.c.l.b16 %v8742
    %v9003 = vunpack.c.l.b16 %v8743
    %v9004 = vunpack.c.l.b16 %v8744
    %v9005 = vunpack.c.l.b16 %v8745
    %v9006 = vunpack.c.l.b16 %v8746
    %v9007 = vunpack.c.l.b16 %v8747
    %v9008 = vunpack.c.l.b16 %v8748
    %v9009 = vunpack.c.l.b16 %v8749
    %v9010 = vunpack.c.l.b16 %v8750
    %v9011 = vunpack.c.l.b16 %v8751
    %v9012 = vunpack.c.l.b16 %v8752
    %v9013 = vunpack.c.l.b16 %v8753
    %v9014 = vunpack.c.l.b16 %v8754
    %v9015 = vunpack.c.l.b16 %v8755
    %v9016 = vunpack.c.l.b16 %v8756
    %v9017 = vunpack.c.l.b16 %v8757
    %v9018 = vunpack.c.l.b16 %v8758
    %v9019 = vunpack.c.l.b16 %v8759
    %v9020 = vunpack.c.l.b16 %v8760
    %v9021 = vunpack.c.l.b16 %v8761
    %v9022 = vunpack.c.l.b16 %v8762
    %v9023 = vunpack.c.l.b16 %v8763
    %v9024 = vunpack.c.l.b16 %v8764
    %v9025 = vunpack.c.l.b16 %v8765
    %v9026 = vunpack.c.l.b16 %v8766
    %v9027 = vunpack.c.l.b16 %v8767
    %v9028 = vunpack.c.l.b16 %v8768
    %v9029 = vunpack.c.l.b16 %v8769
    %v9030 = vunpack.c.l.b16 %v8770
    %v9031 = vunpack.c.l.b16 %v8771
    %v9032 = vunpack.c.l.b16 %v8772
    %v9033 = vunpack.c.l.b16 %v8773
    %v9034 = vunpack.c.l.b16 %v8774
    %v9035 = vunpack.c.l.b16 %v8775
    %v9036 = vunpack.c.l.b16 %v8776
    %v9037 = vunpack.c.l.b16 %v8777
    %v9038 = vunpack.c.l.b16 %v8778
    %v9039 = vunpack.c.l.b16 %v8779
    %v9040 = vunpack.c.l.b16 %v8780
    %v9041 = vunpack.c.l.b16 %v8781
    %v9042 = vunpack.c.l.b16 %v8782
    %v9043 = vunpack.c.l.b16 %v8783
    %v9044 = vunpack.c.l.b16 %v8784
    %v9045 = vunpack.c.l.b16 %v8785
    %v9046 = vunpack.c.l.b16 %v8786
    %v9047 = vunpack.c.l.b16 %v8787
    %v9048 = vunpack.c.l.b16 %v8788
    %v9049 = vunpack.c.l.b16 %v8789
    %v9050 = vunpack.c.l.b16 %v8790
    %v9051 = vunpack.c.l.b16 %v8791
    %v9052 = vunpack.c.l.b16 %v8792
    %v9053 = vunpack.c.l.b16 %v8793
    %v9054 = vunpack.c.l.b16 %v8794
    %v9055 = vunpack.c.l.b16 %v8795
    %v9056 = vunpack.c.l.b16 %v8796
    %v9057 = vunpack.c.l.b16 %v8797
    %v9058 = vunpack.c.l.b16 %v8798
    %v9059 = vunpack.c.l.b16 %v8799
    %v9060 = vunpack.c.l.b16 %v8800
    %v9061 = vunpack.c.l.b16 %v8801
    %v9062 = vunpack.c.l.b16 %v8802
    %v9063 = vunpack.c.l.b16 %v8803
    %v9064 = vunpack.c.l.b16 %v8804
    %v9065 = vunpack.c.l.b16 %v8805
    %v9066 = vunpack.c.l.b16 %v8806
    %v9067 = vunpack.c.l.b16 %v8807
    %v9068 = vunpack.c.l.b16 %v8808
    %9069 = vset.pattern.permute.xlu0 0
    %9070 = vperm.xlu0 %9069, %v8941
    %v9071 = vpop.permute.xlu0 %9070
    %9072 = vset.pattern.permute.xlu0 0
    %9073 = vperm.xlu0 %9072, %v8942
    %v9074 = vpop.permute.xlu0 %9073
    %9075 = vset.pattern.permute.xlu0 0
    %9076 = vperm.xlu0 %9075, %v8943
    %v9077 = vpop.permute.xlu0 %9076
    %9078 = vset.pattern.permute.xlu0 0
    %9079 = vperm.xlu0 %9078, %v8944
    %v9080 = vpop.permute.xlu0 %9079
    %9081 = vset.pattern.permute.xlu0 0
    %9082 = vperm.xlu0 %9081, %v8945
    %v9083 = vpop.permute.xlu0 %9082
    %9084 = vset.pattern.permute.xlu0 0
    %9085 = vperm.xlu0 %9084, %v8946
    %v9086 = vpop.permute.xlu0 %9085
    %9087 = vset.pattern.permute.xlu0 0
    %9088 = vperm.xlu0 %9087, %v8947
    %v9089 = vpop.permute.xlu0 %9088
    %9090 = vset.pattern.permute.xlu0 0
    %9091 = vperm.xlu0 %9090, %v8948
    %v9092 = vpop.permute.xlu0 %9091
    %9093 = vset.pattern.permute.xlu0 0
    %9094 = vperm.xlu0 %9093, %v8949
    %v9095 = vpop.permute.xlu0 %9094
    %9096 = vset.pattern.permute.xlu0 0
    %9097 = vperm.xlu0 %9096, %v8950
    %v9098 = vpop.permute.xlu0 %9097
    %9099 = vset.pattern.permute.xlu0 0
    %9100 = vperm.xlu0 %9099, %v8951
    %v9101 = vpop.permute.xlu0 %9100
    %9102 = vset.pattern.permute.xlu0 0
    %9103 = vperm.xlu0 %9102, %v8952
    %v9104 = vpop.permute.xlu0 %9103
    %9105 = vset.pattern.permute.xlu0 0
    %9106 = vperm.xlu0 %9105, %v8953
    %v9107 = vpop.permute.xlu0 %9106
    %9108 = vset.pattern.permute.xlu0 0
    %9109 = vperm.xlu0 %9108, %v8954
    %v9110 = vpop.permute.xlu0 %9109
    %9111 = vset.pattern.permute.xlu0 0
    %9112 = vperm.xlu0 %9111, %v8955
    %v9113 = vpop.permute.xlu0 %9112
    %9114 = vset.pattern.permute.xlu0 0
    %9115 = vperm.xlu0 %9114, %v8956
    %v9116 = vpop.permute.xlu0 %9115
    %9117 = vset.pattern.permute.xlu0 0
    %9118 = vperm.xlu0 %9117, %v8957
    %v9119 = vpop.permute.xlu0 %9118
    %9120 = vset.pattern.permute.xlu0 0
    %9121 = vperm.xlu0 %9120, %v8958
    %v9122 = vpop.permute.xlu0 %9121
    %9123 = vset.pattern.permute.xlu0 0
    %9124 = vperm.xlu0 %9123, %v8959
    %v9125 = vpop.permute.xlu0 %9124
    %9126 = vset.pattern.permute.xlu0 0
    %9127 = vperm.xlu0 %9126, %v8960
    %v9128 = vpop.permute.xlu0 %9127
    %9129 = vset.pattern.permute.xlu0 0
    %9130 = vperm.xlu0 %9129, %v8961
    %v9131 = vpop.permute.xlu0 %9130
    %9132 = vset.pattern.permute.xlu0 0
    %9133 = vperm.xlu0 %9132, %v8962
    %v9134 = vpop.permute.xlu0 %9133
    %9135 = vset.pattern.permute.xlu0 0
    %9136 = vperm.xlu0 %9135, %v8963
    %v9137 = vpop.permute.xlu0 %9136
    %9138 = vset.pattern.permute.xlu0 0
    %9139 = vperm.xlu0 %9138, %v8964
    %v9140 = vpop.permute.xlu0 %9139
    %9141 = vset.pattern.permute.xlu0 0
    %9142 = vperm.xlu0 %9141, %v8965
    %v9143 = vpop.permute.xlu0 %9142
    %9144 = vset.pattern.permute.xlu0 0
    %9145 = vperm.xlu0 %9144, %v8966
    %v9146 = vpop.permute.xlu0 %9145
    %9147 = vset.pattern.permute.xlu0 0
    %9148 = vperm.xlu0 %9147, %v8967
    %v9149 = vpop.permute.xlu0 %9148
    %9150 = vset.pattern.permute.xlu0 0
    %9151 = vperm.xlu0 %9150, %v8968
    %v9152 = vpop.permute.xlu0 %9151
    %9153 = vset.pattern.permute.xlu0 0
    %9154 = vperm.xlu0 %9153, %v8969
    %v9155 = vpop.permute.xlu0 %9154
    %9156 = vset.pattern.permute.xlu0 0
    %9157 = vperm.xlu0 %9156, %v8970
    %v9158 = vpop.permute.xlu0 %9157
    %9159 = vset.pattern.permute.xlu0 0
    %9160 = vperm.xlu0 %9159, %v8971
    %v9161 = vpop.permute.xlu0 %9160
    %9162 = vset.pattern.permute.xlu0 0
    %9163 = vperm.xlu0 %9162, %v8972
    %v9164 = vpop.permute.xlu0 %9163
    %9165 = vset.pattern.permute.xlu0 0
    %9166 = vperm.xlu0 %9165, %v8973
    %v9167 = vpop.permute.xlu0 %9166
    %9168 = vset.pattern.permute.xlu0 0
    %9169 = vperm.xlu0 %9168, %v8974
    %v9170 = vpop.permute.xlu0 %9169
    %9171 = vset.pattern.permute.xlu0 0
    %9172 = vperm.xlu0 %9171, %v8975
    %v9173 = vpop.permute.xlu0 %9172
    %9174 = vset.pattern.permute.xlu0 0
    %9175 = vperm.xlu0 %9174, %v8976
    %v9176 = vpop.permute.xlu0 %9175
    %9177 = vset.pattern.permute.xlu0 0
    %9178 = vperm.xlu0 %9177, %v8977
    %v9179 = vpop.permute.xlu0 %9178
    %9180 = vset.pattern.permute.xlu0 0
    %9181 = vperm.xlu0 %9180, %v8978
    %v9182 = vpop.permute.xlu0 %9181
    %9183 = vset.pattern.permute.xlu0 0
    %9184 = vperm.xlu0 %9183, %v8979
    %v9185 = vpop.permute.xlu0 %9184
    %9186 = vset.pattern.permute.xlu0 0
    %9187 = vperm.xlu0 %9186, %v8980
    %v9188 = vpop.permute.xlu0 %9187
    %9189 = vset.pattern.permute.xlu0 0
    %9190 = vperm.xlu0 %9189, %v8981
    %v9191 = vpop.permute.xlu0 %9190
    %9192 = vset.pattern.permute.xlu0 0
    %9193 = vperm.xlu0 %9192, %v8982
    %v9194 = vpop.permute.xlu0 %9193
    %9195 = vset.pattern.permute.xlu0 0
    %9196 = vperm.xlu0 %9195, %v8983
    %v9197 = vpop.permute.xlu0 %9196
    %9198 = vset.pattern.permute.xlu0 0
    %9199 = vperm.xlu0 %9198, %v8984
    %v9200 = vpop.permute.xlu0 %9199
    %9201 = vset.pattern.permute.xlu0 0
    %9202 = vperm.xlu0 %9201, %v8985
    %v9203 = vpop.permute.xlu0 %9202
    %9204 = vset.pattern.permute.xlu0 0
    %9205 = vperm.xlu0 %9204, %v8986
    %v9206 = vpop.permute.xlu0 %9205
    %9207 = vset.pattern.permute.xlu0 0
    %9208 = vperm.xlu0 %9207, %v8987
    %v9209 = vpop.permute.xlu0 %9208
    %9210 = vset.pattern.permute.xlu0 0
    %9211 = vperm.xlu0 %9210, %v8988
    %v9212 = vpop.permute.xlu0 %9211
    %9213 = vset.pattern.permute.xlu0 0
    %9214 = vperm.xlu0 %9213, %v8989
    %v9215 = vpop.permute.xlu0 %9214
    %9216 = vset.pattern.permute.xlu0 0
    %9217 = vperm.xlu0 %9216, %v8990
    %v9218 = vpop.permute.xlu0 %9217
    %9219 = vset.pattern.permute.xlu0 0
    %9220 = vperm.xlu0 %9219, %v8991
    %v9221 = vpop.permute.xlu0 %9220
    %9222 = vset.pattern.permute.xlu0 0
    %9223 = vperm.xlu0 %9222, %v8992
    %v9224 = vpop.permute.xlu0 %9223
    %9225 = vset.pattern.permute.xlu0 0
    %9226 = vperm.xlu0 %9225, %v8993
    %v9227 = vpop.permute.xlu0 %9226
    %9228 = vset.pattern.permute.xlu0 0
    %9229 = vperm.xlu0 %9228, %v8994
    %v9230 = vpop.permute.xlu0 %9229
    %9231 = vset.pattern.permute.xlu0 0
    %9232 = vperm.xlu0 %9231, %v8995
    %v9233 = vpop.permute.xlu0 %9232
    %9234 = vset.pattern.permute.xlu0 0
    %9235 = vperm.xlu0 %9234, %v8996
    %v9236 = vpop.permute.xlu0 %9235
    %9237 = vset.pattern.permute.xlu0 0
    %9238 = vperm.xlu0 %9237, %v8997
    %v9239 = vpop.permute.xlu0 %9238
    %9240 = vset.pattern.permute.xlu0 0
    %9241 = vperm.xlu0 %9240, %v8998
    %v9242 = vpop.permute.xlu0 %9241
    %9243 = vset.pattern.permute.xlu0 0
    %9244 = vperm.xlu0 %9243, %v8999
    %v9245 = vpop.permute.xlu0 %9244
    %9246 = vset.pattern.permute.xlu0 0
    %9247 = vperm.xlu0 %9246, %v9000
    %v9248 = vpop.permute.xlu0 %9247
    %9249 = vset.pattern.permute.xlu0 0
    %9250 = vperm.xlu0 %9249, %v9001
    %v9251 = vpop.permute.xlu0 %9250
    %9252 = vset.pattern.permute.xlu0 0
    %9253 = vperm.xlu0 %9252, %v9002
    %v9254 = vpop.permute.xlu0 %9253
    %9255 = vset.pattern.permute.xlu0 0
    %9256 = vperm.xlu0 %9255, %v9003
    %v9257 = vpop.permute.xlu0 %9256
    %9258 = vset.pattern.permute.xlu0 0
    %9259 = vperm.xlu0 %9258, %v9004
    %v9260 = vpop.permute.xlu0 %9259
    %9261 = vset.pattern.permute.xlu0 0
    %9262 = vperm.xlu0 %9261, %v9005
    %v9263 = vpop.permute.xlu0 %9262
    %9264 = vset.pattern.permute.xlu0 0
    %9265 = vperm.xlu0 %9264, %v9006
    %v9266 = vpop.permute.xlu0 %9265
    %9267 = vset.pattern.permute.xlu0 0
    %9268 = vperm.xlu0 %9267, %v9007
    %v9269 = vpop.permute.xlu0 %9268
    %9270 = vset.pattern.permute.xlu0 0
    %9271 = vperm.xlu0 %9270, %v9008
    %v9272 = vpop.permute.xlu0 %9271
    %9273 = vset.pattern.permute.xlu0 0
    %9274 = vperm.xlu0 %9273, %v9009
    %v9275 = vpop.permute.xlu0 %9274
    %9276 = vset.pattern.permute.xlu0 0
    %9277 = vperm.xlu0 %9276, %v9010
    %v9278 = vpop.permute.xlu0 %9277
    %9279 = vset.pattern.permute.xlu0 0
    %9280 = vperm.xlu0 %9279, %v9011
    %v9281 = vpop.permute.xlu0 %9280
    %9282 = vset.pattern.permute.xlu0 0
    %9283 = vperm.xlu0 %9282, %v9012
    %v9284 = vpop.permute.xlu0 %9283
    %9285 = vset.pattern.permute.xlu0 0
    %9286 = vperm.xlu0 %9285, %v9013
    %v9287 = vpop.permute.xlu0 %9286
    %9288 = vset.pattern.permute.xlu0 0
    %9289 = vperm.xlu0 %9288, %v9014
    %v9290 = vpop.permute.xlu0 %9289
    %9291 = vset.pattern.permute.xlu0 0
    %9292 = vperm.xlu0 %9291, %v9015
    %v9293 = vpop.permute.xlu0 %9292
    %9294 = vset.pattern.permute.xlu0 0
    %9295 = vperm.xlu0 %9294, %v9016
    %v9296 = vpop.permute.xlu0 %9295
    %9297 = vset.pattern.permute.xlu0 0
    %9298 = vperm.xlu0 %9297, %v9017
    %v9299 = vpop.permute.xlu0 %9298
    %9300 = vset.pattern.permute.xlu0 0
    %9301 = vperm.xlu0 %9300, %v9018
    %v9302 = vpop.permute.xlu0 %9301
    %9303 = vset.pattern.permute.xlu0 0
    %9304 = vperm.xlu0 %9303, %v9019
    %v9305 = vpop.permute.xlu0 %9304
    %9306 = vset.pattern.permute.xlu0 0
    %9307 = vperm.xlu0 %9306, %v9020
    %v9308 = vpop.permute.xlu0 %9307
    %9309 = vset.pattern.permute.xlu0 0
    %9310 = vperm.xlu0 %9309, %v9021
    %v9311 = vpop.permute.xlu0 %9310
    %9312 = vset.pattern.permute.xlu0 0
    %9313 = vperm.xlu0 %9312, %v9022
    %v9314 = vpop.permute.xlu0 %9313
    %9315 = vset.pattern.permute.xlu0 0
    %9316 = vperm.xlu0 %9315, %v9023
    %v9317 = vpop.permute.xlu0 %9316
    %9318 = vset.pattern.permute.xlu0 0
    %9319 = vperm.xlu0 %9318, %v9024
    %v9320 = vpop.permute.xlu0 %9319
    %9321 = vset.pattern.permute.xlu0 0
    %9322 = vperm.xlu0 %9321, %v9025
    %v9323 = vpop.permute.xlu0 %9322
    %9324 = vset.pattern.permute.xlu0 0
    %9325 = vperm.xlu0 %9324, %v9026
    %v9326 = vpop.permute.xlu0 %9325
    %9327 = vset.pattern.permute.xlu0 0
    %9328 = vperm.xlu0 %9327, %v9027
    %v9329 = vpop.permute.xlu0 %9328
    %9330 = vset.pattern.permute.xlu0 0
    %9331 = vperm.xlu0 %9330, %v9028
    %v9332 = vpop.permute.xlu0 %9331
    %9333 = vset.pattern.permute.xlu0 0
    %9334 = vperm.xlu0 %9333, %v9029
    %v9335 = vpop.permute.xlu0 %9334
    %9336 = vset.pattern.permute.xlu0 0
    %9337 = vperm.xlu0 %9336, %v9030
    %v9338 = vpop.permute.xlu0 %9337
    %9339 = vset.pattern.permute.xlu0 0
    %9340 = vperm.xlu0 %9339, %v9031
    %v9341 = vpop.permute.xlu0 %9340
    %9342 = vset.pattern.permute.xlu0 0
    %9343 = vperm.xlu0 %9342, %v9032
    %v9344 = vpop.permute.xlu0 %9343
    %9345 = vset.pattern.permute.xlu0 0
    %9346 = vperm.xlu0 %9345, %v9033
    %v9347 = vpop.permute.xlu0 %9346
    %9348 = vset.pattern.permute.xlu0 0
    %9349 = vperm.xlu0 %9348, %v9034
    %v9350 = vpop.permute.xlu0 %9349
    %9351 = vset.pattern.permute.xlu0 0
    %9352 = vperm.xlu0 %9351, %v9035
    %v9353 = vpop.permute.xlu0 %9352
    %9354 = vset.pattern.permute.xlu0 0
    %9355 = vperm.xlu0 %9354, %v9036
    %v9356 = vpop.permute.xlu0 %9355
    %9357 = vset.pattern.permute.xlu0 0
    %9358 = vperm.xlu0 %9357, %v9037
    %v9359 = vpop.permute.xlu0 %9358
    %9360 = vset.pattern.permute.xlu0 0
    %9361 = vperm.xlu0 %9360, %v9038
    %v9362 = vpop.permute.xlu0 %9361
    %9363 = vset.pattern.permute.xlu0 0
    %9364 = vperm.xlu0 %9363, %v9039
    %v9365 = vpop.permute.xlu0 %9364
    %9366 = vset.pattern.permute.xlu0 0
    %9367 = vperm.xlu0 %9366, %v9040
    %v9368 = vpop.permute.xlu0 %9367
    %9369 = vset.pattern.permute.xlu0 0
    %9370 = vperm.xlu0 %9369, %v9041
    %v9371 = vpop.permute.xlu0 %9370
    %9372 = vset.pattern.permute.xlu0 0
    %9373 = vperm.xlu0 %9372, %v9042
    %v9374 = vpop.permute.xlu0 %9373
    %9375 = vset.pattern.permute.xlu0 0
    %9376 = vperm.xlu0 %9375, %v9043
    %v9377 = vpop.permute.xlu0 %9376
    %9378 = vset.pattern.permute.xlu0 0
    %9379 = vperm.xlu0 %9378, %v9044
    %v9380 = vpop.permute.xlu0 %9379
    %9381 = vset.pattern.permute.xlu0 0
    %9382 = vperm.xlu0 %9381, %v9045
    %v9383 = vpop.permute.xlu0 %9382
    %9384 = vset.pattern.permute.xlu0 0
    %9385 = vperm.xlu0 %9384, %v9046
    %v9386 = vpop.permute.xlu0 %9385
    %9387 = vset.pattern.permute.xlu0 0
    %9388 = vperm.xlu0 %9387, %v9047
    %v9389 = vpop.permute.xlu0 %9388
    %9390 = vset.pattern.permute.xlu0 0
    %9391 = vperm.xlu0 %9390, %v9048
    %v9392 = vpop.permute.xlu0 %9391
    %9393 = vset.pattern.permute.xlu0 0
    %9394 = vperm.xlu0 %9393, %v9049
    %v9395 = vpop.permute.xlu0 %9394
    %9396 = vset.pattern.permute.xlu0 0
    %9397 = vperm.xlu0 %9396, %v9050
    %v9398 = vpop.permute.xlu0 %9397
    %9399 = vset.pattern.permute.xlu0 0
    %9400 = vperm.xlu0 %9399, %v9051
    %v9401 = vpop.permute.xlu0 %9400
    %9402 = vset.pattern.permute.xlu0 0
    %9403 = vperm.xlu0 %9402, %v9052
    %v9404 = vpop.permute.xlu0 %9403
    %9405 = vset.pattern.permute.xlu0 0
    %9406 = vperm.xlu0 %9405, %v9053
    %v9407 = vpop.permute.xlu0 %9406
    %9408 = vset.pattern.permute.xlu0 0
    %9409 = vperm.xlu0 %9408, %v9054
    %v9410 = vpop.permute.xlu0 %9409
    %9411 = vset.pattern.permute.xlu0 0
    %9412 = vperm.xlu0 %9411, %v9055
    %v9413 = vpop.permute.xlu0 %9412
    %9414 = vset.pattern.permute.xlu0 0
    %9415 = vperm.xlu0 %9414, %v9056
    %v9416 = vpop.permute.xlu0 %9415
    %9417 = vset.pattern.permute.xlu0 0
    %9418 = vperm.xlu0 %9417, %v9057
    %v9419 = vpop.permute.xlu0 %9418
    %9420 = vset.pattern.permute.xlu0 0
    %9421 = vperm.xlu0 %9420, %v9058
    %v9422 = vpop.permute.xlu0 %9421
    %9423 = vset.pattern.permute.xlu0 0
    %9424 = vperm.xlu0 %9423, %v9059
    %v9425 = vpop.permute.xlu0 %9424
    %9426 = vset.pattern.permute.xlu0 0
    %9427 = vperm.xlu0 %9426, %v9060
    %v9428 = vpop.permute.xlu0 %9427
    %9429 = vset.pattern.permute.xlu0 0
    %9430 = vperm.xlu0 %9429, %v9061
    %v9431 = vpop.permute.xlu0 %9430
    %9432 = vset.pattern.permute.xlu0 0
    %9433 = vperm.xlu0 %9432, %v9062
    %v9434 = vpop.permute.xlu0 %9433
    %9435 = vset.pattern.permute.xlu0 0
    %9436 = vperm.xlu0 %9435, %v9063
    %v9437 = vpop.permute.xlu0 %9436
    %9438 = vset.pattern.permute.xlu0 0
    %9439 = vperm.xlu0 %9438, %v9064
    %v9440 = vpop.permute.xlu0 %9439
    %9441 = vset.pattern.permute.xlu0 0
    %9442 = vperm.xlu0 %9441, %v9065
    %v9443 = vpop.permute.xlu0 %9442
    %9444 = vset.pattern.permute.xlu0 0
    %9445 = vperm.xlu0 %9444, %v9066
    %v9446 = vpop.permute.xlu0 %9445
    %9447 = vset.pattern.permute.xlu0 0
    %9448 = vperm.xlu0 %9447, %v9067
    %v9449 = vpop.permute.xlu0 %9448
    %9450 = vset.pattern.permute.xlu0 0
    %9451 = vperm.xlu0 %9450, %v9068
    %v9452 = vpop.permute.xlu0 %9451
    %v9453 = vperm.slane %v9071, %v6225
    %v9454 = vperm.slane %v9074, %v6225
    %v9455 = vperm.slane %v9077, %v6225
    %v9456 = vperm.slane %v9080, %v6225
    %v9457 = vperm.slane %v9083, %v6225
    %v9458 = vperm.slane %v9086, %v6225
    %v9459 = vperm.slane %v9089, %v6225
    %v9460 = vperm.slane %v9092, %v6225
    %v9461 = vperm.slane %v9095, %v6225
    %v9462 = vperm.slane %v9098, %v6225
    %v9463 = vperm.slane %v9101, %v6225
    %v9464 = vperm.slane %v9104, %v6225
    %v9465 = vperm.slane %v9107, %v6225
    %v9466 = vperm.slane %v9110, %v6225
    %v9467 = vperm.slane %v9113, %v6225
    %v9468 = vperm.slane %v9116, %v6225
    %v9469 = vperm.slane %v9119, %v6225
    %v9470 = vperm.slane %v9122, %v6225
    %v9471 = vperm.slane %v9125, %v6225
    %v9472 = vperm.slane %v9128, %v6225
    %v9473 = vperm.slane %v9131, %v6225
    %v9474 = vperm.slane %v9134, %v6225
    %v9475 = vperm.slane %v9137, %v6225
    %v9476 = vperm.slane %v9140, %v6225
    %v9477 = vperm.slane %v9143, %v6225
    %v9478 = vperm.slane %v9146, %v6225
    %v9479 = vperm.slane %v9149, %v6225
    %v9480 = vperm.slane %v9152, %v6225
    %v9481 = vperm.slane %v9155, %v6225
    %v9482 = vperm.slane %v9158, %v6225
    %v9483 = vperm.slane %v9161, %v6225
    %v9484 = vperm.slane %v9164, %v6225
    %v9485 = vperm.slane %v9167, %v6225
    %v9486 = vperm.slane %v9170, %v6225
    %v9487 = vperm.slane %v9173, %v6225
    %v9488 = vperm.slane %v9176, %v6225
    %v9489 = vperm.slane %v9179, %v6225
    %v9490 = vperm.slane %v9182, %v6225
    %v9491 = vperm.slane %v9185, %v6225
    %v9492 = vperm.slane %v9188, %v6225
    %v9493 = vperm.slane %v9191, %v6225
    %v9494 = vperm.slane %v9194, %v6225
    %v9495 = vperm.slane %v9197, %v6225
    %v9496 = vperm.slane %v9200, %v6225
    %v9497 = vperm.slane %v9203, %v6225
    %v9498 = vperm.slane %v9206, %v6225
    %v9499 = vperm.slane %v9209, %v6225
    %v9500 = vperm.slane %v9212, %v6225
    %v9501 = vperm.slane %v9215, %v6225
    %v9502 = vperm.slane %v9218, %v6225
    %v9503 = vperm.slane %v9221, %v6225
    %v9504 = vperm.slane %v9224, %v6225
    %v9505 = vperm.slane %v9227, %v6225
    %v9506 = vperm.slane %v9230, %v6225
    %v9507 = vperm.slane %v9233, %v6225
    %v9508 = vperm.slane %v9236, %v6225
    %v9509 = vperm.slane %v9239, %v6225
    %v9510 = vperm.slane %v9242, %v6225
    %v9511 = vperm.slane %v9245, %v6225
    %v9512 = vperm.slane %v9248, %v6225
    %v9513 = vperm.slane %v9251, %v6225
    %v9514 = vperm.slane %v9254, %v6225
    %v9515 = vperm.slane %v9257, %v6225
    %v9516 = vperm.slane %v9260, %v6225
    %v9517 = vperm.slane %v9263, %v6225
    %v9518 = vperm.slane %v9266, %v6225
    %v9519 = vperm.slane %v9269, %v6225
    %v9520 = vperm.slane %v9272, %v6225
    %v9521 = vperm.slane %v9275, %v6225
    %v9522 = vperm.slane %v9278, %v6225
    %v9523 = vperm.slane %v9281, %v6225
    %v9524 = vperm.slane %v9284, %v6225
    %v9525 = vperm.slane %v9287, %v6225
    %v9526 = vperm.slane %v9290, %v6225
    %v9527 = vperm.slane %v9293, %v6225
    %v9528 = vperm.slane %v9296, %v6225
    %v9529 = vperm.slane %v9299, %v6225
    %v9530 = vperm.slane %v9302, %v6225
    %v9531 = vperm.slane %v9305, %v6225
    %v9532 = vperm.slane %v9308, %v6225
    %v9533 = vperm.slane %v9311, %v6225
    %v9534 = vperm.slane %v9314, %v6225
    %v9535 = vperm.slane %v9317, %v6225
    %v9536 = vperm.slane %v9320, %v6225
    %v9537 = vperm.slane %v9323, %v6225
    %v9538 = vperm.slane %v9326, %v6225
    %v9539 = vperm.slane %v9329, %v6225
    %v9540 = vperm.slane %v9332, %v6225
    %v9541 = vperm.slane %v9335, %v6225
    %v9542 = vperm.slane %v9338, %v6225
    %v9543 = vperm.slane %v9341, %v6225
    %v9544 = vperm.slane %v9344, %v6225
    %v9545 = vperm.slane %v9347, %v6225
    %v9546 = vperm.slane %v9350, %v6225
    %v9547 = vperm.slane %v9353, %v6225
    %v9548 = vperm.slane %v9356, %v6225
    %v9549 = vperm.slane %v9359, %v6225
    %v9550 = vperm.slane %v9362, %v6225
    %v9551 = vperm.slane %v9365, %v6225
    %v9552 = vperm.slane %v9368, %v6225
    %v9553 = vperm.slane %v9371, %v6225
    %v9554 = vperm.slane %v9374, %v6225
    %v9555 = vperm.slane %v9377, %v6225
    %v9556 = vperm.slane %v9380, %v6225
    %v9557 = vperm.slane %v9383, %v6225
    %v9558 = vperm.slane %v9386, %v6225
    %v9559 = vperm.slane %v9389, %v6225
    %v9560 = vperm.slane %v9392, %v6225
    %v9561 = vperm.slane %v9395, %v6225
    %v9562 = vperm.slane %v9398, %v6225
    %v9563 = vperm.slane %v9401, %v6225
    %v9564 = vperm.slane %v9404, %v6225
    %v9565 = vperm.slane %v9407, %v6225
    %v9566 = vperm.slane %v9410, %v6225
    %v9567 = vperm.slane %v9413, %v6225
    %v9568 = vperm.slane %v9416, %v6225
    %v9569 = vperm.slane %v9419, %v6225
    %v9570 = vperm.slane %v9422, %v6225
    %v9571 = vperm.slane %v9425, %v6225
    %v9572 = vperm.slane %v9428, %v6225
    %v9573 = vperm.slane %v9431, %v6225
    %v9574 = vperm.slane %v9434, %v6225
    %v9575 = vperm.slane %v9437, %v6225
    %v9576 = vperm.slane %v9440, %v6225
    %v9577 = vperm.slane %v9443, %v6225
    %v9578 = vperm.slane %v9446, %v6225
    %v9579 = vperm.slane %v9449, %v6225
    %v9580 = vperm.slane %v9452, %v6225
    %v9581 = vsel %vm6270, %v9454, %v9453
    %v9582 = vsel %vm6887, %v9455, %v9581
    %v9583 = vsel %vm6889, %v9456, %v9582
    %v9584 = vsel %vm6891, %v9457, %v9583
    %v9585 = vsel %vm6893, %v9458, %v9584
    %v9586 = vsel %vm6895, %v9459, %v9585
    %v9587 = vsel %vm6897, %v9460, %v9586
    %v9588 = vsel %vm6270, %v9462, %v9461
    %v9589 = vsel %vm6887, %v9463, %v9588
    %v9590 = vsel %vm6889, %v9464, %v9589
    %v9591 = vsel %vm6891, %v9465, %v9590
    %v9592 = vsel %vm6893, %v9466, %v9591
    %v9593 = vsel %vm6895, %v9467, %v9592
    %v9594 = vsel %vm6897, %v9468, %v9593
    %v9595 = vsel %vm6270, %v9470, %v9469
    %v9596 = vsel %vm6887, %v9471, %v9595
    %v9597 = vsel %vm6889, %v9472, %v9596
    %v9598 = vsel %vm6891, %v9473, %v9597
    %v9599 = vsel %vm6893, %v9474, %v9598
    %v9600 = vsel %vm6895, %v9475, %v9599
    %v9601 = vsel %vm6897, %v9476, %v9600
    %v9602 = vsel %vm6270, %v9478, %v9477
    %v9603 = vsel %vm6887, %v9479, %v9602
    %v9604 = vsel %vm6889, %v9480, %v9603
    %v9605 = vsel %vm6891, %v9481, %v9604
    %v9606 = vsel %vm6893, %v9482, %v9605
    %v9607 = vsel %vm6895, %v9483, %v9606
    %v9608 = vsel %vm6897, %v9484, %v9607
    %v9609 = vsel %vm6270, %v9486, %v9485
    %v9610 = vsel %vm6887, %v9487, %v9609
    %v9611 = vsel %vm6889, %v9488, %v9610
    %v9612 = vsel %vm6891, %v9489, %v9611
    %v9613 = vsel %vm6893, %v9490, %v9612
    %v9614 = vsel %vm6895, %v9491, %v9613
    %v9615 = vsel %vm6897, %v9492, %v9614
    %v9616 = vsel %vm6270, %v9494, %v9493
    %v9617 = vsel %vm6887, %v9495, %v9616
    %v9618 = vsel %vm6889, %v9496, %v9617
    %v9619 = vsel %vm6891, %v9497, %v9618
    %v9620 = vsel %vm6893, %v9498, %v9619
    %v9621 = vsel %vm6895, %v9499, %v9620
    %v9622 = vsel %vm6897, %v9500, %v9621
    %v9623 = vsel %vm6270, %v9502, %v9501
    %v9624 = vsel %vm6887, %v9503, %v9623
    %v9625 = vsel %vm6889, %v9504, %v9624
    %v9626 = vsel %vm6891, %v9505, %v9625
    %v9627 = vsel %vm6893, %v9506, %v9626
    %v9628 = vsel %vm6895, %v9507, %v9627
    %v9629 = vsel %vm6897, %v9508, %v9628
    %v9630 = vsel %vm6270, %v9510, %v9509
    %v9631 = vsel %vm6887, %v9511, %v9630
    %v9632 = vsel %vm6889, %v9512, %v9631
    %v9633 = vsel %vm6891, %v9513, %v9632
    %v9634 = vsel %vm6893, %v9514, %v9633
    %v9635 = vsel %vm6895, %v9515, %v9634
    %v9636 = vsel %vm6897, %v9516, %v9635
    %v9637 = vsel %vm6270, %v9518, %v9517
    %v9638 = vsel %vm6887, %v9519, %v9637
    %v9639 = vsel %vm6889, %v9520, %v9638
    %v9640 = vsel %vm6891, %v9521, %v9639
    %v9641 = vsel %vm6893, %v9522, %v9640
    %v9642 = vsel %vm6895, %v9523, %v9641
    %v9643 = vsel %vm6897, %v9524, %v9642
    %v9644 = vsel %vm6270, %v9526, %v9525
    %v9645 = vsel %vm6887, %v9527, %v9644
    %v9646 = vsel %vm6889, %v9528, %v9645
    %v9647 = vsel %vm6891, %v9529, %v9646
    %v9648 = vsel %vm6893, %v9530, %v9647
    %v9649 = vsel %vm6895, %v9531, %v9648
    %v9650 = vsel %vm6897, %v9532, %v9649
    %v9651 = vsel %vm6270, %v9534, %v9533
    %v9652 = vsel %vm6887, %v9535, %v9651
    %v9653 = vsel %vm6889, %v9536, %v9652
    %v9654 = vsel %vm6891, %v9537, %v9653
    %v9655 = vsel %vm6893, %v9538, %v9654
    %v9656 = vsel %vm6895, %v9539, %v9655
    %v9657 = vsel %vm6897, %v9540, %v9656
    %v9658 = vsel %vm6270, %v9542, %v9541
    %v9659 = vsel %vm6887, %v9543, %v9658
    %v9660 = vsel %vm6889, %v9544, %v9659
    %v9661 = vsel %vm6891, %v9545, %v9660
    %v9662 = vsel %vm6893, %v9546, %v9661
    %v9663 = vsel %vm6895, %v9547, %v9662
    %v9664 = vsel %vm6897, %v9548, %v9663
    %v9665 = vsel %vm6270, %v9550, %v9549
    %v9666 = vsel %vm6887, %v9551, %v9665
    %v9667 = vsel %vm6889, %v9552, %v9666
    %v9668 = vsel %vm6891, %v9553, %v9667
    %v9669 = vsel %vm6893, %v9554, %v9668
    %v9670 = vsel %vm6895, %v9555, %v9669
    %v9671 = vsel %vm6897, %v9556, %v9670
    %v9672 = vsel %vm6270, %v9558, %v9557
    %v9673 = vsel %vm6887, %v9559, %v9672
    %v9674 = vsel %vm6889, %v9560, %v9673
    %v9675 = vsel %vm6891, %v9561, %v9674
    %v9676 = vsel %vm6893, %v9562, %v9675
    %v9677 = vsel %vm6895, %v9563, %v9676
    %v9678 = vsel %vm6897, %v9564, %v9677
    %v9679 = vsel %vm6270, %v9566, %v9565
    %v9680 = vsel %vm6887, %v9567, %v9679
    %v9681 = vsel %vm6889, %v9568, %v9680
    %v9682 = vsel %vm6891, %v9569, %v9681
    %v9683 = vsel %vm6893, %v9570, %v9682
    %v9684 = vsel %vm6895, %v9571, %v9683
    %v9685 = vsel %vm6897, %v9572, %v9684
    %v9686 = vsel %vm6270, %v9574, %v9573
    %v9687 = vsel %vm6887, %v9575, %v9686
    %v9688 = vsel %vm6889, %v9576, %v9687
    %v9689 = vsel %vm6891, %v9577, %v9688
    %v9690 = vsel %vm6893, %v9578, %v9689
    %v9691 = vsel %vm6895, %v9579, %v9690
    %v9692 = vsel %vm6897, %v9580, %v9691
    %v9693 = vpack.c.b16 %v9594, %v9587
    %v9694 = vpack.c.b16 %v9608, %v9601
    %v9695 = vpack.c.b16 %v9622, %v9615
    %v9696 = vpack.c.b16 %v9636, %v9629
    %v9697 = vpack.c.b16 %v9650, %v9643
    %v9698 = vpack.c.b16 %v9664, %v9657
    %v9699 = vpack.c.b16 %v9678, %v9671
    %v9700 = vpack.c.b16 %v9692, %v9685
    %v9702 = vsel %vm340, %v9693, 0
    %v9705 = vsel %vm340, %v9694, 0
    %v9708 = vsel %vm340, %v9695, 0
    %v9711 = vsel %vm340, %v9696, 0
    %v9714 = vsel %vm340, %v9697, 0
    %v9717 = vsel %vm340, %v9698, 0
    %v9720 = vsel %vm340, %v9699, 0
    %v9723 = vsel %vm340, %v9700, 0
    %vm9725 = vcmask 1043456
    %v9727 = vsel %vm9725, %v8811, 0
    %v9730 = vsel %vm9725, %v8812, 0
    %9732 = vmatpush.bf16.msra.mxu0 0
    %9733 = vmatpush.bf16.msra.mxu0 0
    %9734 = vmatpush.bf16.msra.mxu0 0
    %9735 = vmatpush.bf16.msra.mxu0 0
    %9736 = vmatpush.bf16.msra.mxu0 0
    %9737 = vmatpush.bf16.msra.mxu0 0
    %9738 = vmatpush.bf16.msra.mxu0 0
    %9739 = vmatpush.bf16.msra.mxu0 %v9727
    %9740 = vmatmul.bf16.gmra.mxu0 %v9702
    %v9741 = vpop.f32.mrf.mxu0
    %v9742 = vadd.f32 0.0, %v9741
    %v9743 = vpop.f32.mrf.mxu0
    %v9744 = vadd.f32 0.0, %v9743
    %9745 = vmatmul.bf16.gmra.mxu0 %v9705
    %v9746 = vpop.f32.mrf.mxu0
    %v9747 = vadd.f32 0.0, %v9746
    %v9748 = vpop.f32.mrf.mxu0
    %v9749 = vadd.f32 0.0, %v9748
    %9750 = vmatmul.bf16.gmra.mxu0 %v9708
    %v9751 = vpop.f32.mrf.mxu0
    %v9752 = vadd.f32 0.0, %v9751
    %v9753 = vpop.f32.mrf.mxu0
    %v9754 = vadd.f32 0.0, %v9753
    %9755 = vmatmul.bf16.gmra.mxu0 %v9711
    %v9756 = vpop.f32.mrf.mxu0
    %v9757 = vadd.f32 0.0, %v9756
    %v9758 = vpop.f32.mrf.mxu0
    %v9759 = vadd.f32 0.0, %v9758
    %9760 = vmatmul.bf16.gmra.mxu0 %v9714
    %v9761 = vpop.f32.mrf.mxu0
    %v9762 = vadd.f32 0.0, %v9761
    %v9763 = vpop.f32.mrf.mxu0
    %v9764 = vadd.f32 0.0, %v9763
    %9765 = vmatmul.bf16.gmra.mxu0 %v9717
    %v9766 = vpop.f32.mrf.mxu0
    %v9767 = vadd.f32 0.0, %v9766
    %v9768 = vpop.f32.mrf.mxu0
    %v9769 = vadd.f32 0.0, %v9768
    %9770 = vmatmul.bf16.gmra.mxu0 %v9720
    %v9771 = vpop.f32.mrf.mxu0
    %v9772 = vadd.f32 0.0, %v9771
    %v9773 = vpop.f32.mrf.mxu0
    %v9774 = vadd.f32 0.0, %v9773
    %9775 = vmatmul.bf16.gmra.mxu0 %v9723
    %v9776 = vpop.f32.mrf.mxu0
    %v9777 = vadd.f32 0.0, %v9776
    %v9778 = vpop.f32.mrf.mxu0
    %v9779 = vadd.f32 0.0, %v9778
    %9780 = vdwg.mxu0
    %9781 = vmatpush.bf16.msra.mxu0 0
    %9782 = vmatpush.bf16.msra.mxu0 0
    %9783 = vmatpush.bf16.msra.mxu0 0
    %9784 = vmatpush.bf16.msra.mxu0 0
    %9785 = vmatpush.bf16.msra.mxu0 0
    %9786 = vmatpush.bf16.msra.mxu0 0
    %9787 = vmatpush.bf16.msra.mxu0 0
    %9788 = vmatpush.bf16.msra.mxu0 %v9730
    %9789 = vmatmul.bf16.gmra.mxu0 %v9702
    %v9790 = vpop.f32.mrf.mxu0
    %v9791 = vadd.f32 0.0, %v9790
    %v9792 = vpop.f32.mrf.mxu0
    %v9793 = vadd.f32 0.0, %v9792
    %9794 = vmatmul.bf16.gmra.mxu0 %v9705
    %v9795 = vpop.f32.mrf.mxu0
    %v9796 = vadd.f32 0.0, %v9795
    %v9797 = vpop.f32.mrf.mxu0
    %v9798 = vadd.f32 0.0, %v9797
    %9799 = vmatmul.bf16.gmra.mxu0 %v9708
    %v9800 = vpop.f32.mrf.mxu0
    %v9801 = vadd.f32 0.0, %v9800
    %v9802 = vpop.f32.mrf.mxu0
    %v9803 = vadd.f32 0.0, %v9802
    %9804 = vmatmul.bf16.gmra.mxu0 %v9711
    %v9805 = vpop.f32.mrf.mxu0
    %v9806 = vadd.f32 0.0, %v9805
    %v9807 = vpop.f32.mrf.mxu0
    %v9808 = vadd.f32 0.0, %v9807
    %9809 = vmatmul.bf16.gmra.mxu0 %v9714
    %v9810 = vpop.f32.mrf.mxu0
    %v9811 = vadd.f32 0.0, %v9810
    %v9812 = vpop.f32.mrf.mxu0
    %v9813 = vadd.f32 0.0, %v9812
    %9814 = vmatmul.bf16.gmra.mxu0 %v9717
    %v9815 = vpop.f32.mrf.mxu0
    %v9816 = vadd.f32 0.0, %v9815
    %v9817 = vpop.f32.mrf.mxu0
    %v9818 = vadd.f32 0.0, %v9817
    %9819 = vmatmul.bf16.gmra.mxu0 %v9720
    %v9820 = vpop.f32.mrf.mxu0
    %v9821 = vadd.f32 0.0, %v9820
    %v9822 = vpop.f32.mrf.mxu0
    %v9823 = vadd.f32 0.0, %v9822
    %9824 = vmatmul.bf16.gmra.mxu0 %v9723
    %v9825 = vpop.f32.mrf.mxu0
    %v9826 = vadd.f32 0.0, %v9825
    %v9827 = vpop.f32.mrf.mxu0
    %v9828 = vadd.f32 0.0, %v9827
    %9829 = vdwg.mxu0
    %9830 = vst [vmem:[%s55] sm:$0xff] %v9742
    %9831 = vst [vmem:[%s55 + $0x8] sm:$0xff] %v9791
    %9832 = vst [vmem:[%s55 + $0x10] sm:$0xff] %v9744
    %9833 = vst [vmem:[%s55 + $0x18] sm:$0xff] %v9793
    %9834 = vst [vmem:[%s55 + $0x20] sm:$0xff] %v9747
    %9835 = vst [vmem:[%s55 + $0x28] sm:$0xff] %v9796
    %9836 = vst [vmem:[%s55 + $0x30] sm:$0xff] %v9749
    %9837 = vst [vmem:[%s55 + $0x38] sm:$0xff] %v9798
    %9838 = vst [vmem:[%s55 + $0x40] sm:$0xff] %v9752
    %9839 = vst [vmem:[%s55 + $0x48] sm:$0xff] %v9801
    %9840 = vst [vmem:[%s55 + $0x50] sm:$0xff] %v9754
    %9841 = vst [vmem:[%s55 + $0x58] sm:$0xff] %v9803
    %9842 = vst [vmem:[%s55 + $0x60] sm:$0xff] %v9757
    %9843 = vst [vmem:[%s55 + $0x68] sm:$0xff] %v9806
    %9844 = vst [vmem:[%s55 + $0x70] sm:$0xff] %v9759
    %9845 = vst [vmem:[%s55 + $0x78] sm:$0xff] %v9808
    %9846 = vst [vmem:[%s55 + $0x80] sm:$0xff] %v9762
    %9847 = vst [vmem:[%s55 + $0x88] sm:$0xff] %v9811
    %9848 = vst [vmem:[%s55 + $0x90] sm:$0xff] %v9764
    %9849 = vst [vmem:[%s55 + $0x98] sm:$0xff] %v9813
    %9850 = vst [vmem:[%s55 + $0xa0] sm:$0xff] %v9767
    %9851 = vst [vmem:[%s55 + $0xa8] sm:$0xff] %v9816
    %9852 = vst [vmem:[%s55 + $0xb0] sm:$0xff] %v9769
    %9853 = vst [vmem:[%s55 + $0xb8] sm:$0xff] %v9818
    %9854 = vst [vmem:[%s55 + $0xc0] sm:$0xff] %v9772
    %9855 = vst [vmem:[%s55 + $0xc8] sm:$0xff] %v9821
    %9856 = vst [vmem:[%s55 + $0xd0] sm:$0xff] %v9774
    %9857 = vst [vmem:[%s55 + $0xd8] sm:$0xff] %v9823
    %9858 = vst [vmem:[%s55 + $0xe0] sm:$0xff] %v9777
    %9859 = vst [vmem:[%s55 + $0xe8] sm:$0xff] %v9826
    %9860 = vst [vmem:[%s55 + $0xf0] sm:$0xff] %v9779
    %9861 = vst [vmem:[%s55 + $0xf8] sm:$0xff] %v9828
    // Predicated region
    $region110: #{adaptir_forward.1} parent=1 // pred_check
      _
    $region111: #{adaptir_forward.1} parent=1 // pred_check_branch
      %9863 = sbr.rel (0) target = $region113
    $region112: #{adaptir_forward.1} parent=1 // pred_region
      _
    $region113: #{adaptir_forward.1} parent=1 // pred_fallthru
      _
    // Predicated region
    $region114: #{adaptir_forward.1} parent=1 // pred_check
      _
    $region115: #{adaptir_forward.1} parent=1 // pred_check_branch
      %9865 = sbr.rel (0) target = $region117
    $region116: #{adaptir_forward.1} parent=1 // pred_region
      _
    $region117: #{adaptir_forward.1} parent=1 // pred_fallthru
      _
    // Predicated region
    $region118: #{adaptir_forward.1} parent=1 // pred_check
      _
    $region119: #{adaptir_forward.1} parent=1 // pred_check_branch
      %9867 = sbr.rel (0) target = $region121
    $region120: #{adaptir_forward.1} parent=1 // pred_region
      _
    $region121: #{adaptir_forward.1} parent=1 // pred_fallthru
      _
    // Predicated region
    $region122: #{adaptir_forward.1} parent=1 // pred_check
      _
    $region123: #{adaptir_forward.1} parent=1 // pred_check_branch
      %9869 = sbr.rel (0) target = $region125
    $region124: #{adaptir_forward.1} parent=1 // pred_region
      %9871 = vsyncadd [#allocation7], 0
      %s9873 = sshll.u32 [#allocation6], 4
      %s9874 = int_to_ptr.vmem [resolvable:$true] %s9873
      %s9875 = sshll.u32 %s61, 4
      %s9876 = int_to_ptr.hbm [resolvable:$true] %s9875
      %9878 = dma.vmem_to_hbm [thread:$0]  %s9874, 32, %s9876, [#allocation7]
    $region125: #{adaptir_forward.1} parent=1 // pred_fallthru
      _
    // Predicated region
    $region126: #{adaptir_forward.1} parent=1 // pred_check
      _
    $region127: #{adaptir_forward.1} parent=1 // pred_check_branch
      %9880 = sbr.rel (0) target = $region129
    $region128: #{adaptir_forward.1} parent=1 // pred_region
      _
    $region129: #{adaptir_forward.1} parent=1 // pred_fallthru
      _
    // Predicated region
    $region130: #{adaptir_forward.1} parent=1 // pred_check
      _
    $region131: #{adaptir_forward.1} parent=1 // pred_check_branch
      %9882 = sbr.rel (0) target = $region133
    $region132: #{adaptir_forward.1} parent=1 // pred_region
      _
    $region133: #{adaptir_forward.1} parent=1 // pred_fallthru
      _
    // Predicated region
    $region134: #{adaptir_forward.1} parent=1 // pred_check
      _
    $region135: #{adaptir_forward.1} parent=1 // pred_check_branch
      %9884 = sbr.rel (0) target = $region137
    $region136: #{adaptir_forward.1} parent=1 // pred_region
      _
    $region137: #{adaptir_forward.1} parent=1 // pred_fallthru
      _
    // Predicated region
    $region138: #{adaptir_forward.1} parent=1 // pred_check
      _
    $region139: #{adaptir_forward.1} parent=1 // pred_check_branch
      %9886 = sbr.rel (0) target = $region141
    $region140: #{adaptir_forward.1} parent=1 // pred_region
      %9888 = dma.done [#allocation7], 32
    $region141: #{adaptir_forward.1} parent=1 // pred_fallthru
      _
    %9889 = vsyncpa [#allocation7], 1

</llo_original>
